<compile_context>
chip_gen: v7x
topology: tpu7x:2x2x1
jax: 0.10.0
libtpu: 0.0.40
codegen_flags: <defaults>
</compile_context>

<pallas_src>
import functools

import jax
import jax.numpy as jnp
import numpy as np
from jax.experimental import pallas as pl
from jax.experimental.pallas import tpu as pltpu


def _round_up(n, m):
    return -(-n // m) * m


# ---------------------------------------------------------------------------
# Fused whole-network kernel
# ---------------------------------------------------------------------------

def _convnet_kernel(x_ref,
                    w1_ref, b1_ref,
                    w2_ref, b2_ref,
                    w3_ref, b3_ref,
                    sel1_ref, sel2_ref,
                    fcw_ref, fcb_ref,
                    o_ref, *, spatial, strides, ips, mxu_dtype):
    """Whole SimpleConvNet forward for `ips` images, entirely in VMEM.

    x_ref   : (1, Cin_pad, ips*R1)  zero-padded layer-1 inputs; image i occupies
              lanes [i*R1, (i+1)*R1), flattened with row stride W+2.
    w*_ref  : (Cout, 9*Cin)   conv weights (BN scale folded in), columns
              ordered tap-major / channel-minor.
    b*_ref  : (Cout, 1)       folded conv-bias + BatchNorm bias.
    sel*    : (nm, R_next)    host-built 0/1 scatter matrices: pooled lanes ->
              next layer's zero-padded flat buffer (junk lanes select nothing).
    fcw_ref : (num_classes, 16*Cout3)  FC weight, columns permuted to the
              kernel's (pixel-major, channel-minor) flatten order.
    fcb_ref : (num_classes, 1)
    o_ref   : (ips, num_classes, 1)
    """
    (h1, w1), (h2, w2), (h3, w3) = spatial
    r1, r2, r3 = strides                      # per-image lane strides

    def conv_bias_relu_pool(xT, w_ref, b_ref, h, w, r_in):
        wp = w + 2
        m = (h - 1) * wp + w                   # valid span within one image
        mt = (ips - 1) * r_in + m              # total span across packed images
        xTc = xT.astype(mxu_dtype)
        # im2col: 9 lane-shifted views stacked on the sublane (channel) axis.
        taps = [xTc[:, kh * wp + kw:kh * wp + kw + mt]
                for kh in range(3) for kw in range(3)]
        colT = jnp.concatenate(taps, axis=0)                     # (9*Cin, mt)
        # single merged-K matmul on the MXU + bias (BN folded) + ReLU.
        yT = jnp.dot(w_ref[...], colT, preferred_element_type=jnp.float32)
        yT = jnp.maximum(yT + b_ref[...], 0.0)                   # (Cout, mt)
        # 2x2 stride-2 maxpool: elementwise max of 4 lane-shifted views; the
        # pooled pixel (h2, w2) of image i lands on lane i*r_in + 2*h2*wp + 2*w2.
        nm_t = mt - wp - 1
        mT = jnp.maximum(
            jnp.maximum(yT[:, 0:nm_t], yT[:, 1:nm_t + 1]),
            jnp.maximum(yT[:, wp:wp + nm_t], yT[:, wp + 1:wp + 1 + nm_t]))
        return mT

    def scatter_pooled(mT, sel_ref, h, w, r_in):
        # Per-image 0/1 selection matmul (host-built sel): pooled strided lanes
        # -> next layer's zero-padded flat buffer.  Junk lanes (x >= w and the
        # pooled tail) have all-zero rows in sel, padding columns are all zero.
        wp = w + 2
        nm = (h - 2) * wp + w - 1              # per-image pooled span
        pieces = [jnp.dot(mT[:, i * r_in:i * r_in + nm].astype(mxu_dtype),
                          sel_ref[...], preferred_element_type=jnp.float32)
                  for i in range(ips)]
        return jnp.concatenate(pieces, axis=1)  # (Cout, ips*R_next)

    m1 = conv_bias_relu_pool(x_ref[0], w1_ref, b1_ref, h1, w1, r1)
    x2 = scatter_pooled(m1, sel1_ref, h1, w1, r1)
    m2 = conv_bias_relu_pool(x2, w2_ref, b2_ref, h2, w2, r2)
    x3 = scatter_pooled(m2, sel2_ref, h2, w2, r2)
    m3 = conv_bias_relu_pool(x3, w3_ref, b3_ref, h3, w3, r3)

    # FC per image: flatten the pooled 4x4 map (pixel-major, channel-minor) on
    # the sublane axis; weight columns were pre-permuted to match on the host.
    wp3 = w3 + 2
    for i in range(ips):
        base = i * r3
        pixels = [m3[:, base + 2 * hh * wp3 + 2 * ww:
                        base + 2 * hh * wp3 + 2 * ww + 1]
                  for hh in range(h3 // 2) for ww in range(w3 // 2)]
        p = jnp.concatenate(pixels, axis=0)                      # (16*Cout3, 1)
        out = jnp.dot(fcw_ref[...], p.astype(mxu_dtype),
                      preferred_element_type=jnp.float32) + fcb_ref[...]
        o_ref[i] = out.astype(o_ref.dtype)


# ---------------------------------------------------------------------------
# Host-side helpers (constant scatter matrices / parameter re-layout)
# ---------------------------------------------------------------------------

def _pool_scatter_matrix(h, w, out_width, dtype):
    """(nm, out_width) 0/1 matrix scattering the pooled (h/2, w/2) map from its
    strided lanes into the next layer's zero-padded flat buffer (row stride
    w/2+2).  Columns >= (h/2+2)*(w/2+2) stay zero (lane-alignment padding)."""
    wp, h2, w2 = w + 2, h // 2, w // 2
    wp2 = w2 + 2
    nm = (h - 2) * wp + w - 1
    sel = np.zeros((nm, out_width), np.float32)
    for i in range(h2):
        for j in range(w2):
            sel[2 * i * wp + 2 * j, (i + 1) * wp2 + (j + 1)] = 1.0
    return jnp.asarray(sel, dtype=dtype)


def _full_spec(a):
    return pl.BlockSpec(a.shape, lambda b: (0,) * a.ndim)


# ---------------------------------------------------------------------------
# Forward pass (single fused pallas_call)
# ---------------------------------------------------------------------------

def simple_convnet_forward(x_nchw, params, *, images_per_step=None,
                           mxu_dtype=jnp.float32):
    B, cin, H, W = x_nchw.shape
    num_classes = params["fc_b"].shape[0]

    if images_per_step is None:
        images_per_step = 1
        for cand in (8, 4, 2):                 # keep >= 2 grid steps (v7x: 2 TCs)
            if B % cand == 0 and B // cand >= 2:
                images_per_step = cand
                break
    ips = images_per_step
    assert B % ips == 0
    steps = B // ips

    # Per-image lane strides of the zero-padded flat buffers, rounded up to a
    # multiple of 128 so per-image slices / concats are vreg-aligned.
    r1 = _round_up((H + 2) * (W + 2), 128)
    r2 = _round_up((H // 2 + 2) * (W // 2 + 2), 128)
    r3 = _round_up((H // 4 + 2) * (W // 4 + 2), 128)

    # Layer-1 input: pad channels to a sublane tile, add the 1-pixel halo,
    # flatten, pad lanes to r1, then pack ips images side-by-side on lanes.
    cin_pad = _round_up(cin, 16 if mxu_dtype == jnp.bfloat16 else 8)
    x = jnp.pad(x_nchw, ((0, 0), (0, cin_pad - cin), (1, 1), (1, 1)))
    x = x.reshape(B, cin_pad, (H + 2) * (W + 2))
    x = jnp.pad(x, ((0, 0), (0, 0), (0, r1 - (H + 2) * (W + 2))))
    x = (x.reshape(steps, ips, cin_pad, r1)
          .transpose(0, 2, 1, 3)
          .reshape(steps, cin_pad, ips * r1)
          .astype(mxu_dtype))

    def conv_params(i, cin_p):
        w, scale, bias = params["convs"][i]
        cout = w.shape[-1]
        w = w * scale                                  # fold BN scale into weights
        wpad = jnp.pad(w, ((0, 0), (0, 0), (0, cin_p - w.shape[2]), (0, 0)))
        wt = wpad.reshape(9 * cin_p, cout).T.astype(mxu_dtype)   # (Cout, 9*Cin)
        return wt, bias.reshape(cout, 1).astype(jnp.float32)

    w1t, b1 = conv_params(0, cin_pad)
    w2t, b2 = conv_params(1, params["convs"][1][0].shape[2])
    w3t, b3 = conv_params(2, params["convs"][2][0].shape[2])

    sel1 = _pool_scatter_matrix(H, W, r2, mxu_dtype)
    sel2 = _pool_scatter_matrix(H // 2, W // 2, r3, mxu_dtype)

    # FC weight: PyTorch flatten is channel-major (c*16 + pixel); permute its
    # rows into the kernel's (pixel*Cout3 + c) order and lay classes on rows.
    cout3 = params["convs"][2][0].shape[-1]
    npix = (H // 8) * (W // 8)
    fcwt = (params["fc_w"].reshape(cout3, npix, num_classes)
            .transpose(2, 1, 0).reshape(num_classes, npix * cout3)
            .astype(mxu_dtype))
    fcbt = params["fc_b"].reshape(num_classes, 1).astype(jnp.float32)

    spatial = ((H, W), (H // 2, W // 2), (H // 4, W // 4))
    strides = (r1, r2, r3)

    out = pl.pallas_call(
        functools.partial(_convnet_kernel, spatial=spatial, strides=strides,
                          ips=ips, mxu_dtype=mxu_dtype),
        out_shape=jax.ShapeDtypeStruct((B, num_classes, 1), jnp.float32),
        grid=(steps,),
        in_specs=[
            pl.BlockSpec((1, cin_pad, ips * r1), lambda b: (b, 0, 0)),
            _full_spec(w1t), _full_spec(b1),
            _full_spec(w2t), _full_spec(b2),
            _full_spec(w3t), _full_spec(b3),
            _full_spec(sel1), _full_spec(sel2),
            _full_spec(fcwt), _full_spec(fcbt),
        ],
        out_specs=pl.BlockSpec((ips, num_classes, 1), lambda b: (b, 0, 0)),
        compiler_params=pltpu.CompilerParams(
            dimension_semantics=("parallel",),
            vmem_limit_bytes=32 * 1024 * 1024),
    )(x, w1t, b1, w2t, b2, w3t, b3, sel1, sel2, fcwt, fcbt)
    return out.reshape(B, num_classes)


# ---------------------------------------------------------------------------
# Parameters (deterministic, synthetic) and reference forward
# ---------------------------------------------------------------------------

def init_params(key, input_channels=3, num_classes=10):
    cfg = [(input_channels, 16), (16, 32), (32, 64)]
    eps = 1e-5
    params = {"convs": []}
    for i, (cin, cout) in enumerate(cfg):
        kw, kb, kg, kbe, km, kv = jax.random.split(jax.random.fold_in(key, i), 6)
        fan_in = cin * 9
        w = jax.random.normal(kw, (3, 3, cin, cout), jnp.float32) / jnp.sqrt(fan_in)
        conv_b = 0.1 * jax.random.normal(kb, (cout,), jnp.float32)
        gamma = 1.0 + 0.1 * jax.random.normal(kg, (cout,), jnp.float32)
        beta = 0.1 * jax.random.normal(kbe, (cout,), jnp.float32)
        r_mean = 0.1 * jax.random.normal(km, (cout,), jnp.float32)
        r_var = jax.random.uniform(kv, (cout,), jnp.float32, 0.5, 1.5)
        scale = gamma / jnp.sqrt(r_var + eps)
        bias = (conv_b - r_mean) * scale + beta   # conv bias + BN folded together
        params["convs"].append((w, scale, bias))
    kfw, kfb = jax.random.split(jax.random.fold_in(key, 100), 2)
    fin = 64 * 4 * 4
    params["fc_w"] = jax.random.normal(kfw, (fin, num_classes), jnp.float32) / jnp.sqrt(fin)
    params["fc_b"] = 0.1 * jax.random.normal(kfb, (num_classes,), jnp.float32)
    return params


def reference_forward(x_nchw, params):
    x = jnp.transpose(x_nchw, (0, 2, 3, 1))
    for (w, scale, bias) in params["convs"]:
        x = jax.lax.conv_general_dilated(
            x, w, window_strides=(1, 1), padding="SAME",
            dimension_numbers=("NHWC", "HWIO", "NHWC"))
        x = jnp.maximum(x * scale + bias, 0.0)
        B, H, W, C = x.shape
        x = x.reshape(B, H // 2, 2, W // 2, 2, C).max(axis=(2, 4))
    B = x.shape[0]
    x = jnp.transpose(x, (0, 3, 1, 2)).reshape(B, -1)
    return x @ params["fc_w"] + params["fc_b"]


if __name__ == "__main__":
    key = jax.random.PRNGKey(0)
    kx, kp = jax.random.split(key)
    # NCHW input like the PyTorch module; 32x32 so the final 4x4x64 flatten
    # matches fc.  Batch 4 with 2 images packed per grid step -> 2 parallel
    # grid steps (keeps both v7x TensorCores busy) while exercising the
    # lane-packed multi-image path.
    x = jax.random.normal(kx, (4, 3, 32, 32), jnp.float32)
    params = init_params(kp, input_channels=3, num_classes=10)

    fwd = jax.jit(functools.partial(simple_convnet_forward, images_per_step=2))
    out = jax.block_until_ready(fwd(x, params))

    ref = reference_forward(x, params)
    assert out.shape == (4, 10), out.shape
    assert jnp.allclose(out, ref, rtol=1e-3, atol=1e-3), \
        float(jnp.max(jnp.abs(out - ref)))
    print("KERNEL_OK")
</pallas_src>

<mosaic_0001>
module attributes {stable_mosaic.version = 11 : i64} {
  func.func @_convnet_kernel(%arg0: i32, %arg1: memref<1x8x2560xf32, #tpu.memory_space<vmem>>, %arg2: memref<16x72xf32, #tpu.memory_space<vmem>>, %arg3: memref<16x1xf32, #tpu.memory_space<vmem>>, %arg4: memref<32x144xf32, #tpu.memory_space<vmem>>, %arg5: memref<32x1xf32, #tpu.memory_space<vmem>>, %arg6: memref<64x288xf32, #tpu.memory_space<vmem>>, %arg7: memref<64x1xf32, #tpu.memory_space<vmem>>, %arg8: memref<1051x384xf32, #tpu.memory_space<vmem>>, %arg9: memref<267x128xf32, #tpu.memory_space<vmem>>, %arg10: memref<10x1024xf32, #tpu.memory_space<vmem>>, %arg11: memref<10x1xf32, #tpu.memory_space<vmem>>, %arg12: memref<2x10x1xf32, #tpu.memory_space<vmem>>) attributes {dimension_semantics = [#tpu.dimension_semantics<parallel>], iteration_bounds = array<i64: 2>, scalar_prefetch = 0 : i64, scratch_operands = 0 : i64, tpu.core_type = #tpu.core_type<tc>, window_params = [{transform_indices = @transform_0, window_bounds = array<i64: 1, 8, 2560>}, {pipeline_mode = #tpu.pipeline_mode<synchronous>, transform_indices = @transform_1, window_bounds = array<i64: 16, 72>}, {pipeline_mode = #tpu.pipeline_mode<synchronous>, transform_indices = @transform_2, window_bounds = array<i64: 16, 1>}, {pipeline_mode = #tpu.pipeline_mode<synchronous>, transform_indices = @transform_3, window_bounds = array<i64: 32, 144>}, {pipeline_mode = #tpu.pipeline_mode<synchronous>, transform_indices = @transform_4, window_bounds = array<i64: 32, 1>}, {pipeline_mode = #tpu.pipeline_mode<synchronous>, transform_indices = @transform_5, window_bounds = array<i64: 64, 288>}, {pipeline_mode = #tpu.pipeline_mode<synchronous>, transform_indices = @transform_6, window_bounds = array<i64: 64, 1>}, {pipeline_mode = #tpu.pipeline_mode<synchronous>, transform_indices = @transform_7, window_bounds = array<i64: 1051, 384>}, {pipeline_mode = #tpu.pipeline_mode<synchronous>, transform_indices = @transform_8, window_bounds = array<i64: 267, 128>}, {pipeline_mode = #tpu.pipeline_mode<synchronous>, transform_indices = @transform_9, window_bounds = array<i64: 10, 1024>}, {pipeline_mode = #tpu.pipeline_mode<synchronous>, transform_indices = @transform_10, window_bounds = array<i64: 10, 1>}, {transform_indices = @transform_11, window_bounds = array<i64: 2, 10, 1>}]} {
    %c0 = arith.constant 0 : index
    %c0_0 = arith.constant 0 : index
    %c0_1 = arith.constant 0 : index
    %0 = vector.load %arg1[%c0, %c0_0, %c0_1] : memref<1x8x2560xf32, #tpu.memory_space<vmem>>, vector<1x8x2560xf32>
    %1 = vector.shape_cast %0 : vector<1x8x2560xf32> to vector<8x2560xf32>
    %2 = vector.extract_strided_slice %1 {offsets = [0, 0], sizes = [8, 2366], strides = [1, 1]} : vector<8x2560xf32> to vector<8x2366xf32>
    %3 = vector.extract_strided_slice %1 {offsets = [0, 1], sizes = [8, 2366], strides = [1, 1]} : vector<8x2560xf32> to vector<8x2366xf32>
    %4 = vector.extract_strided_slice %1 {offsets = [0, 2], sizes = [8, 2366], strides = [1, 1]} : vector<8x2560xf32> to vector<8x2366xf32>
    %5 = vector.extract_strided_slice %1 {offsets = [0, 34], sizes = [8, 2366], strides = [1, 1]} : vector<8x2560xf32> to vector<8x2366xf32>
    %6 = vector.extract_strided_slice %1 {offsets = [0, 35], sizes = [8, 2366], strides = [1, 1]} : vector<8x2560xf32> to vector<8x2366xf32>
    %7 = vector.extract_strided_slice %1 {offsets = [0, 36], sizes = [8, 2366], strides = [1, 1]} : vector<8x2560xf32> to vector<8x2366xf32>
    %8 = vector.extract_strided_slice %1 {offsets = [0, 68], sizes = [8, 2366], strides = [1, 1]} : vector<8x2560xf32> to vector<8x2366xf32>
    %9 = vector.extract_strided_slice %1 {offsets = [0, 69], sizes = [8, 2366], strides = [1, 1]} : vector<8x2560xf32> to vector<8x2366xf32>
    %10 = vector.extract_strided_slice %1 {offsets = [0, 70], sizes = [8, 2366], strides = [1, 1]} : vector<8x2560xf32> to vector<8x2366xf32>
    %11 = tpu.concatenate %2, %3, %4, %5, %6, %7, %8, %9, %10 in 0 : vector<8x2366xf32>, vector<8x2366xf32>, vector<8x2366xf32>, vector<8x2366xf32>, vector<8x2366xf32>, vector<8x2366xf32>, vector<8x2366xf32>, vector<8x2366xf32>, vector<8x2366xf32> -> vector<72x2366xf32>
    %c0_2 = arith.constant 0 : index
    %c0_3 = arith.constant 0 : index
    %12 = vector.load %arg2[%c0_2, %c0_3] : memref<16x72xf32, #tpu.memory_space<vmem>>, vector<16x72xf32>
    %cst = arith.constant dense<0.000000e+00> : vector<16x2366xf32>
    %13 = tpu.matmul %12, %11, %cst {dimension_numbers = #tpu.dot_dimension_numbers<[1], [0], [0], [1], [0, 0, 1, 1], [], []>} : vector<16x72xf32>, vector<72x2366xf32>, vector<16x2366xf32> -> vector<16x2366xf32>
    %c0_4 = arith.constant 0 : index
    %c0_5 = arith.constant 0 : index
    %14 = vector.load %arg3[%c0_4, %c0_5] : memref<16x1xf32, #tpu.memory_space<vmem>>, vector<16x1xf32>
    %15 = vector.broadcast %14 : vector<16x1xf32> to vector<16x2366xf32>
    %16 = arith.addf %13, %15 : vector<16x2366xf32>
    %cst_6 = arith.constant 0.000000e+00 : f32
    %17 = vector.broadcast %cst_6 : f32 to vector<16x2366xf32>
    %18 = arith.maximumf %16, %17 : vector<16x2366xf32>
    %19 = vector.extract_strided_slice %18 {offsets = [0, 0], sizes = [16, 2331], strides = [1, 1]} : vector<16x2366xf32> to vector<16x2331xf32>
    %20 = vector.extract_strided_slice %18 {offsets = [0, 1], sizes = [16, 2331], strides = [1, 1]} : vector<16x2366xf32> to vector<16x2331xf32>
    %21 = arith.maximumf %19, %20 : vector<16x2331xf32>
    %22 = vector.extract_strided_slice %18 {offsets = [0, 34], sizes = [16, 2331], strides = [1, 1]} : vector<16x2366xf32> to vector<16x2331xf32>
    %23 = vector.extract_strided_slice %18 {offsets = [0, 35], sizes = [16, 2331], strides = [1, 1]} : vector<16x2366xf32> to vector<16x2331xf32>
    %24 = arith.maximumf %22, %23 : vector<16x2331xf32>
    %25 = arith.maximumf %21, %24 : vector<16x2331xf32>
    %26 = vector.extract_strided_slice %25 {offsets = [0, 0], sizes = [16, 1051], strides = [1, 1]} : vector<16x2331xf32> to vector<16x1051xf32>
    %c0_7 = arith.constant 0 : index
    %c0_8 = arith.constant 0 : index
    %27 = vector.load %arg8[%c0_7, %c0_8] : memref<1051x384xf32, #tpu.memory_space<vmem>>, vector<1051x384xf32>
    %cst_9 = arith.constant dense<0.000000e+00> : vector<16x384xf32>
    %28 = tpu.matmul %26, %27, %cst_9 {dimension_numbers = #tpu.dot_dimension_numbers<[1], [0], [0], [1], [0, 0, 1, 1], [], []>} : vector<16x1051xf32>, vector<1051x384xf32>, vector<16x384xf32> -> vector<16x384xf32>
    %29 = vector.extract_strided_slice %25 {offsets = [0, 1280], sizes = [16, 1051], strides = [1, 1]} : vector<16x2331xf32> to vector<16x1051xf32>
    %c0_10 = arith.constant 0 : index
    %c0_11 = arith.constant 0 : index
    %30 = vector.load %arg8[%c0_10, %c0_11] : memref<1051x384xf32, #tpu.memory_space<vmem>>, vector<1051x384xf32>
    %cst_12 = arith.constant dense<0.000000e+00> : vector<16x384xf32>
    %31 = tpu.matmul %29, %30, %cst_12 {dimension_numbers = #tpu.dot_dimension_numbers<[1], [0], [0], [1], [0, 0, 1, 1], [], []>} : vector<16x1051xf32>, vector<1051x384xf32>, vector<16x384xf32> -> vector<16x384xf32>
    %32 = tpu.concatenate %28, %31 in 1 : vector<16x384xf32>, vector<16x384xf32> -> vector<16x768xf32>
    %33 = vector.extract_strided_slice %32 {offsets = [0, 0], sizes = [16, 670], strides = [1, 1]} : vector<16x768xf32> to vector<16x670xf32>
    %34 = vector.extract_strided_slice %32 {offsets = [0, 1], sizes = [16, 670], strides = [1, 1]} : vector<16x768xf32> to vector<16x670xf32>
    %35 = vector.extract_strided_slice %32 {offsets = [0, 2], sizes = [16, 670], strides = [1, 1]} : vector<16x768xf32> to vector<16x670xf32>
    %36 = vector.extract_strided_slice %32 {offsets = [0, 18], sizes = [16, 670], strides = [1, 1]} : vector<16x768xf32> to vector<16x670xf32>
    %37 = vector.extract_strided_slice %32 {offsets = [0, 19], sizes = [16, 670], strides = [1, 1]} : vector<16x768xf32> to vector<16x670xf32>
    %38 = vector.extract_strided_slice %32 {offsets = [0, 20], sizes = [16, 670], strides = [1, 1]} : vector<16x768xf32> to vector<16x670xf32>
    %39 = vector.extract_strided_slice %32 {offsets = [0, 36], sizes = [16, 670], strides = [1, 1]} : vector<16x768xf32> to vector<16x670xf32>
    %40 = vector.extract_strided_slice %32 {offsets = [0, 37], sizes = [16, 670], strides = [1, 1]} : vector<16x768xf32> to vector<16x670xf32>
    %41 = vector.extract_strided_slice %32 {offsets = [0, 38], sizes = [16, 670], strides = [1, 1]} : vector<16x768xf32> to vector<16x670xf32>
    %42 = tpu.concatenate %33, %34, %35, %36, %37, %38, %39, %40, %41 in 0 : vector<16x670xf32>, vector<16x670xf32>, vector<16x670xf32>, vector<16x670xf32>, vector<16x670xf32>, vector<16x670xf32>, vector<16x670xf32>, vector<16x670xf32>, vector<16x670xf32> -> vector<144x670xf32>
    %c0_13 = arith.constant 0 : index
    %c0_14 = arith.constant 0 : index
    %43 = vector.load %arg4[%c0_13, %c0_14] : memref<32x144xf32, #tpu.memory_space<vmem>>, vector<32x144xf32>
    %cst_15 = arith.constant dense<0.000000e+00> : vector<32x670xf32>
    %44 = tpu.matmul %43, %42, %cst_15 {dimension_numbers = #tpu.dot_dimension_numbers<[1], [0], [0], [1], [0, 0, 1, 1], [], []>} : vector<32x144xf32>, vector<144x670xf32>, vector<32x670xf32> -> vector<32x670xf32>
    %c0_16 = arith.constant 0 : index
    %c0_17 = arith.constant 0 : index
    %45 = vector.load %arg5[%c0_16, %c0_17] : memref<32x1xf32, #tpu.memory_space<vmem>>, vector<32x1xf32>
    %46 = vector.broadcast %45 : vector<32x1xf32> to vector<32x670xf32>
    %47 = arith.addf %44, %46 : vector<32x670xf32>
    %cst_18 = arith.constant 0.000000e+00 : f32
    %48 = vector.broadcast %cst_18 : f32 to vector<32x670xf32>
    %49 = arith.maximumf %47, %48 : vector<32x670xf32>
    %50 = vector.extract_strided_slice %49 {offsets = [0, 0], sizes = [32, 651], strides = [1, 1]} : vector<32x670xf32> to vector<32x651xf32>
    %51 = vector.extract_strided_slice %49 {offsets = [0, 1], sizes = [32, 651], strides = [1, 1]} : vector<32x670xf32> to vector<32x651xf32>
    %52 = arith.maximumf %50, %51 : vector<32x651xf32>
    %53 = vector.extract_strided_slice %49 {offsets = [0, 18], sizes = [32, 651], strides = [1, 1]} : vector<32x670xf32> to vector<32x651xf32>
    %54 = vector.extract_strided_slice %49 {offsets = [0, 19], sizes = [32, 651], strides = [1, 1]} : vector<32x670xf32> to vector<32x651xf32>
    %55 = arith.maximumf %53, %54 : vector<32x651xf32>
    %56 = arith.maximumf %52, %55 : vector<32x651xf32>
    %57 = vector.extract_strided_slice %56 {offsets = [0, 0], sizes = [32, 267], strides = [1, 1]} : vector<32x651xf32> to vector<32x267xf32>
    %c0_19 = arith.constant 0 : index
    %c0_20 = arith.constant 0 : index
    %58 = vector.load %arg9[%c0_19, %c0_20] : memref<267x128xf32, #tpu.memory_space<vmem>>, vector<267x128xf32>
    %cst_21 = arith.constant dense<0.000000e+00> : vector<32x128xf32>
    %59 = tpu.matmul %57, %58, %cst_21 {dimension_numbers = #tpu.dot_dimension_numbers<[1], [0], [0], [1], [0, 0, 1, 1], [], []>} : vector<32x267xf32>, vector<267x128xf32>, vector<32x128xf32> -> vector<32x128xf32>
    %60 = vector.extract_strided_slice %56 {offsets = [0, 384], sizes = [32, 267], strides = [1, 1]} : vector<32x651xf32> to vector<32x267xf32>
    %c0_22 = arith.constant 0 : index
    %c0_23 = arith.constant 0 : index
    %61 = vector.load %arg9[%c0_22, %c0_23] : memref<267x128xf32, #tpu.memory_space<vmem>>, vector<267x128xf32>
    %cst_24 = arith.constant dense<0.000000e+00> : vector<32x128xf32>
    %62 = tpu.matmul %60, %61, %cst_24 {dimension_numbers = #tpu.dot_dimension_numbers<[1], [0], [0], [1], [0, 0, 1, 1], [], []>} : vector<32x267xf32>, vector<267x128xf32>, vector<32x128xf32> -> vector<32x128xf32>
    %63 = tpu.concatenate %59, %62 in 1 : vector<32x128xf32>, vector<32x128xf32> -> vector<32x256xf32>
    %64 = vector.extract_strided_slice %63 {offsets = [0, 0], sizes = [32, 206], strides = [1, 1]} : vector<32x256xf32> to vector<32x206xf32>
    %65 = vector.extract_strided_slice %63 {offsets = [0, 1], sizes = [32, 206], strides = [1, 1]} : vector<32x256xf32> to vector<32x206xf32>
    %66 = vector.extract_strided_slice %63 {offsets = [0, 2], sizes = [32, 206], strides = [1, 1]} : vector<32x256xf32> to vector<32x206xf32>
    %67 = vector.extract_strided_slice %63 {offsets = [0, 10], sizes = [32, 206], strides = [1, 1]} : vector<32x256xf32> to vector<32x206xf32>
    %68 = vector.extract_strided_slice %63 {offsets = [0, 11], sizes = [32, 206], strides = [1, 1]} : vector<32x256xf32> to vector<32x206xf32>
    %69 = vector.extract_strided_slice %63 {offsets = [0, 12], sizes = [32, 206], strides = [1, 1]} : vector<32x256xf32> to vector<32x206xf32>
    %70 = vector.extract_strided_slice %63 {offsets = [0, 20], sizes = [32, 206], strides = [1, 1]} : vector<32x256xf32> to vector<32x206xf32>
    %71 = vector.extract_strided_slice %63 {offsets = [0, 21], sizes = [32, 206], strides = [1, 1]} : vector<32x256xf32> to vector<32x206xf32>
    %72 = vector.extract_strided_slice %63 {offsets = [0, 22], sizes = [32, 206], strides = [1, 1]} : vector<32x256xf32> to vector<32x206xf32>
    %73 = tpu.concatenate %64, %65, %66, %67, %68, %69, %70, %71, %72 in 0 : vector<32x206xf32>, vector<32x206xf32>, vector<32x206xf32>, vector<32x206xf32>, vector<32x206xf32>, vector<32x206xf32>, vector<32x206xf32>, vector<32x206xf32>, vector<32x206xf32> -> vector<288x206xf32>
    %c0_25 = arith.constant 0 : index
    %c0_26 = arith.constant 0 : index
    %74 = vector.load %arg6[%c0_25, %c0_26] : memref<64x288xf32, #tpu.memory_space<vmem>>, vector<64x288xf32>
    %cst_27 = arith.constant dense<0.000000e+00> : vector<64x206xf32>
    %75 = tpu.matmul %74, %73, %cst_27 {dimension_numbers = #tpu.dot_dimension_numbers<[1], [0], [0], [1], [0, 0, 1, 1], [], []>} : vector<64x288xf32>, vector<288x206xf32>, vector<64x206xf32> -> vector<64x206xf32>
    %c0_28 = arith.constant 0 : index
    %c0_29 = arith.constant 0 : index
    %76 = vector.load %arg7[%c0_28, %c0_29] : memref<64x1xf32, #tpu.memory_space<vmem>>, vector<64x1xf32>
    %77 = vector.broadcast %76 : vector<64x1xf32> to vector<64x206xf32>
    %78 = arith.addf %75, %77 : vector<64x206xf32>
    %cst_30 = arith.constant 0.000000e+00 : f32
    %79 = vector.broadcast %cst_30 : f32 to vector<64x206xf32>
    %80 = arith.maximumf %78, %79 : vector<64x206xf32>
    %81 = vector.extract_strided_slice %80 {offsets = [0, 0], sizes = [64, 195], strides = [1, 1]} : vector<64x206xf32> to vector<64x195xf32>
    %82 = vector.extract_strided_slice %80 {offsets = [0, 1], sizes = [64, 195], strides = [1, 1]} : vector<64x206xf32> to vector<64x195xf32>
    %83 = arith.maximumf %81, %82 : vector<64x195xf32>
    %84 = vector.extract_strided_slice %80 {offsets = [0, 10], sizes = [64, 195], strides = [1, 1]} : vector<64x206xf32> to vector<64x195xf32>
    %85 = vector.extract_strided_slice %80 {offsets = [0, 11], sizes = [64, 195], strides = [1, 1]} : vector<64x206xf32> to vector<64x195xf32>
    %86 = arith.maximumf %84, %85 : vector<64x195xf32>
    %87 = arith.maximumf %83, %86 : vector<64x195xf32>
    %88 = vector.extract_strided_slice %87 {offsets = [0, 0], sizes = [64, 1], strides = [1, 1]} : vector<64x195xf32> to vector<64x1xf32>
    %89 = vector.extract_strided_slice %87 {offsets = [0, 2], sizes = [64, 1], strides = [1, 1]} : vector<64x195xf32> to vector<64x1xf32>
    %90 = vector.extract_strided_slice %87 {offsets = [0, 4], sizes = [64, 1], strides = [1, 1]} : vector<64x195xf32> to vector<64x1xf32>
    %91 = vector.extract_strided_slice %87 {offsets = [0, 6], sizes = [64, 1], strides = [1, 1]} : vector<64x195xf32> to vector<64x1xf32>
    %92 = vector.extract_strided_slice %87 {offsets = [0, 20], sizes = [64, 1], strides = [1, 1]} : vector<64x195xf32> to vector<64x1xf32>
    %93 = vector.extract_strided_slice %87 {offsets = [0, 22], sizes = [64, 1], strides = [1, 1]} : vector<64x195xf32> to vector<64x1xf32>
    %94 = vector.extract_strided_slice %87 {offsets = [0, 24], sizes = [64, 1], strides = [1, 1]} : vector<64x195xf32> to vector<64x1xf32>
    %95 = vector.extract_strided_slice %87 {offsets = [0, 26], sizes = [64, 1], strides = [1, 1]} : vector<64x195xf32> to vector<64x1xf32>
    %96 = vector.extract_strided_slice %87 {offsets = [0, 40], sizes = [64, 1], strides = [1, 1]} : vector<64x195xf32> to vector<64x1xf32>
    %97 = vector.extract_strided_slice %87 {offsets = [0, 42], sizes = [64, 1], strides = [1, 1]} : vector<64x195xf32> to vector<64x1xf32>
    %98 = vector.extract_strided_slice %87 {offsets = [0, 44], sizes = [64, 1], strides = [1, 1]} : vector<64x195xf32> to vector<64x1xf32>
    %99 = vector.extract_strided_slice %87 {offsets = [0, 46], sizes = [64, 1], strides = [1, 1]} : vector<64x195xf32> to vector<64x1xf32>
    %100 = vector.extract_strided_slice %87 {offsets = [0, 60], sizes = [64, 1], strides = [1, 1]} : vector<64x195xf32> to vector<64x1xf32>
    %101 = vector.extract_strided_slice %87 {offsets = [0, 62], sizes = [64, 1], strides = [1, 1]} : vector<64x195xf32> to vector<64x1xf32>
    %102 = vector.extract_strided_slice %87 {offsets = [0, 64], sizes = [64, 1], strides = [1, 1]} : vector<64x195xf32> to vector<64x1xf32>
    %103 = vector.extract_strided_slice %87 {offsets = [0, 66], sizes = [64, 1], strides = [1, 1]} : vector<64x195xf32> to vector<64x1xf32>
    %104 = tpu.concatenate %88, %89, %90, %91, %92, %93, %94, %95, %96, %97, %98, %99, %100, %101, %102, %103 in 0 : vector<64x1xf32>, vector<64x1xf32>, vector<64x1xf32>, vector<64x1xf32>, vector<64x1xf32>, vector<64x1xf32>, vector<64x1xf32>, vector<64x1xf32>, vector<64x1xf32>, vector<64x1xf32>, vector<64x1xf32>, vector<64x1xf32>, vector<64x1xf32>, vector<64x1xf32>, vector<64x1xf32>, vector<64x1xf32> -> vector<1024x1xf32>
    %c0_31 = arith.constant 0 : index
    %c0_32 = arith.constant 0 : index
    %105 = vector.load %arg10[%c0_31, %c0_32] : memref<10x1024xf32, #tpu.memory_space<vmem>>, vector<10x1024xf32>
    %cst_33 = arith.constant dense<0.000000e+00> : vector<10x1xf32>
    %106 = tpu.matmul %105, %104, %cst_33 {dimension_numbers = #tpu.dot_dimension_numbers<[1], [0], [0], [1], [0, 0, 1, 1], [], []>} : vector<10x1024xf32>, vector<1024x1xf32>, vector<10x1xf32> -> vector<10x1xf32>
    %c0_34 = arith.constant 0 : index
    %c0_35 = arith.constant 0 : index
    %107 = vector.load %arg11[%c0_34, %c0_35] : memref<10x1xf32, #tpu.memory_space<vmem>>, vector<10x1xf32>
    %108 = arith.addf %106, %107 : vector<10x1xf32>
    %c0_36 = arith.constant 0 : index
    %c0_37 = arith.constant 0 : index
    %c0_38 = arith.constant 0 : index
    %109 = vector.load %arg12[%c0_36, %c0_37, %c0_38] : memref<2x10x1xf32, #tpu.memory_space<vmem>>, vector<1x10x1xf32>
    %110 = vector.shape_cast %109 : vector<1x10x1xf32> to vector<10x1xf32>
    %111 = vector.shape_cast %108 : vector<10x1xf32> to vector<1x10x1xf32>
    tpu.vector_store %arg12[%c0_36, %c0_37, %c0_38], %111 {strides = array<i32>} : memref<2x10x1xf32, #tpu.memory_space<vmem>>, vector<1x10x1xf32>,
    %112 = vector.extract_strided_slice %87 {offsets = [0, 128], sizes = [64, 1], strides = [1, 1]} : vector<64x195xf32> to vector<64x1xf32>
    %113 = vector.extract_strided_slice %87 {offsets = [0, 130], sizes = [64, 1], strides = [1, 1]} : vector<64x195xf32> to vector<64x1xf32>
    %114 = vector.extract_strided_slice %87 {offsets = [0, 132], sizes = [64, 1], strides = [1, 1]} : vector<64x195xf32> to vector<64x1xf32>
    %115 = vector.extract_strided_slice %87 {offsets = [0, 134], sizes = [64, 1], strides = [1, 1]} : vector<64x195xf32> to vector<64x1xf32>
    %116 = vector.extract_strided_slice %87 {offsets = [0, 148], sizes = [64, 1], strides = [1, 1]} : vector<64x195xf32> to vector<64x1xf32>
    %117 = vector.extract_strided_slice %87 {offsets = [0, 150], sizes = [64, 1], strides = [1, 1]} : vector<64x195xf32> to vector<64x1xf32>
    %118 = vector.extract_strided_slice %87 {offsets = [0, 152], sizes = [64, 1], strides = [1, 1]} : vector<64x195xf32> to vector<64x1xf32>
    %119 = vector.extract_strided_slice %87 {offsets = [0, 154], sizes = [64, 1], strides = [1, 1]} : vector<64x195xf32> to vector<64x1xf32>
    %120 = vector.extract_strided_slice %87 {offsets = [0, 168], sizes = [64, 1], strides = [1, 1]} : vector<64x195xf32> to vector<64x1xf32>
    %121 = vector.extract_strided_slice %87 {offsets = [0, 170], sizes = [64, 1], strides = [1, 1]} : vector<64x195xf32> to vector<64x1xf32>
    %122 = vector.extract_strided_slice %87 {offsets = [0, 172], sizes = [64, 1], strides = [1, 1]} : vector<64x195xf32> to vector<64x1xf32>
    %123 = vector.extract_strided_slice %87 {offsets = [0, 174], sizes = [64, 1], strides = [1, 1]} : vector<64x195xf32> to vector<64x1xf32>
    %124 = vector.extract_strided_slice %87 {offsets = [0, 188], sizes = [64, 1], strides = [1, 1]} : vector<64x195xf32> to vector<64x1xf32>
    %125 = vector.extract_strided_slice %87 {offsets = [0, 190], sizes = [64, 1], strides = [1, 1]} : vector<64x195xf32> to vector<64x1xf32>
    %126 = vector.extract_strided_slice %87 {offsets = [0, 192], sizes = [64, 1], strides = [1, 1]} : vector<64x195xf32> to vector<64x1xf32>
    %127 = vector.extract_strided_slice %87 {offsets = [0, 194], sizes = [64, 1], strides = [1, 1]} : vector<64x195xf32> to vector<64x1xf32>
    %128 = tpu.concatenate %112, %113, %114, %115, %116, %117, %118, %119, %120, %121, %122, %123, %124, %125, %126, %127 in 0 : vector<64x1xf32>, vector<64x1xf32>, vector<64x1xf32>, vector<64x1xf32>, vector<64x1xf32>, vector<64x1xf32>, vector<64x1xf32>, vector<64x1xf32>, vector<64x1xf32>, vector<64x1xf32>, vector<64x1xf32>, vector<64x1xf32>, vector<64x1xf32>, vector<64x1xf32>, vector<64x1xf32>, vector<64x1xf32> -> vector<1024x1xf32>
    %c0_39 = arith.constant 0 : index
    %c0_40 = arith.constant 0 : index
    %129 = vector.load %arg10[%c0_39, %c0_40] : memref<10x1024xf32, #tpu.memory_space<vmem>>, vector<10x1024xf32>
    %cst_41 = arith.constant dense<0.000000e+00> : vector<10x1xf32>
    %130 = tpu.matmul %129, %128, %cst_41 {dimension_numbers = #tpu.dot_dimension_numbers<[1], [0], [0], [1], [0, 0, 1, 1], [], []>} : vector<10x1024xf32>, vector<1024x1xf32>, vector<10x1xf32> -> vector<10x1xf32>
    %c0_42 = arith.constant 0 : index
    %c0_43 = arith.constant 0 : index
    %131 = vector.load %arg11[%c0_42, %c0_43] : memref<10x1xf32, #tpu.memory_space<vmem>>, vector<10x1xf32>
    %132 = arith.addf %130, %131 : vector<10x1xf32>
    %c1 = arith.constant 1 : index
    %c0_44 = arith.constant 0 : index
    %c0_45 = arith.constant 0 : index
    %133 = vector.load %arg12[%c1, %c0_44, %c0_45] : memref<2x10x1xf32, #tpu.memory_space<vmem>>, vector<1x10x1xf32>
    %134 = vector.shape_cast %133 : vector<1x10x1xf32> to vector<10x1xf32>
    %135 = vector.shape_cast %132 : vector<10x1xf32> to vector<1x10x1xf32>
    tpu.vector_store %arg12[%c1, %c0_44, %c0_45], %135 {strides = array<i32>} : memref<2x10x1xf32, #tpu.memory_space<vmem>>, vector<1x10x1xf32>,
    return
  }
  func.func @transform_0(%arg0: i32) -> (i32, i32, i32) {
    %c0_i32 = arith.constant 0 : i32
    %c0_i32_0 = arith.constant 0 : i32
    %c0_i32_1 = arith.constant 0 : i32
    return %arg0, %c0_i32, %c0_i32_0 : i32, i32, i32
  }
  func.func @transform_1(%arg0: i32) -> (i32, i32) {
    %c0_i32 = arith.constant 0 : i32
    %c0_i32_0 = arith.constant 0 : i32
    %c0_i32_1 = arith.constant 0 : i32
    return %c0_i32, %c0_i32_0 : i32, i32
  }
  func.func @transform_2(%arg0: i32) -> (i32, i32) {
    %c0_i32 = arith.constant 0 : i32
    %c0_i32_0 = arith.constant 0 : i32
    %c0_i32_1 = arith.constant 0 : i32
    return %c0_i32, %c0_i32_0 : i32, i32
  }
  func.func @transform_3(%arg0: i32) -> (i32, i32) {
    %c0_i32 = arith.constant 0 : i32
    %c0_i32_0 = arith.constant 0 : i32
    %c0_i32_1 = arith.constant 0 : i32
    return %c0_i32, %c0_i32_0 : i32, i32
  }
  func.func @transform_4(%arg0: i32) -> (i32, i32) {
    %c0_i32 = arith.constant 0 : i32
    %c0_i32_0 = arith.constant 0 : i32
    %c0_i32_1 = arith.constant 0 : i32
    return %c0_i32, %c0_i32_0 : i32, i32
  }
  func.func @transform_5(%arg0: i32) -> (i32, i32) {
    %c0_i32 = arith.constant 0 : i32
    %c0_i32_0 = arith.constant 0 : i32
    %c0_i32_1 = arith.constant 0 : i32
    return %c0_i32, %c0_i32_0 : i32, i32
  }
  func.func @transform_6(%arg0: i32) -> (i32, i32) {
    %c0_i32 = arith.constant 0 : i32
    %c0_i32_0 = arith.constant 0 : i32
    %c0_i32_1 = arith.constant 0 : i32
    return %c0_i32, %c0_i32_0 : i32, i32
  }
  func.func @transform_7(%arg0: i32) -> (i32, i32) {
    %c0_i32 = arith.constant 0 : i32
    %c0_i32_0 = arith.constant 0 : i32
    %c0_i32_1 = arith.constant 0 : i32
    return %c0_i32, %c0_i32_0 : i32, i32
  }
  func.func @transform_8(%arg0: i32) -> (i32, i32) {
    %c0_i32 = arith.constant 0 : i32
    %c0_i32_0 = arith.constant 0 : i32
    %c0_i32_1 = arith.constant 0 : i32
    return %c0_i32, %c0_i32_0 : i32, i32
  }
  func.func @transform_9(%arg0: i32) -> (i32, i32) {
    %c0_i32 = arith.constant 0 : i32
    %c0_i32_0 = arith.constant 0 : i32
    %c0_i32_1 = arith.constant 0 : i32
    return %c0_i32, %c0_i32_0 : i32, i32
  }
  func.func @transform_10(%arg0: i32) -> (i32, i32) {
    %c0_i32 = arith.constant 0 : i32
    %c0_i32_0 = arith.constant 0 : i32
    %c0_i32_1 = arith.constant 0 : i32
    return %c0_i32, %c0_i32_0 : i32, i32
  }
  func.func @transform_11(%arg0: i32) -> (i32, i32, i32) {
    %c0_i32 = arith.constant 0 : i32
    %c0_i32_0 = arith.constant 0 : i32
    %c0_i32_1 = arith.constant 0 : i32
    return %arg0, %c0_i32, %c0_i32_0 : i32, i32, i32
  }
}

</mosaic_0001>

<llo_original>
// kernel: simple_convnet_forward.1
$region0: #{simple_convnet_forward.1}
  #allocation0 [shape = 'u32[]', space=smem, size = 0x4, offset = 0x4, fixed_abs, tag = 'smem constant byte address 0x4 - core index']
  #allocation1 [shape = 'u32[144,128]{1,0:T(1,128)}', space=vmem, size = 0x12000, scoped, tag = 'internal scratch']
  %s0 = inlined_call_operand.vmem [shape: f32[2,8,2560], index: 0, kind: input, shape index: {}]
  %s1 = inlined_call_operand.vmem [shape: f32[16,72], index: 1, kind: input, shape index: {}]
  %s2 = inlined_call_operand.vmem [shape: f32[16,1], index: 2, kind: input, shape index: {}]
  %s3 = inlined_call_operand.vmem [shape: f32[32,144], index: 3, kind: input, shape index: {}]
  %s4 = inlined_call_operand.vmem [shape: f32[32,1], index: 4, kind: input, shape index: {}]
  %s5 = inlined_call_operand.vmem [shape: f32[64,288], index: 5, kind: input, shape index: {}]
  %s6 = inlined_call_operand.vmem [shape: f32[64,1], index: 6, kind: input, shape index: {}]
  %s7 = inlined_call_operand.vmem [shape: f32[1051,384], index: 7, kind: input, shape index: {}]
  %s8 = inlined_call_operand.vmem [shape: f32[267,128], index: 8, kind: input, shape index: {}]
  %s9 = inlined_call_operand.vmem [shape: f32[10,1024], index: 9, kind: input, shape index: {}]
  %s10 = inlined_call_operand.vmem [shape: f32[10,1], index: 10, kind: input, shape index: {}]
  %s11 = inlined_call_operand.vmem [shape: f32[4,10,1], index: 11, kind: output, shape index: {}]
  %s12 = sld [smem:[#allocation0]]
  $region77: #{simple_convnet_forward.1} parent=0
    _
  %s14 = ssub.s32 1, %s12
  %s15 = scalar_select 0, %s14, %s12
  loop: start=0, step=1, limit=4
  $region2: #{simple_convnet_forward.1} parent=0 // loop_pre_header
    _
  $region3: #{simple_convnet_forward.1} parent=0 // loop_header
    %s17 = sphi 0, %s21
    %p18 = scmp.ge.s32.totalorder %s17, 4
    %s27 = sphi 0, %s29
    %s30 = sphi 0, %s27
    %s31 = sphi 0, %s30
    %s47 = sphi 0, %s31
    %s51 = sphi 0, %s51
    %s53 = sphi 0, %s51
    %s54 = sphi 0, %s53
    %s68 = sphi 0, %s54
    %s72 = sphi 0, %s72
    %s74 = sphi 0, %s72
    %s75 = sphi 0, %s74
    %s89 = sphi 0, %s75
    %s93 = sphi 0, %s93
    %s95 = sphi 0, %s93
    %s96 = sphi 0, %s95
    %s110 = sphi 0, %s96
    %s114 = sphi 0, %s114
    %s116 = sphi 0, %s114
    %s117 = sphi 0, %s116
    %s131 = sphi 0, %s117
    %s135 = sphi 0, %s135
    %s137 = sphi 0, %s135
    %s138 = sphi 0, %s137
    %s152 = sphi 0, %s138
    %s156 = sphi 0, %s156
    %s158 = sphi 0, %s156
    %s159 = sphi 0, %s158
    %s173 = sphi 0, %s159
    %s177 = sphi 0, %s177
    %s179 = sphi 0, %s177
    %s180 = sphi 0, %s179
    %s194 = sphi 0, %s180
    %s198 = sphi 0, %s198
    %s200 = sphi 0, %s198
    %s201 = sphi 0, %s200
    %s215 = sphi 0, %s201
    %s219 = sphi 0, %s219
    %s221 = sphi 0, %s219
    %s222 = sphi 0, %s221
    %s236 = sphi 0, %s222
    %s240 = sphi 0, %s240
    %s242 = sphi 0, %s240
    %s243 = sphi 0, %s242
    %s257 = sphi 0, %s243
    %s263 = sphi 0, %s265
    %s266 = sphi 0, %s263
    %s267 = sphi 0, %s266
    %s283 = sphi 0, %s267
  $region4: #{simple_convnet_forward.1} parent=0 // loop_header_branch
    %20 = sbr.rel (%p18) target = $region8
  $region5: #{simple_convnet_forward.1} parent=0 // loop_body
    %s22 = ssub.s32 %s17, 1
    %s23 = ssub.s32 %s17, 2
    %s24 = sadd.s32 %s17, 1
    %s25 = ssub.s32 %s17, %s24
    %p26 = scmp.eq.s32.totalorder %s25, 0
    %s28 = sadd.s32 %s27, 1
    %s29 = scalar_select %p26, %s27, %s28
    %p32 = pneg %p26
    %p33 = scmp.eq.s32.totalorder %s17, 1
    %p34 = por %p32, %p33
    %p35 = scmp.ne.s32.totalorder %s27, %s30
    %p36 = scmp.eq.s32.totalorder %s17, 0
    %p37 = por %p35, %p36
    %p38 = scmp.ne.s32.totalorder %s27, %s30
    %p39 = scmp.eq.s32.totalorder %s22, 1
    %p40 = por %p38, %p39
    %p41 = scmp.ne.s32.totalorder %s30, %s31
    %p42 = scmp.eq.s32.totalorder %s22, 0
    %p43 = por %p41, %p42
    %p44 = scmp.ne.s32.totalorder %s30, %s31
    %p45 = scmp.eq.s32.totalorder %s23, 1
    %p46 = por %p44, %p45
    %p48 = scmp.ne.s32.totalorder %s31, %s47
    %p49 = scmp.eq.s32.totalorder %s23, 0
    %p50 = por %p48, %p49
    %s52 = sadd.s32 %s51, 1
    %p55 = scmp.eq.s32.totalorder %s17, 1
    %p56 = scmp.ne.s32.totalorder %s51, %s53
    %p57 = scmp.eq.s32.totalorder %s17, 0
    %p58 = por %p56, %p57
    %p59 = scmp.ne.s32.totalorder %s51, %s53
    %p60 = scmp.eq.s32.totalorder %s22, 1
    %p61 = por %p59, %p60
    %p62 = scmp.ne.s32.totalorder %s53, %s54
    %p63 = scmp.eq.s32.totalorder %s22, 0
    %p64 = por %p62, %p63
    %p65 = scmp.ne.s32.totalorder %s53, %s54
    %p66 = scmp.eq.s32.totalorder %s23, 1
    %p67 = por %p65, %p66
    %p69 = scmp.ne.s32.totalorder %s54, %s68
    %p70 = scmp.eq.s32.totalorder %s23, 0
    %p71 = por %p69, %p70
    %s73 = sadd.s32 %s72, 1
    %p76 = scmp.eq.s32.totalorder %s17, 1
    %p77 = scmp.ne.s32.totalorder %s72, %s74
    %p78 = scmp.eq.s32.totalorder %s17, 0
    %p79 = por %p77, %p78
    %p80 = scmp.ne.s32.totalorder %s72, %s74
    %p81 = scmp.eq.s32.totalorder %s22, 1
    %p82 = por %p80, %p81
    %p83 = scmp.ne.s32.totalorder %s74, %s75
    %p84 = scmp.eq.s32.totalorder %s22, 0
    %p85 = por %p83, %p84
    %p86 = scmp.ne.s32.totalorder %s74, %s75
    %p87 = scmp.eq.s32.totalorder %s23, 1
    %p88 = por %p86, %p87
    %p90 = scmp.ne.s32.totalorder %s75, %s89
    %p91 = scmp.eq.s32.totalorder %s23, 0
    %p92 = por %p90, %p91
    %s94 = sadd.s32 %s93, 1
    %p97 = scmp.eq.s32.totalorder %s17, 1
    %p98 = scmp.ne.s32.totalorder %s93, %s95
    %p99 = scmp.eq.s32.totalorder %s17, 0
    %p100 = por %p98, %p99
    %p101 = scmp.ne.s32.totalorder %s93, %s95
    %p102 = scmp.eq.s32.totalorder %s22, 1
    %p103 = por %p101, %p102
    %p104 = scmp.ne.s32.totalorder %s95, %s96
    %p105 = scmp.eq.s32.totalorder %s22, 0
    %p106 = por %p104, %p105
    %p107 = scmp.ne.s32.totalorder %s95, %s96
    %p108 = scmp.eq.s32.totalorder %s23, 1
    %p109 = por %p107, %p108
    %p111 = scmp.ne.s32.totalorder %s96, %s110
    %p112 = scmp.eq.s32.totalorder %s23, 0
    %p113 = por %p111, %p112
    %s115 = sadd.s32 %s114, 1
    %p118 = scmp.eq.s32.totalorder %s17, 1
    %p119 = scmp.ne.s32.totalorder %s114, %s116
    %p120 = scmp.eq.s32.totalorder %s17, 0
    %p121 = por %p119, %p120
    %p122 = scmp.ne.s32.totalorder %s114, %s116
    %p123 = scmp.eq.s32.totalorder %s22, 1
    %p124 = por %p122, %p123
    %p125 = scmp.ne.s32.totalorder %s116, %s117
    %p126 = scmp.eq.s32.totalorder %s22, 0
    %p127 = por %p125, %p126
    %p128 = scmp.ne.s32.totalorder %s116, %s117
    %p129 = scmp.eq.s32.totalorder %s23, 1
    %p130 = por %p128, %p129
    %p132 = scmp.ne.s32.totalorder %s117, %s131
    %p133 = scmp.eq.s32.totalorder %s23, 0
    %p134 = por %p132, %p133
    %s136 = sadd.s32 %s135, 1
    %p139 = scmp.eq.s32.totalorder %s17, 1
    %p140 = scmp.ne.s32.totalorder %s135, %s137
    %p141 = scmp.eq.s32.totalorder %s17, 0
    %p142 = por %p140, %p141
    %p143 = scmp.ne.s32.totalorder %s135, %s137
    %p144 = scmp.eq.s32.totalorder %s22, 1
    %p145 = por %p143, %p144
    %p146 = scmp.ne.s32.totalorder %s137, %s138
    %p147 = scmp.eq.s32.totalorder %s22, 0
    %p148 = por %p146, %p147
    %p149 = scmp.ne.s32.totalorder %s137, %s138
    %p150 = scmp.eq.s32.totalorder %s23, 1
    %p151 = por %p149, %p150
    %p153 = scmp.ne.s32.totalorder %s138, %s152
    %p154 = scmp.eq.s32.totalorder %s23, 0
    %p155 = por %p153, %p154
    %s157 = sadd.s32 %s156, 1
    %p160 = scmp.eq.s32.totalorder %s17, 1
    %p161 = scmp.ne.s32.totalorder %s156, %s158
    %p162 = scmp.eq.s32.totalorder %s17, 0
    %p163 = por %p161, %p162
    %p164 = scmp.ne.s32.totalorder %s156, %s158
    %p165 = scmp.eq.s32.totalorder %s22, 1
    %p166 = por %p164, %p165
    %p167 = scmp.ne.s32.totalorder %s158, %s159
    %p168 = scmp.eq.s32.totalorder %s22, 0
    %p169 = por %p167, %p168
    %p170 = scmp.ne.s32.totalorder %s158, %s159
    %p171 = scmp.eq.s32.totalorder %s23, 1
    %p172 = por %p170, %p171
    %p174 = scmp.ne.s32.totalorder %s159, %s173
    %p175 = scmp.eq.s32.totalorder %s23, 0
    %p176 = por %p174, %p175
    %s178 = sadd.s32 %s177, 1
    %p181 = scmp.eq.s32.totalorder %s17, 1
    %p182 = scmp.ne.s32.totalorder %s177, %s179
    %p183 = scmp.eq.s32.totalorder %s17, 0
    %p184 = por %p182, %p183
    %p185 = scmp.ne.s32.totalorder %s177, %s179
    %p186 = scmp.eq.s32.totalorder %s22, 1
    %p187 = por %p185, %p186
    %p188 = scmp.ne.s32.totalorder %s179, %s180
    %p189 = scmp.eq.s32.totalorder %s22, 0
    %p190 = por %p188, %p189
    %p191 = scmp.ne.s32.totalorder %s179, %s180
    %p192 = scmp.eq.s32.totalorder %s23, 1
    %p193 = por %p191, %p192
    %p195 = scmp.ne.s32.totalorder %s180, %s194
    %p196 = scmp.eq.s32.totalorder %s23, 0
    %p197 = por %p195, %p196
    %s199 = sadd.s32 %s198, 1
    %p202 = scmp.eq.s32.totalorder %s17, 1
    %p203 = scmp.ne.s32.totalorder %s198, %s200
    %p204 = scmp.eq.s32.totalorder %s17, 0
    %p205 = por %p203, %p204
    %p206 = scmp.ne.s32.totalorder %s198, %s200
    %p207 = scmp.eq.s32.totalorder %s22, 1
    %p208 = por %p206, %p207
    %p209 = scmp.ne.s32.totalorder %s200, %s201
    %p210 = scmp.eq.s32.totalorder %s22, 0
    %p211 = por %p209, %p210
    %p212 = scmp.ne.s32.totalorder %s200, %s201
    %p213 = scmp.eq.s32.totalorder %s23, 1
    %p214 = por %p212, %p213
    %p216 = scmp.ne.s32.totalorder %s201, %s215
    %p217 = scmp.eq.s32.totalorder %s23, 0
    %p218 = por %p216, %p217
    %s220 = sadd.s32 %s219, 1
    %p223 = scmp.eq.s32.totalorder %s17, 1
    %p224 = scmp.ne.s32.totalorder %s219, %s221
    %p225 = scmp.eq.s32.totalorder %s17, 0
    %p226 = por %p224, %p225
    %p227 = scmp.ne.s32.totalorder %s219, %s221
    %p228 = scmp.eq.s32.totalorder %s22, 1
    %p229 = por %p227, %p228
    %p230 = scmp.ne.s32.totalorder %s221, %s222
    %p231 = scmp.eq.s32.totalorder %s22, 0
    %p232 = por %p230, %p231
    %p233 = scmp.ne.s32.totalorder %s221, %s222
    %p234 = scmp.eq.s32.totalorder %s23, 1
    %p235 = por %p233, %p234
    %p237 = scmp.ne.s32.totalorder %s222, %s236
    %p238 = scmp.eq.s32.totalorder %s23, 0
    %p239 = por %p237, %p238
    %s241 = sadd.s32 %s240, 1
    %p244 = scmp.eq.s32.totalorder %s17, 1
    %p245 = scmp.ne.s32.totalorder %s240, %s242
    %p246 = scmp.eq.s32.totalorder %s17, 0
    %p247 = por %p245, %p246
    %p248 = scmp.ne.s32.totalorder %s240, %s242
    %p249 = scmp.eq.s32.totalorder %s22, 1
    %p250 = por %p248, %p249
    %p251 = scmp.ne.s32.totalorder %s242, %s243
    %p252 = scmp.eq.s32.totalorder %s22, 0
    %p253 = por %p251, %p252
    %p254 = scmp.ne.s32.totalorder %s242, %s243
    %p255 = scmp.eq.s32.totalorder %s23, 1
    %p256 = por %p254, %p255
    %p258 = scmp.ne.s32.totalorder %s243, %s257
    %p259 = scmp.eq.s32.totalorder %s23, 0
    %p260 = por %p258, %p259
    %s261 = ssub.s32 %s17, %s24
    %p262 = scmp.eq.s32.totalorder %s261, 0
    %s264 = sadd.s32 %s263, 1
    %s265 = scalar_select %p262, %s263, %s264
    %p268 = pneg %p262
    %p269 = scmp.eq.s32.totalorder %s17, 1
    %p270 = por %p268, %p269
    %p271 = scmp.ne.s32.totalorder %s263, %s266
    %p272 = scmp.eq.s32.totalorder %s17, 0
    %p273 = por %p271, %p272
    %p274 = scmp.ne.s32.totalorder %s263, %s266
    %p275 = scmp.eq.s32.totalorder %s22, 1
    %p276 = por %p274, %p275
    %p277 = scmp.ne.s32.totalorder %s266, %s267
    %p278 = scmp.eq.s32.totalorder %s22, 0
    %p279 = por %p277, %p278
    %p280 = scmp.ne.s32.totalorder %s266, %s267
    %p281 = scmp.eq.s32.totalorder %s23, 1
    %p282 = por %p280, %p281
    %p284 = scmp.ne.s32.totalorder %s267, %s283
    %p285 = scmp.eq.s32.totalorder %s23, 0
    %p286 = por %p284, %p285
    %p287 = scmp.le.s32.totalorder 1, %s17
    %p288 = scmp.lt.s32.totalorder %s17, 3
    %p289 = pnand %p287, %p288
    %p290 = pneg %p289
    // Predicated region
    $region9: #{simple_convnet_forward.1} parent=5 // pred_check
      _
    $region10: #{simple_convnet_forward.1} parent=5 // pred_check_branch
      %292 = sbr.rel (%p289) target = $region12
    $region11: #{simple_convnet_forward.1} parent=5 // pred_region
      %s293 = ssub.s32 %s17, 1
      // Predicated region
      $region13: #{simple_convnet_forward.1} parent=11 // pred_check
        %p294 = pneg %p64
      $region14: #{simple_convnet_forward.1} parent=11 // pred_check_branch
        %296 = sbr.rel (%p294) target = $region16
      $region15: #{simple_convnet_forward.1} parent=11 // pred_region
        _
      $region16: #{simple_convnet_forward.1} parent=11 // pred_fallthru
        _
      // Predicated region
      $region17: #{simple_convnet_forward.1} parent=11 // pred_check
        %p297 = pneg %p85
      $region18: #{simple_convnet_forward.1} parent=11 // pred_check_branch
        %299 = sbr.rel (%p297) target = $region20
      $region19: #{simple_convnet_forward.1} parent=11 // pred_region
        _
      $region20: #{simple_convnet_forward.1} parent=11 // pred_fallthru
        _
      // Predicated region
      $region21: #{simple_convnet_forward.1} parent=11 // pred_check
        %p300 = pneg %p106
      $region22: #{simple_convnet_forward.1} parent=11 // pred_check_branch
        %302 = sbr.rel (%p300) target = $region24
      $region23: #{simple_convnet_forward.1} parent=11 // pred_region
        _
      $region24: #{simple_convnet_forward.1} parent=11 // pred_fallthru
        _
      // Predicated region
      $region25: #{simple_convnet_forward.1} parent=11 // pred_check
        %p303 = pneg %p127
      $region26: #{simple_convnet_forward.1} parent=11 // pred_check_branch
        %305 = sbr.rel (%p303) target = $region28
      $region27: #{simple_convnet_forward.1} parent=11 // pred_region
        _
      $region28: #{simple_convnet_forward.1} parent=11 // pred_fallthru
        _
      // Predicated region
      $region29: #{simple_convnet_forward.1} parent=11 // pred_check
        %p306 = pneg %p148
      $region30: #{simple_convnet_forward.1} parent=11 // pred_check_branch
        %308 = sbr.rel (%p306) target = $region32
      $region31: #{simple_convnet_forward.1} parent=11 // pred_region
        _
      $region32: #{simple_convnet_forward.1} parent=11 // pred_fallthru
        _
      // Predicated region
      $region33: #{simple_convnet_forward.1} parent=11 // pred_check
        %p309 = pneg %p169
      $region34: #{simple_convnet_forward.1} parent=11 // pred_check_branch
        %311 = sbr.rel (%p309) target = $region36
      $region35: #{simple_convnet_forward.1} parent=11 // pred_region
        _
      $region36: #{simple_convnet_forward.1} parent=11 // pred_fallthru
        _
      // Predicated region
      $region37: #{simple_convnet_forward.1} parent=11 // pred_check
        %p312 = pneg %p190
      $region38: #{simple_convnet_forward.1} parent=11 // pred_check_branch
        %314 = sbr.rel (%p312) target = $region40
      $region39: #{simple_convnet_forward.1} parent=11 // pred_region
        _
      $region40: #{simple_convnet_forward.1} parent=11 // pred_fallthru
        _
      // Predicated region
      $region41: #{simple_convnet_forward.1} parent=11 // pred_check
        %p315 = pneg %p211
      $region42: #{simple_convnet_forward.1} parent=11 // pred_check_branch
        %317 = sbr.rel (%p315) target = $region44
      $region43: #{simple_convnet_forward.1} parent=11 // pred_region
        _
      $region44: #{simple_convnet_forward.1} parent=11 // pred_fallthru
        _
      // Predicated region
      $region45: #{simple_convnet_forward.1} parent=11 // pred_check
        %p318 = pneg %p232
      $region46: #{simple_convnet_forward.1} parent=11 // pred_check_branch
        %320 = sbr.rel (%p318) target = $region48
      $region47: #{simple_convnet_forward.1} parent=11 // pred_region
        _
      $region48: #{simple_convnet_forward.1} parent=11 // pred_fallthru
        _
      // Predicated region
      $region49: #{simple_convnet_forward.1} parent=11 // pred_check
        %p321 = pneg %p253
      $region50: #{simple_convnet_forward.1} parent=11 // pred_check_branch
        %323 = sbr.rel (%p321) target = $region52
      $region51: #{simple_convnet_forward.1} parent=11 // pred_region
        _
      $region52: #{simple_convnet_forward.1} parent=11 // pred_fallthru
        _
    $region12: #{simple_convnet_forward.1} parent=5 // pred_fallthru
      _
    %p324 = scmp.lt.s32.totalorder %s17, 2
    // Predicated region
    $region53: #{simple_convnet_forward.1} parent=5 // pred_check
      %p325 = pneg %p324
    $region54: #{simple_convnet_forward.1} parent=5 // pred_check_branch
      %327 = sbr.rel (%p325) target = $region56
    $region55: #{simple_convnet_forward.1} parent=5 // pred_region
      // Predicated region
      $region57: #{simple_convnet_forward.1} parent=55 // pred_check
        %p328 = pneg %p37
      $region58: #{simple_convnet_forward.1} parent=55 // pred_check_branch
        %330 = sbr.rel (%p328) target = $region60
      $region59: #{simple_convnet_forward.1} parent=55 // pred_region
        %p331 = scmp.lt.s32.totalorder %s17, 1
        %s332 = scalar_select %p331, %s17, 1
        %s333 = smul.addr %s332, 20
        %s334 = smul.addr %s333, 8
        %s335 = scalar_lea.vmem %s0, %s334
      $region60: #{simple_convnet_forward.1} parent=55 // pred_fallthru
        _
    $region56: #{simple_convnet_forward.1} parent=5 // pred_fallthru
      _
    %p336 = scmp.le.s32.totalorder 1, %s17
    %p337 = scmp.lt.s32.totalorder %s17, 3
    %p338 = pnand %p336, %p337
    %p339 = pneg %p338
    // Predicated region
    $region61: #{simple_convnet_forward.1} parent=5 // pred_check
      _
    $region62: #{simple_convnet_forward.1} parent=5 // pred_check_branch
      %341 = sbr.rel (%p338) target = $region64
    $region63: #{simple_convnet_forward.1} parent=5 // pred_region
      %s342 = ssub.s32 %s17, 1
      %p343 = scmp.lt.s32.totalorder %s22, 1
      %s344 = scalar_select %p343, %s22, 1
      %s345 = smul.addr %s344, 20
      %s346 = smul.addr %s345, 8
      %s347 = scalar_lea.vmem %s0, %s346
      %p348 = pneg %p43
      %p349 = pneg %p40
      %p350 = pneg %p64
      %p351 = pneg %p61
      %p352 = pneg %p85
      %p353 = pneg %p82
      %p354 = pneg %p106
      %p355 = pneg %p103
      %p356 = pneg %p127
      %p357 = pneg %p124
      %p358 = pneg %p148
      %p359 = pneg %p145
      %p360 = pneg %p169
      %p361 = pneg %p166
      %p362 = pneg %p190
      %p363 = pneg %p187
      %p364 = pneg %p211
      %p365 = pneg %p208
      %p366 = pneg %p232
      %p367 = pneg %p229
      %p368 = pneg %p253
      %p369 = pneg %p250
      %p370 = pneg %p279
      %p371 = pneg %p276
      %s372 = smul.u32 2, %s22
      %p373 = scmp.lt.s32.totalorder %s372, 3
      %s374 = scalar_select %p373, %s372, 3
      %s375 = smul.addr %s374, 2
      %s376 = smul.addr %s375, 8
      %s377 = scalar_lea.vmem %s11, %s376
      %p378 = scmp.lt.s32.totalorder %s22, 1
      %s379 = scalar_select %p378, %s22, 1
      %s380 = smul.addr %s379, 20
      %s381 = smul.addr %s380, 8
      %s382 = scalar_lea.vmem %s0, %s381
      %s383 = smul.u32 2, %s22
      %p384 = scmp.lt.s32.totalorder %s383, 3
      %s385 = scalar_select %p384, %s383, 3
      %s386 = smul.addr %s385, 2
      %s387 = smul.addr %s386, 8
      %s388 = scalar_lea.vmem %s11, %s387
      %s389 = smul.u32 2, %s22
      %v390 = vld [vmem:[%s382] sm:$0xff]
      %v391 = vld [vmem:[%s382 + $0x8] sm:$0xff]
      %v392 = vld [vmem:[%s382 + $0x10] sm:$0xff]
      %v393 = vld [vmem:[%s382 + $0x18] sm:$0xff]
      %v394 = vld [vmem:[%s382 + $0x20] sm:$0xff]
      %v395 = vld [vmem:[%s382 + $0x28] sm:$0xff]
      %v396 = vld [vmem:[%s382 + $0x30] sm:$0xff]
      %v397 = vld [vmem:[%s382 + $0x38] sm:$0xff]
      %v398 = vld [vmem:[%s382 + $0x40] sm:$0xff]
      %v399 = vld [vmem:[%s382 + $0x48] sm:$0xff]
      %v400 = vld [vmem:[%s382 + $0x50] sm:$0xff]
      %v401 = vld [vmem:[%s382 + $0x58] sm:$0xff]
      %v402 = vld [vmem:[%s382 + $0x60] sm:$0xff]
      %v403 = vld [vmem:[%s382 + $0x68] sm:$0xff]
      %v404 = vld [vmem:[%s382 + $0x70] sm:$0xff]
      %v405 = vld [vmem:[%s382 + $0x78] sm:$0xff]
      %v406 = vld [vmem:[%s382 + $0x80] sm:$0xff]
      %v407 = vld [vmem:[%s382 + $0x88] sm:$0xff]
      %v408 = vld [vmem:[%s382 + $0x90] sm:$0xff]
      %v409 = vld [vmem:[%s382 + $0x98] sm:$0xff]
      %429 = vrot.lane.b32.xlu0 %v390, 127
      %v430 = vpop.permute.xlu0 %429
      %431 = vrot.lane.b32.xlu0 %v391, 127
      %v432 = vpop.permute.xlu0 %431
      %433 = vrot.lane.b32.xlu0 %v392, 127
      %v434 = vpop.permute.xlu0 %433
      %435 = vrot.lane.b32.xlu0 %v393, 127
      %v436 = vpop.permute.xlu0 %435
      %437 = vrot.lane.b32.xlu0 %v394, 127
      %v438 = vpop.permute.xlu0 %437
      %439 = vrot.lane.b32.xlu0 %v395, 127
      %v440 = vpop.permute.xlu0 %439
      %441 = vrot.lane.b32.xlu0 %v396, 127
      %v442 = vpop.permute.xlu0 %441
      %443 = vrot.lane.b32.xlu0 %v397, 127
      %v444 = vpop.permute.xlu0 %443
      %445 = vrot.lane.b32.xlu0 %v398, 127
      %v446 = vpop.permute.xlu0 %445
      %447 = vrot.lane.b32.xlu0 %v399, 127
      %v448 = vpop.permute.xlu0 %447
      %449 = vrot.lane.b32.xlu0 %v400, 127
      %v450 = vpop.permute.xlu0 %449
      %451 = vrot.lane.b32.xlu0 %v401, 127
      %v452 = vpop.permute.xlu0 %451
      %453 = vrot.lane.b32.xlu0 %v402, 127
      %v454 = vpop.permute.xlu0 %453
      %455 = vrot.lane.b32.xlu0 %v403, 127
      %v456 = vpop.permute.xlu0 %455
      %457 = vrot.lane.b32.xlu0 %v404, 127
      %v458 = vpop.permute.xlu0 %457
      %459 = vrot.lane.b32.xlu0 %v405, 127
      %v460 = vpop.permute.xlu0 %459
      %461 = vrot.lane.b32.xlu0 %v406, 127
      %v462 = vpop.permute.xlu0 %461
      %463 = vrot.lane.b32.xlu0 %v407, 127
      %v464 = vpop.permute.xlu0 %463
      %465 = vrot.lane.b32.xlu0 %v408, 127
      %v466 = vpop.permute.xlu0 %465
      %vm467 = vcmask 1039360
      %v468 = vsel %vm467, %v430, %v432
      %v469 = vsel %vm467, %v432, %v434
      %v470 = vsel %vm467, %v434, %v436
      %v471 = vsel %vm467, %v436, %v438
      %v472 = vsel %vm467, %v438, %v440
      %v473 = vsel %vm467, %v440, %v442
      %v474 = vsel %vm467, %v442, %v444
      %v475 = vsel %vm467, %v444, %v446
      %v476 = vsel %vm467, %v446, %v448
      %v477 = vsel %vm467, %v448, %v450
      %v478 = vsel %vm467, %v450, %v452
      %v479 = vsel %vm467, %v452, %v454
      %v480 = vsel %vm467, %v454, %v456
      %v481 = vsel %vm467, %v456, %v458
      %v482 = vsel %vm467, %v458, %v460
      %v483 = vsel %vm467, %v460, %v462
      %v484 = vsel %vm467, %v462, %v464
      %v485 = vsel %vm467, %v464, %v466
      %505 = vrot.lane.b32.xlu0 %v390, 126
      %v506 = vpop.permute.xlu0 %505
      %507 = vrot.lane.b32.xlu0 %v391, 126
      %v508 = vpop.permute.xlu0 %507
      %509 = vrot.lane.b32.xlu0 %v392, 126
      %v510 = vpop.permute.xlu0 %509
      %511 = vrot.lane.b32.xlu0 %v393, 126
      %v512 = vpop.permute.xlu0 %511
      %513 = vrot.lane.b32.xlu0 %v394, 126
      %v514 = vpop.permute.xlu0 %513
      %515 = vrot.lane.b32.xlu0 %v395, 126
      %v516 = vpop.permute.xlu0 %515
      %517 = vrot.lane.b32.xlu0 %v396, 126
      %v518 = vpop.permute.xlu0 %517
      %519 = vrot.lane.b32.xlu0 %v397, 126
      %v520 = vpop.permute.xlu0 %519
      %521 = vrot.lane.b32.xlu0 %v398, 126
      %v522 = vpop.permute.xlu0 %521
      %523 = vrot.lane.b32.xlu0 %v399, 126
      %v524 = vpop.permute.xlu0 %523
      %525 = vrot.lane.b32.xlu0 %v400, 126
      %v526 = vpop.permute.xlu0 %525
      %527 = vrot.lane.b32.xlu0 %v401, 126
      %v528 = vpop.permute.xlu0 %527
      %529 = vrot.lane.b32.xlu0 %v402, 126
      %v530 = vpop.permute.xlu0 %529
      %531 = vrot.lane.b32.xlu0 %v403, 126
      %v532 = vpop.permute.xlu0 %531
      %533 = vrot.lane.b32.xlu0 %v404, 126
      %v534 = vpop.permute.xlu0 %533
      %535 = vrot.lane.b32.xlu0 %v405, 126
      %v536 = vpop.permute.xlu0 %535
      %537 = vrot.lane.b32.xlu0 %v406, 126
      %v538 = vpop.permute.xlu0 %537
      %539 = vrot.lane.b32.xlu0 %v407, 126
      %v540 = vpop.permute.xlu0 %539
      %541 = vrot.lane.b32.xlu0 %v408, 126
      %v542 = vpop.permute.xlu0 %541
      %vm543 = vcmask 1031168
      %v544 = vsel %vm543, %v506, %v508
      %v545 = vsel %vm543, %v508, %v510
      %v546 = vsel %vm543, %v510, %v512
      %v547 = vsel %vm543, %v512, %v514
      %v548 = vsel %vm543, %v514, %v516
      %v549 = vsel %vm543, %v516, %v518
      %v550 = vsel %vm543, %v518, %v520
      %v551 = vsel %vm543, %v520, %v522
      %v552 = vsel %vm543, %v522, %v524
      %v553 = vsel %vm543, %v524, %v526
      %v554 = vsel %vm543, %v526, %v528
      %v555 = vsel %vm543, %v528, %v530
      %v556 = vsel %vm543, %v530, %v532
      %v557 = vsel %vm543, %v532, %v534
      %v558 = vsel %vm543, %v534, %v536
      %v559 = vsel %vm543, %v536, %v538
      %v560 = vsel %vm543, %v538, %v540
      %v561 = vsel %vm543, %v540, %v542
      %581 = vrot.lane.b32.xlu0 %v390, 94
      %v582 = vpop.permute.xlu0 %581
      %583 = vrot.lane.b32.xlu0 %v391, 94
      %v584 = vpop.permute.xlu0 %583
      %585 = vrot.lane.b32.xlu0 %v392, 94
      %v586 = vpop.permute.xlu0 %585
      %587 = vrot.lane.b32.xlu0 %v393, 94
      %v588 = vpop.permute.xlu0 %587
      %589 = vrot.lane.b32.xlu0 %v394, 94
      %v590 = vpop.permute.xlu0 %589
      %591 = vrot.lane.b32.xlu0 %v395, 94
      %v592 = vpop.permute.xlu0 %591
      %593 = vrot.lane.b32.xlu0 %v396, 94
      %v594 = vpop.permute.xlu0 %593
      %595 = vrot.lane.b32.xlu0 %v397, 94
      %v596 = vpop.permute.xlu0 %595
      %597 = vrot.lane.b32.xlu0 %v398, 94
      %v598 = vpop.permute.xlu0 %597
      %599 = vrot.lane.b32.xlu0 %v399, 94
      %v600 = vpop.permute.xlu0 %599
      %601 = vrot.lane.b32.xlu0 %v400, 94
      %v602 = vpop.permute.xlu0 %601
      %603 = vrot.lane.b32.xlu0 %v401, 94
      %v604 = vpop.permute.xlu0 %603
      %605 = vrot.lane.b32.xlu0 %v402, 94
      %v606 = vpop.permute.xlu0 %605
      %607 = vrot.lane.b32.xlu0 %v403, 94
      %v608 = vpop.permute.xlu0 %607
      %609 = vrot.lane.b32.xlu0 %v404, 94
      %v610 = vpop.permute.xlu0 %609
      %611 = vrot.lane.b32.xlu0 %v405, 94
      %v612 = vpop.permute.xlu0 %611
      %613 = vrot.lane.b32.xlu0 %v406, 94
      %v614 = vpop.permute.xlu0 %613
      %615 = vrot.lane.b32.xlu0 %v407, 94
      %v616 = vpop.permute.xlu0 %615
      %617 = vrot.lane.b32.xlu0 %v408, 94
      %v618 = vpop.permute.xlu0 %617
      %vm619 = vcmask 769024
      %v620 = vsel %vm619, %v582, %v584
      %v621 = vsel %vm619, %v584, %v586
      %v622 = vsel %vm619, %v586, %v588
      %v623 = vsel %vm619, %v588, %v590
      %v624 = vsel %vm619, %v590, %v592
      %v625 = vsel %vm619, %v592, %v594
      %v626 = vsel %vm619, %v594, %v596
      %v627 = vsel %vm619, %v596, %v598
      %v628 = vsel %vm619, %v598, %v600
      %v629 = vsel %vm619, %v600, %v602
      %v630 = vsel %vm619, %v602, %v604
      %v631 = vsel %vm619, %v604, %v606
      %v632 = vsel %vm619, %v606, %v608
      %v633 = vsel %vm619, %v608, %v610
      %v634 = vsel %vm619, %v610, %v612
      %v635 = vsel %vm619, %v612, %v614
      %v636 = vsel %vm619, %v614, %v616
      %v637 = vsel %vm619, %v616, %v618
      %657 = vrot.lane.b32.xlu0 %v390, 93
      %v658 = vpop.permute.xlu0 %657
      %659 = vrot.lane.b32.xlu0 %v391, 93
      %v660 = vpop.permute.xlu0 %659
      %661 = vrot.lane.b32.xlu0 %v392, 93
      %v662 = vpop.permute.xlu0 %661
      %663 = vrot.lane.b32.xlu0 %v393, 93
      %v664 = vpop.permute.xlu0 %663
      %665 = vrot.lane.b32.xlu0 %v394, 93
      %v666 = vpop.permute.xlu0 %665
      %667 = vrot.lane.b32.xlu0 %v395, 93
      %v668 = vpop.permute.xlu0 %667
      %669 = vrot.lane.b32.xlu0 %v396, 93
      %v670 = vpop.permute.xlu0 %669
      %671 = vrot.lane.b32.xlu0 %v397, 93
      %v672 = vpop.permute.xlu0 %671
      %673 = vrot.lane.b32.xlu0 %v398, 93
      %v674 = vpop.permute.xlu0 %673
      %675 = vrot.lane.b32.xlu0 %v399, 93
      %v676 = vpop.permute.xlu0 %675
      %677 = vrot.lane.b32.xlu0 %v400, 93
      %v678 = vpop.permute.xlu0 %677
      %679 = vrot.lane.b32.xlu0 %v401, 93
      %v680 = vpop.permute.xlu0 %679
      %681 = vrot.lane.b32.xlu0 %v402, 93
      %v682 = vpop.permute.xlu0 %681
      %683 = vrot.lane.b32.xlu0 %v403, 93
      %v684 = vpop.permute.xlu0 %683
      %685 = vrot.lane.b32.xlu0 %v404, 93
      %v686 = vpop.permute.xlu0 %685
      %687 = vrot.lane.b32.xlu0 %v405, 93
      %v688 = vpop.permute.xlu0 %687
      %689 = vrot.lane.b32.xlu0 %v406, 93
      %v690 = vpop.permute.xlu0 %689
      %691 = vrot.lane.b32.xlu0 %v407, 93
      %v692 = vpop.permute.xlu0 %691
      %693 = vrot.lane.b32.xlu0 %v408, 93
      %v694 = vpop.permute.xlu0 %693
      %vm695 = vcmask 760832
      %v696 = vsel %vm695, %v658, %v660
      %v697 = vsel %vm695, %v660, %v662
      %v698 = vsel %vm695, %v662, %v664
      %v699 = vsel %vm695, %v664, %v666
      %v700 = vsel %vm695, %v666, %v668
      %v701 = vsel %vm695, %v668, %v670
      %v702 = vsel %vm695, %v670, %v672
      %v703 = vsel %vm695, %v672, %v674
      %v704 = vsel %vm695, %v674, %v676
      %v705 = vsel %vm695, %v676, %v678
      %v706 = vsel %vm695, %v678, %v680
      %v707 = vsel %vm695, %v680, %v682
      %v708 = vsel %vm695, %v682, %v684
      %v709 = vsel %vm695, %v684, %v686
      %v710 = vsel %vm695, %v686, %v688
      %v711 = vsel %vm695, %v688, %v690
      %v712 = vsel %vm695, %v690, %v692
      %v713 = vsel %vm695, %v692, %v694
      %733 = vrot.lane.b32.xlu0 %v390, 92
      %v734 = vpop.permute.xlu0 %733
      %735 = vrot.lane.b32.xlu0 %v391, 92
      %v736 = vpop.permute.xlu0 %735
      %737 = vrot.lane.b32.xlu0 %v392, 92
      %v738 = vpop.permute.xlu0 %737
      %739 = vrot.lane.b32.xlu0 %v393, 92
      %v740 = vpop.permute.xlu0 %739
      %741 = vrot.lane.b32.xlu0 %v394, 92
      %v742 = vpop.permute.xlu0 %741
      %743 = vrot.lane.b32.xlu0 %v395, 92
      %v744 = vpop.permute.xlu0 %743
      %745 = vrot.lane.b32.xlu0 %v396, 92
      %v746 = vpop.permute.xlu0 %745
      %747 = vrot.lane.b32.xlu0 %v397, 92
      %v748 = vpop.permute.xlu0 %747
      %749 = vrot.lane.b32.xlu0 %v398, 92
      %v750 = vpop.permute.xlu0 %749
      %751 = vrot.lane.b32.xlu0 %v399, 92
      %v752 = vpop.permute.xlu0 %751
      %753 = vrot.lane.b32.xlu0 %v400, 92
      %v754 = vpop.permute.xlu0 %753
      %755 = vrot.lane.b32.xlu0 %v401, 92
      %v756 = vpop.permute.xlu0 %755
      %757 = vrot.lane.b32.xlu0 %v402, 92
      %v758 = vpop.permute.xlu0 %757
      %759 = vrot.lane.b32.xlu0 %v403, 92
      %v760 = vpop.permute.xlu0 %759
      %761 = vrot.lane.b32.xlu0 %v404, 92
      %v762 = vpop.permute.xlu0 %761
      %763 = vrot.lane.b32.xlu0 %v405, 92
      %v764 = vpop.permute.xlu0 %763
      %765 = vrot.lane.b32.xlu0 %v406, 92
      %v766 = vpop.permute.xlu0 %765
      %767 = vrot.lane.b32.xlu0 %v407, 92
      %v768 = vpop.permute.xlu0 %767
      %769 = vrot.lane.b32.xlu0 %v408, 92
      %v770 = vpop.permute.xlu0 %769
      %vm771 = vcmask 752640
      %v772 = vsel %vm771, %v734, %v736
      %v773 = vsel %vm771, %v736, %v738
      %v774 = vsel %vm771, %v738, %v740
      %v775 = vsel %vm771, %v740, %v742
      %v776 = vsel %vm771, %v742, %v744
      %v777 = vsel %vm771, %v744, %v746
      %v778 = vsel %vm771, %v746, %v748
      %v779 = vsel %vm771, %v748, %v750
      %v780 = vsel %vm771, %v750, %v752
      %v781 = vsel %vm771, %v752, %v754
      %v782 = vsel %vm771, %v754, %v756
      %v783 = vsel %vm771, %v756, %v758
      %v784 = vsel %vm771, %v758, %v760
      %v785 = vsel %vm771, %v760, %v762
      %v786 = vsel %vm771, %v762, %v764
      %v787 = vsel %vm771, %v764, %v766
      %v788 = vsel %vm771, %v766, %v768
      %v789 = vsel %vm771, %v768, %v770
      %810 = vrot.lane.b32.xlu0 %v390, 60
      %v811 = vpop.permute.xlu0 %810
      %812 = vrot.lane.b32.xlu0 %v391, 60
      %v813 = vpop.permute.xlu0 %812
      %814 = vrot.lane.b32.xlu0 %v392, 60
      %v815 = vpop.permute.xlu0 %814
      %816 = vrot.lane.b32.xlu0 %v393, 60
      %v817 = vpop.permute.xlu0 %816
      %818 = vrot.lane.b32.xlu0 %v394, 60
      %v819 = vpop.permute.xlu0 %818
      %820 = vrot.lane.b32.xlu0 %v395, 60
      %v821 = vpop.permute.xlu0 %820
      %822 = vrot.lane.b32.xlu0 %v396, 60
      %v823 = vpop.permute.xlu0 %822
      %824 = vrot.lane.b32.xlu0 %v397, 60
      %v825 = vpop.permute.xlu0 %824
      %826 = vrot.lane.b32.xlu0 %v398, 60
      %v827 = vpop.permute.xlu0 %826
      %828 = vrot.lane.b32.xlu0 %v399, 60
      %v829 = vpop.permute.xlu0 %828
      %830 = vrot.lane.b32.xlu0 %v400, 60
      %v831 = vpop.permute.xlu0 %830
      %832 = vrot.lane.b32.xlu0 %v401, 60
      %v833 = vpop.permute.xlu0 %832
      %834 = vrot.lane.b32.xlu0 %v402, 60
      %v835 = vpop.permute.xlu0 %834
      %836 = vrot.lane.b32.xlu0 %v403, 60
      %v837 = vpop.permute.xlu0 %836
      %838 = vrot.lane.b32.xlu0 %v404, 60
      %v839 = vpop.permute.xlu0 %838
      %840 = vrot.lane.b32.xlu0 %v405, 60
      %v841 = vpop.permute.xlu0 %840
      %842 = vrot.lane.b32.xlu0 %v406, 60
      %v843 = vpop.permute.xlu0 %842
      %844 = vrot.lane.b32.xlu0 %v407, 60
      %v845 = vpop.permute.xlu0 %844
      %846 = vrot.lane.b32.xlu0 %v408, 60
      %v847 = vpop.permute.xlu0 %846
      %848 = vrot.lane.b32.xlu0 %v409, 60
      %v849 = vpop.permute.xlu0 %848
      %vm850 = vcmask 490496
      %v851 = vsel %vm850, %v811, %v813
      %v852 = vsel %vm850, %v813, %v815
      %v853 = vsel %vm850, %v815, %v817
      %v854 = vsel %vm850, %v817, %v819
      %v855 = vsel %vm850, %v819, %v821
      %v856 = vsel %vm850, %v821, %v823
      %v857 = vsel %vm850, %v823, %v825
      %v858 = vsel %vm850, %v825, %v827
      %v859 = vsel %vm850, %v827, %v829
      %v860 = vsel %vm850, %v829, %v831
      %v861 = vsel %vm850, %v831, %v833
      %v862 = vsel %vm850, %v833, %v835
      %v863 = vsel %vm850, %v835, %v837
      %v864 = vsel %vm850, %v837, %v839
      %v865 = vsel %vm850, %v839, %v841
      %v866 = vsel %vm850, %v841, %v843
      %v867 = vsel %vm850, %v843, %v845
      %v868 = vsel %vm850, %v845, %v847
      %v869 = vsel %vm850, %v847, %v849
      %889 = vrot.lane.b32.xlu0 %v390, 59
      %v890 = vpop.permute.xlu0 %889
      %891 = vrot.lane.b32.xlu0 %v391, 59
      %v892 = vpop.permute.xlu0 %891
      %893 = vrot.lane.b32.xlu0 %v392, 59
      %v894 = vpop.permute.xlu0 %893
      %895 = vrot.lane.b32.xlu0 %v393, 59
      %v896 = vpop.permute.xlu0 %895
      %897 = vrot.lane.b32.xlu0 %v394, 59
      %v898 = vpop.permute.xlu0 %897
      %899 = vrot.lane.b32.xlu0 %v395, 59
      %v900 = vpop.permute.xlu0 %899
      %901 = vrot.lane.b32.xlu0 %v396, 59
      %v902 = vpop.permute.xlu0 %901
      %903 = vrot.lane.b32.xlu0 %v397, 59
      %v904 = vpop.permute.xlu0 %903
      %905 = vrot.lane.b32.xlu0 %v398, 59
      %v906 = vpop.permute.xlu0 %905
      %907 = vrot.lane.b32.xlu0 %v399, 59
      %v908 = vpop.permute.xlu0 %907
      %909 = vrot.lane.b32.xlu0 %v400, 59
      %v910 = vpop.permute.xlu0 %909
      %911 = vrot.lane.b32.xlu0 %v401, 59
      %v912 = vpop.permute.xlu0 %911
      %913 = vrot.lane.b32.xlu0 %v402, 59
      %v914 = vpop.permute.xlu0 %913
      %915 = vrot.lane.b32.xlu0 %v403, 59
      %v916 = vpop.permute.xlu0 %915
      %917 = vrot.lane.b32.xlu0 %v404, 59
      %v918 = vpop.permute.xlu0 %917
      %919 = vrot.lane.b32.xlu0 %v405, 59
      %v920 = vpop.permute.xlu0 %919
      %921 = vrot.lane.b32.xlu0 %v406, 59
      %v922 = vpop.permute.xlu0 %921
      %923 = vrot.lane.b32.xlu0 %v407, 59
      %v924 = vpop.permute.xlu0 %923
      %925 = vrot.lane.b32.xlu0 %v408, 59
      %v926 = vpop.permute.xlu0 %925
      %927 = vrot.lane.b32.xlu0 %v409, 59
      %v928 = vpop.permute.xlu0 %927
      %vm929 = vcmask 482304
      %v930 = vsel %vm929, %v890, %v892
      %v931 = vsel %vm929, %v892, %v894
      %v932 = vsel %vm929, %v894, %v896
      %v933 = vsel %vm929, %v896, %v898
      %v934 = vsel %vm929, %v898, %v900
      %v935 = vsel %vm929, %v900, %v902
      %v936 = vsel %vm929, %v902, %v904
      %v937 = vsel %vm929, %v904, %v906
      %v938 = vsel %vm929, %v906, %v908
      %v939 = vsel %vm929, %v908, %v910
      %v940 = vsel %vm929, %v910, %v912
      %v941 = vsel %vm929, %v912, %v914
      %v942 = vsel %vm929, %v914, %v916
      %v943 = vsel %vm929, %v916, %v918
      %v944 = vsel %vm929, %v918, %v920
      %v945 = vsel %vm929, %v920, %v922
      %v946 = vsel %vm929, %v922, %v924
      %v947 = vsel %vm929, %v924, %v926
      %v948 = vsel %vm929, %v926, %v928
      %968 = vrot.lane.b32.xlu0 %v390, 58
      %v969 = vpop.permute.xlu0 %968
      %970 = vrot.lane.b32.xlu0 %v391, 58
      %v971 = vpop.permute.xlu0 %970
      %972 = vrot.lane.b32.xlu0 %v392, 58
      %v973 = vpop.permute.xlu0 %972
      %974 = vrot.lane.b32.xlu0 %v393, 58
      %v975 = vpop.permute.xlu0 %974
      %976 = vrot.lane.b32.xlu0 %v394, 58
      %v977 = vpop.permute.xlu0 %976
      %978 = vrot.lane.b32.xlu0 %v395, 58
      %v979 = vpop.permute.xlu0 %978
      %980 = vrot.lane.b32.xlu0 %v396, 58
      %v981 = vpop.permute.xlu0 %980
      %982 = vrot.lane.b32.xlu0 %v397, 58
      %v983 = vpop.permute.xlu0 %982
      %984 = vrot.lane.b32.xlu0 %v398, 58
      %v985 = vpop.permute.xlu0 %984
      %986 = vrot.lane.b32.xlu0 %v399, 58
      %v987 = vpop.permute.xlu0 %986
      %988 = vrot.lane.b32.xlu0 %v400, 58
      %v989 = vpop.permute.xlu0 %988
      %990 = vrot.lane.b32.xlu0 %v401, 58
      %v991 = vpop.permute.xlu0 %990
      %992 = vrot.lane.b32.xlu0 %v402, 58
      %v993 = vpop.permute.xlu0 %992
      %994 = vrot.lane.b32.xlu0 %v403, 58
      %v995 = vpop.permute.xlu0 %994
      %996 = vrot.lane.b32.xlu0 %v404, 58
      %v997 = vpop.permute.xlu0 %996
      %998 = vrot.lane.b32.xlu0 %v405, 58
      %v999 = vpop.permute.xlu0 %998
      %1000 = vrot.lane.b32.xlu0 %v406, 58
      %v1001 = vpop.permute.xlu0 %1000
      %1002 = vrot.lane.b32.xlu0 %v407, 58
      %v1003 = vpop.permute.xlu0 %1002
      %1004 = vrot.lane.b32.xlu0 %v408, 58
      %v1005 = vpop.permute.xlu0 %1004
      %1006 = vrot.lane.b32.xlu0 %v409, 58
      %v1007 = vpop.permute.xlu0 %1006
      %vm1008 = vcmask 474112
      %v1009 = vsel %vm1008, %v969, %v971
      %v1010 = vsel %vm1008, %v971, %v973
      %v1011 = vsel %vm1008, %v973, %v975
      %v1012 = vsel %vm1008, %v975, %v977
      %v1013 = vsel %vm1008, %v977, %v979
      %v1014 = vsel %vm1008, %v979, %v981
      %v1015 = vsel %vm1008, %v981, %v983
      %v1016 = vsel %vm1008, %v983, %v985
      %v1017 = vsel %vm1008, %v985, %v987
      %v1018 = vsel %vm1008, %v987, %v989
      %v1019 = vsel %vm1008, %v989, %v991
      %v1020 = vsel %vm1008, %v991, %v993
      %v1021 = vsel %vm1008, %v993, %v995
      %v1022 = vsel %vm1008, %v995, %v997
      %v1023 = vsel %vm1008, %v997, %v999
      %v1024 = vsel %vm1008, %v999, %v1001
      %v1025 = vsel %vm1008, %v1001, %v1003
      %v1026 = vsel %vm1008, %v1003, %v1005
      %v1027 = vsel %vm1008, %v1005, %v1007
      %v1047 = vld [vmem:[%s1] sm:$0xff]
      %v1048 = vld [vmem:[%s1 + $0x8] sm:$0xff]
      %v1049 = vld [vmem:[%s2] sm:$0xff]
      %v1050 = vld [vmem:[%s2 + $0x8] sm:$0xff]
      %1052 = vset.pattern.permute.xlu0 0
      %1053 = vperm.xlu0 %1052, %v1049
      %v1054 = vpop.permute.xlu0 %1053
      %1057 = vset.pattern.permute.xlu0 0
      %1058 = vperm.xlu0 %1057, %v1050
      %v1059 = vpop.permute.xlu0 %1058
      %vm1061 = vcmask 588800
      %v1063 = vsel %vm1061, %v1047, 0
      %v1066 = vsel %vm1061, %v1048, 0
      %1068 = vmatprep.subr.mxu0 %v391
      %1069 = vmatpush1.msra.mxu0 %v390
      %1070 = vmatprep.subr.mxu0 %v469
      %1071 = vmatpush1.msra.mxu0 %v468
      %1072 = vmatprep.subr.mxu0 %v545
      %1073 = vmatpush1.msra.mxu0 %v544
      %1074 = vmatprep.subr.mxu0 %v621
      %1075 = vmatpush1.msra.mxu0 %v620
      %1076 = vmatprep.subr.mxu0 %v697
      %1077 = vmatpush1.msra.mxu0 %v696
      %1078 = vmatprep.subr.mxu0 %v773
      %1079 = vmatpush1.msra.mxu0 %v772
      %1080 = vmatprep.subr.mxu0 %v852
      %1081 = vmatpush1.msra.mxu0 %v851
      %1082 = vmatprep.subr.mxu0 %v931
      %1083 = vmatpush1.msra.mxu0 %v930
      %1084 = vmatprep.subr.mxu0 %v1010
      %1085 = vmatpush1.msra.mxu0 %v1009
      %1086 = vmatprep.subr.mxu0 0.0
      %1087 = vmatpush1.msra.mxu0 0.0
      %1088 = vmatprep.subr.mxu0 0.0
      %1089 = vmatpush1.msra.mxu0 0.0
      %1090 = vmatprep.subr.mxu0 0.0
      %1091 = vmatpush1.msra.mxu0 0.0
      %1092 = vmatprep.subr.mxu0 0.0
      %1093 = vmatpush1.msra.mxu0 0.0
      %1094 = vmatprep.subr.mxu0 0.0
      %1095 = vmatpush1.msra.mxu0 0.0
      %1096 = vmatprep.subr.mxu0 0.0
      %1097 = vmatpush1.msra.mxu0 0.0
      %1098 = vmatprep.subr.mxu0 0.0
      %1099 = vmatpush1.msra.mxu0 0.0
      %1100 = vmatprep.subr.mxu0 0.0
      %1101 = vmatpush1.msra.mxu0 0.0
      %1102 = vmatprep.subr.mxu0 0.0
      %1103 = vmatpush1.msra.mxu0 0.0
      %1104 = vmatprep.subr.mxu0 0.0
      %1105 = vmatpush1.msra.mxu0 0.0
      %1106 = vmatprep.subr.mxu0 0.0
      %1107 = vmatpush1.msra.mxu0 0.0
      %1108 = vmatprep.subr.mxu0 0.0
      %1109 = vmatpush1.msra.mxu0 0.0
      %1110 = vmatprep.subr.mxu0 0.0
      %1111 = vmatpush1.msra.mxu0 0.0
      %1112 = vmatprep.subr.mxu0 0.0
      %1113 = vmatpush1.msra.mxu0 0.0
      %1114 = vmatprep.subr.mxu0 0.0
      %1115 = vmatpush1.msra.mxu0 0.0
      %1116 = vmatprep.subr.mxu0 0.0
      %1117 = vmatpush1.msra.mxu0 0.0
      %1118 = vmatprep.subr.mxu0 0.0
      %1119 = vmatpush1.msra.mxu0 0.0
      %1120 = vmatprep.subr.mxu0 0.0
      %1121 = vmatpush1.msra.mxu0 0.0
      %1122 = vmatprep.subr.mxu0 0.0
      %1123 = vmatpush1.msra.mxu0 0.0
      %1124 = vmatprep.subr.mxu0 0.0
      %1125 = vmatpush1.msra.mxu0 0.0
      %1126 = vmatprep.subr.mxu0 0.0
      %1127 = vmatpush1.msra.mxu0 0.0
      %1128 = vmatprep.subr.mxu0 0.0
      %1129 = vmatpush1.msra.mxu0 0.0
      %1130 = vmatprep.subr.mxu0 0.0
      %1131 = vmatpush1.msra.mxu0 0.0
      %1132 = vmatprep.mubr.f32.mxu0 0.0
      %1133 = vmatmul.mubr.f32.gmra.mrb[0].mxu0 %v1063
      %v1134 = vpop.f32.mrb[0].mxu0
      %v1135 = vadd.f32 %v1054, %v1134
      %v1136 = vpop.f32.mrb[0].mxu0
      %v1137 = vadd.f32 %v1054, %v1136
      %1138 = vmatprep.mubr.f32.mxu0 0.0
      %1139 = vmatmul.mubr.f32.gmra.mrb[0].mxu0 %v1066
      %v1140 = vpop.f32.mrb[0].mxu0
      %v1141 = vadd.f32 %v1059, %v1140
      %v1142 = vpop.f32.mrb[0].mxu0
      %v1143 = vadd.f32 %v1059, %v1142
      %1144 = vdwg.mxu0
      %1145 = vmatprep.subr.mxu0 %v393
      %1146 = vmatpush1.msra.mxu0 %v392
      %1147 = vmatprep.subr.mxu0 %v471
      %1148 = vmatpush1.msra.mxu0 %v470
      %1149 = vmatprep.subr.mxu0 %v547
      %1150 = vmatpush1.msra.mxu0 %v546
      %1151 = vmatprep.subr.mxu0 %v623
      %1152 = vmatpush1.msra.mxu0 %v622
      %1153 = vmatprep.subr.mxu0 %v699
      %1154 = vmatpush1.msra.mxu0 %v698
      %1155 = vmatprep.subr.mxu0 %v775
      %1156 = vmatpush1.msra.mxu0 %v774
      %1157 = vmatprep.subr.mxu0 %v854
      %1158 = vmatpush1.msra.mxu0 %v853
      %1159 = vmatprep.subr.mxu0 %v933
      %1160 = vmatpush1.msra.mxu0 %v932
      %1161 = vmatprep.subr.mxu0 %v1012
      %1162 = vmatpush1.msra.mxu0 %v1011
      %1163 = vmatprep.subr.mxu0 0.0
      %1164 = vmatpush1.msra.mxu0 0.0
      %1165 = vmatprep.subr.mxu0 0.0
      %1166 = vmatpush1.msra.mxu0 0.0
      %1167 = vmatprep.subr.mxu0 0.0
      %1168 = vmatpush1.msra.mxu0 0.0
      %1169 = vmatprep.subr.mxu0 0.0
      %1170 = vmatpush1.msra.mxu0 0.0
      %1171 = vmatprep.subr.mxu0 0.0
      %1172 = vmatpush1.msra.mxu0 0.0
      %1173 = vmatprep.subr.mxu0 0.0
      %1174 = vmatpush1.msra.mxu0 0.0
      %1175 = vmatprep.subr.mxu0 0.0
      %1176 = vmatpush1.msra.mxu0 0.0
      %1177 = vmatprep.subr.mxu0 0.0
      %1178 = vmatpush1.msra.mxu0 0.0
      %1179 = vmatprep.subr.mxu0 0.0
      %1180 = vmatpush1.msra.mxu0 0.0
      %1181 = vmatprep.subr.mxu0 0.0
      %1182 = vmatpush1.msra.mxu0 0.0
      %1183 = vmatprep.subr.mxu0 0.0
      %1184 = vmatpush1.msra.mxu0 0.0
      %1185 = vmatprep.subr.mxu0 0.0
      %1186 = vmatpush1.msra.mxu0 0.0
      %1187 = vmatprep.subr.mxu0 0.0
      %1188 = vmatpush1.msra.mxu0 0.0
      %1189 = vmatprep.subr.mxu0 0.0
      %1190 = vmatpush1.msra.mxu0 0.0
      %1191 = vmatprep.subr.mxu0 0.0
      %1192 = vmatpush1.msra.mxu0 0.0
      %1193 = vmatprep.subr.mxu0 0.0
      %1194 = vmatpush1.msra.mxu0 0.0
      %1195 = vmatprep.subr.mxu0 0.0
      %1196 = vmatpush1.msra.mxu0 0.0
      %1197 = vmatprep.subr.mxu0 0.0
      %1198 = vmatpush1.msra.mxu0 0.0
      %1199 = vmatprep.subr.mxu0 0.0
      %1200 = vmatpush1.msra.mxu0 0.0
      %1201 = vmatprep.subr.mxu0 0.0
      %1202 = vmatpush1.msra.mxu0 0.0
      %1203 = vmatprep.subr.mxu0 0.0
      %1204 = vmatpush1.msra.mxu0 0.0
      %1205 = vmatprep.subr.mxu0 0.0
      %1206 = vmatpush1.msra.mxu0 0.0
      %1207 = vmatprep.subr.mxu0 0.0
      %1208 = vmatpush1.msra.mxu0 0.0
      %1209 = vmatprep.mubr.f32.mxu0 0.0
      %1210 = vmatmul.mubr.f32.gmra.mrb[0].mxu0 %v1063
      %v1211 = vpop.f32.mrb[0].mxu0
      %v1212 = vadd.f32 %v1054, %v1211
      %v1213 = vpop.f32.mrb[0].mxu0
      %v1214 = vadd.f32 %v1054, %v1213
      %1215 = vmatprep.mubr.f32.mxu0 0.0
      %1216 = vmatmul.mubr.f32.gmra.mrb[0].mxu0 %v1066
      %v1217 = vpop.f32.mrb[0].mxu0
      %v1218 = vadd.f32 %v1059, %v1217
      %v1219 = vpop.f32.mrb[0].mxu0
      %v1220 = vadd.f32 %v1059, %v1219
      %1221 = vdwg.mxu0
      %1222 = vmatprep.subr.mxu0 %v395
      %1223 = vmatpush1.msra.mxu0 %v394
      %1224 = vmatprep.subr.mxu0 %v473
      %1225 = vmatpush1.msra.mxu0 %v472
      %1226 = vmatprep.subr.mxu0 %v549
      %1227 = vmatpush1.msra.mxu0 %v548
      %1228 = vmatprep.subr.mxu0 %v625
      %1229 = vmatpush1.msra.mxu0 %v624
      %1230 = vmatprep.subr.mxu0 %v701
      %1231 = vmatpush1.msra.mxu0 %v700
      %1232 = vmatprep.subr.mxu0 %v777
      %1233 = vmatpush1.msra.mxu0 %v776
      %1234 = vmatprep.subr.mxu0 %v856
      %1235 = vmatpush1.msra.mxu0 %v855
      %1236 = vmatprep.subr.mxu0 %v935
      %1237 = vmatpush1.msra.mxu0 %v934
      %1238 = vmatprep.subr.mxu0 %v1014
      %1239 = vmatpush1.msra.mxu0 %v1013
      %1240 = vmatprep.subr.mxu0 0.0
      %1241 = vmatpush1.msra.mxu0 0.0
      %1242 = vmatprep.subr.mxu0 0.0
      %1243 = vmatpush1.msra.mxu0 0.0
      %1244 = vmatprep.subr.mxu0 0.0
      %1245 = vmatpush1.msra.mxu0 0.0
      %1246 = vmatprep.subr.mxu0 0.0
      %1247 = vmatpush1.msra.mxu0 0.0
      %1248 = vmatprep.subr.mxu0 0.0
      %1249 = vmatpush1.msra.mxu0 0.0
      %1250 = vmatprep.subr.mxu0 0.0
      %1251 = vmatpush1.msra.mxu0 0.0
      %1252 = vmatprep.subr.mxu0 0.0
      %1253 = vmatpush1.msra.mxu0 0.0
      %1254 = vmatprep.subr.mxu0 0.0
      %1255 = vmatpush1.msra.mxu0 0.0
      %1256 = vmatprep.subr.mxu0 0.0
      %1257 = vmatpush1.msra.mxu0 0.0
      %1258 = vmatprep.subr.mxu0 0.0
      %1259 = vmatpush1.msra.mxu0 0.0
      %1260 = vmatprep.subr.mxu0 0.0
      %1261 = vmatpush1.msra.mxu0 0.0
      %1262 = vmatprep.subr.mxu0 0.0
      %1263 = vmatpush1.msra.mxu0 0.0
      %1264 = vmatprep.subr.mxu0 0.0
      %1265 = vmatpush1.msra.mxu0 0.0
      %1266 = vmatprep.subr.mxu0 0.0
      %1267 = vmatpush1.msra.mxu0 0.0
      %1268 = vmatprep.subr.mxu0 0.0
      %1269 = vmatpush1.msra.mxu0 0.0
      %1270 = vmatprep.subr.mxu0 0.0
      %1271 = vmatpush1.msra.mxu0 0.0
      %1272 = vmatprep.subr.mxu0 0.0
      %1273 = vmatpush1.msra.mxu0 0.0
      %1274 = vmatprep.subr.mxu0 0.0
      %1275 = vmatpush1.msra.mxu0 0.0
      %1276 = vmatprep.subr.mxu0 0.0
      %1277 = vmatpush1.msra.mxu0 0.0
      %1278 = vmatprep.subr.mxu0 0.0
      %1279 = vmatpush1.msra.mxu0 0.0
      %1280 = vmatprep.subr.mxu0 0.0
      %1281 = vmatpush1.msra.mxu0 0.0
      %1282 = vmatprep.subr.mxu0 0.0
      %1283 = vmatpush1.msra.mxu0 0.0
      %1284 = vmatprep.subr.mxu0 0.0
      %1285 = vmatpush1.msra.mxu0 0.0
      %1286 = vmatprep.mubr.f32.mxu0 0.0
      %1287 = vmatmul.mubr.f32.gmra.mrb[0].mxu0 %v1063
      %v1288 = vpop.f32.mrb[0].mxu0
      %v1289 = vadd.f32 %v1054, %v1288
      %v1290 = vpop.f32.mrb[0].mxu0
      %v1291 = vadd.f32 %v1054, %v1290
      %1292 = vmatprep.mubr.f32.mxu0 0.0
      %1293 = vmatmul.mubr.f32.gmra.mrb[0].mxu0 %v1066
      %v1294 = vpop.f32.mrb[0].mxu0
      %v1295 = vadd.f32 %v1059, %v1294
      %v1296 = vpop.f32.mrb[0].mxu0
      %v1297 = vadd.f32 %v1059, %v1296
      %1298 = vdwg.mxu0
      %1299 = vmatprep.subr.mxu0 %v397
      %1300 = vmatpush1.msra.mxu0 %v396
      %1301 = vmatprep.subr.mxu0 %v475
      %1302 = vmatpush1.msra.mxu0 %v474
      %1303 = vmatprep.subr.mxu0 %v551
      %1304 = vmatpush1.msra.mxu0 %v550
      %1305 = vmatprep.subr.mxu0 %v627
      %1306 = vmatpush1.msra.mxu0 %v626
      %1307 = vmatprep.subr.mxu0 %v703
      %1308 = vmatpush1.msra.mxu0 %v702
      %1309 = vmatprep.subr.mxu0 %v779
      %1310 = vmatpush1.msra.mxu0 %v778
      %1311 = vmatprep.subr.mxu0 %v858
      %1312 = vmatpush1.msra.mxu0 %v857
      %1313 = vmatprep.subr.mxu0 %v937
      %1314 = vmatpush1.msra.mxu0 %v936
      %1315 = vmatprep.subr.mxu0 %v1016
      %1316 = vmatpush1.msra.mxu0 %v1015
      %1317 = vmatprep.subr.mxu0 0.0
      %1318 = vmatpush1.msra.mxu0 0.0
      %1319 = vmatprep.subr.mxu0 0.0
      %1320 = vmatpush1.msra.mxu0 0.0
      %1321 = vmatprep.subr.mxu0 0.0
      %1322 = vmatpush1.msra.mxu0 0.0
      %1323 = vmatprep.subr.mxu0 0.0
      %1324 = vmatpush1.msra.mxu0 0.0
      %1325 = vmatprep.subr.mxu0 0.0
      %1326 = vmatpush1.msra.mxu0 0.0
      %1327 = vmatprep.subr.mxu0 0.0
      %1328 = vmatpush1.msra.mxu0 0.0
      %1329 = vmatprep.subr.mxu0 0.0
      %1330 = vmatpush1.msra.mxu0 0.0
      %1331 = vmatprep.subr.mxu0 0.0
      %1332 = vmatpush1.msra.mxu0 0.0
      %1333 = vmatprep.subr.mxu0 0.0
      %1334 = vmatpush1.msra.mxu0 0.0
      %1335 = vmatprep.subr.mxu0 0.0
      %1336 = vmatpush1.msra.mxu0 0.0
      %1337 = vmatprep.subr.mxu0 0.0
      %1338 = vmatpush1.msra.mxu0 0.0
      %1339 = vmatprep.subr.mxu0 0.0
      %1340 = vmatpush1.msra.mxu0 0.0
      %1341 = vmatprep.subr.mxu0 0.0
      %1342 = vmatpush1.msra.mxu0 0.0
      %1343 = vmatprep.subr.mxu0 0.0
      %1344 = vmatpush1.msra.mxu0 0.0
      %1345 = vmatprep.subr.mxu0 0.0
      %1346 = vmatpush1.msra.mxu0 0.0
      %1347 = vmatprep.subr.mxu0 0.0
      %1348 = vmatpush1.msra.mxu0 0.0
      %1349 = vmatprep.subr.mxu0 0.0
      %1350 = vmatpush1.msra.mxu0 0.0
      %1351 = vmatprep.subr.mxu0 0.0
      %1352 = vmatpush1.msra.mxu0 0.0
      %1353 = vmatprep.subr.mxu0 0.0
      %1354 = vmatpush1.msra.mxu0 0.0
      %1355 = vmatprep.subr.mxu0 0.0
      %1356 = vmatpush1.msra.mxu0 0.0
      %1357 = vmatprep.subr.mxu0 0.0
      %1358 = vmatpush1.msra.mxu0 0.0
      %1359 = vmatprep.subr.mxu0 0.0
      %1360 = vmatpush1.msra.mxu0 0.0
      %1361 = vmatprep.subr.mxu0 0.0
      %1362 = vmatpush1.msra.mxu0 0.0
      %1363 = vmatprep.mubr.f32.mxu0 0.0
      %1364 = vmatmul.mubr.f32.gmra.mrb[0].mxu0 %v1063
      %v1365 = vpop.f32.mrb[0].mxu0
      %v1366 = vadd.f32 %v1054, %v1365
      %v1367 = vpop.f32.mrb[0].mxu0
      %v1368 = vadd.f32 %v1054, %v1367
      %1369 = vmatprep.mubr.f32.mxu0 0.0
      %1370 = vmatmul.mubr.f32.gmra.mrb[0].mxu0 %v1066
      %v1371 = vpop.f32.mrb[0].mxu0
      %v1372 = vadd.f32 %v1059, %v1371
      %v1373 = vpop.f32.mrb[0].mxu0
      %v1374 = vadd.f32 %v1059, %v1373
      %1375 = vdwg.mxu0
      %1376 = vmatprep.subr.mxu0 %v399
      %1377 = vmatpush1.msra.mxu0 %v398
      %1378 = vmatprep.subr.mxu0 %v477
      %1379 = vmatpush1.msra.mxu0 %v476
      %1380 = vmatprep.subr.mxu0 %v553
      %1381 = vmatpush1.msra.mxu0 %v552
      %1382 = vmatprep.subr.mxu0 %v629
      %1383 = vmatpush1.msra.mxu0 %v628
      %1384 = vmatprep.subr.mxu0 %v705
      %1385 = vmatpush1.msra.mxu0 %v704
      %1386 = vmatprep.subr.mxu0 %v781
      %1387 = vmatpush1.msra.mxu0 %v780
      %1388 = vmatprep.subr.mxu0 %v860
      %1389 = vmatpush1.msra.mxu0 %v859
      %1390 = vmatprep.subr.mxu0 %v939
      %1391 = vmatpush1.msra.mxu0 %v938
      %1392 = vmatprep.subr.mxu0 %v1018
      %1393 = vmatpush1.msra.mxu0 %v1017
      %1394 = vmatprep.subr.mxu0 0.0
      %1395 = vmatpush1.msra.mxu0 0.0
      %1396 = vmatprep.subr.mxu0 0.0
      %1397 = vmatpush1.msra.mxu0 0.0
      %1398 = vmatprep.subr.mxu0 0.0
      %1399 = vmatpush1.msra.mxu0 0.0
      %1400 = vmatprep.subr.mxu0 0.0
      %1401 = vmatpush1.msra.mxu0 0.0
      %1402 = vmatprep.subr.mxu0 0.0
      %1403 = vmatpush1.msra.mxu0 0.0
      %1404 = vmatprep.subr.mxu0 0.0
      %1405 = vmatpush1.msra.mxu0 0.0
      %1406 = vmatprep.subr.mxu0 0.0
      %1407 = vmatpush1.msra.mxu0 0.0
      %1408 = vmatprep.subr.mxu0 0.0
      %1409 = vmatpush1.msra.mxu0 0.0
      %1410 = vmatprep.subr.mxu0 0.0
      %1411 = vmatpush1.msra.mxu0 0.0
      %1412 = vmatprep.subr.mxu0 0.0
      %1413 = vmatpush1.msra.mxu0 0.0
      %1414 = vmatprep.subr.mxu0 0.0
      %1415 = vmatpush1.msra.mxu0 0.0
      %1416 = vmatprep.subr.mxu0 0.0
      %1417 = vmatpush1.msra.mxu0 0.0
      %1418 = vmatprep.subr.mxu0 0.0
      %1419 = vmatpush1.msra.mxu0 0.0
      %1420 = vmatprep.subr.mxu0 0.0
      %1421 = vmatpush1.msra.mxu0 0.0
      %1422 = vmatprep.subr.mxu0 0.0
      %1423 = vmatpush1.msra.mxu0 0.0
      %1424 = vmatprep.subr.mxu0 0.0
      %1425 = vmatpush1.msra.mxu0 0.0
      %1426 = vmatprep.subr.mxu0 0.0
      %1427 = vmatpush1.msra.mxu0 0.0
      %1428 = vmatprep.subr.mxu0 0.0
      %1429 = vmatpush1.msra.mxu0 0.0
      %1430 = vmatprep.subr.mxu0 0.0
      %1431 = vmatpush1.msra.mxu0 0.0
      %1432 = vmatprep.subr.mxu0 0.0
      %1433 = vmatpush1.msra.mxu0 0.0
      %1434 = vmatprep.subr.mxu0 0.0
      %1435 = vmatpush1.msra.mxu0 0.0
      %1436 = vmatprep.subr.mxu0 0.0
      %1437 = vmatpush1.msra.mxu0 0.0
      %1438 = vmatprep.subr.mxu0 0.0
      %1439 = vmatpush1.msra.mxu0 0.0
      %1440 = vmatprep.mubr.f32.mxu0 0.0
      %1441 = vmatmul.mubr.f32.gmra.mrb[0].mxu0 %v1063
      %v1442 = vpop.f32.mrb[0].mxu0
      %v1443 = vadd.f32 %v1054, %v1442
      %v1444 = vpop.f32.mrb[0].mxu0
      %v1445 = vadd.f32 %v1054, %v1444
      %1446 = vmatprep.mubr.f32.mxu0 0.0
      %1447 = vmatmul.mubr.f32.gmra.mrb[0].mxu0 %v1066
      %v1448 = vpop.f32.mrb[0].mxu0
      %v1449 = vadd.f32 %v1059, %v1448
      %v1450 = vpop.f32.mrb[0].mxu0
      %v1451 = vadd.f32 %v1059, %v1450
      %1452 = vdwg.mxu0
      %1453 = vmatprep.subr.mxu0 %v401
      %1454 = vmatpush1.msra.mxu0 %v400
      %1455 = vmatprep.subr.mxu0 %v479
      %1456 = vmatpush1.msra.mxu0 %v478
      %1457 = vmatprep.subr.mxu0 %v555
      %1458 = vmatpush1.msra.mxu0 %v554
      %1459 = vmatprep.subr.mxu0 %v631
      %1460 = vmatpush1.msra.mxu0 %v630
      %1461 = vmatprep.subr.mxu0 %v707
      %1462 = vmatpush1.msra.mxu0 %v706
      %1463 = vmatprep.subr.mxu0 %v783
      %1464 = vmatpush1.msra.mxu0 %v782
      %1465 = vmatprep.subr.mxu0 %v862
      %1466 = vmatpush1.msra.mxu0 %v861
      %1467 = vmatprep.subr.mxu0 %v941
      %1468 = vmatpush1.msra.mxu0 %v940
      %1469 = vmatprep.subr.mxu0 %v1020
      %1470 = vmatpush1.msra.mxu0 %v1019
      %1471 = vmatprep.subr.mxu0 0.0
      %1472 = vmatpush1.msra.mxu0 0.0
      %1473 = vmatprep.subr.mxu0 0.0
      %1474 = vmatpush1.msra.mxu0 0.0
      %1475 = vmatprep.subr.mxu0 0.0
      %1476 = vmatpush1.msra.mxu0 0.0
      %1477 = vmatprep.subr.mxu0 0.0
      %1478 = vmatpush1.msra.mxu0 0.0
      %1479 = vmatprep.subr.mxu0 0.0
      %1480 = vmatpush1.msra.mxu0 0.0
      %1481 = vmatprep.subr.mxu0 0.0
      %1482 = vmatpush1.msra.mxu0 0.0
      %1483 = vmatprep.subr.mxu0 0.0
      %1484 = vmatpush1.msra.mxu0 0.0
      %1485 = vmatprep.subr.mxu0 0.0
      %1486 = vmatpush1.msra.mxu0 0.0
      %1487 = vmatprep.subr.mxu0 0.0
      %1488 = vmatpush1.msra.mxu0 0.0
      %1489 = vmatprep.subr.mxu0 0.0
      %1490 = vmatpush1.msra.mxu0 0.0
      %1491 = vmatprep.subr.mxu0 0.0
      %1492 = vmatpush1.msra.mxu0 0.0
      %1493 = vmatprep.subr.mxu0 0.0
      %1494 = vmatpush1.msra.mxu0 0.0
      %1495 = vmatprep.subr.mxu0 0.0
      %1496 = vmatpush1.msra.mxu0 0.0
      %1497 = vmatprep.subr.mxu0 0.0
      %1498 = vmatpush1.msra.mxu0 0.0
      %1499 = vmatprep.subr.mxu0 0.0
      %1500 = vmatpush1.msra.mxu0 0.0
      %1501 = vmatprep.subr.mxu0 0.0
      %1502 = vmatpush1.msra.mxu0 0.0
      %1503 = vmatprep.subr.mxu0 0.0
      %1504 = vmatpush1.msra.mxu0 0.0
      %1505 = vmatprep.subr.mxu0 0.0
      %1506 = vmatpush1.msra.mxu0 0.0
      %1507 = vmatprep.subr.mxu0 0.0
      %1508 = vmatpush1.msra.mxu0 0.0
      %1509 = vmatprep.subr.mxu0 0.0
      %1510 = vmatpush1.msra.mxu0 0.0
      %1511 = vmatprep.subr.mxu0 0.0
      %1512 = vmatpush1.msra.mxu0 0.0
      %1513 = vmatprep.subr.mxu0 0.0
      %1514 = vmatpush1.msra.mxu0 0.0
      %1515 = vmatprep.subr.mxu0 0.0
      %1516 = vmatpush1.msra.mxu0 0.0
      %1517 = vmatprep.mubr.f32.mxu0 0.0
      %1518 = vmatmul.mubr.f32.gmra.mrb[0].mxu0 %v1063
      %v1519 = vpop.f32.mrb[0].mxu0
      %v1520 = vadd.f32 %v1054, %v1519
      %v1521 = vpop.f32.mrb[0].mxu0
      %v1522 = vadd.f32 %v1054, %v1521
      %1523 = vmatprep.mubr.f32.mxu0 0.0
      %1524 = vmatmul.mubr.f32.gmra.mrb[0].mxu0 %v1066
      %v1525 = vpop.f32.mrb[0].mxu0
      %v1526 = vadd.f32 %v1059, %v1525
      %v1527 = vpop.f32.mrb[0].mxu0
      %v1528 = vadd.f32 %v1059, %v1527
      %1529 = vdwg.mxu0
      %1530 = vmatprep.subr.mxu0 %v403
      %1531 = vmatpush1.msra.mxu0 %v402
      %1532 = vmatprep.subr.mxu0 %v481
      %1533 = vmatpush1.msra.mxu0 %v480
      %1534 = vmatprep.subr.mxu0 %v557
      %1535 = vmatpush1.msra.mxu0 %v556
      %1536 = vmatprep.subr.mxu0 %v633
      %1537 = vmatpush1.msra.mxu0 %v632
      %1538 = vmatprep.subr.mxu0 %v709
      %1539 = vmatpush1.msra.mxu0 %v708
      %1540 = vmatprep.subr.mxu0 %v785
      %1541 = vmatpush1.msra.mxu0 %v784
      %1542 = vmatprep.subr.mxu0 %v864
      %1543 = vmatpush1.msra.mxu0 %v863
      %1544 = vmatprep.subr.mxu0 %v943
      %1545 = vmatpush1.msra.mxu0 %v942
      %1546 = vmatprep.subr.mxu0 %v1022
      %1547 = vmatpush1.msra.mxu0 %v1021
      %1548 = vmatprep.subr.mxu0 0.0
      %1549 = vmatpush1.msra.mxu0 0.0
      %1550 = vmatprep.subr.mxu0 0.0
      %1551 = vmatpush1.msra.mxu0 0.0
      %1552 = vmatprep.subr.mxu0 0.0
      %1553 = vmatpush1.msra.mxu0 0.0
      %1554 = vmatprep.subr.mxu0 0.0
      %1555 = vmatpush1.msra.mxu0 0.0
      %1556 = vmatprep.subr.mxu0 0.0
      %1557 = vmatpush1.msra.mxu0 0.0
      %1558 = vmatprep.subr.mxu0 0.0
      %1559 = vmatpush1.msra.mxu0 0.0
      %1560 = vmatprep.subr.mxu0 0.0
      %1561 = vmatpush1.msra.mxu0 0.0
      %1562 = vmatprep.subr.mxu0 0.0
      %1563 = vmatpush1.msra.mxu0 0.0
      %1564 = vmatprep.subr.mxu0 0.0
      %1565 = vmatpush1.msra.mxu0 0.0
      %1566 = vmatprep.subr.mxu0 0.0
      %1567 = vmatpush1.msra.mxu0 0.0
      %1568 = vmatprep.subr.mxu0 0.0
      %1569 = vmatpush1.msra.mxu0 0.0
      %1570 = vmatprep.subr.mxu0 0.0
      %1571 = vmatpush1.msra.mxu0 0.0
      %1572 = vmatprep.subr.mxu0 0.0
      %1573 = vmatpush1.msra.mxu0 0.0
      %1574 = vmatprep.subr.mxu0 0.0
      %1575 = vmatpush1.msra.mxu0 0.0
      %1576 = vmatprep.subr.mxu0 0.0
      %1577 = vmatpush1.msra.mxu0 0.0
      %1578 = vmatprep.subr.mxu0 0.0
      %1579 = vmatpush1.msra.mxu0 0.0
      %1580 = vmatprep.subr.mxu0 0.0
      %1581 = vmatpush1.msra.mxu0 0.0
      %1582 = vmatprep.subr.mxu0 0.0
      %1583 = vmatpush1.msra.mxu0 0.0
      %1584 = vmatprep.subr.mxu0 0.0
      %1585 = vmatpush1.msra.mxu0 0.0
      %1586 = vmatprep.subr.mxu0 0.0
      %1587 = vmatpush1.msra.mxu0 0.0
      %1588 = vmatprep.subr.mxu0 0.0
      %1589 = vmatpush1.msra.mxu0 0.0
      %1590 = vmatprep.subr.mxu0 0.0
      %1591 = vmatpush1.msra.mxu0 0.0
      %1592 = vmatprep.subr.mxu0 0.0
      %1593 = vmatpush1.msra.mxu0 0.0
      %1594 = vmatprep.mubr.f32.mxu0 0.0
      %1595 = vmatmul.mubr.f32.gmra.mrb[0].mxu0 %v1063
      %v1596 = vpop.f32.mrb[0].mxu0
      %v1597 = vadd.f32 %v1054, %v1596
      %v1598 = vpop.f32.mrb[0].mxu0
      %v1599 = vadd.f32 %v1054, %v1598
      %1600 = vmatprep.mubr.f32.mxu0 0.0
      %1601 = vmatmul.mubr.f32.gmra.mrb[0].mxu0 %v1066
      %v1602 = vpop.f32.mrb[0].mxu0
      %v1603 = vadd.f32 %v1059, %v1602
      %v1604 = vpop.f32.mrb[0].mxu0
      %v1605 = vadd.f32 %v1059, %v1604
      %1606 = vdwg.mxu0
      %1607 = vmatprep.subr.mxu0 %v405
      %1608 = vmatpush1.msra.mxu0 %v404
      %1609 = vmatprep.subr.mxu0 %v483
      %1610 = vmatpush1.msra.mxu0 %v482
      %1611 = vmatprep.subr.mxu0 %v559
      %1612 = vmatpush1.msra.mxu0 %v558
      %1613 = vmatprep.subr.mxu0 %v635
      %1614 = vmatpush1.msra.mxu0 %v634
      %1615 = vmatprep.subr.mxu0 %v711
      %1616 = vmatpush1.msra.mxu0 %v710
      %1617 = vmatprep.subr.mxu0 %v787
      %1618 = vmatpush1.msra.mxu0 %v786
      %1619 = vmatprep.subr.mxu0 %v866
      %1620 = vmatpush1.msra.mxu0 %v865
      %1621 = vmatprep.subr.mxu0 %v945
      %1622 = vmatpush1.msra.mxu0 %v944
      %1623 = vmatprep.subr.mxu0 %v1024
      %1624 = vmatpush1.msra.mxu0 %v1023
      %1625 = vmatprep.subr.mxu0 0.0
      %1626 = vmatpush1.msra.mxu0 0.0
      %1627 = vmatprep.subr.mxu0 0.0
      %1628 = vmatpush1.msra.mxu0 0.0
      %1629 = vmatprep.subr.mxu0 0.0
      %1630 = vmatpush1.msra.mxu0 0.0
      %1631 = vmatprep.subr.mxu0 0.0
      %1632 = vmatpush1.msra.mxu0 0.0
      %1633 = vmatprep.subr.mxu0 0.0
      %1634 = vmatpush1.msra.mxu0 0.0
      %1635 = vmatprep.subr.mxu0 0.0
      %1636 = vmatpush1.msra.mxu0 0.0
      %1637 = vmatprep.subr.mxu0 0.0
      %1638 = vmatpush1.msra.mxu0 0.0
      %1639 = vmatprep.subr.mxu0 0.0
      %1640 = vmatpush1.msra.mxu0 0.0
      %1641 = vmatprep.subr.mxu0 0.0
      %1642 = vmatpush1.msra.mxu0 0.0
      %1643 = vmatprep.subr.mxu0 0.0
      %1644 = vmatpush1.msra.mxu0 0.0
      %1645 = vmatprep.subr.mxu0 0.0
      %1646 = vmatpush1.msra.mxu0 0.0
      %1647 = vmatprep.subr.mxu0 0.0
      %1648 = vmatpush1.msra.mxu0 0.0
      %1649 = vmatprep.subr.mxu0 0.0
      %1650 = vmatpush1.msra.mxu0 0.0
      %1651 = vmatprep.subr.mxu0 0.0
      %1652 = vmatpush1.msra.mxu0 0.0
      %1653 = vmatprep.subr.mxu0 0.0
      %1654 = vmatpush1.msra.mxu0 0.0
      %1655 = vmatprep.subr.mxu0 0.0
      %1656 = vmatpush1.msra.mxu0 0.0
      %1657 = vmatprep.subr.mxu0 0.0
      %1658 = vmatpush1.msra.mxu0 0.0
      %1659 = vmatprep.subr.mxu0 0.0
      %1660 = vmatpush1.msra.mxu0 0.0
      %1661 = vmatprep.subr.mxu0 0.0
      %1662 = vmatpush1.msra.mxu0 0.0
      %1663 = vmatprep.subr.mxu0 0.0
      %1664 = vmatpush1.msra.mxu0 0.0
      %1665 = vmatprep.subr.mxu0 0.0
      %1666 = vmatpush1.msra.mxu0 0.0
      %1667 = vmatprep.subr.mxu0 0.0
      %1668 = vmatpush1.msra.mxu0 0.0
      %1669 = vmatprep.subr.mxu0 0.0
      %1670 = vmatpush1.msra.mxu0 0.0
      %1671 = vmatprep.mubr.f32.mxu0 0.0
      %1672 = vmatmul.mubr.f32.gmra.mrb[0].mxu0 %v1063
      %v1673 = vpop.f32.mrb[0].mxu0
      %v1674 = vadd.f32 %v1054, %v1673
      %v1675 = vpop.f32.mrb[0].mxu0
      %v1676 = vadd.f32 %v1054, %v1675
      %1677 = vmatprep.mubr.f32.mxu0 0.0
      %1678 = vmatmul.mubr.f32.gmra.mrb[0].mxu0 %v1066
      %v1679 = vpop.f32.mrb[0].mxu0
      %v1680 = vadd.f32 %v1059, %v1679
      %v1681 = vpop.f32.mrb[0].mxu0
      %v1682 = vadd.f32 %v1059, %v1681
      %1683 = vdwg.mxu0
      %1684 = vmatprep.subr.mxu0 %v407
      %1685 = vmatpush1.msra.mxu0 %v406
      %1686 = vmatprep.subr.mxu0 %v485
      %1687 = vmatpush1.msra.mxu0 %v484
      %1688 = vmatprep.subr.mxu0 %v561
      %1689 = vmatpush1.msra.mxu0 %v560
      %1690 = vmatprep.subr.mxu0 %v637
      %1691 = vmatpush1.msra.mxu0 %v636
      %1692 = vmatprep.subr.mxu0 %v713
      %1693 = vmatpush1.msra.mxu0 %v712
      %1694 = vmatprep.subr.mxu0 %v789
      %1695 = vmatpush1.msra.mxu0 %v788
      %1696 = vmatprep.subr.mxu0 %v868
      %1697 = vmatpush1.msra.mxu0 %v867
      %1698 = vmatprep.subr.mxu0 %v947
      %1699 = vmatpush1.msra.mxu0 %v946
      %1700 = vmatprep.subr.mxu0 %v1026
      %1701 = vmatpush1.msra.mxu0 %v1025
      %1702 = vmatprep.subr.mxu0 0.0
      %1703 = vmatpush1.msra.mxu0 0.0
      %1704 = vmatprep.subr.mxu0 0.0
      %1705 = vmatpush1.msra.mxu0 0.0
      %1706 = vmatprep.subr.mxu0 0.0
      %1707 = vmatpush1.msra.mxu0 0.0
      %1708 = vmatprep.subr.mxu0 0.0
      %1709 = vmatpush1.msra.mxu0 0.0
      %1710 = vmatprep.subr.mxu0 0.0
      %1711 = vmatpush1.msra.mxu0 0.0
      %1712 = vmatprep.subr.mxu0 0.0
      %1713 = vmatpush1.msra.mxu0 0.0
      %1714 = vmatprep.subr.mxu0 0.0
      %1715 = vmatpush1.msra.mxu0 0.0
      %1716 = vmatprep.subr.mxu0 0.0
      %1717 = vmatpush1.msra.mxu0 0.0
      %1718 = vmatprep.subr.mxu0 0.0
      %1719 = vmatpush1.msra.mxu0 0.0
      %1720 = vmatprep.subr.mxu0 0.0
      %1721 = vmatpush1.msra.mxu0 0.0
      %1722 = vmatprep.subr.mxu0 0.0
      %1723 = vmatpush1.msra.mxu0 0.0
      %1724 = vmatprep.subr.mxu0 0.0
      %1725 = vmatpush1.msra.mxu0 0.0
      %1726 = vmatprep.subr.mxu0 0.0
      %1727 = vmatpush1.msra.mxu0 0.0
      %1728 = vmatprep.subr.mxu0 0.0
      %1729 = vmatpush1.msra.mxu0 0.0
      %1730 = vmatprep.subr.mxu0 0.0
      %1731 = vmatpush1.msra.mxu0 0.0
      %1732 = vmatprep.subr.mxu0 0.0
      %1733 = vmatpush1.msra.mxu0 0.0
      %1734 = vmatprep.subr.mxu0 0.0
      %1735 = vmatpush1.msra.mxu0 0.0
      %1736 = vmatprep.subr.mxu0 0.0
      %1737 = vmatpush1.msra.mxu0 0.0
      %1738 = vmatprep.subr.mxu0 0.0
      %1739 = vmatpush1.msra.mxu0 0.0
      %1740 = vmatprep.subr.mxu0 0.0
      %1741 = vmatpush1.msra.mxu0 0.0
      %1742 = vmatprep.subr.mxu0 0.0
      %1743 = vmatpush1.msra.mxu0 0.0
      %1744 = vmatprep.subr.mxu0 0.0
      %1745 = vmatpush1.msra.mxu0 0.0
      %1746 = vmatprep.subr.mxu0 0.0
      %1747 = vmatpush1.msra.mxu0 0.0
      %1748 = vmatprep.mubr.f32.mxu0 0.0
      %1749 = vmatmul.mubr.f32.gmra.mrb[0].mxu0 %v1063
      %v1750 = vpop.f32.mrb[0].mxu0
      %v1751 = vadd.f32 %v1054, %v1750
      %v1752 = vpop.f32.mrb[0].mxu0
      %v1753 = vadd.f32 %v1054, %v1752
      %1754 = vmatprep.mubr.f32.mxu0 0.0
      %1755 = vmatmul.mubr.f32.gmra.mrb[0].mxu0 %v1066
      %v1756 = vpop.f32.mrb[0].mxu0
      %v1757 = vadd.f32 %v1059, %v1756
      %v1758 = vpop.f32.mrb[0].mxu0
      %v1759 = vadd.f32 %v1059, %v1758
      %1760 = vdwg.mxu0
      %1761 = vmatprep.subr.mxu0 0.0
      %1762 = vmatpush1.msra.mxu0 %v408
      %1763 = vmatprep.subr.mxu0 0.0
      %1764 = vmatpush1.msra.mxu0 %v466
      %1765 = vmatprep.subr.mxu0 0.0
      %1766 = vmatpush1.msra.mxu0 %v542
      %1767 = vmatprep.subr.mxu0 0.0
      %1768 = vmatpush1.msra.mxu0 %v618
      %1769 = vmatprep.subr.mxu0 0.0
      %1770 = vmatpush1.msra.mxu0 %v694
      %1771 = vmatprep.subr.mxu0 0.0
      %1772 = vmatpush1.msra.mxu0 %v770
      %1773 = vmatprep.subr.mxu0 0.0
      %1774 = vmatpush1.msra.mxu0 %v869
      %1775 = vmatprep.subr.mxu0 0.0
      %1776 = vmatpush1.msra.mxu0 %v948
      %1777 = vmatprep.subr.mxu0 0.0
      %1778 = vmatpush1.msra.mxu0 %v1027
      %1779 = vmatprep.subr.mxu0 0.0
      %1780 = vmatpush1.msra.mxu0 0.0
      %1781 = vmatprep.subr.mxu0 0.0
      %1782 = vmatpush1.msra.mxu0 0.0
      %1783 = vmatprep.subr.mxu0 0.0
      %1784 = vmatpush1.msra.mxu0 0.0
      %1785 = vmatprep.subr.mxu0 0.0
      %1786 = vmatpush1.msra.mxu0 0.0
      %1787 = vmatprep.subr.mxu0 0.0
      %1788 = vmatpush1.msra.mxu0 0.0
      %1789 = vmatprep.subr.mxu0 0.0
      %1790 = vmatpush1.msra.mxu0 0.0
      %1791 = vmatprep.subr.mxu0 0.0
      %1792 = vmatpush1.msra.mxu0 0.0
      %1793 = vmatprep.subr.mxu0 0.0
      %1794 = vmatpush1.msra.mxu0 0.0
      %1795 = vmatprep.subr.mxu0 0.0
      %1796 = vmatpush1.msra.mxu0 0.0
      %1797 = vmatprep.subr.mxu0 0.0
      %1798 = vmatpush1.msra.mxu0 0.0
      %1799 = vmatprep.subr.mxu0 0.0
      %1800 = vmatpush1.msra.mxu0 0.0
      %1801 = vmatprep.subr.mxu0 0.0
      %1802 = vmatpush1.msra.mxu0 0.0
      %1803 = vmatprep.subr.mxu0 0.0
      %1804 = vmatpush1.msra.mxu0 0.0
      %1805 = vmatprep.subr.mxu0 0.0
      %1806 = vmatpush1.msra.mxu0 0.0
      %1807 = vmatprep.subr.mxu0 0.0
      %1808 = vmatpush1.msra.mxu0 0.0
      %1809 = vmatprep.subr.mxu0 0.0
      %1810 = vmatpush1.msra.mxu0 0.0
      %1811 = vmatprep.subr.mxu0 0.0
      %1812 = vmatpush1.msra.mxu0 0.0
      %1813 = vmatprep.subr.mxu0 0.0
      %1814 = vmatpush1.msra.mxu0 0.0
      %1815 = vmatprep.subr.mxu0 0.0
      %1816 = vmatpush1.msra.mxu0 0.0
      %1817 = vmatprep.subr.mxu0 0.0
      %1818 = vmatpush1.msra.mxu0 0.0
      %1819 = vmatprep.subr.mxu0 0.0
      %1820 = vmatpush1.msra.mxu0 0.0
      %1821 = vmatprep.subr.mxu0 0.0
      %1822 = vmatpush1.msra.mxu0 0.0
      %1823 = vmatprep.subr.mxu0 0.0
      %1824 = vmatpush1.msra.mxu0 0.0
      %1825 = vmatprep.mubr.f32.mxu0 0.0
      %1826 = vmatmul.mubr.f32.gmra.mrb[0].mxu0 %v1063
      %v1827 = vpop.f32.mrb[0].mxu0
      %v1828 = vadd.f32 %v1054, %v1827
      %v1829 = vpop.f32.mrb[0].mxu0
      %1830 = vmatprep.mubr.f32.mxu0 0.0
      %1831 = vmatmul.mubr.f32.gmra.mrb[0].mxu0 %v1066
      %v1832 = vpop.f32.mrb[0].mxu0
      %v1833 = vadd.f32 %v1059, %v1832
      %v1834 = vpop.f32.mrb[0].mxu0
      %1835 = vdwg.mxu0
      %v1836 = vmax.f32 %v1135, 0.0
      %v1837 = vmax.f32 %v1137, 0.0
      %v1838 = vmax.f32 %v1212, 0.0
      %v1839 = vmax.f32 %v1214, 0.0
      %v1840 = vmax.f32 %v1289, 0.0
      %v1841 = vmax.f32 %v1291, 0.0
      %v1842 = vmax.f32 %v1366, 0.0
      %v1843 = vmax.f32 %v1368, 0.0
      %v1844 = vmax.f32 %v1443, 0.0
      %v1845 = vmax.f32 %v1445, 0.0
      %v1846 = vmax.f32 %v1520, 0.0
      %v1847 = vmax.f32 %v1522, 0.0
      %v1848 = vmax.f32 %v1597, 0.0
      %v1849 = vmax.f32 %v1599, 0.0
      %v1850 = vmax.f32 %v1674, 0.0
      %v1851 = vmax.f32 %v1676, 0.0
      %v1852 = vmax.f32 %v1751, 0.0
      %v1853 = vmax.f32 %v1753, 0.0
      %v1854 = vmax.f32 %v1828, 0.0
      %v1855 = vmax.f32 %v1141, 0.0
      %v1856 = vmax.f32 %v1143, 0.0
      %v1857 = vmax.f32 %v1218, 0.0
      %v1858 = vmax.f32 %v1220, 0.0
      %v1859 = vmax.f32 %v1295, 0.0
      %v1860 = vmax.f32 %v1297, 0.0
      %v1861 = vmax.f32 %v1372, 0.0
      %v1862 = vmax.f32 %v1374, 0.0
      %v1863 = vmax.f32 %v1449, 0.0
      %v1864 = vmax.f32 %v1451, 0.0
      %v1865 = vmax.f32 %v1526, 0.0
      %v1866 = vmax.f32 %v1528, 0.0
      %v1867 = vmax.f32 %v1603, 0.0
      %v1868 = vmax.f32 %v1605, 0.0
      %v1869 = vmax.f32 %v1680, 0.0
      %v1870 = vmax.f32 %v1682, 0.0
      %v1871 = vmax.f32 %v1757, 0.0
      %v1872 = vmax.f32 %v1759, 0.0
      %v1873 = vmax.f32 %v1833, 0.0
      %1912 = vrot.lane.b32.xlu0 %v1836, 127
      %v1913 = vpop.permute.xlu0 %1912
      %1914 = vrot.lane.b32.xlu0 %v1837, 127
      %v1915 = vpop.permute.xlu0 %1914
      %1916 = vrot.lane.b32.xlu0 %v1838, 127
      %v1917 = vpop.permute.xlu0 %1916
      %1918 = vrot.lane.b32.xlu0 %v1839, 127
      %v1919 = vpop.permute.xlu0 %1918
      %1920 = vrot.lane.b32.xlu0 %v1840, 127
      %v1921 = vpop.permute.xlu0 %1920
      %1922 = vrot.lane.b32.xlu0 %v1841, 127
      %v1923 = vpop.permute.xlu0 %1922
      %1924 = vrot.lane.b32.xlu0 %v1842, 127
      %v1925 = vpop.permute.xlu0 %1924
      %1926 = vrot.lane.b32.xlu0 %v1843, 127
      %v1927 = vpop.permute.xlu0 %1926
      %1928 = vrot.lane.b32.xlu0 %v1844, 127
      %v1929 = vpop.permute.xlu0 %1928
      %1930 = vrot.lane.b32.xlu0 %v1845, 127
      %v1931 = vpop.permute.xlu0 %1930
      %1932 = vrot.lane.b32.xlu0 %v1846, 127
      %v1933 = vpop.permute.xlu0 %1932
      %1934 = vrot.lane.b32.xlu0 %v1847, 127
      %v1935 = vpop.permute.xlu0 %1934
      %1936 = vrot.lane.b32.xlu0 %v1848, 127
      %v1937 = vpop.permute.xlu0 %1936
      %1938 = vrot.lane.b32.xlu0 %v1849, 127
      %v1939 = vpop.permute.xlu0 %1938
      %1940 = vrot.lane.b32.xlu0 %v1850, 127
      %v1941 = vpop.permute.xlu0 %1940
      %1942 = vrot.lane.b32.xlu0 %v1851, 127
      %v1943 = vpop.permute.xlu0 %1942
      %1944 = vrot.lane.b32.xlu0 %v1852, 127
      %v1945 = vpop.permute.xlu0 %1944
      %1946 = vrot.lane.b32.xlu0 %v1853, 127
      %v1947 = vpop.permute.xlu0 %1946
      %1948 = vrot.lane.b32.xlu0 %v1854, 127
      %v1949 = vpop.permute.xlu0 %1948
      %1950 = vrot.lane.b32.xlu0 %v1855, 127
      %v1951 = vpop.permute.xlu0 %1950
      %1952 = vrot.lane.b32.xlu0 %v1856, 127
      %v1953 = vpop.permute.xlu0 %1952
      %1954 = vrot.lane.b32.xlu0 %v1857, 127
      %v1955 = vpop.permute.xlu0 %1954
      %1956 = vrot.lane.b32.xlu0 %v1858, 127
      %v1957 = vpop.permute.xlu0 %1956
      %1958 = vrot.lane.b32.xlu0 %v1859, 127
      %v1959 = vpop.permute.xlu0 %1958
      %1960 = vrot.lane.b32.xlu0 %v1860, 127
      %v1961 = vpop.permute.xlu0 %1960
      %1962 = vrot.lane.b32.xlu0 %v1861, 127
      %v1963 = vpop.permute.xlu0 %1962
      %1964 = vrot.lane.b32.xlu0 %v1862, 127
      %v1965 = vpop.permute.xlu0 %1964
      %1966 = vrot.lane.b32.xlu0 %v1863, 127
      %v1967 = vpop.permute.xlu0 %1966
      %1968 = vrot.lane.b32.xlu0 %v1864, 127
      %v1969 = vpop.permute.xlu0 %1968
      %1970 = vrot.lane.b32.xlu0 %v1865, 127
      %v1971 = vpop.permute.xlu0 %1970
      %1972 = vrot.lane.b32.xlu0 %v1866, 127
      %v1973 = vpop.permute.xlu0 %1972
      %1974 = vrot.lane.b32.xlu0 %v1867, 127
      %v1975 = vpop.permute.xlu0 %1974
      %1976 = vrot.lane.b32.xlu0 %v1868, 127
      %v1977 = vpop.permute.xlu0 %1976
      %1978 = vrot.lane.b32.xlu0 %v1869, 127
      %v1979 = vpop.permute.xlu0 %1978
      %1980 = vrot.lane.b32.xlu0 %v1870, 127
      %v1981 = vpop.permute.xlu0 %1980
      %1982 = vrot.lane.b32.xlu0 %v1871, 127
      %v1983 = vpop.permute.xlu0 %1982
      %1984 = vrot.lane.b32.xlu0 %v1872, 127
      %v1985 = vpop.permute.xlu0 %1984
      %1986 = vrot.lane.b32.xlu0 %v1873, 127
      %v1987 = vpop.permute.xlu0 %1986
      %v1988 = vsel %vm467, %v1913, %v1915
      %v1989 = vsel %vm467, %v1915, %v1917
      %v1990 = vsel %vm467, %v1917, %v1919
      %v1991 = vsel %vm467, %v1919, %v1921
      %v1992 = vsel %vm467, %v1921, %v1923
      %v1993 = vsel %vm467, %v1923, %v1925
      %v1994 = vsel %vm467, %v1925, %v1927
      %v1995 = vsel %vm467, %v1927, %v1929
      %v1996 = vsel %vm467, %v1929, %v1931
      %v1997 = vsel %vm467, %v1933, %v1935
      %v1998 = vsel %vm467, %v1935, %v1937
      %v1999 = vsel %vm467, %v1937, %v1939
      %v2000 = vsel %vm467, %v1939, %v1941
      %v2001 = vsel %vm467, %v1941, %v1943
      %v2002 = vsel %vm467, %v1943, %v1945
      %v2003 = vsel %vm467, %v1945, %v1947
      %v2004 = vsel %vm467, %v1947, %v1949
      %v2005 = vsel %vm467, %v1951, %v1953
      %v2006 = vsel %vm467, %v1953, %v1955
      %v2007 = vsel %vm467, %v1955, %v1957
      %v2008 = vsel %vm467, %v1957, %v1959
      %v2009 = vsel %vm467, %v1959, %v1961
      %v2010 = vsel %vm467, %v1961, %v1963
      %v2011 = vsel %vm467, %v1963, %v1965
      %v2012 = vsel %vm467, %v1965, %v1967
      %v2013 = vsel %vm467, %v1967, %v1969
      %v2014 = vsel %vm467, %v1971, %v1973
      %v2015 = vsel %vm467, %v1973, %v1975
      %v2016 = vsel %vm467, %v1975, %v1977
      %v2017 = vsel %vm467, %v1977, %v1979
      %v2018 = vsel %vm467, %v1979, %v1981
      %v2019 = vsel %vm467, %v1981, %v1983
      %v2020 = vsel %vm467, %v1983, %v1985
      %v2021 = vsel %vm467, %v1985, %v1987
      %v2058 = vmax.f32 %v1836, %v1988
      %v2059 = vmax.f32 %v1837, %v1989
      %v2060 = vmax.f32 %v1838, %v1990
      %v2061 = vmax.f32 %v1839, %v1991
      %v2062 = vmax.f32 %v1840, %v1992
      %v2063 = vmax.f32 %v1841, %v1993
      %v2064 = vmax.f32 %v1842, %v1994
      %v2065 = vmax.f32 %v1843, %v1995
      %v2066 = vmax.f32 %v1844, %v1996
      %v2067 = vmax.f32 %v1846, %v1997
      %v2068 = vmax.f32 %v1847, %v1998
      %v2069 = vmax.f32 %v1848, %v1999
      %v2070 = vmax.f32 %v1849, %v2000
      %v2071 = vmax.f32 %v1850, %v2001
      %v2072 = vmax.f32 %v1851, %v2002
      %v2073 = vmax.f32 %v1852, %v2003
      %v2074 = vmax.f32 %v1853, %v2004
      %v2075 = vmax.f32 %v1854, %v1949
      %v2076 = vmax.f32 %v1855, %v2005
      %v2077 = vmax.f32 %v1856, %v2006
      %v2078 = vmax.f32 %v1857, %v2007
      %v2079 = vmax.f32 %v1858, %v2008
      %v2080 = vmax.f32 %v1859, %v2009
      %v2081 = vmax.f32 %v1860, %v2010
      %v2082 = vmax.f32 %v1861, %v2011
      %v2083 = vmax.f32 %v1862, %v2012
      %v2084 = vmax.f32 %v1863, %v2013
      %v2085 = vmax.f32 %v1865, %v2014
      %v2086 = vmax.f32 %v1866, %v2015
      %v2087 = vmax.f32 %v1867, %v2016
      %v2088 = vmax.f32 %v1868, %v2017
      %v2089 = vmax.f32 %v1869, %v2018
      %v2090 = vmax.f32 %v1870, %v2019
      %v2091 = vmax.f32 %v1871, %v2020
      %v2092 = vmax.f32 %v1872, %v2021
      %v2093 = vmax.f32 %v1873, %v1987
      %v2094 = vsel %vm467, %v1931, %v1933
      %v2095 = vsel %vm467, %v1969, %v1971
      %v2098 = vmax.f32 %v1845, %v2094
      %v2099 = vmax.f32 %v1864, %v2095
      %2138 = vrot.lane.b32.xlu0 %v2058, 94
      %v2139 = vpop.permute.xlu0 %2138
      %2140 = vrot.lane.b32.xlu0 %v2059, 94
      %v2141 = vpop.permute.xlu0 %2140
      %2142 = vrot.lane.b32.xlu0 %v2060, 94
      %v2143 = vpop.permute.xlu0 %2142
      %2144 = vrot.lane.b32.xlu0 %v2061, 94
      %v2145 = vpop.permute.xlu0 %2144
      %2146 = vrot.lane.b32.xlu0 %v2062, 94
      %v2147 = vpop.permute.xlu0 %2146
      %2148 = vrot.lane.b32.xlu0 %v2063, 94
      %v2149 = vpop.permute.xlu0 %2148
      %2150 = vrot.lane.b32.xlu0 %v2064, 94
      %v2151 = vpop.permute.xlu0 %2150
      %2152 = vrot.lane.b32.xlu0 %v2065, 94
      %v2153 = vpop.permute.xlu0 %2152
      %2154 = vrot.lane.b32.xlu0 %v2066, 94
      %v2155 = vpop.permute.xlu0 %2154
      %2156 = vrot.lane.b32.xlu0 %v2098, 94
      %v2157 = vpop.permute.xlu0 %2156
      %2158 = vrot.lane.b32.xlu0 %v2067, 94
      %v2159 = vpop.permute.xlu0 %2158
      %2160 = vrot.lane.b32.xlu0 %v2068, 94
      %v2161 = vpop.permute.xlu0 %2160
      %2162 = vrot.lane.b32.xlu0 %v2069, 94
      %v2163 = vpop.permute.xlu0 %2162
      %2164 = vrot.lane.b32.xlu0 %v2070, 94
      %v2165 = vpop.permute.xlu0 %2164
      %2166 = vrot.lane.b32.xlu0 %v2071, 94
      %v2167 = vpop.permute.xlu0 %2166
      %2168 = vrot.lane.b32.xlu0 %v2072, 94
      %v2169 = vpop.permute.xlu0 %2168
      %2170 = vrot.lane.b32.xlu0 %v2073, 94
      %v2171 = vpop.permute.xlu0 %2170
      %2172 = vrot.lane.b32.xlu0 %v2074, 94
      %v2173 = vpop.permute.xlu0 %2172
      %2174 = vrot.lane.b32.xlu0 %v2075, 94
      %v2175 = vpop.permute.xlu0 %2174
      %2176 = vrot.lane.b32.xlu0 %v2076, 94
      %v2177 = vpop.permute.xlu0 %2176
      %2178 = vrot.lane.b32.xlu0 %v2077, 94
      %v2179 = vpop.permute.xlu0 %2178
      %2180 = vrot.lane.b32.xlu0 %v2078, 94
      %v2181 = vpop.permute.xlu0 %2180
      %2182 = vrot.lane.b32.xlu0 %v2079, 94
      %v2183 = vpop.permute.xlu0 %2182
      %2184 = vrot.lane.b32.xlu0 %v2080, 94
      %v2185 = vpop.permute.xlu0 %2184
      %2186 = vrot.lane.b32.xlu0 %v2081, 94
      %v2187 = vpop.permute.xlu0 %2186
      %2188 = vrot.lane.b32.xlu0 %v2082, 94
      %v2189 = vpop.permute.xlu0 %2188
      %2190 = vrot.lane.b32.xlu0 %v2083, 94
      %v2191 = vpop.permute.xlu0 %2190
      %2192 = vrot.lane.b32.xlu0 %v2084, 94
      %v2193 = vpop.permute.xlu0 %2192
      %2194 = vrot.lane.b32.xlu0 %v2099, 94
      %v2195 = vpop.permute.xlu0 %2194
      %2196 = vrot.lane.b32.xlu0 %v2085, 94
      %v2197 = vpop.permute.xlu0 %2196
      %2198 = vrot.lane.b32.xlu0 %v2086, 94
      %v2199 = vpop.permute.xlu0 %2198
      %2200 = vrot.lane.b32.xlu0 %v2087, 94
      %v2201 = vpop.permute.xlu0 %2200
      %2202 = vrot.lane.b32.xlu0 %v2088, 94
      %v2203 = vpop.permute.xlu0 %2202
      %2204 = vrot.lane.b32.xlu0 %v2089, 94
      %v2205 = vpop.permute.xlu0 %2204
      %2206 = vrot.lane.b32.xlu0 %v2090, 94
      %v2207 = vpop.permute.xlu0 %2206
      %2208 = vrot.lane.b32.xlu0 %v2091, 94
      %v2209 = vpop.permute.xlu0 %2208
      %2210 = vrot.lane.b32.xlu0 %v2092, 94
      %v2211 = vpop.permute.xlu0 %2210
      %2212 = vrot.lane.b32.xlu0 %v2093, 94
      %v2213 = vpop.permute.xlu0 %2212
      %v2214 = vsel %vm619, %v2139, %v2141
      %v2215 = vsel %vm619, %v2141, %v2143
      %v2216 = vsel %vm619, %v2143, %v2145
      %v2217 = vsel %vm619, %v2145, %v2147
      %v2218 = vsel %vm619, %v2147, %v2149
      %v2219 = vsel %vm619, %v2149, %v2151
      %v2220 = vsel %vm619, %v2151, %v2153
      %v2221 = vsel %vm619, %v2153, %v2155
      %v2222 = vsel %vm619, %v2155, %v2157
      %v2223 = vsel %vm619, %v2159, %v2161
      %v2224 = vsel %vm619, %v2161, %v2163
      %v2225 = vsel %vm619, %v2163, %v2165
      %v2226 = vsel %vm619, %v2165, %v2167
      %v2227 = vsel %vm619, %v2167, %v2169
      %v2228 = vsel %vm619, %v2169, %v2171
      %v2229 = vsel %vm619, %v2171, %v2173
      %v2230 = vsel %vm619, %v2173, %v2175
      %v2231 = vsel %vm619, %v2177, %v2179
      %v2232 = vsel %vm619, %v2179, %v2181
      %v2233 = vsel %vm619, %v2181, %v2183
      %v2234 = vsel %vm619, %v2183, %v2185
      %v2235 = vsel %vm619, %v2185, %v2187
      %v2236 = vsel %vm619, %v2187, %v2189
      %v2237 = vsel %vm619, %v2189, %v2191
      %v2238 = vsel %vm619, %v2191, %v2193
      %v2239 = vsel %vm619, %v2193, %v2195
      %v2240 = vsel %vm619, %v2197, %v2199
      %v2241 = vsel %vm619, %v2199, %v2201
      %v2242 = vsel %vm619, %v2201, %v2203
      %v2243 = vsel %vm619, %v2203, %v2205
      %v2244 = vsel %vm619, %v2205, %v2207
      %v2245 = vsel %vm619, %v2207, %v2209
      %v2246 = vsel %vm619, %v2209, %v2211
      %v2247 = vsel %vm619, %v2211, %v2213
      %v2284 = vmax.f32 %v2058, %v2214
      %v2285 = vmax.f32 %v2059, %v2215
      %v2286 = vmax.f32 %v2060, %v2216
      %v2287 = vmax.f32 %v2061, %v2217
      %v2288 = vmax.f32 %v2062, %v2218
      %v2289 = vmax.f32 %v2063, %v2219
      %v2290 = vmax.f32 %v2064, %v2220
      %v2291 = vmax.f32 %v2065, %v2221
      %v2292 = vmax.f32 %v2066, %v2222
      %v2293 = vmax.f32 %v2067, %v2223
      %v2294 = vmax.f32 %v2068, %v2224
      %v2295 = vmax.f32 %v2069, %v2225
      %v2296 = vmax.f32 %v2070, %v2226
      %v2297 = vmax.f32 %v2071, %v2227
      %v2298 = vmax.f32 %v2072, %v2228
      %v2299 = vmax.f32 %v2073, %v2229
      %v2300 = vmax.f32 %v2074, %v2230
      %v2301 = vmax.f32 %v2075, %v2175
      %v2302 = vmax.f32 %v2076, %v2231
      %v2303 = vmax.f32 %v2077, %v2232
      %v2304 = vmax.f32 %v2078, %v2233
      %v2305 = vmax.f32 %v2079, %v2234
      %v2306 = vmax.f32 %v2080, %v2235
      %v2307 = vmax.f32 %v2081, %v2236
      %v2308 = vmax.f32 %v2082, %v2237
      %v2309 = vmax.f32 %v2083, %v2238
      %v2310 = vmax.f32 %v2084, %v2239
      %v2311 = vmax.f32 %v2085, %v2240
      %v2312 = vmax.f32 %v2086, %v2241
      %v2313 = vmax.f32 %v2087, %v2242
      %v2314 = vmax.f32 %v2088, %v2243
      %v2315 = vmax.f32 %v2089, %v2244
      %v2316 = vmax.f32 %v2090, %v2245
      %v2317 = vmax.f32 %v2091, %v2246
      %v2318 = vmax.f32 %v2092, %v2247
      %v2319 = vmax.f32 %v2093, %v2213
      %v2320 = vld [vmem:[%s7] sm:$0xff]
      %v2321 = vld [vmem:[%s7 + $0x8] sm:$0xff]
      %v2322 = vld [vmem:[%s7 + $0x10] sm:$0xff]
      %v2323 = vld [vmem:[%s7 + $0x18] sm:$0xff]
      %v2324 = vld [vmem:[%s7 + $0x20] sm:$0xff]
      %v2325 = vld [vmem:[%s7 + $0x28] sm:$0xff]
      %v2326 = vld [vmem:[%s7 + $0x30] sm:$0xff]
      %v2327 = vld [vmem:[%s7 + $0x38] sm:$0xff]
      %v2328 = vld [vmem:[%s7 + $0x40] sm:$0xff]
      %v2329 = vld [vmem:[%s7 + $0x48] sm:$0xff]
      %v2330 = vld [vmem:[%s7 + $0x50] sm:$0xff]
      %v2331 = vld [vmem:[%s7 + $0x58] sm:$0xff]
      %v2332 = vld [vmem:[%s7 + $0x60] sm:$0xff]
      %v2333 = vld [vmem:[%s7 + $0x68] sm:$0xff]
      %v2334 = vld [vmem:[%s7 + $0x70] sm:$0xff]
      %v2335 = vld [vmem:[%s7 + $0x78] sm:$0xff]
      %v2336 = vld [vmem:[%s7 + $0x80] sm:$0xff]
      %v2337 = vld [vmem:[%s7 + $0x88] sm:$0xff]
      %v2338 = vld [vmem:[%s7 + $0x90] sm:$0xff]
      %v2339 = vld [vmem:[%s7 + $0x98] sm:$0xff]
      %v2340 = vld [vmem:[%s7 + $0xa0] sm:$0xff]
      %v2341 = vld [vmem:[%s7 + $0xa8] sm:$0xff]
      %v2342 = vld [vmem:[%s7 + $0xb0] sm:$0xff]
      %v2343 = vld [vmem:[%s7 + $0xb8] sm:$0xff]
      %v2344 = vld [vmem:[%s7 + $0xc0] sm:$0xff]
      %v2345 = vld [vmem:[%s7 + $0xc8] sm:$0xff]
      %v2346 = vld [vmem:[%s7 + $0xd0] sm:$0xff]
      %v2347 = vld [vmem:[%s7 + $0xd8] sm:$0xff]
      %v2348 = vld [vmem:[%s7 + $0xe0] sm:$0xff]
      %v2349 = vld [vmem:[%s7 + $0xe8] sm:$0xff]
      %v2350 = vld [vmem:[%s7 + $0xf0] sm:$0xff]
      %v2351 = vld [vmem:[%s7 + $0xf8] sm:$0xff]
      %v2352 = vld [vmem:[%s7 + $0x100] sm:$0xff]
      %v2353 = vld [vmem:[%s7 + $0x108] sm:$0xff]
      %v2354 = vld [vmem:[%s7 + $0x110] sm:$0xff]
      %v2355 = vld [vmem:[%s7 + $0x118] sm:$0xff]
      %v2356 = vld [vmem:[%s7 + $0x120] sm:$0xff]
      %v2357 = vld [vmem:[%s7 + $0x128] sm:$0xff]
      %v2358 = vld [vmem:[%s7 + $0x130] sm:$0xff]
      %v2359 = vld [vmem:[%s7 + $0x138] sm:$0xff]
      %v2360 = vld [vmem:[%s7 + $0x140] sm:$0xff]
      %v2361 = vld [vmem:[%s7 + $0x148] sm:$0xff]
      %v2362 = vld [vmem:[%s7 + $0x150] sm:$0xff]
      %v2363 = vld [vmem:[%s7 + $0x158] sm:$0xff]
      %v2364 = vld [vmem:[%s7 + $0x160] sm:$0xff]
      %v2365 = vld [vmem:[%s7 + $0x168] sm:$0xff]
      %v2366 = vld [vmem:[%s7 + $0x170] sm:$0xff]
      %v2367 = vld [vmem:[%s7 + $0x178] sm:$0xff]
      %v2368 = vld [vmem:[%s7 + $0x180] sm:$0xff]
      %v2369 = vld [vmem:[%s7 + $0x188] sm:$0xff]
      %v2370 = vld [vmem:[%s7 + $0x190] sm:$0xff]
      %v2371 = vld [vmem:[%s7 + $0x198] sm:$0xff]
      %v2372 = vld [vmem:[%s7 + $0x1a0] sm:$0xff]
      %v2373 = vld [vmem:[%s7 + $0x1a8] sm:$0xff]
      %v2374 = vld [vmem:[%s7 + $0x1b0] sm:$0xff]
      %v2375 = vld [vmem:[%s7 + $0x1b8] sm:$0xff]
      %v2376 = vld [vmem:[%s7 + $0x1c0] sm:$0xff]
      %v2377 = vld [vmem:[%s7 + $0x1c8] sm:$0xff]
      %v2378 = vld [vmem:[%s7 + $0x1d0] sm:$0xff]
      %v2379 = vld [vmem:[%s7 + $0x1d8] sm:$0xff]
      %v2380 = vld [vmem:[%s7 + $0x1e0] sm:$0xff]
      %v2381 = vld [vmem:[%s7 + $0x1e8] sm:$0xff]
      %v2382 = vld [vmem:[%s7 + $0x1f0] sm:$0xff]
      %v2383 = vld [vmem:[%s7 + $0x1f8] sm:$0xff]
      %v2384 = vld [vmem:[%s7 + $0x200] sm:$0xff]
      %v2385 = vld [vmem:[%s7 + $0x208] sm:$0xff]
      %v2386 = vld [vmem:[%s7 + $0x210] sm:$0xff]
      %v2387 = vld [vmem:[%s7 + $0x218] sm:$0xff]
      %v2388 = vld [vmem:[%s7 + $0x220] sm:$0xff]
      %v2389 = vld [vmem:[%s7 + $0x228] sm:$0xff]
      %v2390 = vld [vmem:[%s7 + $0x230] sm:$0xff]
      %v2391 = vld [vmem:[%s7 + $0x238] sm:$0xff]
      %v2392 = vld [vmem:[%s7 + $0x240] sm:$0xff]
      %v2393 = vld [vmem:[%s7 + $0x248] sm:$0xff]
      %v2394 = vld [vmem:[%s7 + $0x250] sm:$0xff]
      %v2395 = vld [vmem:[%s7 + $0x258] sm:$0xff]
      %v2396 = vld [vmem:[%s7 + $0x260] sm:$0xff]
      %v2397 = vld [vmem:[%s7 + $0x268] sm:$0xff]
      %v2398 = vld [vmem:[%s7 + $0x270] sm:$0xff]
      %v2399 = vld [vmem:[%s7 + $0x278] sm:$0xff]
      %v2400 = vld [vmem:[%s7 + $0x280] sm:$0xff]
      %v2401 = vld [vmem:[%s7 + $0x288] sm:$0xff]
      %v2402 = vld [vmem:[%s7 + $0x290] sm:$0xff]
      %v2403 = vld [vmem:[%s7 + $0x298] sm:$0xff]
      %v2404 = vld [vmem:[%s7 + $0x2a0] sm:$0xff]
      %v2405 = vld [vmem:[%s7 + $0x2a8] sm:$0xff]
      %v2406 = vld [vmem:[%s7 + $0x2b0] sm:$0xff]
      %v2407 = vld [vmem:[%s7 + $0x2b8] sm:$0xff]
      %v2408 = vld [vmem:[%s7 + $0x2c0] sm:$0xff]
      %v2409 = vld [vmem:[%s7 + $0x2c8] sm:$0xff]
      %v2410 = vld [vmem:[%s7 + $0x2d0] sm:$0xff]
      %v2411 = vld [vmem:[%s7 + $0x2d8] sm:$0xff]
      %v2412 = vld [vmem:[%s7 + $0x2e0] sm:$0xff]
      %v2413 = vld [vmem:[%s7 + $0x2e8] sm:$0xff]
      %v2414 = vld [vmem:[%s7 + $0x2f0] sm:$0xff]
      %v2415 = vld [vmem:[%s7 + $0x2f8] sm:$0xff]
      %v2416 = vld [vmem:[%s7 + $0x300] sm:$0xff]
      %v2417 = vld [vmem:[%s7 + $0x308] sm:$0xff]
      %v2418 = vld [vmem:[%s7 + $0x310] sm:$0xff]
      %v2419 = vld [vmem:[%s7 + $0x318] sm:$0xff]
      %v2420 = vld [vmem:[%s7 + $0x320] sm:$0xff]
      %v2421 = vld [vmem:[%s7 + $0x328] sm:$0xff]
      %v2422 = vld [vmem:[%s7 + $0x330] sm:$0xff]
      %v2423 = vld [vmem:[%s7 + $0x338] sm:$0xff]
      %v2424 = vld [vmem:[%s7 + $0x340] sm:$0xff]
      %v2425 = vld [vmem:[%s7 + $0x348] sm:$0xff]
      %v2426 = vld [vmem:[%s7 + $0x350] sm:$0xff]
      %v2427 = vld [vmem:[%s7 + $0x358] sm:$0xff]
      %v2428 = vld [vmem:[%s7 + $0x360] sm:$0xff]
      %v2429 = vld [vmem:[%s7 + $0x368] sm:$0xff]
      %v2430 = vld [vmem:[%s7 + $0x370] sm:$0xff]
      %v2431 = vld [vmem:[%s7 + $0x378] sm:$0xff]
      %v2432 = vld [vmem:[%s7 + $0x380] sm:$0xff]
      %v2433 = vld [vmem:[%s7 + $0x388] sm:$0xff]
      %v2434 = vld [vmem:[%s7 + $0x390] sm:$0xff]
      %v2435 = vld [vmem:[%s7 + $0x398] sm:$0xff]
      %v2436 = vld [vmem:[%s7 + $0x3a0] sm:$0xff]
      %v2437 = vld [vmem:[%s7 + $0x3a8] sm:$0xff]
      %v2438 = vld [vmem:[%s7 + $0x3b0] sm:$0xff]
      %v2439 = vld [vmem:[%s7 + $0x3b8] sm:$0xff]
      %v2440 = vld [vmem:[%s7 + $0x3c0] sm:$0xff]
      %v2441 = vld [vmem:[%s7 + $0x3c8] sm:$0xff]
      %v2442 = vld [vmem:[%s7 + $0x3d0] sm:$0xff]
      %v2443 = vld [vmem:[%s7 + $0x3d8] sm:$0xff]
      %v2444 = vld [vmem:[%s7 + $0x3e0] sm:$0xff]
      %v2445 = vld [vmem:[%s7 + $0x3e8] sm:$0xff]
      %v2446 = vld [vmem:[%s7 + $0x3f0] sm:$0xff]
      %v2447 = vld [vmem:[%s7 + $0x3f8] sm:$0xff]
      %v2448 = vld [vmem:[%s7 + $0x400] sm:$0xff]
      %v2449 = vld [vmem:[%s7 + $0x408] sm:$0xff]
      %v2450 = vld [vmem:[%s7 + $0x410] sm:$0xff]
      %v2451 = vld [vmem:[%s7 + $0x418] sm:$0xff]
      %v2452 = vld [vmem:[%s7 + $0x420] sm:$0xff]
      %v2453 = vld [vmem:[%s7 + $0x428] sm:$0xff]
      %v2454 = vld [vmem:[%s7 + $0x430] sm:$0xff]
      %v2455 = vld [vmem:[%s7 + $0x438] sm:$0xff]
      %v2456 = vld [vmem:[%s7 + $0x440] sm:$0xff]
      %v2457 = vld [vmem:[%s7 + $0x448] sm:$0xff]
      %v2458 = vld [vmem:[%s7 + $0x450] sm:$0xff]
      %v2459 = vld [vmem:[%s7 + $0x458] sm:$0xff]
      %v2460 = vld [vmem:[%s7 + $0x460] sm:$0xff]
      %v2461 = vld [vmem:[%s7 + $0x468] sm:$0xff]
      %v2462 = vld [vmem:[%s7 + $0x470] sm:$0xff]
      %v2463 = vld [vmem:[%s7 + $0x478] sm:$0xff]
      %v2464 = vld [vmem:[%s7 + $0x480] sm:$0xff]
      %v2465 = vld [vmem:[%s7 + $0x488] sm:$0xff]
      %v2466 = vld [vmem:[%s7 + $0x490] sm:$0xff]
      %v2467 = vld [vmem:[%s7 + $0x498] sm:$0xff]
      %v2468 = vld [vmem:[%s7 + $0x4a0] sm:$0xff]
      %v2469 = vld [vmem:[%s7 + $0x4a8] sm:$0xff]
      %v2470 = vld [vmem:[%s7 + $0x4b0] sm:$0xff]
      %v2471 = vld [vmem:[%s7 + $0x4b8] sm:$0xff]
      %v2472 = vld [vmem:[%s7 + $0x4c0] sm:$0xff]
      %v2473 = vld [vmem:[%s7 + $0x4c8] sm:$0xff]
      %v2474 = vld [vmem:[%s7 + $0x4d0] sm:$0xff]
      %v2475 = vld [vmem:[%s7 + $0x4d8] sm:$0xff]
      %v2476 = vld [vmem:[%s7 + $0x4e0] sm:$0xff]
      %v2477 = vld [vmem:[%s7 + $0x4e8] sm:$0xff]
      %v2478 = vld [vmem:[%s7 + $0x4f0] sm:$0xff]
      %v2479 = vld [vmem:[%s7 + $0x4f8] sm:$0xff]
      %v2480 = vld [vmem:[%s7 + $0x500] sm:$0xff]
      %v2481 = vld [vmem:[%s7 + $0x508] sm:$0xff]
      %v2482 = vld [vmem:[%s7 + $0x510] sm:$0xff]
      %v2483 = vld [vmem:[%s7 + $0x518] sm:$0xff]
      %v2484 = vld [vmem:[%s7 + $0x520] sm:$0xff]
      %v2485 = vld [vmem:[%s7 + $0x528] sm:$0xff]
      %v2486 = vld [vmem:[%s7 + $0x530] sm:$0xff]
      %v2487 = vld [vmem:[%s7 + $0x538] sm:$0xff]
      %v2488 = vld [vmem:[%s7 + $0x540] sm:$0xff]
      %v2489 = vld [vmem:[%s7 + $0x548] sm:$0xff]
      %v2490 = vld [vmem:[%s7 + $0x550] sm:$0xff]
      %v2491 = vld [vmem:[%s7 + $0x558] sm:$0xff]
      %v2492 = vld [vmem:[%s7 + $0x560] sm:$0xff]
      %v2493 = vld [vmem:[%s7 + $0x568] sm:$0xff]
      %v2494 = vld [vmem:[%s7 + $0x570] sm:$0xff]
      %v2495 = vld [vmem:[%s7 + $0x578] sm:$0xff]
      %v2496 = vld [vmem:[%s7 + $0x580] sm:$0xff]
      %v2497 = vld [vmem:[%s7 + $0x588] sm:$0xff]
      %v2498 = vld [vmem:[%s7 + $0x590] sm:$0xff]
      %v2499 = vld [vmem:[%s7 + $0x598] sm:$0xff]
      %v2500 = vld [vmem:[%s7 + $0x5a0] sm:$0xff]
      %v2501 = vld [vmem:[%s7 + $0x5a8] sm:$0xff]
      %v2502 = vld [vmem:[%s7 + $0x5b0] sm:$0xff]
      %v2503 = vld [vmem:[%s7 + $0x5b8] sm:$0xff]
      %v2504 = vld [vmem:[%s7 + $0x5c0] sm:$0xff]
      %v2505 = vld [vmem:[%s7 + $0x5c8] sm:$0xff]
      %v2506 = vld [vmem:[%s7 + $0x5d0] sm:$0xff]
      %v2507 = vld [vmem:[%s7 + $0x5d8] sm:$0xff]
      %v2508 = vld [vmem:[%s7 + $0x5e0] sm:$0xff]
      %v2509 = vld [vmem:[%s7 + $0x5e8] sm:$0xff]
      %v2510 = vld [vmem:[%s7 + $0x5f0] sm:$0xff]
      %v2511 = vld [vmem:[%s7 + $0x5f8] sm:$0xff]
      %v2512 = vld [vmem:[%s7 + $0x600] sm:$0xff]
      %v2513 = vld [vmem:[%s7 + $0x608] sm:$0xff]
      %v2514 = vld [vmem:[%s7 + $0x610] sm:$0xff]
      %v2515 = vld [vmem:[%s7 + $0x618] sm:$0xff]
      %v2516 = vld [vmem:[%s7 + $0x620] sm:$0xff]
      %v2517 = vld [vmem:[%s7 + $0x628] sm:$0xff]
      %v2518 = vld [vmem:[%s7 + $0x630] sm:$0xff]
      %v2519 = vld [vmem:[%s7 + $0x638] sm:$0xff]
      %v2520 = vld [vmem:[%s7 + $0x640] sm:$0xff]
      %v2521 = vld [vmem:[%s7 + $0x648] sm:$0xff]
      %v2522 = vld [vmem:[%s7 + $0x650] sm:$0xff]
      %v2523 = vld [vmem:[%s7 + $0x658] sm:$0xff]
      %v2524 = vld [vmem:[%s7 + $0x660] sm:$0xff]
      %v2525 = vld [vmem:[%s7 + $0x668] sm:$0xff]
      %v2526 = vld [vmem:[%s7 + $0x670] sm:$0xff]
      %v2527 = vld [vmem:[%s7 + $0x678] sm:$0xff]
      %v2528 = vld [vmem:[%s7 + $0x680] sm:$0xff]
      %v2529 = vld [vmem:[%s7 + $0x688] sm:$0xff]
      %v2530 = vld [vmem:[%s7 + $0x690] sm:$0xff]
      %v2531 = vld [vmem:[%s7 + $0x698] sm:$0xff]
      %v2532 = vld [vmem:[%s7 + $0x6a0] sm:$0xff]
      %v2533 = vld [vmem:[%s7 + $0x6a8] sm:$0xff]
      %v2534 = vld [vmem:[%s7 + $0x6b0] sm:$0xff]
      %v2535 = vld [vmem:[%s7 + $0x6b8] sm:$0xff]
      %v2536 = vld [vmem:[%s7 + $0x6c0] sm:$0xff]
      %v2537 = vld [vmem:[%s7 + $0x6c8] sm:$0xff]
      %v2538 = vld [vmem:[%s7 + $0x6d0] sm:$0xff]
      %v2539 = vld [vmem:[%s7 + $0x6d8] sm:$0xff]
      %v2540 = vld [vmem:[%s7 + $0x6e0] sm:$0xff]
      %v2541 = vld [vmem:[%s7 + $0x6e8] sm:$0xff]
      %v2542 = vld [vmem:[%s7 + $0x6f0] sm:$0xff]
      %v2543 = vld [vmem:[%s7 + $0x6f8] sm:$0xff]
      %v2544 = vld [vmem:[%s7 + $0x700] sm:$0xff]
      %v2545 = vld [vmem:[%s7 + $0x708] sm:$0xff]
      %v2546 = vld [vmem:[%s7 + $0x710] sm:$0xff]
      %v2547 = vld [vmem:[%s7 + $0x718] sm:$0xff]
      %v2548 = vld [vmem:[%s7 + $0x720] sm:$0xff]
      %v2549 = vld [vmem:[%s7 + $0x728] sm:$0xff]
      %v2550 = vld [vmem:[%s7 + $0x730] sm:$0xff]
      %v2551 = vld [vmem:[%s7 + $0x738] sm:$0xff]
      %v2552 = vld [vmem:[%s7 + $0x740] sm:$0xff]
      %v2553 = vld [vmem:[%s7 + $0x748] sm:$0xff]
      %v2554 = vld [vmem:[%s7 + $0x750] sm:$0xff]
      %v2555 = vld [vmem:[%s7 + $0x758] sm:$0xff]
      %v2556 = vld [vmem:[%s7 + $0x760] sm:$0xff]
      %v2557 = vld [vmem:[%s7 + $0x768] sm:$0xff]
      %v2558 = vld [vmem:[%s7 + $0x770] sm:$0xff]
      %v2559 = vld [vmem:[%s7 + $0x778] sm:$0xff]
      %v2560 = vld [vmem:[%s7 + $0x780] sm:$0xff]
      %v2561 = vld [vmem:[%s7 + $0x788] sm:$0xff]
      %v2562 = vld [vmem:[%s7 + $0x790] sm:$0xff]
      %v2563 = vld [vmem:[%s7 + $0x798] sm:$0xff]
      %v2564 = vld [vmem:[%s7 + $0x7a0] sm:$0xff]
      %v2565 = vld [vmem:[%s7 + $0x7a8] sm:$0xff]
      %v2566 = vld [vmem:[%s7 + $0x7b0] sm:$0xff]
      %v2567 = vld [vmem:[%s7 + $0x7b8] sm:$0xff]
      %v2568 = vld [vmem:[%s7 + $0x7c0] sm:$0xff]
      %v2569 = vld [vmem:[%s7 + $0x7c8] sm:$0xff]
      %v2570 = vld [vmem:[%s7 + $0x7d0] sm:$0xff]
      %v2571 = vld [vmem:[%s7 + $0x7d8] sm:$0xff]
      %v2572 = vld [vmem:[%s7 + $0x7e0] sm:$0xff]
      %v2573 = vld [vmem:[%s7 + $0x7e8] sm:$0xff]
      %v2574 = vld [vmem:[%s7 + $0x7f0] sm:$0xff]
      %v2575 = vld [vmem:[%s7 + $0x7f8] sm:$0xff]
      %v2576 = vld [vmem:[%s7 + $0x800] sm:$0xff]
      %v2577 = vld [vmem:[%s7 + $0x808] sm:$0xff]
      %v2578 = vld [vmem:[%s7 + $0x810] sm:$0xff]
      %v2579 = vld [vmem:[%s7 + $0x818] sm:$0xff]
      %v2580 = vld [vmem:[%s7 + $0x820] sm:$0xff]
      %v2581 = vld [vmem:[%s7 + $0x828] sm:$0xff]
      %v2582 = vld [vmem:[%s7 + $0x830] sm:$0xff]
      %v2583 = vld [vmem:[%s7 + $0x838] sm:$0xff]
      %v2584 = vld [vmem:[%s7 + $0x840] sm:$0xff]
      %v2585 = vld [vmem:[%s7 + $0x848] sm:$0xff]
      %v2586 = vld [vmem:[%s7 + $0x850] sm:$0xff]
      %v2587 = vld [vmem:[%s7 + $0x858] sm:$0xff]
      %v2588 = vld [vmem:[%s7 + $0x860] sm:$0xff]
      %v2589 = vld [vmem:[%s7 + $0x868] sm:$0xff]
      %v2590 = vld [vmem:[%s7 + $0x870] sm:$0xff]
      %v2591 = vld [vmem:[%s7 + $0x878] sm:$0xff]
      %v2592 = vld [vmem:[%s7 + $0x880] sm:$0xff]
      %v2593 = vld [vmem:[%s7 + $0x888] sm:$0xff]
      %v2594 = vld [vmem:[%s7 + $0x890] sm:$0xff]
      %v2595 = vld [vmem:[%s7 + $0x898] sm:$0xff]
      %v2596 = vld [vmem:[%s7 + $0x8a0] sm:$0xff]
      %v2597 = vld [vmem:[%s7 + $0x8a8] sm:$0xff]
      %v2598 = vld [vmem:[%s7 + $0x8b0] sm:$0xff]
      %v2599 = vld [vmem:[%s7 + $0x8b8] sm:$0xff]
      %v2600 = vld [vmem:[%s7 + $0x8c0] sm:$0xff]
      %v2601 = vld [vmem:[%s7 + $0x8c8] sm:$0xff]
      %v2602 = vld [vmem:[%s7 + $0x8d0] sm:$0xff]
      %v2603 = vld [vmem:[%s7 + $0x8d8] sm:$0xff]
      %v2604 = vld [vmem:[%s7 + $0x8e0] sm:$0xff]
      %v2605 = vld [vmem:[%s7 + $0x8e8] sm:$0xff]
      %v2606 = vld [vmem:[%s7 + $0x8f0] sm:$0xff]
      %v2607 = vld [vmem:[%s7 + $0x8f8] sm:$0xff]
      %v2608 = vld [vmem:[%s7 + $0x900] sm:$0xff]
      %v2609 = vld [vmem:[%s7 + $0x908] sm:$0xff]
      %v2610 = vld [vmem:[%s7 + $0x910] sm:$0xff]
      %v2611 = vld [vmem:[%s7 + $0x918] sm:$0xff]
      %v2612 = vld [vmem:[%s7 + $0x920] sm:$0xff]
      %v2613 = vld [vmem:[%s7 + $0x928] sm:$0xff]
      %v2614 = vld [vmem:[%s7 + $0x930] sm:$0xff]
      %v2615 = vld [vmem:[%s7 + $0x938] sm:$0xff]
      %v2616 = vld [vmem:[%s7 + $0x940] sm:$0xff]
      %v2617 = vld [vmem:[%s7 + $0x948] sm:$0xff]
      %v2618 = vld [vmem:[%s7 + $0x950] sm:$0xff]
      %v2619 = vld [vmem:[%s7 + $0x958] sm:$0xff]
      %v2620 = vld [vmem:[%s7 + $0x960] sm:$0xff]
      %v2621 = vld [vmem:[%s7 + $0x968] sm:$0xff]
      %v2622 = vld [vmem:[%s7 + $0x970] sm:$0xff]
      %v2623 = vld [vmem:[%s7 + $0x978] sm:$0xff]
      %v2624 = vld [vmem:[%s7 + $0x980] sm:$0xff]
      %v2625 = vld [vmem:[%s7 + $0x988] sm:$0xff]
      %v2626 = vld [vmem:[%s7 + $0x990] sm:$0xff]
      %v2627 = vld [vmem:[%s7 + $0x998] sm:$0xff]
      %v2628 = vld [vmem:[%s7 + $0x9a0] sm:$0xff]
      %v2629 = vld [vmem:[%s7 + $0x9a8] sm:$0xff]
      %v2630 = vld [vmem:[%s7 + $0x9b0] sm:$0xff]
      %v2631 = vld [vmem:[%s7 + $0x9b8] sm:$0xff]
      %v2632 = vld [vmem:[%s7 + $0x9c0] sm:$0xff]
      %v2633 = vld [vmem:[%s7 + $0x9c8] sm:$0xff]
      %v2634 = vld [vmem:[%s7 + $0x9d0] sm:$0xff]
      %v2635 = vld [vmem:[%s7 + $0x9d8] sm:$0xff]
      %v2636 = vld [vmem:[%s7 + $0x9e0] sm:$0xff]
      %v2637 = vld [vmem:[%s7 + $0x9e8] sm:$0xff]
      %v2638 = vld [vmem:[%s7 + $0x9f0] sm:$0xff]
      %v2639 = vld [vmem:[%s7 + $0x9f8] sm:$0xff]
      %v2640 = vld [vmem:[%s7 + $0xa00] sm:$0xff]
      %v2641 = vld [vmem:[%s7 + $0xa08] sm:$0xff]
      %v2642 = vld [vmem:[%s7 + $0xa10] sm:$0xff]
      %v2643 = vld [vmem:[%s7 + $0xa18] sm:$0xff]
      %v2644 = vld [vmem:[%s7 + $0xa20] sm:$0xff]
      %v2645 = vld [vmem:[%s7 + $0xa28] sm:$0xff]
      %v2646 = vld [vmem:[%s7 + $0xa30] sm:$0xff]
      %v2647 = vld [vmem:[%s7 + $0xa38] sm:$0xff]
      %v2648 = vld [vmem:[%s7 + $0xa40] sm:$0xff]
      %v2649 = vld [vmem:[%s7 + $0xa48] sm:$0xff]
      %v2650 = vld [vmem:[%s7 + $0xa50] sm:$0xff]
      %v2651 = vld [vmem:[%s7 + $0xa58] sm:$0xff]
      %v2652 = vld [vmem:[%s7 + $0xa60] sm:$0xff]
      %v2653 = vld [vmem:[%s7 + $0xa68] sm:$0xff]
      %v2654 = vld [vmem:[%s7 + $0xa70] sm:$0xff]
      %v2655 = vld [vmem:[%s7 + $0xa78] sm:$0xff]
      %v2656 = vld [vmem:[%s7 + $0xa80] sm:$0xff]
      %v2657 = vld [vmem:[%s7 + $0xa88] sm:$0xff]
      %v2658 = vld [vmem:[%s7 + $0xa90] sm:$0xff]
      %v2659 = vld [vmem:[%s7 + $0xa98] sm:$0xff]
      %v2660 = vld [vmem:[%s7 + $0xaa0] sm:$0xff]
      %v2661 = vld [vmem:[%s7 + $0xaa8] sm:$0xff]
      %v2662 = vld [vmem:[%s7 + $0xab0] sm:$0xff]
      %v2663 = vld [vmem:[%s7 + $0xab8] sm:$0xff]
      %v2664 = vld [vmem:[%s7 + $0xac0] sm:$0xff]
      %v2665 = vld [vmem:[%s7 + $0xac8] sm:$0xff]
      %v2666 = vld [vmem:[%s7 + $0xad0] sm:$0xff]
      %v2667 = vld [vmem:[%s7 + $0xad8] sm:$0xff]
      %v2668 = vld [vmem:[%s7 + $0xae0] sm:$0xff]
      %v2669 = vld [vmem:[%s7 + $0xae8] sm:$0xff]
      %v2670 = vld [vmem:[%s7 + $0xaf0] sm:$0xff]
      %v2671 = vld [vmem:[%s7 + $0xaf8] sm:$0xff]
      %v2672 = vld [vmem:[%s7 + $0xb00] sm:$0xff]
      %v2673 = vld [vmem:[%s7 + $0xb08] sm:$0xff]
      %v2674 = vld [vmem:[%s7 + $0xb10] sm:$0xff]
      %v2675 = vld [vmem:[%s7 + $0xb18] sm:$0xff]
      %v2676 = vld [vmem:[%s7 + $0xb20] sm:$0xff]
      %v2677 = vld [vmem:[%s7 + $0xb28] sm:$0xff]
      %v2678 = vld [vmem:[%s7 + $0xb30] sm:$0xff]
      %v2679 = vld [vmem:[%s7 + $0xb38] sm:$0xff]
      %v2680 = vld [vmem:[%s7 + $0xb40] sm:$0xff]
      %v2681 = vld [vmem:[%s7 + $0xb48] sm:$0xff]
      %v2682 = vld [vmem:[%s7 + $0xb50] sm:$0xff]
      %v2683 = vld [vmem:[%s7 + $0xb58] sm:$0xff]
      %v2684 = vld [vmem:[%s7 + $0xb60] sm:$0xff]
      %v2685 = vld [vmem:[%s7 + $0xb68] sm:$0xff]
      %v2686 = vld [vmem:[%s7 + $0xb70] sm:$0xff]
      %v2687 = vld [vmem:[%s7 + $0xb78] sm:$0xff]
      %v2688 = vld [vmem:[%s7 + $0xb80] sm:$0xff]
      %v2689 = vld [vmem:[%s7 + $0xb88] sm:$0xff]
      %v2690 = vld [vmem:[%s7 + $0xb90] sm:$0xff]
      %v2691 = vld [vmem:[%s7 + $0xb98] sm:$0xff]
      %v2692 = vld [vmem:[%s7 + $0xba0] sm:$0xff]
      %v2693 = vld [vmem:[%s7 + $0xba8] sm:$0xff]
      %v2694 = vld [vmem:[%s7 + $0xbb0] sm:$0xff]
      %v2695 = vld [vmem:[%s7 + $0xbb8] sm:$0xff]
      %v2696 = vld [vmem:[%s7 + $0xbc0] sm:$0xff]
      %v2697 = vld [vmem:[%s7 + $0xbc8] sm:$0xff]
      %v2698 = vld [vmem:[%s7 + $0xbd0] sm:$0xff]
      %v2699 = vld [vmem:[%s7 + $0xbd8] sm:$0xff]
      %v2700 = vld [vmem:[%s7 + $0xbe0] sm:$0xff]
      %v2701 = vld [vmem:[%s7 + $0xbe8] sm:$0xff]
      %v2702 = vld [vmem:[%s7 + $0xbf0] sm:$0xff]
      %v2703 = vld [vmem:[%s7 + $0xbf8] sm:$0xff]
      %v2704 = vld [vmem:[%s7 + $0xc00] sm:$0xff]
      %v2705 = vld [vmem:[%s7 + $0xc08] sm:$0xff]
      %v2706 = vld [vmem:[%s7 + $0xc10] sm:$0xff]
      %v2707 = vld [vmem:[%s7 + $0xc18] sm:$0xff]
      %v2708 = vld [vmem:[%s7 + $0xc20] sm:$0xff]
      %v2709 = vld [vmem:[%s7 + $0xc28] sm:$0xff]
      %v2710 = vld [vmem:[%s7 + $0xc30] sm:$0xff]
      %v2711 = vld [vmem:[%s7 + $0xc38] sm:$0xff]
      %v2712 = vld [vmem:[%s7 + $0xc40] sm:$0xff]
      %v2713 = vld [vmem:[%s7 + $0xc48] sm:$0x7]
      %v2714 = vld [vmem:[%s7 + $0xc50] sm:$0x7]
      %v2715 = vld [vmem:[%s7 + $0xc58] sm:$0x7]
      %vm2716 = vcmask 220160
      %v2718 = vsel %vm2716, %v2292, 0
      %v2721 = vsel %vm2716, %v2310, 0
      %vm2723 = vcmask 1042432
      %v2725 = vsel %vm2723, %v2713, 0
      %v2728 = vsel %vm2723, %v2714, 0
      %v2731 = vsel %vm2723, %v2715, 0
      %2733 = vmatprep.subr.mxu0 %v2321
      %2734 = vmatpush1.msra.mxu0 %v2320
      %2735 = vmatprep.subr.mxu0 %v2324
      %2736 = vmatpush1.msra.mxu0 %v2323
      %2737 = vmatprep.subr.mxu0 %v2327
      %2738 = vmatpush1.msra.mxu0 %v2326
      %2739 = vmatprep.subr.mxu0 %v2330
      %2740 = vmatpush1.msra.mxu0 %v2329
      %2741 = vmatprep.subr.mxu0 %v2333
      %2742 = vmatpush1.msra.mxu0 %v2332
      %2743 = vmatprep.subr.mxu0 %v2336
      %2744 = vmatpush1.msra.mxu0 %v2335
      %2745 = vmatprep.subr.mxu0 %v2339
      %2746 = vmatpush1.msra.mxu0 %v2338
      %2747 = vmatprep.subr.mxu0 %v2342
      %2748 = vmatpush1.msra.mxu0 %v2341
      %2749 = vmatprep.subr.mxu0 %v2345
      %2750 = vmatpush1.msra.mxu0 %v2344
      %2751 = vmatprep.subr.mxu0 %v2348
      %2752 = vmatpush1.msra.mxu0 %v2347
      %2753 = vmatprep.subr.mxu0 %v2351
      %2754 = vmatpush1.msra.mxu0 %v2350
      %2755 = vmatprep.subr.mxu0 %v2354
      %2756 = vmatpush1.msra.mxu0 %v2353
      %2757 = vmatprep.subr.mxu0 %v2357
      %2758 = vmatpush1.msra.mxu0 %v2356
      %2759 = vmatprep.subr.mxu0 %v2360
      %2760 = vmatpush1.msra.mxu0 %v2359
      %2761 = vmatprep.subr.mxu0 %v2363
      %2762 = vmatpush1.msra.mxu0 %v2362
      %2763 = vmatprep.subr.mxu0 %v2366
      %2764 = vmatpush1.msra.mxu0 %v2365
      %2765 = vmatprep.subr.mxu0 %v2369
      %2766 = vmatpush1.msra.mxu0 %v2368
      %2767 = vmatprep.subr.mxu0 %v2372
      %2768 = vmatpush1.msra.mxu0 %v2371
      %2769 = vmatprep.subr.mxu0 %v2375
      %2770 = vmatpush1.msra.mxu0 %v2374
      %2771 = vmatprep.subr.mxu0 %v2378
      %2772 = vmatpush1.msra.mxu0 %v2377
      %2773 = vmatprep.subr.mxu0 %v2381
      %2774 = vmatpush1.msra.mxu0 %v2380
      %2775 = vmatprep.subr.mxu0 %v2384
      %2776 = vmatpush1.msra.mxu0 %v2383
      %2777 = vmatprep.subr.mxu0 %v2387
      %2778 = vmatpush1.msra.mxu0 %v2386
      %2779 = vmatprep.subr.mxu0 %v2390
      %2780 = vmatpush1.msra.mxu0 %v2389
      %2781 = vmatprep.subr.mxu0 %v2393
      %2782 = vmatpush1.msra.mxu0 %v2392
      %2783 = vmatprep.subr.mxu0 %v2396
      %2784 = vmatpush1.msra.mxu0 %v2395
      %2785 = vmatprep.subr.mxu0 %v2399
      %2786 = vmatpush1.msra.mxu0 %v2398
      %2787 = vmatprep.subr.mxu0 %v2402
      %2788 = vmatpush1.msra.mxu0 %v2401
      %2789 = vmatprep.subr.mxu0 %v2405
      %2790 = vmatpush1.msra.mxu0 %v2404
      %2791 = vmatprep.subr.mxu0 %v2408
      %2792 = vmatpush1.msra.mxu0 %v2407
      %2793 = vmatprep.subr.mxu0 %v2411
      %2794 = vmatpush1.msra.mxu0 %v2410
      %2795 = vmatprep.subr.mxu0 %v2414
      %2796 = vmatpush1.msra.mxu0 %v2413
      %2797 = vmatprep.mubr.f32.mxu0 %v2285
      %2798 = vmatmul.mubr.f32.gmra.mrb[0].mxu0 %v2284
      %v2799 = vpop.f32.mrb[0].mxu0
      %v2800 = vadd.f32 0.0, %v2799
      %v2801 = vpop.f32.mrb[0].mxu0
      %v2802 = vadd.f32 0.0, %v2801
      %2803 = vmatprep.mubr.f32.mxu0 %v2303
      %2804 = vmatmul.mubr.f32.gmra.mrb[0].mxu0 %v2302
      %v2805 = vpop.f32.mrb[0].mxu0
      %v2806 = vadd.f32 0.0, %v2805
      %v2807 = vpop.f32.mrb[0].mxu0
      %v2808 = vadd.f32 0.0, %v2807
      %2809 = vdwg.mxu0
      %2810 = vmatprep.subr.mxu0 %v2417
      %2811 = vmatpush1.msra.mxu0 %v2416
      %2812 = vmatprep.subr.mxu0 %v2420
      %2813 = vmatpush1.msra.mxu0 %v2419
      %2814 = vmatprep.subr.mxu0 %v2423
      %2815 = vmatpush1.msra.mxu0 %v2422
      %2816 = vmatprep.subr.mxu0 %v2426
      %2817 = vmatpush1.msra.mxu0 %v2425
      %2818 = vmatprep.subr.mxu0 %v2429
      %2819 = vmatpush1.msra.mxu0 %v2428
      %2820 = vmatprep.subr.mxu0 %v2432
      %2821 = vmatpush1.msra.mxu0 %v2431
      %2822 = vmatprep.subr.mxu0 %v2435
      %2823 = vmatpush1.msra.mxu0 %v2434
      %2824 = vmatprep.subr.mxu0 %v2438
      %2825 = vmatpush1.msra.mxu0 %v2437
      %2826 = vmatprep.subr.mxu0 %v2441
      %2827 = vmatpush1.msra.mxu0 %v2440
      %2828 = vmatprep.subr.mxu0 %v2444
      %2829 = vmatpush1.msra.mxu0 %v2443
      %2830 = vmatprep.subr.mxu0 %v2447
      %2831 = vmatpush1.msra.mxu0 %v2446
      %2832 = vmatprep.subr.mxu0 %v2450
      %2833 = vmatpush1.msra.mxu0 %v2449
      %2834 = vmatprep.subr.mxu0 %v2453
      %2835 = vmatpush1.msra.mxu0 %v2452
      %2836 = vmatprep.subr.mxu0 %v2456
      %2837 = vmatpush1.msra.mxu0 %v2455
      %2838 = vmatprep.subr.mxu0 %v2459
      %2839 = vmatpush1.msra.mxu0 %v2458
      %2840 = vmatprep.subr.mxu0 %v2462
      %2841 = vmatpush1.msra.mxu0 %v2461
      %2842 = vmatprep.subr.mxu0 %v2465
      %2843 = vmatpush1.msra.mxu0 %v2464
      %2844 = vmatprep.subr.mxu0 %v2468
      %2845 = vmatpush1.msra.mxu0 %v2467
      %2846 = vmatprep.subr.mxu0 %v2471
      %2847 = vmatpush1.msra.mxu0 %v2470
      %2848 = vmatprep.subr.mxu0 %v2474
      %2849 = vmatpush1.msra.mxu0 %v2473
      %2850 = vmatprep.subr.mxu0 %v2477
      %2851 = vmatpush1.msra.mxu0 %v2476
      %2852 = vmatprep.subr.mxu0 %v2480
      %2853 = vmatpush1.msra.mxu0 %v2479
      %2854 = vmatprep.subr.mxu0 %v2483
      %2855 = vmatpush1.msra.mxu0 %v2482
      %2856 = vmatprep.subr.mxu0 %v2486
      %2857 = vmatpush1.msra.mxu0 %v2485
      %2858 = vmatprep.subr.mxu0 %v2489
      %2859 = vmatpush1.msra.mxu0 %v2488
      %2860 = vmatprep.subr.mxu0 %v2492
      %2861 = vmatpush1.msra.mxu0 %v2491
      %2862 = vmatprep.subr.mxu0 %v2495
      %2863 = vmatpush1.msra.mxu0 %v2494
      %2864 = vmatprep.subr.mxu0 %v2498
      %2865 = vmatpush1.msra.mxu0 %v2497
      %2866 = vmatprep.subr.mxu0 %v2501
      %2867 = vmatpush1.msra.mxu0 %v2500
      %2868 = vmatprep.subr.mxu0 %v2504
      %2869 = vmatpush1.msra.mxu0 %v2503
      %2870 = vmatprep.subr.mxu0 %v2507
      %2871 = vmatpush1.msra.mxu0 %v2506
      %2872 = vmatprep.subr.mxu0 %v2510
      %2873 = vmatpush1.msra.mxu0 %v2509
      %2874 = vmatprep.mubr.f32.mxu0 %v2287
      %2875 = vmatmul.mubr.f32.gmra.mrb[0].mxu0 %v2286
      %v2876 = vpop.f32.mrb[0].mxu0
      %v2877 = vadd.f32 %v2800, %v2876
      %v2878 = vpop.f32.mrb[0].mxu0
      %v2879 = vadd.f32 %v2802, %v2878
      %2880 = vmatprep.mubr.f32.mxu0 %v2305
      %2881 = vmatmul.mubr.f32.gmra.mrb[0].mxu0 %v2304
      %v2882 = vpop.f32.mrb[0].mxu0
      %v2883 = vadd.f32 %v2806, %v2882
      %v2884 = vpop.f32.mrb[0].mxu0
      %v2885 = vadd.f32 %v2808, %v2884
      %2886 = vdwg.mxu0
      %2887 = vmatprep.subr.mxu0 %v2513
      %2888 = vmatpush1.msra.mxu0 %v2512
      %2889 = vmatprep.subr.mxu0 %v2516
      %2890 = vmatpush1.msra.mxu0 %v2515
      %2891 = vmatprep.subr.mxu0 %v2519
      %2892 = vmatpush1.msra.mxu0 %v2518
      %2893 = vmatprep.subr.mxu0 %v2522
      %2894 = vmatpush1.msra.mxu0 %v2521
      %2895 = vmatprep.subr.mxu0 %v2525
      %2896 = vmatpush1.msra.mxu0 %v2524
      %2897 = vmatprep.subr.mxu0 %v2528
      %2898 = vmatpush1.msra.mxu0 %v2527
      %2899 = vmatprep.subr.mxu0 %v2531
      %2900 = vmatpush1.msra.mxu0 %v2530
      %2901 = vmatprep.subr.mxu0 %v2534
      %2902 = vmatpush1.msra.mxu0 %v2533
      %2903 = vmatprep.subr.mxu0 %v2537
      %2904 = vmatpush1.msra.mxu0 %v2536
      %2905 = vmatprep.subr.mxu0 %v2540
      %2906 = vmatpush1.msra.mxu0 %v2539
      %2907 = vmatprep.subr.mxu0 %v2543
      %2908 = vmatpush1.msra.mxu0 %v2542
      %2909 = vmatprep.subr.mxu0 %v2546
      %2910 = vmatpush1.msra.mxu0 %v2545
      %2911 = vmatprep.subr.mxu0 %v2549
      %2912 = vmatpush1.msra.mxu0 %v2548
      %2913 = vmatprep.subr.mxu0 %v2552
      %2914 = vmatpush1.msra.mxu0 %v2551
      %2915 = vmatprep.subr.mxu0 %v2555
      %2916 = vmatpush1.msra.mxu0 %v2554
      %2917 = vmatprep.subr.mxu0 %v2558
      %2918 = vmatpush1.msra.mxu0 %v2557
      %2919 = vmatprep.subr.mxu0 %v2561
      %2920 = vmatpush1.msra.mxu0 %v2560
      %2921 = vmatprep.subr.mxu0 %v2564
      %2922 = vmatpush1.msra.mxu0 %v2563
      %2923 = vmatprep.subr.mxu0 %v2567
      %2924 = vmatpush1.msra.mxu0 %v2566
      %2925 = vmatprep.subr.mxu0 %v2570
      %2926 = vmatpush1.msra.mxu0 %v2569
      %2927 = vmatprep.subr.mxu0 %v2573
      %2928 = vmatpush1.msra.mxu0 %v2572
      %2929 = vmatprep.subr.mxu0 %v2576
      %2930 = vmatpush1.msra.mxu0 %v2575
      %2931 = vmatprep.subr.mxu0 %v2579
      %2932 = vmatpush1.msra.mxu0 %v2578
      %2933 = vmatprep.subr.mxu0 %v2582
      %2934 = vmatpush1.msra.mxu0 %v2581
      %2935 = vmatprep.subr.mxu0 %v2585
      %2936 = vmatpush1.msra.mxu0 %v2584
      %2937 = vmatprep.subr.mxu0 %v2588
      %2938 = vmatpush1.msra.mxu0 %v2587
      %2939 = vmatprep.subr.mxu0 %v2591
      %2940 = vmatpush1.msra.mxu0 %v2590
      %2941 = vmatprep.subr.mxu0 %v2594
      %2942 = vmatpush1.msra.mxu0 %v2593
      %2943 = vmatprep.subr.mxu0 %v2597
      %2944 = vmatpush1.msra.mxu0 %v2596
      %2945 = vmatprep.subr.mxu0 %v2600
      %2946 = vmatpush1.msra.mxu0 %v2599
      %2947 = vmatprep.subr.mxu0 %v2603
      %2948 = vmatpush1.msra.mxu0 %v2602
      %2949 = vmatprep.subr.mxu0 %v2606
      %2950 = vmatpush1.msra.mxu0 %v2605
      %2951 = vmatprep.mubr.f32.mxu0 %v2289
      %2952 = vmatmul.mubr.f32.gmra.mrb[0].mxu0 %v2288
      %v2953 = vpop.f32.mrb[0].mxu0
      %v2954 = vadd.f32 %v2877, %v2953
      %v2955 = vpop.f32.mrb[0].mxu0
      %v2956 = vadd.f32 %v2879, %v2955
      %2957 = vmatprep.mubr.f32.mxu0 %v2307
      %2958 = vmatmul.mubr.f32.gmra.mrb[0].mxu0 %v2306
      %v2959 = vpop.f32.mrb[0].mxu0
      %v2960 = vadd.f32 %v2883, %v2959
      %v2961 = vpop.f32.mrb[0].mxu0
      %v2962 = vadd.f32 %v2885, %v2961
      %2963 = vdwg.mxu0
      %2964 = vmatprep.subr.mxu0 %v2609
      %2965 = vmatpush1.msra.mxu0 %v2608
      %2966 = vmatprep.subr.mxu0 %v2612
      %2967 = vmatpush1.msra.mxu0 %v2611
      %2968 = vmatprep.subr.mxu0 %v2615
      %2969 = vmatpush1.msra.mxu0 %v2614
      %2970 = vmatprep.subr.mxu0 %v2618
      %2971 = vmatpush1.msra.mxu0 %v2617
      %2972 = vmatprep.subr.mxu0 %v2621
      %2973 = vmatpush1.msra.mxu0 %v2620
      %2974 = vmatprep.subr.mxu0 %v2624
      %2975 = vmatpush1.msra.mxu0 %v2623
      %2976 = vmatprep.subr.mxu0 %v2627
      %2977 = vmatpush1.msra.mxu0 %v2626
      %2978 = vmatprep.subr.mxu0 %v2630
      %2979 = vmatpush1.msra.mxu0 %v2629
      %2980 = vmatprep.subr.mxu0 %v2633
      %2981 = vmatpush1.msra.mxu0 %v2632
      %2982 = vmatprep.subr.mxu0 %v2636
      %2983 = vmatpush1.msra.mxu0 %v2635
      %2984 = vmatprep.subr.mxu0 %v2639
      %2985 = vmatpush1.msra.mxu0 %v2638
      %2986 = vmatprep.subr.mxu0 %v2642
      %2987 = vmatpush1.msra.mxu0 %v2641
      %2988 = vmatprep.subr.mxu0 %v2645
      %2989 = vmatpush1.msra.mxu0 %v2644
      %2990 = vmatprep.subr.mxu0 %v2648
      %2991 = vmatpush1.msra.mxu0 %v2647
      %2992 = vmatprep.subr.mxu0 %v2651
      %2993 = vmatpush1.msra.mxu0 %v2650
      %2994 = vmatprep.subr.mxu0 %v2654
      %2995 = vmatpush1.msra.mxu0 %v2653
      %2996 = vmatprep.subr.mxu0 %v2657
      %2997 = vmatpush1.msra.mxu0 %v2656
      %2998 = vmatprep.subr.mxu0 %v2660
      %2999 = vmatpush1.msra.mxu0 %v2659
      %3000 = vmatprep.subr.mxu0 %v2663
      %3001 = vmatpush1.msra.mxu0 %v2662
      %3002 = vmatprep.subr.mxu0 %v2666
      %3003 = vmatpush1.msra.mxu0 %v2665
      %3004 = vmatprep.subr.mxu0 %v2669
      %3005 = vmatpush1.msra.mxu0 %v2668
      %3006 = vmatprep.subr.mxu0 %v2672
      %3007 = vmatpush1.msra.mxu0 %v2671
      %3008 = vmatprep.subr.mxu0 %v2675
      %3009 = vmatpush1.msra.mxu0 %v2674
      %3010 = vmatprep.subr.mxu0 %v2678
      %3011 = vmatpush1.msra.mxu0 %v2677
      %3012 = vmatprep.subr.mxu0 %v2681
      %3013 = vmatpush1.msra.mxu0 %v2680
      %3014 = vmatprep.subr.mxu0 %v2684
      %3015 = vmatpush1.msra.mxu0 %v2683
      %3016 = vmatprep.subr.mxu0 %v2687
      %3017 = vmatpush1.msra.mxu0 %v2686
      %3018 = vmatprep.subr.mxu0 %v2690
      %3019 = vmatpush1.msra.mxu0 %v2689
      %3020 = vmatprep.subr.mxu0 %v2693
      %3021 = vmatpush1.msra.mxu0 %v2692
      %3022 = vmatprep.subr.mxu0 %v2696
      %3023 = vmatpush1.msra.mxu0 %v2695
      %3024 = vmatprep.subr.mxu0 %v2699
      %3025 = vmatpush1.msra.mxu0 %v2698
      %3026 = vmatprep.subr.mxu0 %v2702
      %3027 = vmatpush1.msra.mxu0 %v2701
      %3028 = vmatprep.mubr.f32.mxu0 %v2291
      %3029 = vmatmul.mubr.f32.gmra.mrb[0].mxu0 %v2290
      %v3030 = vpop.f32.mrb[0].mxu0
      %v3031 = vadd.f32 %v2954, %v3030
      %v3032 = vpop.f32.mrb[0].mxu0
      %v3033 = vadd.f32 %v2956, %v3032
      %3034 = vmatprep.mubr.f32.mxu0 %v2309
      %3035 = vmatmul.mubr.f32.gmra.mrb[0].mxu0 %v2308
      %v3036 = vpop.f32.mrb[0].mxu0
      %v3037 = vadd.f32 %v2960, %v3036
      %v3038 = vpop.f32.mrb[0].mxu0
      %v3039 = vadd.f32 %v2962, %v3038
      %3040 = vdwg.mxu0
      %3041 = vmatprep.subr.mxu0 %v2705
      %3042 = vmatpush1.msra.mxu0 %v2704
      %3043 = vmatprep.subr.mxu0 %v2708
      %3044 = vmatpush1.msra.mxu0 %v2707
      %3045 = vmatprep.subr.mxu0 %v2711
      %3046 = vmatpush1.msra.mxu0 %v2710
      %3047 = vmatprep.subr.mxu0 %v2728
      %3048 = vmatpush1.msra.mxu0 %v2725
      %3049 = vmatprep.subr.mxu0 0.0
      %3050 = vmatpush1.msra.mxu0 0.0
      %3051 = vmatprep.subr.mxu0 0.0
      %3052 = vmatpush1.msra.mxu0 0.0
      %3053 = vmatprep.subr.mxu0 0.0
      %3054 = vmatpush1.msra.mxu0 0.0
      %3055 = vmatprep.subr.mxu0 0.0
      %3056 = vmatpush1.msra.mxu0 0.0
      %3057 = vmatprep.subr.mxu0 0.0
      %3058 = vmatpush1.msra.mxu0 0.0
      %3059 = vmatprep.subr.mxu0 0.0
      %3060 = vmatpush1.msra.mxu0 0.0
      %3061 = vmatprep.subr.mxu0 0.0
      %3062 = vmatpush1.msra.mxu0 0.0
      %3063 = vmatprep.subr.mxu0 0.0
      %3064 = vmatpush1.msra.mxu0 0.0
      %3065 = vmatprep.subr.mxu0 0.0
      %3066 = vmatpush1.msra.mxu0 0.0
      %3067 = vmatprep.subr.mxu0 0.0
      %3068 = vmatpush1.msra.mxu0 0.0
      %3069 = vmatprep.subr.mxu0 0.0
      %3070 = vmatpush1.msra.mxu0 0.0
      %3071 = vmatprep.subr.mxu0 0.0
      %3072 = vmatpush1.msra.mxu0 0.0
      %3073 = vmatprep.subr.mxu0 0.0
      %3074 = vmatpush1.msra.mxu0 0.0
      %3075 = vmatprep.subr.mxu0 0.0
      %3076 = vmatpush1.msra.mxu0 0.0
      %3077 = vmatprep.subr.mxu0 0.0
      %3078 = vmatpush1.msra.mxu0 0.0
      %3079 = vmatprep.subr.mxu0 0.0
      %3080 = vmatpush1.msra.mxu0 0.0
      %3081 = vmatprep.subr.mxu0 0.0
      %3082 = vmatpush1.msra.mxu0 0.0
      %3083 = vmatprep.subr.mxu0 0.0
      %3084 = vmatpush1.msra.mxu0 0.0
      %3085 = vmatprep.subr.mxu0 0.0
      %3086 = vmatpush1.msra.mxu0 0.0
      %3087 = vmatprep.subr.mxu0 0.0
      %3088 = vmatpush1.msra.mxu0 0.0
      %3089 = vmatprep.subr.mxu0 0.0
      %3090 = vmatpush1.msra.mxu0 0.0
      %3091 = vmatprep.subr.mxu0 0.0
      %3092 = vmatpush1.msra.mxu0 0.0
      %3093 = vmatprep.subr.mxu0 0.0
      %3094 = vmatpush1.msra.mxu0 0.0
      %3095 = vmatprep.subr.mxu0 0.0
      %3096 = vmatpush1.msra.mxu0 0.0
      %3097 = vmatprep.subr.mxu0 0.0
      %3098 = vmatpush1.msra.mxu0 0.0
      %3099 = vmatprep.subr.mxu0 0.0
      %3100 = vmatpush1.msra.mxu0 0.0
      %3101 = vmatprep.subr.mxu0 0.0
      %3102 = vmatpush1.msra.mxu0 0.0
      %3103 = vmatprep.subr.mxu0 0.0
      %3104 = vmatpush1.msra.mxu0 0.0
      %3105 = vmatprep.mubr.f32.mxu0 0.0
      %3106 = vmatmul.mubr.f32.gmra.mrb[0].mxu0 %v2718
      %v3107 = vpop.f32.mrb[0].mxu0
      %v3108 = vadd.f32 %v3031, %v3107
      %v3109 = vpop.f32.mrb[0].mxu0
      %v3110 = vadd.f32 %v3033, %v3109
      %3111 = vmatprep.mubr.f32.mxu0 0.0
      %3112 = vmatmul.mubr.f32.gmra.mrb[0].mxu0 %v2721
      %v3113 = vpop.f32.mrb[0].mxu0
      %v3114 = vadd.f32 %v3037, %v3113
      %v3115 = vpop.f32.mrb[0].mxu0
      %v3116 = vadd.f32 %v3039, %v3115
      %3117 = vdwg.mxu0
      %3118 = vmatprep.subr.mxu0 0.0
      %3119 = vmatpush1.msra.mxu0 %v2322
      %3120 = vmatprep.subr.mxu0 0.0
      %3121 = vmatpush1.msra.mxu0 %v2325
      %3122 = vmatprep.subr.mxu0 0.0
      %3123 = vmatpush1.msra.mxu0 %v2328
      %3124 = vmatprep.subr.mxu0 0.0
      %3125 = vmatpush1.msra.mxu0 %v2331
      %3126 = vmatprep.subr.mxu0 0.0
      %3127 = vmatpush1.msra.mxu0 %v2334
      %3128 = vmatprep.subr.mxu0 0.0
      %3129 = vmatpush1.msra.mxu0 %v2337
      %3130 = vmatprep.subr.mxu0 0.0
      %3131 = vmatpush1.msra.mxu0 %v2340
      %3132 = vmatprep.subr.mxu0 0.0
      %3133 = vmatpush1.msra.mxu0 %v2343
      %3134 = vmatprep.subr.mxu0 0.0
      %3135 = vmatpush1.msra.mxu0 %v2346
      %3136 = vmatprep.subr.mxu0 0.0
      %3137 = vmatpush1.msra.mxu0 %v2349
      %3138 = vmatprep.subr.mxu0 0.0
      %3139 = vmatpush1.msra.mxu0 %v2352
      %3140 = vmatprep.subr.mxu0 0.0
      %3141 = vmatpush1.msra.mxu0 %v2355
      %3142 = vmatprep.subr.mxu0 0.0
      %3143 = vmatpush1.msra.mxu0 %v2358
      %3144 = vmatprep.subr.mxu0 0.0
      %3145 = vmatpush1.msra.mxu0 %v2361
      %3146 = vmatprep.subr.mxu0 0.0
      %3147 = vmatpush1.msra.mxu0 %v2364
      %3148 = vmatprep.subr.mxu0 0.0
      %3149 = vmatpush1.msra.mxu0 %v2367
      %3150 = vmatprep.subr.mxu0 0.0
      %3151 = vmatpush1.msra.mxu0 %v2370
      %3152 = vmatprep.subr.mxu0 0.0
      %3153 = vmatpush1.msra.mxu0 %v2373
      %3154 = vmatprep.subr.mxu0 0.0
      %3155 = vmatpush1.msra.mxu0 %v2376
      %3156 = vmatprep.subr.mxu0 0.0
      %3157 = vmatpush1.msra.mxu0 %v2379
      %3158 = vmatprep.subr.mxu0 0.0
      %3159 = vmatpush1.msra.mxu0 %v2382
      %3160 = vmatprep.subr.mxu0 0.0
      %3161 = vmatpush1.msra.mxu0 %v2385
      %3162 = vmatprep.subr.mxu0 0.0
      %3163 = vmatpush1.msra.mxu0 %v2388
      %3164 = vmatprep.subr.mxu0 0.0
      %3165 = vmatpush1.msra.mxu0 %v2391
      %3166 = vmatprep.subr.mxu0 0.0
      %3167 = vmatpush1.msra.mxu0 %v2394
      %3168 = vmatprep.subr.mxu0 0.0
      %3169 = vmatpush1.msra.mxu0 %v2397
      %3170 = vmatprep.subr.mxu0 0.0
      %3171 = vmatpush1.msra.mxu0 %v2400
      %3172 = vmatprep.subr.mxu0 0.0
      %3173 = vmatpush1.msra.mxu0 %v2403
      %3174 = vmatprep.subr.mxu0 0.0
      %3175 = vmatpush1.msra.mxu0 %v2406
      %3176 = vmatprep.subr.mxu0 0.0
      %3177 = vmatpush1.msra.mxu0 %v2409
      %3178 = vmatprep.subr.mxu0 0.0
      %3179 = vmatpush1.msra.mxu0 %v2412
      %3180 = vmatprep.subr.mxu0 0.0
      %3181 = vmatpush1.msra.mxu0 %v2415
      %3182 = vmatprep.mubr.f32.mxu0 %v2285
      %3183 = vmatmul.mubr.f32.gmra.mrb[0].mxu0 %v2284
      %v3184 = vpop.f32.mrb[0].mxu0
      %v3185 = vadd.f32 0.0, %v3184
      %v3186 = vpop.f32.mrb[0].mxu0
      %3187 = vmatprep.mubr.f32.mxu0 %v2303
      %3188 = vmatmul.mubr.f32.gmra.mrb[0].mxu0 %v2302
      %v3189 = vpop.f32.mrb[0].mxu0
      %v3190 = vadd.f32 0.0, %v3189
      %v3191 = vpop.f32.mrb[0].mxu0
      %3192 = vdwg.mxu0
      %3193 = vmatprep.subr.mxu0 0.0
      %3194 = vmatpush1.msra.mxu0 %v2418
      %3195 = vmatprep.subr.mxu0 0.0
      %3196 = vmatpush1.msra.mxu0 %v2421
      %3197 = vmatprep.subr.mxu0 0.0
      %3198 = vmatpush1.msra.mxu0 %v2424
      %3199 = vmatprep.subr.mxu0 0.0
      %3200 = vmatpush1.msra.mxu0 %v2427
      %3201 = vmatprep.subr.mxu0 0.0
      %3202 = vmatpush1.msra.mxu0 %v2430
      %3203 = vmatprep.subr.mxu0 0.0
      %3204 = vmatpush1.msra.mxu0 %v2433
      %3205 = vmatprep.subr.mxu0 0.0
      %3206 = vmatpush1.msra.mxu0 %v2436
      %3207 = vmatprep.subr.mxu0 0.0
      %3208 = vmatpush1.msra.mxu0 %v2439
      %3209 = vmatprep.subr.mxu0 0.0
      %3210 = vmatpush1.msra.mxu0 %v2442
      %3211 = vmatprep.subr.mxu0 0.0
      %3212 = vmatpush1.msra.mxu0 %v2445
      %3213 = vmatprep.subr.mxu0 0.0
      %3214 = vmatpush1.msra.mxu0 %v2448
      %3215 = vmatprep.subr.mxu0 0.0
      %3216 = vmatpush1.msra.mxu0 %v2451
      %3217 = vmatprep.subr.mxu0 0.0
      %3218 = vmatpush1.msra.mxu0 %v2454
      %3219 = vmatprep.subr.mxu0 0.0
      %3220 = vmatpush1.msra.mxu0 %v2457
      %3221 = vmatprep.subr.mxu0 0.0
      %3222 = vmatpush1.msra.mxu0 %v2460
      %3223 = vmatprep.subr.mxu0 0.0
      %3224 = vmatpush1.msra.mxu0 %v2463
      %3225 = vmatprep.subr.mxu0 0.0
      %3226 = vmatpush1.msra.mxu0 %v2466
      %3227 = vmatprep.subr.mxu0 0.0
      %3228 = vmatpush1.msra.mxu0 %v2469
      %3229 = vmatprep.subr.mxu0 0.0
      %3230 = vmatpush1.msra.mxu0 %v2472
      %3231 = vmatprep.subr.mxu0 0.0
      %3232 = vmatpush1.msra.mxu0 %v2475
      %3233 = vmatprep.subr.mxu0 0.0
      %3234 = vmatpush1.msra.mxu0 %v2478
      %3235 = vmatprep.subr.mxu0 0.0
      %3236 = vmatpush1.msra.mxu0 %v2481
      %3237 = vmatprep.subr.mxu0 0.0
      %3238 = vmatpush1.msra.mxu0 %v2484
      %3239 = vmatprep.subr.mxu0 0.0
      %3240 = vmatpush1.msra.mxu0 %v2487
      %3241 = vmatprep.subr.mxu0 0.0
      %3242 = vmatpush1.msra.mxu0 %v2490
      %3243 = vmatprep.subr.mxu0 0.0
      %3244 = vmatpush1.msra.mxu0 %v2493
      %3245 = vmatprep.subr.mxu0 0.0
      %3246 = vmatpush1.msra.mxu0 %v2496
      %3247 = vmatprep.subr.mxu0 0.0
      %3248 = vmatpush1.msra.mxu0 %v2499
      %3249 = vmatprep.subr.mxu0 0.0
      %3250 = vmatpush1.msra.mxu0 %v2502
      %3251 = vmatprep.subr.mxu0 0.0
      %3252 = vmatpush1.msra.mxu0 %v2505
      %3253 = vmatprep.subr.mxu0 0.0
      %3254 = vmatpush1.msra.mxu0 %v2508
      %3255 = vmatprep.subr.mxu0 0.0
      %3256 = vmatpush1.msra.mxu0 %v2511
      %3257 = vmatprep.mubr.f32.mxu0 %v2287
      %3258 = vmatmul.mubr.f32.gmra.mrb[0].mxu0 %v2286
      %v3259 = vpop.f32.mrb[0].mxu0
      %v3260 = vadd.f32 %v3185, %v3259
      %v3261 = vpop.f32.mrb[0].mxu0
      %3262 = vmatprep.mubr.f32.mxu0 %v2305
      %3263 = vmatmul.mubr.f32.gmra.mrb[0].mxu0 %v2304
      %v3264 = vpop.f32.mrb[0].mxu0
      %v3265 = vadd.f32 %v3190, %v3264
      %v3266 = vpop.f32.mrb[0].mxu0
      %3267 = vdwg.mxu0
      %3268 = vmatprep.subr.mxu0 0.0
      %3269 = vmatpush1.msra.mxu0 %v2514
      %3270 = vmatprep.subr.mxu0 0.0
      %3271 = vmatpush1.msra.mxu0 %v2517
      %3272 = vmatprep.subr.mxu0 0.0
      %3273 = vmatpush1.msra.mxu0 %v2520
      %3274 = vmatprep.subr.mxu0 0.0
      %3275 = vmatpush1.msra.mxu0 %v2523
      %3276 = vmatprep.subr.mxu0 0.0
      %3277 = vmatpush1.msra.mxu0 %v2526
      %3278 = vmatprep.subr.mxu0 0.0
      %3279 = vmatpush1.msra.mxu0 %v2529
      %3280 = vmatprep.subr.mxu0 0.0
      %3281 = vmatpush1.msra.mxu0 %v2532
      %3282 = vmatprep.subr.mxu0 0.0
      %3283 = vmatpush1.msra.mxu0 %v2535
      %3284 = vmatprep.subr.mxu0 0.0
      %3285 = vmatpush1.msra.mxu0 %v2538
      %3286 = vmatprep.subr.mxu0 0.0
      %3287 = vmatpush1.msra.mxu0 %v2541
      %3288 = vmatprep.subr.mxu0 0.0
      %3289 = vmatpush1.msra.mxu0 %v2544
      %3290 = vmatprep.subr.mxu0 0.0
      %3291 = vmatpush1.msra.mxu0 %v2547
      %3292 = vmatprep.subr.mxu0 0.0
      %3293 = vmatpush1.msra.mxu0 %v2550
      %3294 = vmatprep.subr.mxu0 0.0
      %3295 = vmatpush1.msra.mxu0 %v2553
      %3296 = vmatprep.subr.mxu0 0.0
      %3297 = vmatpush1.msra.mxu0 %v2556
      %3298 = vmatprep.subr.mxu0 0.0
      %3299 = vmatpush1.msra.mxu0 %v2559
      %3300 = vmatprep.subr.mxu0 0.0
      %3301 = vmatpush1.msra.mxu0 %v2562
      %3302 = vmatprep.subr.mxu0 0.0
      %3303 = vmatpush1.msra.mxu0 %v2565
      %3304 = vmatprep.subr.mxu0 0.0
      %3305 = vmatpush1.msra.mxu0 %v2568
      %3306 = vmatprep.subr.mxu0 0.0
      %3307 = vmatpush1.msra.mxu0 %v2571
      %3308 = vmatprep.subr.mxu0 0.0
      %3309 = vmatpush1.msra.mxu0 %v2574
      %3310 = vmatprep.subr.mxu0 0.0
      %3311 = vmatpush1.msra.mxu0 %v2577
      %3312 = vmatprep.subr.mxu0 0.0
      %3313 = vmatpush1.msra.mxu0 %v2580
      %3314 = vmatprep.subr.mxu0 0.0
      %3315 = vmatpush1.msra.mxu0 %v2583
      %3316 = vmatprep.subr.mxu0 0.0
      %3317 = vmatpush1.msra.mxu0 %v2586
      %3318 = vmatprep.subr.mxu0 0.0
      %3319 = vmatpush1.msra.mxu0 %v2589
      %3320 = vmatprep.subr.mxu0 0.0
      %3321 = vmatpush1.msra.mxu0 %v2592
      %3322 = vmatprep.subr.mxu0 0.0
      %3323 = vmatpush1.msra.mxu0 %v2595
      %3324 = vmatprep.subr.mxu0 0.0
      %3325 = vmatpush1.msra.mxu0 %v2598
      %3326 = vmatprep.subr.mxu0 0.0
      %3327 = vmatpush1.msra.mxu0 %v2601
      %3328 = vmatprep.subr.mxu0 0.0
      %3329 = vmatpush1.msra.mxu0 %v2604
      %3330 = vmatprep.subr.mxu0 0.0
      %3331 = vmatpush1.msra.mxu0 %v2607
      %3332 = vmatprep.mubr.f32.mxu0 %v2289
      %3333 = vmatmul.mubr.f32.gmra.mrb[0].mxu0 %v2288
      %v3334 = vpop.f32.mrb[0].mxu0
      %v3335 = vadd.f32 %v3260, %v3334
      %v3336 = vpop.f32.mrb[0].mxu0
      %3337 = vmatprep.mubr.f32.mxu0 %v2307
      %3338 = vmatmul.mubr.f32.gmra.mrb[0].mxu0 %v2306
      %v3339 = vpop.f32.mrb[0].mxu0
      %v3340 = vadd.f32 %v3265, %v3339
      %v3341 = vpop.f32.mrb[0].mxu0
      %3342 = vdwg.mxu0
      %3343 = vmatprep.subr.mxu0 0.0
      %3344 = vmatpush1.msra.mxu0 %v2610
      %3345 = vmatprep.subr.mxu0 0.0
      %3346 = vmatpush1.msra.mxu0 %v2613
      %3347 = vmatprep.subr.mxu0 0.0
      %3348 = vmatpush1.msra.mxu0 %v2616
      %3349 = vmatprep.subr.mxu0 0.0
      %3350 = vmatpush1.msra.mxu0 %v2619
      %3351 = vmatprep.subr.mxu0 0.0
      %3352 = vmatpush1.msra.mxu0 %v2622
      %3353 = vmatprep.subr.mxu0 0.0
      %3354 = vmatpush1.msra.mxu0 %v2625
      %3355 = vmatprep.subr.mxu0 0.0
      %3356 = vmatpush1.msra.mxu0 %v2628
      %3357 = vmatprep.subr.mxu0 0.0
      %3358 = vmatpush1.msra.mxu0 %v2631
      %3359 = vmatprep.subr.mxu0 0.0
      %3360 = vmatpush1.msra.mxu0 %v2634
      %3361 = vmatprep.subr.mxu0 0.0
      %3362 = vmatpush1.msra.mxu0 %v2637
      %3363 = vmatprep.subr.mxu0 0.0
      %3364 = vmatpush1.msra.mxu0 %v2640
      %3365 = vmatprep.subr.mxu0 0.0
      %3366 = vmatpush1.msra.mxu0 %v2643
      %3367 = vmatprep.subr.mxu0 0.0
      %3368 = vmatpush1.msra.mxu0 %v2646
      %3369 = vmatprep.subr.mxu0 0.0
      %3370 = vmatpush1.msra.mxu0 %v2649
      %3371 = vmatprep.subr.mxu0 0.0
      %3372 = vmatpush1.msra.mxu0 %v2652
      %3373 = vmatprep.subr.mxu0 0.0
      %3374 = vmatpush1.msra.mxu0 %v2655
      %3375 = vmatprep.subr.mxu0 0.0
      %3376 = vmatpush1.msra.mxu0 %v2658
      %3377 = vmatprep.subr.mxu0 0.0
      %3378 = vmatpush1.msra.mxu0 %v2661
      %3379 = vmatprep.subr.mxu0 0.0
      %3380 = vmatpush1.msra.mxu0 %v2664
      %3381 = vmatprep.subr.mxu0 0.0
      %3382 = vmatpush1.msra.mxu0 %v2667
      %3383 = vmatprep.subr.mxu0 0.0
      %3384 = vmatpush1.msra.mxu0 %v2670
      %3385 = vmatprep.subr.mxu0 0.0
      %3386 = vmatpush1.msra.mxu0 %v2673
      %3387 = vmatprep.subr.mxu0 0.0
      %3388 = vmatpush1.msra.mxu0 %v2676
      %3389 = vmatprep.subr.mxu0 0.0
      %3390 = vmatpush1.msra.mxu0 %v2679
      %3391 = vmatprep.subr.mxu0 0.0
      %3392 = vmatpush1.msra.mxu0 %v2682
      %3393 = vmatprep.subr.mxu0 0.0
      %3394 = vmatpush1.msra.mxu0 %v2685
      %3395 = vmatprep.subr.mxu0 0.0
      %3396 = vmatpush1.msra.mxu0 %v2688
      %3397 = vmatprep.subr.mxu0 0.0
      %3398 = vmatpush1.msra.mxu0 %v2691
      %3399 = vmatprep.subr.mxu0 0.0
      %3400 = vmatpush1.msra.mxu0 %v2694
      %3401 = vmatprep.subr.mxu0 0.0
      %3402 = vmatpush1.msra.mxu0 %v2697
      %3403 = vmatprep.subr.mxu0 0.0
      %3404 = vmatpush1.msra.mxu0 %v2700
      %3405 = vmatprep.subr.mxu0 0.0
      %3406 = vmatpush1.msra.mxu0 %v2703
      %3407 = vmatprep.mubr.f32.mxu0 %v2291
      %3408 = vmatmul.mubr.f32.gmra.mrb[0].mxu0 %v2290
      %v3409 = vpop.f32.mrb[0].mxu0
      %v3410 = vadd.f32 %v3335, %v3409
      %v3411 = vpop.f32.mrb[0].mxu0
      %3412 = vmatprep.mubr.f32.mxu0 %v2309
      %3413 = vmatmul.mubr.f32.gmra.mrb[0].mxu0 %v2308
      %v3414 = vpop.f32.mrb[0].mxu0
      %v3415 = vadd.f32 %v3340, %v3414
      %v3416 = vpop.f32.mrb[0].mxu0
      %3417 = vdwg.mxu0
      %3418 = vmatprep.subr.mxu0 0.0
      %3419 = vmatpush1.msra.mxu0 %v2706
      %3420 = vmatprep.subr.mxu0 0.0
      %3421 = vmatpush1.msra.mxu0 %v2709
      %3422 = vmatprep.subr.mxu0 0.0
      %3423 = vmatpush1.msra.mxu0 %v2712
      %3424 = vmatprep.subr.mxu0 0.0
      %3425 = vmatpush1.msra.mxu0 %v2731
      %3426 = vmatprep.subr.mxu0 0.0
      %3427 = vmatpush1.msra.mxu0 0.0
      %3428 = vmatprep.subr.mxu0 0.0
      %3429 = vmatpush1.msra.mxu0 0.0
      %3430 = vmatprep.subr.mxu0 0.0
      %3431 = vmatpush1.msra.mxu0 0.0
      %3432 = vmatprep.subr.mxu0 0.0
      %3433 = vmatpush1.msra.mxu0 0.0
      %3434 = vmatprep.subr.mxu0 0.0
      %3435 = vmatpush1.msra.mxu0 0.0
      %3436 = vmatprep.subr.mxu0 0.0
      %3437 = vmatpush1.msra.mxu0 0.0
      %3438 = vmatprep.subr.mxu0 0.0
      %3439 = vmatpush1.msra.mxu0 0.0
      %3440 = vmatprep.subr.mxu0 0.0
      %3441 = vmatpush1.msra.mxu0 0.0
      %3442 = vmatprep.subr.mxu0 0.0
      %3443 = vmatpush1.msra.mxu0 0.0
      %3444 = vmatprep.subr.mxu0 0.0
      %3445 = vmatpush1.msra.mxu0 0.0
      %3446 = vmatprep.subr.mxu0 0.0
      %3447 = vmatpush1.msra.mxu0 0.0
      %3448 = vmatprep.subr.mxu0 0.0
      %3449 = vmatpush1.msra.mxu0 0.0
      %3450 = vmatprep.subr.mxu0 0.0
      %3451 = vmatpush1.msra.mxu0 0.0
      %3452 = vmatprep.subr.mxu0 0.0
      %3453 = vmatpush1.msra.mxu0 0.0
      %3454 = vmatprep.subr.mxu0 0.0
      %3455 = vmatpush1.msra.mxu0 0.0
      %3456 = vmatprep.subr.mxu0 0.0
      %3457 = vmatpush1.msra.mxu0 0.0
      %3458 = vmatprep.subr.mxu0 0.0
      %3459 = vmatpush1.msra.mxu0 0.0
      %3460 = vmatprep.subr.mxu0 0.0
      %3461 = vmatpush1.msra.mxu0 0.0
      %3462 = vmatprep.subr.mxu0 0.0
      %3463 = vmatpush1.msra.mxu0 0.0
      %3464 = vmatprep.subr.mxu0 0.0
      %3465 = vmatpush1.msra.mxu0 0.0
      %3466 = vmatprep.subr.mxu0 0.0
      %3467 = vmatpush1.msra.mxu0 0.0
      %3468 = vmatprep.subr.mxu0 0.0
      %3469 = vmatpush1.msra.mxu0 0.0
      %3470 = vmatprep.subr.mxu0 0.0
      %3471 = vmatpush1.msra.mxu0 0.0
      %3472 = vmatprep.subr.mxu0 0.0
      %3473 = vmatpush1.msra.mxu0 0.0
      %3474 = vmatprep.subr.mxu0 0.0
      %3475 = vmatpush1.msra.mxu0 0.0
      %3476 = vmatprep.subr.mxu0 0.0
      %3477 = vmatpush1.msra.mxu0 0.0
      %3478 = vmatprep.subr.mxu0 0.0
      %3479 = vmatpush1.msra.mxu0 0.0
      %3480 = vmatprep.subr.mxu0 0.0
      %3481 = vmatpush1.msra.mxu0 0.0
      %3482 = vmatprep.mubr.f32.mxu0 0.0
      %3483 = vmatmul.mubr.f32.gmra.mrb[0].mxu0 %v2718
      %v3484 = vpop.f32.mrb[0].mxu0
      %v3485 = vadd.f32 %v3410, %v3484
      %v3486 = vpop.f32.mrb[0].mxu0
      %3487 = vmatprep.mubr.f32.mxu0 0.0
      %3488 = vmatmul.mubr.f32.gmra.mrb[0].mxu0 %v2721
      %v3489 = vpop.f32.mrb[0].mxu0
      %v3490 = vadd.f32 %v3415, %v3489
      %v3491 = vpop.f32.mrb[0].mxu0
      %3492 = vdwg.mxu0
      %v3494 = vsel %vm2716, %v2301, 0
      %v3497 = vsel %vm2716, %v2319, 0
      %3499 = vmatprep.subr.mxu0 %v2321
      %3500 = vmatpush1.msra.mxu0 %v2320
      %3501 = vmatprep.subr.mxu0 %v2324
      %3502 = vmatpush1.msra.mxu0 %v2323
      %3503 = vmatprep.subr.mxu0 %v2327
      %3504 = vmatpush1.msra.mxu0 %v2326
      %3505 = vmatprep.subr.mxu0 %v2330
      %3506 = vmatpush1.msra.mxu0 %v2329
      %3507 = vmatprep.subr.mxu0 %v2333
      %3508 = vmatpush1.msra.mxu0 %v2332
      %3509 = vmatprep.subr.mxu0 %v2336
      %3510 = vmatpush1.msra.mxu0 %v2335
      %3511 = vmatprep.subr.mxu0 %v2339
      %3512 = vmatpush1.msra.mxu0 %v2338
      %3513 = vmatprep.subr.mxu0 %v2342
      %3514 = vmatpush1.msra.mxu0 %v2341
      %3515 = vmatprep.subr.mxu0 %v2345
      %3516 = vmatpush1.msra.mxu0 %v2344
      %3517 = vmatprep.subr.mxu0 %v2348
      %3518 = vmatpush1.msra.mxu0 %v2347
      %3519 = vmatprep.subr.mxu0 %v2351
      %3520 = vmatpush1.msra.mxu0 %v2350
      %3521 = vmatprep.subr.mxu0 %v2354
      %3522 = vmatpush1.msra.mxu0 %v2353
      %3523 = vmatprep.subr.mxu0 %v2357
      %3524 = vmatpush1.msra.mxu0 %v2356
      %3525 = vmatprep.subr.mxu0 %v2360
      %3526 = vmatpush1.msra.mxu0 %v2359
      %3527 = vmatprep.subr.mxu0 %v2363
      %3528 = vmatpush1.msra.mxu0 %v2362
      %3529 = vmatprep.subr.mxu0 %v2366
      %3530 = vmatpush1.msra.mxu0 %v2365
      %3531 = vmatprep.subr.mxu0 %v2369
      %3532 = vmatpush1.msra.mxu0 %v2368
      %3533 = vmatprep.subr.mxu0 %v2372
      %3534 = vmatpush1.msra.mxu0 %v2371
      %3535 = vmatprep.subr.mxu0 %v2375
      %3536 = vmatpush1.msra.mxu0 %v2374
      %3537 = vmatprep.subr.mxu0 %v2378
      %3538 = vmatpush1.msra.mxu0 %v2377
      %3539 = vmatprep.subr.mxu0 %v2381
      %3540 = vmatpush1.msra.mxu0 %v2380
      %3541 = vmatprep.subr.mxu0 %v2384
      %3542 = vmatpush1.msra.mxu0 %v2383
      %3543 = vmatprep.subr.mxu0 %v2387
      %3544 = vmatpush1.msra.mxu0 %v2386
      %3545 = vmatprep.subr.mxu0 %v2390
      %3546 = vmatpush1.msra.mxu0 %v2389
      %3547 = vmatprep.subr.mxu0 %v2393
      %3548 = vmatpush1.msra.mxu0 %v2392
      %3549 = vmatprep.subr.mxu0 %v2396
      %3550 = vmatpush1.msra.mxu0 %v2395
      %3551 = vmatprep.subr.mxu0 %v2399
      %3552 = vmatpush1.msra.mxu0 %v2398
      %3553 = vmatprep.subr.mxu0 %v2402
      %3554 = vmatpush1.msra.mxu0 %v2401
      %3555 = vmatprep.subr.mxu0 %v2405
      %3556 = vmatpush1.msra.mxu0 %v2404
      %3557 = vmatprep.subr.mxu0 %v2408
      %3558 = vmatpush1.msra.mxu0 %v2407
      %3559 = vmatprep.subr.mxu0 %v2411
      %3560 = vmatpush1.msra.mxu0 %v2410
      %3561 = vmatprep.subr.mxu0 %v2414
      %3562 = vmatpush1.msra.mxu0 %v2413
      %3563 = vmatprep.mubr.f32.mxu0 %v2294
      %3564 = vmatmul.mubr.f32.gmra.mrb[0].mxu0 %v2293
      %v3565 = vpop.f32.mrb[0].mxu0
      %v3566 = vadd.f32 0.0, %v3565
      %v3567 = vpop.f32.mrb[0].mxu0
      %v3568 = vadd.f32 0.0, %v3567
      %3569 = vmatprep.mubr.f32.mxu0 %v2312
      %3570 = vmatmul.mubr.f32.gmra.mrb[0].mxu0 %v2311
      %v3571 = vpop.f32.mrb[0].mxu0
      %v3572 = vadd.f32 0.0, %v3571
      %v3573 = vpop.f32.mrb[0].mxu0
      %v3574 = vadd.f32 0.0, %v3573
      %3575 = vdwg.mxu0
      %3576 = vmatprep.subr.mxu0 %v2417
      %3577 = vmatpush1.msra.mxu0 %v2416
      %3578 = vmatprep.subr.mxu0 %v2420
      %3579 = vmatpush1.msra.mxu0 %v2419
      %3580 = vmatprep.subr.mxu0 %v2423
      %3581 = vmatpush1.msra.mxu0 %v2422
      %3582 = vmatprep.subr.mxu0 %v2426
      %3583 = vmatpush1.msra.mxu0 %v2425
      %3584 = vmatprep.subr.mxu0 %v2429
      %3585 = vmatpush1.msra.mxu0 %v2428
      %3586 = vmatprep.subr.mxu0 %v2432
      %3587 = vmatpush1.msra.mxu0 %v2431
      %3588 = vmatprep.subr.mxu0 %v2435
      %3589 = vmatpush1.msra.mxu0 %v2434
      %3590 = vmatprep.subr.mxu0 %v2438
      %3591 = vmatpush1.msra.mxu0 %v2437
      %3592 = vmatprep.subr.mxu0 %v2441
      %3593 = vmatpush1.msra.mxu0 %v2440
      %3594 = vmatprep.subr.mxu0 %v2444
      %3595 = vmatpush1.msra.mxu0 %v2443
      %3596 = vmatprep.subr.mxu0 %v2447
      %3597 = vmatpush1.msra.mxu0 %v2446
      %3598 = vmatprep.subr.mxu0 %v2450
      %3599 = vmatpush1.msra.mxu0 %v2449
      %3600 = vmatprep.subr.mxu0 %v2453
      %3601 = vmatpush1.msra.mxu0 %v2452
      %3602 = vmatprep.subr.mxu0 %v2456
      %3603 = vmatpush1.msra.mxu0 %v2455
      %3604 = vmatprep.subr.mxu0 %v2459
      %3605 = vmatpush1.msra.mxu0 %v2458
      %3606 = vmatprep.subr.mxu0 %v2462
      %3607 = vmatpush1.msra.mxu0 %v2461
      %3608 = vmatprep.subr.mxu0 %v2465
      %3609 = vmatpush1.msra.mxu0 %v2464
      %3610 = vmatprep.subr.mxu0 %v2468
      %3611 = vmatpush1.msra.mxu0 %v2467
      %3612 = vmatprep.subr.mxu0 %v2471
      %3613 = vmatpush1.msra.mxu0 %v2470
      %3614 = vmatprep.subr.mxu0 %v2474
      %3615 = vmatpush1.msra.mxu0 %v2473
      %3616 = vmatprep.subr.mxu0 %v2477
      %3617 = vmatpush1.msra.mxu0 %v2476
      %3618 = vmatprep.subr.mxu0 %v2480
      %3619 = vmatpush1.msra.mxu0 %v2479
      %3620 = vmatprep.subr.mxu0 %v2483
      %3621 = vmatpush1.msra.mxu0 %v2482
      %3622 = vmatprep.subr.mxu0 %v2486
      %3623 = vmatpush1.msra.mxu0 %v2485
      %3624 = vmatprep.subr.mxu0 %v2489
      %3625 = vmatpush1.msra.mxu0 %v2488
      %3626 = vmatprep.subr.mxu0 %v2492
      %3627 = vmatpush1.msra.mxu0 %v2491
      %3628 = vmatprep.subr.mxu0 %v2495
      %3629 = vmatpush1.msra.mxu0 %v2494
      %3630 = vmatprep.subr.mxu0 %v2498
      %3631 = vmatpush1.msra.mxu0 %v2497
      %3632 = vmatprep.subr.mxu0 %v2501
      %3633 = vmatpush1.msra.mxu0 %v2500
      %3634 = vmatprep.subr.mxu0 %v2504
      %3635 = vmatpush1.msra.mxu0 %v2503
      %3636 = vmatprep.subr.mxu0 %v2507
      %3637 = vmatpush1.msra.mxu0 %v2506
      %3638 = vmatprep.subr.mxu0 %v2510
      %3639 = vmatpush1.msra.mxu0 %v2509
      %3640 = vmatprep.mubr.f32.mxu0 %v2296
      %3641 = vmatmul.mubr.f32.gmra.mrb[0].mxu0 %v2295
      %v3642 = vpop.f32.mrb[0].mxu0
      %v3643 = vadd.f32 %v3566, %v3642
      %v3644 = vpop.f32.mrb[0].mxu0
      %v3645 = vadd.f32 %v3568, %v3644
      %3646 = vmatprep.mubr.f32.mxu0 %v2314
      %3647 = vmatmul.mubr.f32.gmra.mrb[0].mxu0 %v2313
      %v3648 = vpop.f32.mrb[0].mxu0
      %v3649 = vadd.f32 %v3572, %v3648
      %v3650 = vpop.f32.mrb[0].mxu0
      %v3651 = vadd.f32 %v3574, %v3650
      %3652 = vdwg.mxu0
      %3653 = vmatprep.subr.mxu0 %v2513
      %3654 = vmatpush1.msra.mxu0 %v2512
      %3655 = vmatprep.subr.mxu0 %v2516
      %3656 = vmatpush1.msra.mxu0 %v2515
      %3657 = vmatprep.subr.mxu0 %v2519
      %3658 = vmatpush1.msra.mxu0 %v2518
      %3659 = vmatprep.subr.mxu0 %v2522
      %3660 = vmatpush1.msra.mxu0 %v2521
      %3661 = vmatprep.subr.mxu0 %v2525
      %3662 = vmatpush1.msra.mxu0 %v2524
      %3663 = vmatprep.subr.mxu0 %v2528
      %3664 = vmatpush1.msra.mxu0 %v2527
      %3665 = vmatprep.subr.mxu0 %v2531
      %3666 = vmatpush1.msra.mxu0 %v2530
      %3667 = vmatprep.subr.mxu0 %v2534
      %3668 = vmatpush1.msra.mxu0 %v2533
      %3669 = vmatprep.subr.mxu0 %v2537
      %3670 = vmatpush1.msra.mxu0 %v2536
      %3671 = vmatprep.subr.mxu0 %v2540
      %3672 = vmatpush1.msra.mxu0 %v2539
      %3673 = vmatprep.subr.mxu0 %v2543
      %3674 = vmatpush1.msra.mxu0 %v2542
      %3675 = vmatprep.subr.mxu0 %v2546
      %3676 = vmatpush1.msra.mxu0 %v2545
      %3677 = vmatprep.subr.mxu0 %v2549
      %3678 = vmatpush1.msra.mxu0 %v2548
      %3679 = vmatprep.subr.mxu0 %v2552
      %3680 = vmatpush1.msra.mxu0 %v2551
      %3681 = vmatprep.subr.mxu0 %v2555
      %3682 = vmatpush1.msra.mxu0 %v2554
      %3683 = vmatprep.subr.mxu0 %v2558
      %3684 = vmatpush1.msra.mxu0 %v2557
      %3685 = vmatprep.subr.mxu0 %v2561
      %3686 = vmatpush1.msra.mxu0 %v2560
      %3687 = vmatprep.subr.mxu0 %v2564
      %3688 = vmatpush1.msra.mxu0 %v2563
      %3689 = vmatprep.subr.mxu0 %v2567
      %3690 = vmatpush1.msra.mxu0 %v2566
      %3691 = vmatprep.subr.mxu0 %v2570
      %3692 = vmatpush1.msra.mxu0 %v2569
      %3693 = vmatprep.subr.mxu0 %v2573
      %3694 = vmatpush1.msra.mxu0 %v2572
      %3695 = vmatprep.subr.mxu0 %v2576
      %3696 = vmatpush1.msra.mxu0 %v2575
      %3697 = vmatprep.subr.mxu0 %v2579
      %3698 = vmatpush1.msra.mxu0 %v2578
      %3699 = vmatprep.subr.mxu0 %v2582
      %3700 = vmatpush1.msra.mxu0 %v2581
      %3701 = vmatprep.subr.mxu0 %v2585
      %3702 = vmatpush1.msra.mxu0 %v2584
      %3703 = vmatprep.subr.mxu0 %v2588
      %3704 = vmatpush1.msra.mxu0 %v2587
      %3705 = vmatprep.subr.mxu0 %v2591
      %3706 = vmatpush1.msra.mxu0 %v2590
      %3707 = vmatprep.subr.mxu0 %v2594
      %3708 = vmatpush1.msra.mxu0 %v2593
      %3709 = vmatprep.subr.mxu0 %v2597
      %3710 = vmatpush1.msra.mxu0 %v2596
      %3711 = vmatprep.subr.mxu0 %v2600
      %3712 = vmatpush1.msra.mxu0 %v2599
      %3713 = vmatprep.subr.mxu0 %v2603
      %3714 = vmatpush1.msra.mxu0 %v2602
      %3715 = vmatprep.subr.mxu0 %v2606
      %3716 = vmatpush1.msra.mxu0 %v2605
      %3717 = vmatprep.mubr.f32.mxu0 %v2298
      %3718 = vmatmul.mubr.f32.gmra.mrb[0].mxu0 %v2297
      %v3719 = vpop.f32.mrb[0].mxu0
      %v3720 = vadd.f32 %v3643, %v3719
      %v3721 = vpop.f32.mrb[0].mxu0
      %v3722 = vadd.f32 %v3645, %v3721
      %3723 = vmatprep.mubr.f32.mxu0 %v2316
      %3724 = vmatmul.mubr.f32.gmra.mrb[0].mxu0 %v2315
      %v3725 = vpop.f32.mrb[0].mxu0
      %v3726 = vadd.f32 %v3649, %v3725
      %v3727 = vpop.f32.mrb[0].mxu0
      %v3728 = vadd.f32 %v3651, %v3727
      %3729 = vdwg.mxu0
      %3730 = vmatprep.subr.mxu0 %v2609
      %3731 = vmatpush1.msra.mxu0 %v2608
      %3732 = vmatprep.subr.mxu0 %v2612
      %3733 = vmatpush1.msra.mxu0 %v2611
      %3734 = vmatprep.subr.mxu0 %v2615
      %3735 = vmatpush1.msra.mxu0 %v2614
      %3736 = vmatprep.subr.mxu0 %v2618
      %3737 = vmatpush1.msra.mxu0 %v2617
      %3738 = vmatprep.subr.mxu0 %v2621
      %3739 = vmatpush1.msra.mxu0 %v2620
      %3740 = vmatprep.subr.mxu0 %v2624
      %3741 = vmatpush1.msra.mxu0 %v2623
      %3742 = vmatprep.subr.mxu0 %v2627
      %3743 = vmatpush1.msra.mxu0 %v2626
      %3744 = vmatprep.subr.mxu0 %v2630
      %3745 = vmatpush1.msra.mxu0 %v2629
      %3746 = vmatprep.subr.mxu0 %v2633
      %3747 = vmatpush1.msra.mxu0 %v2632
      %3748 = vmatprep.subr.mxu0 %v2636
      %3749 = vmatpush1.msra.mxu0 %v2635
      %3750 = vmatprep.subr.mxu0 %v2639
      %3751 = vmatpush1.msra.mxu0 %v2638
      %3752 = vmatprep.subr.mxu0 %v2642
      %3753 = vmatpush1.msra.mxu0 %v2641
      %3754 = vmatprep.subr.mxu0 %v2645
      %3755 = vmatpush1.msra.mxu0 %v2644
      %3756 = vmatprep.subr.mxu0 %v2648
      %3757 = vmatpush1.msra.mxu0 %v2647
      %3758 = vmatprep.subr.mxu0 %v2651
      %3759 = vmatpush1.msra.mxu0 %v2650
      %3760 = vmatprep.subr.mxu0 %v2654
      %3761 = vmatpush1.msra.mxu0 %v2653
      %3762 = vmatprep.subr.mxu0 %v2657
      %3763 = vmatpush1.msra.mxu0 %v2656
      %3764 = vmatprep.subr.mxu0 %v2660
      %3765 = vmatpush1.msra.mxu0 %v2659
      %3766 = vmatprep.subr.mxu0 %v2663
      %3767 = vmatpush1.msra.mxu0 %v2662
      %3768 = vmatprep.subr.mxu0 %v2666
      %3769 = vmatpush1.msra.mxu0 %v2665
      %3770 = vmatprep.subr.mxu0 %v2669
      %3771 = vmatpush1.msra.mxu0 %v2668
      %3772 = vmatprep.subr.mxu0 %v2672
      %3773 = vmatpush1.msra.mxu0 %v2671
      %3774 = vmatprep.subr.mxu0 %v2675
      %3775 = vmatpush1.msra.mxu0 %v2674
      %3776 = vmatprep.subr.mxu0 %v2678
      %3777 = vmatpush1.msra.mxu0 %v2677
      %3778 = vmatprep.subr.mxu0 %v2681
      %3779 = vmatpush1.msra.mxu0 %v2680
      %3780 = vmatprep.subr.mxu0 %v2684
      %3781 = vmatpush1.msra.mxu0 %v2683
      %3782 = vmatprep.subr.mxu0 %v2687
      %3783 = vmatpush1.msra.mxu0 %v2686
      %3784 = vmatprep.subr.mxu0 %v2690
      %3785 = vmatpush1.msra.mxu0 %v2689
      %3786 = vmatprep.subr.mxu0 %v2693
      %3787 = vmatpush1.msra.mxu0 %v2692
      %3788 = vmatprep.subr.mxu0 %v2696
      %3789 = vmatpush1.msra.mxu0 %v2695
      %3790 = vmatprep.subr.mxu0 %v2699
      %3791 = vmatpush1.msra.mxu0 %v2698
      %3792 = vmatprep.subr.mxu0 %v2702
      %3793 = vmatpush1.msra.mxu0 %v2701
      %3794 = vmatprep.mubr.f32.mxu0 %v2300
      %3795 = vmatmul.mubr.f32.gmra.mrb[0].mxu0 %v2299
      %v3796 = vpop.f32.mrb[0].mxu0
      %v3797 = vadd.f32 %v3720, %v3796
      %v3798 = vpop.f32.mrb[0].mxu0
      %v3799 = vadd.f32 %v3722, %v3798
      %3800 = vmatprep.mubr.f32.mxu0 %v2318
      %3801 = vmatmul.mubr.f32.gmra.mrb[0].mxu0 %v2317
      %v3802 = vpop.f32.mrb[0].mxu0
      %v3803 = vadd.f32 %v3726, %v3802
      %v3804 = vpop.f32.mrb[0].mxu0
      %v3805 = vadd.f32 %v3728, %v3804
      %3806 = vdwg.mxu0
      %3807 = vmatprep.subr.mxu0 %v2705
      %3808 = vmatpush1.msra.mxu0 %v2704
      %3809 = vmatprep.subr.mxu0 %v2708
      %3810 = vmatpush1.msra.mxu0 %v2707
      %3811 = vmatprep.subr.mxu0 %v2711
      %3812 = vmatpush1.msra.mxu0 %v2710
      %3813 = vmatprep.subr.mxu0 %v2728
      %3814 = vmatpush1.msra.mxu0 %v2725
      %3815 = vmatprep.subr.mxu0 0.0
      %3816 = vmatpush1.msra.mxu0 0.0
      %3817 = vmatprep.subr.mxu0 0.0
      %3818 = vmatpush1.msra.mxu0 0.0
      %3819 = vmatprep.subr.mxu0 0.0
      %3820 = vmatpush1.msra.mxu0 0.0
      %3821 = vmatprep.subr.mxu0 0.0
      %3822 = vmatpush1.msra.mxu0 0.0
      %3823 = vmatprep.subr.mxu0 0.0
      %3824 = vmatpush1.msra.mxu0 0.0
      %3825 = vmatprep.subr.mxu0 0.0
      %3826 = vmatpush1.msra.mxu0 0.0
      %3827 = vmatprep.subr.mxu0 0.0
      %3828 = vmatpush1.msra.mxu0 0.0
      %3829 = vmatprep.subr.mxu0 0.0
      %3830 = vmatpush1.msra.mxu0 0.0
      %3831 = vmatprep.subr.mxu0 0.0
      %3832 = vmatpush1.msra.mxu0 0.0
      %3833 = vmatprep.subr.mxu0 0.0
      %3834 = vmatpush1.msra.mxu0 0.0
      %3835 = vmatprep.subr.mxu0 0.0
      %3836 = vmatpush1.msra.mxu0 0.0
      %3837 = vmatprep.subr.mxu0 0.0
      %3838 = vmatpush1.msra.mxu0 0.0
      %3839 = vmatprep.subr.mxu0 0.0
      %3840 = vmatpush1.msra.mxu0 0.0
      %3841 = vmatprep.subr.mxu0 0.0
      %3842 = vmatpush1.msra.mxu0 0.0
      %3843 = vmatprep.subr.mxu0 0.0
      %3844 = vmatpush1.msra.mxu0 0.0
      %3845 = vmatprep.subr.mxu0 0.0
      %3846 = vmatpush1.msra.mxu0 0.0
      %3847 = vmatprep.subr.mxu0 0.0
      %3848 = vmatpush1.msra.mxu0 0.0
      %3849 = vmatprep.subr.mxu0 0.0
      %3850 = vmatpush1.msra.mxu0 0.0
      %3851 = vmatprep.subr.mxu0 0.0
      %3852 = vmatpush1.msra.mxu0 0.0
      %3853 = vmatprep.subr.mxu0 0.0
      %3854 = vmatpush1.msra.mxu0 0.0
      %3855 = vmatprep.subr.mxu0 0.0
      %3856 = vmatpush1.msra.mxu0 0.0
      %3857 = vmatprep.subr.mxu0 0.0
      %3858 = vmatpush1.msra.mxu0 0.0
      %3859 = vmatprep.subr.mxu0 0.0
      %3860 = vmatpush1.msra.mxu0 0.0
      %3861 = vmatprep.subr.mxu0 0.0
      %3862 = vmatpush1.msra.mxu0 0.0
      %3863 = vmatprep.subr.mxu0 0.0
      %3864 = vmatpush1.msra.mxu0 0.0
      %3865 = vmatprep.subr.mxu0 0.0
      %3866 = vmatpush1.msra.mxu0 0.0
      %3867 = vmatprep.subr.mxu0 0.0
      %3868 = vmatpush1.msra.mxu0 0.0
      %3869 = vmatprep.subr.mxu0 0.0
      %3870 = vmatpush1.msra.mxu0 0.0
      %3871 = vmatprep.mubr.f32.mxu0 0.0
      %3872 = vmatmul.mubr.f32.gmra.mrb[0].mxu0 %v3494
      %v3873 = vpop.f32.mrb[0].mxu0
      %v3874 = vadd.f32 %v3797, %v3873
      %v3875 = vpop.f32.mrb[0].mxu0
      %v3876 = vadd.f32 %v3799, %v3875
      %3877 = vmatprep.mubr.f32.mxu0 0.0
      %3878 = vmatmul.mubr.f32.gmra.mrb[0].mxu0 %v3497
      %v3879 = vpop.f32.mrb[0].mxu0
      %v3880 = vadd.f32 %v3803, %v3879
      %v3881 = vpop.f32.mrb[0].mxu0
      %v3882 = vadd.f32 %v3805, %v3881
      %3883 = vdwg.mxu0
      %3884 = vmatprep.subr.mxu0 0.0
      %3885 = vmatpush1.msra.mxu0 %v2322
      %3886 = vmatprep.subr.mxu0 0.0
      %3887 = vmatpush1.msra.mxu0 %v2325
      %3888 = vmatprep.subr.mxu0 0.0
      %3889 = vmatpush1.msra.mxu0 %v2328
      %3890 = vmatprep.subr.mxu0 0.0
      %3891 = vmatpush1.msra.mxu0 %v2331
      %3892 = vmatprep.subr.mxu0 0.0
      %3893 = vmatpush1.msra.mxu0 %v2334
      %3894 = vmatprep.subr.mxu0 0.0
      %3895 = vmatpush1.msra.mxu0 %v2337
      %3896 = vmatprep.subr.mxu0 0.0
      %3897 = vmatpush1.msra.mxu0 %v2340
      %3898 = vmatprep.subr.mxu0 0.0
      %3899 = vmatpush1.msra.mxu0 %v2343
      %3900 = vmatprep.subr.mxu0 0.0
      %3901 = vmatpush1.msra.mxu0 %v2346
      %3902 = vmatprep.subr.mxu0 0.0
      %3903 = vmatpush1.msra.mxu0 %v2349
      %3904 = vmatprep.subr.mxu0 0.0
      %3905 = vmatpush1.msra.mxu0 %v2352
      %3906 = vmatprep.subr.mxu0 0.0
      %3907 = vmatpush1.msra.mxu0 %v2355
      %3908 = vmatprep.subr.mxu0 0.0
      %3909 = vmatpush1.msra.mxu0 %v2358
      %3910 = vmatprep.subr.mxu0 0.0
      %3911 = vmatpush1.msra.mxu0 %v2361
      %3912 = vmatprep.subr.mxu0 0.0
      %3913 = vmatpush1.msra.mxu0 %v2364
      %3914 = vmatprep.subr.mxu0 0.0
      %3915 = vmatpush1.msra.mxu0 %v2367
      %3916 = vmatprep.subr.mxu0 0.0
      %3917 = vmatpush1.msra.mxu0 %v2370
      %3918 = vmatprep.subr.mxu0 0.0
      %3919 = vmatpush1.msra.mxu0 %v2373
      %3920 = vmatprep.subr.mxu0 0.0
      %3921 = vmatpush1.msra.mxu0 %v2376
      %3922 = vmatprep.subr.mxu0 0.0
      %3923 = vmatpush1.msra.mxu0 %v2379
      %3924 = vmatprep.subr.mxu0 0.0
      %3925 = vmatpush1.msra.mxu0 %v2382
      %3926 = vmatprep.subr.mxu0 0.0
      %3927 = vmatpush1.msra.mxu0 %v2385
      %3928 = vmatprep.subr.mxu0 0.0
      %3929 = vmatpush1.msra.mxu0 %v2388
      %3930 = vmatprep.subr.mxu0 0.0
      %3931 = vmatpush1.msra.mxu0 %v2391
      %3932 = vmatprep.subr.mxu0 0.0
      %3933 = vmatpush1.msra.mxu0 %v2394
      %3934 = vmatprep.subr.mxu0 0.0
      %3935 = vmatpush1.msra.mxu0 %v2397
      %3936 = vmatprep.subr.mxu0 0.0
      %3937 = vmatpush1.msra.mxu0 %v2400
      %3938 = vmatprep.subr.mxu0 0.0
      %3939 = vmatpush1.msra.mxu0 %v2403
      %3940 = vmatprep.subr.mxu0 0.0
      %3941 = vmatpush1.msra.mxu0 %v2406
      %3942 = vmatprep.subr.mxu0 0.0
      %3943 = vmatpush1.msra.mxu0 %v2409
      %3944 = vmatprep.subr.mxu0 0.0
      %3945 = vmatpush1.msra.mxu0 %v2412
      %3946 = vmatprep.subr.mxu0 0.0
      %3947 = vmatpush1.msra.mxu0 %v2415
      %3948 = vmatprep.mubr.f32.mxu0 %v2294
      %3949 = vmatmul.mubr.f32.gmra.mrb[0].mxu0 %v2293
      %v3950 = vpop.f32.mrb[0].mxu0
      %v3951 = vadd.f32 0.0, %v3950
      %v3952 = vpop.f32.mrb[0].mxu0
      %3953 = vmatprep.mubr.f32.mxu0 %v2312
      %3954 = vmatmul.mubr.f32.gmra.mrb[0].mxu0 %v2311
      %v3955 = vpop.f32.mrb[0].mxu0
      %v3956 = vadd.f32 0.0, %v3955
      %v3957 = vpop.f32.mrb[0].mxu0
      %3958 = vdwg.mxu0
      %3959 = vmatprep.subr.mxu0 0.0
      %3960 = vmatpush1.msra.mxu0 %v2418
      %3961 = vmatprep.subr.mxu0 0.0
      %3962 = vmatpush1.msra.mxu0 %v2421
      %3963 = vmatprep.subr.mxu0 0.0
      %3964 = vmatpush1.msra.mxu0 %v2424
      %3965 = vmatprep.subr.mxu0 0.0
      %3966 = vmatpush1.msra.mxu0 %v2427
      %3967 = vmatprep.subr.mxu0 0.0
      %3968 = vmatpush1.msra.mxu0 %v2430
      %3969 = vmatprep.subr.mxu0 0.0
      %3970 = vmatpush1.msra.mxu0 %v2433
      %3971 = vmatprep.subr.mxu0 0.0
      %3972 = vmatpush1.msra.mxu0 %v2436
      %3973 = vmatprep.subr.mxu0 0.0
      %3974 = vmatpush1.msra.mxu0 %v2439
      %3975 = vmatprep.subr.mxu0 0.0
      %3976 = vmatpush1.msra.mxu0 %v2442
      %3977 = vmatprep.subr.mxu0 0.0
      %3978 = vmatpush1.msra.mxu0 %v2445
      %3979 = vmatprep.subr.mxu0 0.0
      %3980 = vmatpush1.msra.mxu0 %v2448
      %3981 = vmatprep.subr.mxu0 0.0
      %3982 = vmatpush1.msra.mxu0 %v2451
      %3983 = vmatprep.subr.mxu0 0.0
      %3984 = vmatpush1.msra.mxu0 %v2454
      %3985 = vmatprep.subr.mxu0 0.0
      %3986 = vmatpush1.msra.mxu0 %v2457
      %3987 = vmatprep.subr.mxu0 0.0
      %3988 = vmatpush1.msra.mxu0 %v2460
      %3989 = vmatprep.subr.mxu0 0.0
      %3990 = vmatpush1.msra.mxu0 %v2463
      %3991 = vmatprep.subr.mxu0 0.0
      %3992 = vmatpush1.msra.mxu0 %v2466
      %3993 = vmatprep.subr.mxu0 0.0
      %3994 = vmatpush1.msra.mxu0 %v2469
      %3995 = vmatprep.subr.mxu0 0.0
      %3996 = vmatpush1.msra.mxu0 %v2472
      %3997 = vmatprep.subr.mxu0 0.0
      %3998 = vmatpush1.msra.mxu0 %v2475
      %3999 = vmatprep.subr.mxu0 0.0
      %4000 = vmatpush1.msra.mxu0 %v2478
      %4001 = vmatprep.subr.mxu0 0.0
      %4002 = vmatpush1.msra.mxu0 %v2481
      %4003 = vmatprep.subr.mxu0 0.0
      %4004 = vmatpush1.msra.mxu0 %v2484
      %4005 = vmatprep.subr.mxu0 0.0
      %4006 = vmatpush1.msra.mxu0 %v2487
      %4007 = vmatprep.subr.mxu0 0.0
      %4008 = vmatpush1.msra.mxu0 %v2490
      %4009 = vmatprep.subr.mxu0 0.0
      %4010 = vmatpush1.msra.mxu0 %v2493
      %4011 = vmatprep.subr.mxu0 0.0
      %4012 = vmatpush1.msra.mxu0 %v2496
      %4013 = vmatprep.subr.mxu0 0.0
      %4014 = vmatpush1.msra.mxu0 %v2499
      %4015 = vmatprep.subr.mxu0 0.0
      %4016 = vmatpush1.msra.mxu0 %v2502
      %4017 = vmatprep.subr.mxu0 0.0
      %4018 = vmatpush1.msra.mxu0 %v2505
      %4019 = vmatprep.subr.mxu0 0.0
      %4020 = vmatpush1.msra.mxu0 %v2508
      %4021 = vmatprep.subr.mxu0 0.0
      %4022 = vmatpush1.msra.mxu0 %v2511
      %4023 = vmatprep.mubr.f32.mxu0 %v2296
      %4024 = vmatmul.mubr.f32.gmra.mrb[0].mxu0 %v2295
      %v4025 = vpop.f32.mrb[0].mxu0
      %v4026 = vadd.f32 %v3951, %v4025
      %v4027 = vpop.f32.mrb[0].mxu0
      %4028 = vmatprep.mubr.f32.mxu0 %v2314
      %4029 = vmatmul.mubr.f32.gmra.mrb[0].mxu0 %v2313
      %v4030 = vpop.f32.mrb[0].mxu0
      %v4031 = vadd.f32 %v3956, %v4030
      %v4032 = vpop.f32.mrb[0].mxu0
      %4033 = vdwg.mxu0
      %4034 = vmatprep.subr.mxu0 0.0
      %4035 = vmatpush1.msra.mxu0 %v2514
      %4036 = vmatprep.subr.mxu0 0.0
      %4037 = vmatpush1.msra.mxu0 %v2517
      %4038 = vmatprep.subr.mxu0 0.0
      %4039 = vmatpush1.msra.mxu0 %v2520
      %4040 = vmatprep.subr.mxu0 0.0
      %4041 = vmatpush1.msra.mxu0 %v2523
      %4042 = vmatprep.subr.mxu0 0.0
      %4043 = vmatpush1.msra.mxu0 %v2526
      %4044 = vmatprep.subr.mxu0 0.0
      %4045 = vmatpush1.msra.mxu0 %v2529
      %4046 = vmatprep.subr.mxu0 0.0
      %4047 = vmatpush1.msra.mxu0 %v2532
      %4048 = vmatprep.subr.mxu0 0.0
      %4049 = vmatpush1.msra.mxu0 %v2535
      %4050 = vmatprep.subr.mxu0 0.0
      %4051 = vmatpush1.msra.mxu0 %v2538
      %4052 = vmatprep.subr.mxu0 0.0
      %4053 = vmatpush1.msra.mxu0 %v2541
      %4054 = vmatprep.subr.mxu0 0.0
      %4055 = vmatpush1.msra.mxu0 %v2544
      %4056 = vmatprep.subr.mxu0 0.0
      %4057 = vmatpush1.msra.mxu0 %v2547
      %4058 = vmatprep.subr.mxu0 0.0
      %4059 = vmatpush1.msra.mxu0 %v2550
      %4060 = vmatprep.subr.mxu0 0.0
      %4061 = vmatpush1.msra.mxu0 %v2553
      %4062 = vmatprep.subr.mxu0 0.0
      %4063 = vmatpush1.msra.mxu0 %v2556
      %4064 = vmatprep.subr.mxu0 0.0
      %4065 = vmatpush1.msra.mxu0 %v2559
      %4066 = vmatprep.subr.mxu0 0.0
      %4067 = vmatpush1.msra.mxu0 %v2562
      %4068 = vmatprep.subr.mxu0 0.0
      %4069 = vmatpush1.msra.mxu0 %v2565
      %4070 = vmatprep.subr.mxu0 0.0
      %4071 = vmatpush1.msra.mxu0 %v2568
      %4072 = vmatprep.subr.mxu0 0.0
      %4073 = vmatpush1.msra.mxu0 %v2571
      %4074 = vmatprep.subr.mxu0 0.0
      %4075 = vmatpush1.msra.mxu0 %v2574
      %4076 = vmatprep.subr.mxu0 0.0
      %4077 = vmatpush1.msra.mxu0 %v2577
      %4078 = vmatprep.subr.mxu0 0.0
      %4079 = vmatpush1.msra.mxu0 %v2580
      %4080 = vmatprep.subr.mxu0 0.0
      %4081 = vmatpush1.msra.mxu0 %v2583
      %4082 = vmatprep.subr.mxu0 0.0
      %4083 = vmatpush1.msra.mxu0 %v2586
      %4084 = vmatprep.subr.mxu0 0.0
      %4085 = vmatpush1.msra.mxu0 %v2589
      %4086 = vmatprep.subr.mxu0 0.0
      %4087 = vmatpush1.msra.mxu0 %v2592
      %4088 = vmatprep.subr.mxu0 0.0
      %4089 = vmatpush1.msra.mxu0 %v2595
      %4090 = vmatprep.subr.mxu0 0.0
      %4091 = vmatpush1.msra.mxu0 %v2598
      %4092 = vmatprep.subr.mxu0 0.0
      %4093 = vmatpush1.msra.mxu0 %v2601
      %4094 = vmatprep.subr.mxu0 0.0
      %4095 = vmatpush1.msra.mxu0 %v2604
      %4096 = vmatprep.subr.mxu0 0.0
      %4097 = vmatpush1.msra.mxu0 %v2607
      %4098 = vmatprep.mubr.f32.mxu0 %v2298
      %4099 = vmatmul.mubr.f32.gmra.mrb[0].mxu0 %v2297
      %v4100 = vpop.f32.mrb[0].mxu0
      %v4101 = vadd.f32 %v4026, %v4100
      %v4102 = vpop.f32.mrb[0].mxu0
      %4103 = vmatprep.mubr.f32.mxu0 %v2316
      %4104 = vmatmul.mubr.f32.gmra.mrb[0].mxu0 %v2315
      %v4105 = vpop.f32.mrb[0].mxu0
      %v4106 = vadd.f32 %v4031, %v4105
      %v4107 = vpop.f32.mrb[0].mxu0
      %4108 = vdwg.mxu0
      %4109 = vmatprep.subr.mxu0 0.0
      %4110 = vmatpush1.msra.mxu0 %v2610
      %4111 = vmatprep.subr.mxu0 0.0
      %4112 = vmatpush1.msra.mxu0 %v2613
      %4113 = vmatprep.subr.mxu0 0.0
      %4114 = vmatpush1.msra.mxu0 %v2616
      %4115 = vmatprep.subr.mxu0 0.0
      %4116 = vmatpush1.msra.mxu0 %v2619
      %4117 = vmatprep.subr.mxu0 0.0
      %4118 = vmatpush1.msra.mxu0 %v2622
      %4119 = vmatprep.subr.mxu0 0.0
      %4120 = vmatpush1.msra.mxu0 %v2625
      %4121 = vmatprep.subr.mxu0 0.0
      %4122 = vmatpush1.msra.mxu0 %v2628
      %4123 = vmatprep.subr.mxu0 0.0
      %4124 = vmatpush1.msra.mxu0 %v2631
      %4125 = vmatprep.subr.mxu0 0.0
      %4126 = vmatpush1.msra.mxu0 %v2634
      %4127 = vmatprep.subr.mxu0 0.0
      %4128 = vmatpush1.msra.mxu0 %v2637
      %4129 = vmatprep.subr.mxu0 0.0
      %4130 = vmatpush1.msra.mxu0 %v2640
      %4131 = vmatprep.subr.mxu0 0.0
      %4132 = vmatpush1.msra.mxu0 %v2643
      %4133 = vmatprep.subr.mxu0 0.0
      %4134 = vmatpush1.msra.mxu0 %v2646
      %4135 = vmatprep.subr.mxu0 0.0
      %4136 = vmatpush1.msra.mxu0 %v2649
      %4137 = vmatprep.subr.mxu0 0.0
      %4138 = vmatpush1.msra.mxu0 %v2652
      %4139 = vmatprep.subr.mxu0 0.0
      %4140 = vmatpush1.msra.mxu0 %v2655
      %4141 = vmatprep.subr.mxu0 0.0
      %4142 = vmatpush1.msra.mxu0 %v2658
      %4143 = vmatprep.subr.mxu0 0.0
      %4144 = vmatpush1.msra.mxu0 %v2661
      %4145 = vmatprep.subr.mxu0 0.0
      %4146 = vmatpush1.msra.mxu0 %v2664
      %4147 = vmatprep.subr.mxu0 0.0
      %4148 = vmatpush1.msra.mxu0 %v2667
      %4149 = vmatprep.subr.mxu0 0.0
      %4150 = vmatpush1.msra.mxu0 %v2670
      %4151 = vmatprep.subr.mxu0 0.0
      %4152 = vmatpush1.msra.mxu0 %v2673
      %4153 = vmatprep.subr.mxu0 0.0
      %4154 = vmatpush1.msra.mxu0 %v2676
      %4155 = vmatprep.subr.mxu0 0.0
      %4156 = vmatpush1.msra.mxu0 %v2679
      %4157 = vmatprep.subr.mxu0 0.0
      %4158 = vmatpush1.msra.mxu0 %v2682
      %4159 = vmatprep.subr.mxu0 0.0
      %4160 = vmatpush1.msra.mxu0 %v2685
      %4161 = vmatprep.subr.mxu0 0.0
      %4162 = vmatpush1.msra.mxu0 %v2688
      %4163 = vmatprep.subr.mxu0 0.0
      %4164 = vmatpush1.msra.mxu0 %v2691
      %4165 = vmatprep.subr.mxu0 0.0
      %4166 = vmatpush1.msra.mxu0 %v2694
      %4167 = vmatprep.subr.mxu0 0.0
      %4168 = vmatpush1.msra.mxu0 %v2697
      %4169 = vmatprep.subr.mxu0 0.0
      %4170 = vmatpush1.msra.mxu0 %v2700
      %4171 = vmatprep.subr.mxu0 0.0
      %4172 = vmatpush1.msra.mxu0 %v2703
      %4173 = vmatprep.mubr.f32.mxu0 %v2300
      %4174 = vmatmul.mubr.f32.gmra.mrb[0].mxu0 %v2299
      %v4175 = vpop.f32.mrb[0].mxu0
      %v4176 = vadd.f32 %v4101, %v4175
      %v4177 = vpop.f32.mrb[0].mxu0
      %4178 = vmatprep.mubr.f32.mxu0 %v2318
      %4179 = vmatmul.mubr.f32.gmra.mrb[0].mxu0 %v2317
      %v4180 = vpop.f32.mrb[0].mxu0
      %v4181 = vadd.f32 %v4106, %v4180
      %v4182 = vpop.f32.mrb[0].mxu0
      %4183 = vdwg.mxu0
      %4184 = vmatprep.subr.mxu0 0.0
      %4185 = vmatpush1.msra.mxu0 %v2706
      %4186 = vmatprep.subr.mxu0 0.0
      %4187 = vmatpush1.msra.mxu0 %v2709
      %4188 = vmatprep.subr.mxu0 0.0
      %4189 = vmatpush1.msra.mxu0 %v2712
      %4190 = vmatprep.subr.mxu0 0.0
      %4191 = vmatpush1.msra.mxu0 %v2731
      %4192 = vmatprep.subr.mxu0 0.0
      %4193 = vmatpush1.msra.mxu0 0.0
      %4194 = vmatprep.subr.mxu0 0.0
      %4195 = vmatpush1.msra.mxu0 0.0
      %4196 = vmatprep.subr.mxu0 0.0
      %4197 = vmatpush1.msra.mxu0 0.0
      %4198 = vmatprep.subr.mxu0 0.0
      %4199 = vmatpush1.msra.mxu0 0.0
      %4200 = vmatprep.subr.mxu0 0.0
      %4201 = vmatpush1.msra.mxu0 0.0
      %4202 = vmatprep.subr.mxu0 0.0
      %4203 = vmatpush1.msra.mxu0 0.0
      %4204 = vmatprep.subr.mxu0 0.0
      %4205 = vmatpush1.msra.mxu0 0.0
      %4206 = vmatprep.subr.mxu0 0.0
      %4207 = vmatpush1.msra.mxu0 0.0
      %4208 = vmatprep.subr.mxu0 0.0
      %4209 = vmatpush1.msra.mxu0 0.0
      %4210 = vmatprep.subr.mxu0 0.0
      %4211 = vmatpush1.msra.mxu0 0.0
      %4212 = vmatprep.subr.mxu0 0.0
      %4213 = vmatpush1.msra.mxu0 0.0
      %4214 = vmatprep.subr.mxu0 0.0
      %4215 = vmatpush1.msra.mxu0 0.0
      %4216 = vmatprep.subr.mxu0 0.0
      %4217 = vmatpush1.msra.mxu0 0.0
      %4218 = vmatprep.subr.mxu0 0.0
      %4219 = vmatpush1.msra.mxu0 0.0
      %4220 = vmatprep.subr.mxu0 0.0
      %4221 = vmatpush1.msra.mxu0 0.0
      %4222 = vmatprep.subr.mxu0 0.0
      %4223 = vmatpush1.msra.mxu0 0.0
      %4224 = vmatprep.subr.mxu0 0.0
      %4225 = vmatpush1.msra.mxu0 0.0
      %4226 = vmatprep.subr.mxu0 0.0
      %4227 = vmatpush1.msra.mxu0 0.0
      %4228 = vmatprep.subr.mxu0 0.0
      %4229 = vmatpush1.msra.mxu0 0.0
      %4230 = vmatprep.subr.mxu0 0.0
      %4231 = vmatpush1.msra.mxu0 0.0
      %4232 = vmatprep.subr.mxu0 0.0
      %4233 = vmatpush1.msra.mxu0 0.0
      %4234 = vmatprep.subr.mxu0 0.0
      %4235 = vmatpush1.msra.mxu0 0.0
      %4236 = vmatprep.subr.mxu0 0.0
      %4237 = vmatpush1.msra.mxu0 0.0
      %4238 = vmatprep.subr.mxu0 0.0
      %4239 = vmatpush1.msra.mxu0 0.0
      %4240 = vmatprep.subr.mxu0 0.0
      %4241 = vmatpush1.msra.mxu0 0.0
      %4242 = vmatprep.subr.mxu0 0.0
      %4243 = vmatpush1.msra.mxu0 0.0
      %4244 = vmatprep.subr.mxu0 0.0
      %4245 = vmatpush1.msra.mxu0 0.0
      %4246 = vmatprep.subr.mxu0 0.0
      %4247 = vmatpush1.msra.mxu0 0.0
      %4248 = vmatprep.mubr.f32.mxu0 0.0
      %4249 = vmatmul.mubr.f32.gmra.mrb[0].mxu0 %v3494
      %v4250 = vpop.f32.mrb[0].mxu0
      %v4251 = vadd.f32 %v4176, %v4250
      %v4252 = vpop.f32.mrb[0].mxu0
      %4253 = vmatprep.mubr.f32.mxu0 0.0
      %4254 = vmatmul.mubr.f32.gmra.mrb[0].mxu0 %v3497
      %v4255 = vpop.f32.mrb[0].mxu0
      %v4256 = vadd.f32 %v4181, %v4255
      %v4257 = vpop.f32.mrb[0].mxu0
      %4258 = vdwg.mxu0
      %4271 = vrot.lane.b32.xlu0 %v3108, 127
      %v4272 = vpop.permute.xlu0 %4271
      %4273 = vrot.lane.b32.xlu0 %v3110, 127
      %v4274 = vpop.permute.xlu0 %4273
      %4275 = vrot.lane.b32.xlu0 %v3485, 127
      %v4276 = vpop.permute.xlu0 %4275
      %4277 = vrot.lane.b32.xlu0 %v3874, 127
      %v4278 = vpop.permute.xlu0 %4277
      %4279 = vrot.lane.b32.xlu0 %v3876, 127
      %v4280 = vpop.permute.xlu0 %4279
      %4281 = vrot.lane.b32.xlu0 %v4251, 127
      %v4282 = vpop.permute.xlu0 %4281
      %4283 = vrot.lane.b32.xlu0 %v3114, 127
      %v4284 = vpop.permute.xlu0 %4283
      %4285 = vrot.lane.b32.xlu0 %v3116, 127
      %v4286 = vpop.permute.xlu0 %4285
      %4287 = vrot.lane.b32.xlu0 %v3490, 127
      %v4288 = vpop.permute.xlu0 %4287
      %4289 = vrot.lane.b32.xlu0 %v3880, 127
      %v4290 = vpop.permute.xlu0 %4289
      %4291 = vrot.lane.b32.xlu0 %v3882, 127
      %v4292 = vpop.permute.xlu0 %4291
      %4293 = vrot.lane.b32.xlu0 %v4256, 127
      %v4294 = vpop.permute.xlu0 %4293
      %v4295 = vsel %vm467, %v4272, %v4274
      %v4296 = vsel %vm467, %v4274, %v4276
      %v4297 = vsel %vm467, %v4276, %v4278
      %v4298 = vsel %vm467, %v4278, %v4280
      %v4299 = vsel %vm467, %v4280, %v4282
      %v4300 = vsel %vm467, %v4284, %v4286
      %v4301 = vsel %vm467, %v4286, %v4288
      %v4302 = vsel %vm467, %v4288, %v4290
      %v4303 = vsel %vm467, %v4290, %v4292
      %v4304 = vsel %vm467, %v4292, %v4294
      %4317 = vrot.lane.b32.xlu0 %v3108, 126
      %v4318 = vpop.permute.xlu0 %4317
      %4319 = vrot.lane.b32.xlu0 %v3110, 126
      %v4320 = vpop.permute.xlu0 %4319
      %4321 = vrot.lane.b32.xlu0 %v3485, 126
      %v4322 = vpop.permute.xlu0 %4321
      %4323 = vrot.lane.b32.xlu0 %v3874, 126
      %v4324 = vpop.permute.xlu0 %4323
      %4325 = vrot.lane.b32.xlu0 %v3876, 126
      %v4326 = vpop.permute.xlu0 %4325
      %4327 = vrot.lane.b32.xlu0 %v4251, 126
      %v4328 = vpop.permute.xlu0 %4327
      %4329 = vrot.lane.b32.xlu0 %v3114, 126
      %v4330 = vpop.permute.xlu0 %4329
      %4331 = vrot.lane.b32.xlu0 %v3116, 126
      %v4332 = vpop.permute.xlu0 %4331
      %4333 = vrot.lane.b32.xlu0 %v3490, 126
      %v4334 = vpop.permute.xlu0 %4333
      %4335 = vrot.lane.b32.xlu0 %v3880, 126
      %v4336 = vpop.permute.xlu0 %4335
      %4337 = vrot.lane.b32.xlu0 %v3882, 126
      %v4338 = vpop.permute.xlu0 %4337
      %4339 = vrot.lane.b32.xlu0 %v4256, 126
      %v4340 = vpop.permute.xlu0 %4339
      %v4341 = vsel %vm543, %v4318, %v4320
      %v4342 = vsel %vm543, %v4320, %v4322
      %v4343 = vsel %vm543, %v4322, %v4324
      %v4344 = vsel %vm543, %v4324, %v4326
      %v4345 = vsel %vm543, %v4326, %v4328
      %v4346 = vsel %vm543, %v4330, %v4332
      %v4347 = vsel %vm543, %v4332, %v4334
      %v4348 = vsel %vm543, %v4334, %v4336
      %v4349 = vsel %vm543, %v4336, %v4338
      %v4350 = vsel %vm543, %v4338, %v4340
      %4363 = vrot.lane.b32.xlu0 %v3108, 110
      %v4364 = vpop.permute.xlu0 %4363
      %4365 = vrot.lane.b32.xlu0 %v3110, 110
      %v4366 = vpop.permute.xlu0 %4365
      %4367 = vrot.lane.b32.xlu0 %v3485, 110
      %v4368 = vpop.permute.xlu0 %4367
      %4369 = vrot.lane.b32.xlu0 %v3874, 110
      %v4370 = vpop.permute.xlu0 %4369
      %4371 = vrot.lane.b32.xlu0 %v3876, 110
      %v4372 = vpop.permute.xlu0 %4371
      %4373 = vrot.lane.b32.xlu0 %v4251, 110
      %v4374 = vpop.permute.xlu0 %4373
      %4375 = vrot.lane.b32.xlu0 %v3114, 110
      %v4376 = vpop.permute.xlu0 %4375
      %4377 = vrot.lane.b32.xlu0 %v3116, 110
      %v4378 = vpop.permute.xlu0 %4377
      %4379 = vrot.lane.b32.xlu0 %v3490, 110
      %v4380 = vpop.permute.xlu0 %4379
      %4381 = vrot.lane.b32.xlu0 %v3880, 110
      %v4382 = vpop.permute.xlu0 %4381
      %4383 = vrot.lane.b32.xlu0 %v3882, 110
      %v4384 = vpop.permute.xlu0 %4383
      %4385 = vrot.lane.b32.xlu0 %v4256, 110
      %v4386 = vpop.permute.xlu0 %4385
      %vm4387 = vcmask 900096
      %v4388 = vsel %vm4387, %v4364, %v4366
      %v4389 = vsel %vm4387, %v4366, %v4368
      %v4390 = vsel %vm4387, %v4368, %v4370
      %v4391 = vsel %vm4387, %v4370, %v4372
      %v4392 = vsel %vm4387, %v4372, %v4374
      %v4393 = vsel %vm4387, %v4376, %v4378
      %v4394 = vsel %vm4387, %v4378, %v4380
      %v4395 = vsel %vm4387, %v4380, %v4382
      %v4396 = vsel %vm4387, %v4382, %v4384
      %v4397 = vsel %vm4387, %v4384, %v4386
      %4410 = vrot.lane.b32.xlu0 %v3108, 109
      %v4411 = vpop.permute.xlu0 %4410
      %4412 = vrot.lane.b32.xlu0 %v3110, 109
      %v4413 = vpop.permute.xlu0 %4412
      %4414 = vrot.lane.b32.xlu0 %v3485, 109
      %v4415 = vpop.permute.xlu0 %4414
      %4416 = vrot.lane.b32.xlu0 %v3874, 109
      %v4417 = vpop.permute.xlu0 %4416
      %4418 = vrot.lane.b32.xlu0 %v3876, 109
      %v4419 = vpop.permute.xlu0 %4418
      %4420 = vrot.lane.b32.xlu0 %v4251, 109
      %v4421 = vpop.permute.xlu0 %4420
      %4422 = vrot.lane.b32.xlu0 %v3114, 109
      %v4423 = vpop.permute.xlu0 %4422
      %4424 = vrot.lane.b32.xlu0 %v3116, 109
      %v4425 = vpop.permute.xlu0 %4424
      %4426 = vrot.lane.b32.xlu0 %v3490, 109
      %v4427 = vpop.permute.xlu0 %4426
      %4428 = vrot.lane.b32.xlu0 %v3880, 109
      %v4429 = vpop.permute.xlu0 %4428
      %4430 = vrot.lane.b32.xlu0 %v3882, 109
      %v4431 = vpop.permute.xlu0 %4430
      %4432 = vrot.lane.b32.xlu0 %v4256, 109
      %v4433 = vpop.permute.xlu0 %4432
      %vm4434 = vcmask 891904
      %v4435 = vsel %vm4434, %v4411, %v4413
      %v4436 = vsel %vm4434, %v4413, %v4415
      %v4437 = vsel %vm4434, %v4415, %v4417
      %v4438 = vsel %vm4434, %v4417, %v4419
      %v4439 = vsel %vm4434, %v4419, %v4421
      %v4440 = vsel %vm4434, %v4423, %v4425
      %v4441 = vsel %vm4434, %v4425, %v4427
      %v4442 = vsel %vm4434, %v4427, %v4429
      %v4443 = vsel %vm4434, %v4429, %v4431
      %v4444 = vsel %vm4434, %v4431, %v4433
      %4457 = vrot.lane.b32.xlu0 %v3108, 108
      %v4458 = vpop.permute.xlu0 %4457
      %4459 = vrot.lane.b32.xlu0 %v3110, 108
      %v4460 = vpop.permute.xlu0 %4459
      %4461 = vrot.lane.b32.xlu0 %v3485, 108
      %v4462 = vpop.permute.xlu0 %4461
      %4463 = vrot.lane.b32.xlu0 %v3874, 108
      %v4464 = vpop.permute.xlu0 %4463
      %4465 = vrot.lane.b32.xlu0 %v3876, 108
      %v4466 = vpop.permute.xlu0 %4465
      %4467 = vrot.lane.b32.xlu0 %v4251, 108
      %v4468 = vpop.permute.xlu0 %4467
      %4469 = vrot.lane.b32.xlu0 %v3114, 108
      %v4470 = vpop.permute.xlu0 %4469
      %4471 = vrot.lane.b32.xlu0 %v3116, 108
      %v4472 = vpop.permute.xlu0 %4471
      %4473 = vrot.lane.b32.xlu0 %v3490, 108
      %v4474 = vpop.permute.xlu0 %4473
      %4475 = vrot.lane.b32.xlu0 %v3880, 108
      %v4476 = vpop.permute.xlu0 %4475
      %4477 = vrot.lane.b32.xlu0 %v3882, 108
      %v4478 = vpop.permute.xlu0 %4477
      %4479 = vrot.lane.b32.xlu0 %v4256, 108
      %v4480 = vpop.permute.xlu0 %4479
      %vm4481 = vcmask 883712
      %v4482 = vsel %vm4481, %v4458, %v4460
      %v4483 = vsel %vm4481, %v4460, %v4462
      %v4484 = vsel %vm4481, %v4462, %v4464
      %v4485 = vsel %vm4481, %v4464, %v4466
      %v4486 = vsel %vm4481, %v4466, %v4468
      %v4487 = vsel %vm4481, %v4470, %v4472
      %v4488 = vsel %vm4481, %v4472, %v4474
      %v4489 = vsel %vm4481, %v4474, %v4476
      %v4490 = vsel %vm4481, %v4476, %v4478
      %v4491 = vsel %vm4481, %v4478, %v4480
      %4504 = vrot.lane.b32.xlu0 %v3108, 92
      %v4505 = vpop.permute.xlu0 %4504
      %4506 = vrot.lane.b32.xlu0 %v3110, 92
      %v4507 = vpop.permute.xlu0 %4506
      %4508 = vrot.lane.b32.xlu0 %v3485, 92
      %v4509 = vpop.permute.xlu0 %4508
      %4510 = vrot.lane.b32.xlu0 %v3874, 92
      %v4511 = vpop.permute.xlu0 %4510
      %4512 = vrot.lane.b32.xlu0 %v3876, 92
      %v4513 = vpop.permute.xlu0 %4512
      %4514 = vrot.lane.b32.xlu0 %v4251, 92
      %v4515 = vpop.permute.xlu0 %4514
      %4516 = vrot.lane.b32.xlu0 %v3114, 92
      %v4517 = vpop.permute.xlu0 %4516
      %4518 = vrot.lane.b32.xlu0 %v3116, 92
      %v4519 = vpop.permute.xlu0 %4518
      %4520 = vrot.lane.b32.xlu0 %v3490, 92
      %v4521 = vpop.permute.xlu0 %4520
      %4522 = vrot.lane.b32.xlu0 %v3880, 92
      %v4523 = vpop.permute.xlu0 %4522
      %4524 = vrot.lane.b32.xlu0 %v3882, 92
      %v4525 = vpop.permute.xlu0 %4524
      %4526 = vrot.lane.b32.xlu0 %v4256, 92
      %v4527 = vpop.permute.xlu0 %4526
      %v4528 = vsel %vm771, %v4505, %v4507
      %v4529 = vsel %vm771, %v4507, %v4509
      %v4530 = vsel %vm771, %v4509, %v4511
      %v4531 = vsel %vm771, %v4511, %v4513
      %v4532 = vsel %vm771, %v4513, %v4515
      %v4533 = vsel %vm771, %v4517, %v4519
      %v4534 = vsel %vm771, %v4519, %v4521
      %v4535 = vsel %vm771, %v4521, %v4523
      %v4536 = vsel %vm771, %v4523, %v4525
      %v4537 = vsel %vm771, %v4525, %v4527
      %4550 = vrot.lane.b32.xlu0 %v3108, 91
      %v4551 = vpop.permute.xlu0 %4550
      %4552 = vrot.lane.b32.xlu0 %v3110, 91
      %v4553 = vpop.permute.xlu0 %4552
      %4554 = vrot.lane.b32.xlu0 %v3485, 91
      %v4555 = vpop.permute.xlu0 %4554
      %4556 = vrot.lane.b32.xlu0 %v3874, 91
      %v4557 = vpop.permute.xlu0 %4556
      %4558 = vrot.lane.b32.xlu0 %v3876, 91
      %v4559 = vpop.permute.xlu0 %4558
      %4560 = vrot.lane.b32.xlu0 %v4251, 91
      %v4561 = vpop.permute.xlu0 %4560
      %4562 = vrot.lane.b32.xlu0 %v3114, 91
      %v4563 = vpop.permute.xlu0 %4562
      %4564 = vrot.lane.b32.xlu0 %v3116, 91
      %v4565 = vpop.permute.xlu0 %4564
      %4566 = vrot.lane.b32.xlu0 %v3490, 91
      %v4567 = vpop.permute.xlu0 %4566
      %4568 = vrot.lane.b32.xlu0 %v3880, 91
      %v4569 = vpop.permute.xlu0 %4568
      %4570 = vrot.lane.b32.xlu0 %v3882, 91
      %v4571 = vpop.permute.xlu0 %4570
      %4572 = vrot.lane.b32.xlu0 %v4256, 91
      %v4573 = vpop.permute.xlu0 %4572
      %vm4574 = vcmask 744448
      %v4575 = vsel %vm4574, %v4551, %v4553
      %v4576 = vsel %vm4574, %v4553, %v4555
      %v4577 = vsel %vm4574, %v4555, %v4557
      %v4578 = vsel %vm4574, %v4557, %v4559
      %v4579 = vsel %vm4574, %v4559, %v4561
      %v4580 = vsel %vm4574, %v4563, %v4565
      %v4581 = vsel %vm4574, %v4565, %v4567
      %v4582 = vsel %vm4574, %v4567, %v4569
      %v4583 = vsel %vm4574, %v4569, %v4571
      %v4584 = vsel %vm4574, %v4571, %v4573
      %4597 = vrot.lane.b32.xlu0 %v3108, 90
      %v4598 = vpop.permute.xlu0 %4597
      %4599 = vrot.lane.b32.xlu0 %v3110, 90
      %v4600 = vpop.permute.xlu0 %4599
      %4601 = vrot.lane.b32.xlu0 %v3485, 90
      %v4602 = vpop.permute.xlu0 %4601
      %4603 = vrot.lane.b32.xlu0 %v3874, 90
      %v4604 = vpop.permute.xlu0 %4603
      %4605 = vrot.lane.b32.xlu0 %v3876, 90
      %v4606 = vpop.permute.xlu0 %4605
      %4607 = vrot.lane.b32.xlu0 %v4251, 90
      %v4608 = vpop.permute.xlu0 %4607
      %4609 = vrot.lane.b32.xlu0 %v3114, 90
      %v4610 = vpop.permute.xlu0 %4609
      %4611 = vrot.lane.b32.xlu0 %v3116, 90
      %v4612 = vpop.permute.xlu0 %4611
      %4613 = vrot.lane.b32.xlu0 %v3490, 90
      %v4614 = vpop.permute.xlu0 %4613
      %4615 = vrot.lane.b32.xlu0 %v3880, 90
      %v4616 = vpop.permute.xlu0 %4615
      %4617 = vrot.lane.b32.xlu0 %v3882, 90
      %v4618 = vpop.permute.xlu0 %4617
      %4619 = vrot.lane.b32.xlu0 %v4256, 90
      %v4620 = vpop.permute.xlu0 %4619
      %vm4621 = vcmask 736256
      %v4622 = vsel %vm4621, %v4598, %v4600
      %v4623 = vsel %vm4621, %v4600, %v4602
      %v4624 = vsel %vm4621, %v4602, %v4604
      %v4625 = vsel %vm4621, %v4604, %v4606
      %v4626 = vsel %vm4621, %v4606, %v4608
      %v4627 = vsel %vm4621, %v4610, %v4612
      %v4628 = vsel %vm4621, %v4612, %v4614
      %v4629 = vsel %vm4621, %v4614, %v4616
      %v4630 = vsel %vm4621, %v4616, %v4618
      %v4631 = vsel %vm4621, %v4618, %v4620
      %v4644 = vld [vmem:[%s3] sm:$0xff]
      %v4645 = vld [vmem:[%s3 + $0x8] sm:$0xff]
      %v4646 = vld [vmem:[%s3 + $0x10] sm:$0xff]
      %v4647 = vld [vmem:[%s3 + $0x18] sm:$0xff]
      %v4648 = vld [vmem:[%s3 + $0x20] sm:$0xff]
      %v4649 = vld [vmem:[%s3 + $0x28] sm:$0xff]
      %v4650 = vld [vmem:[%s3 + $0x30] sm:$0xff]
      %v4651 = vld [vmem:[%s3 + $0x38] sm:$0xff]
      %v4652 = vld [vmem:[%s4] sm:$0xff]
      %v4653 = vld [vmem:[%s4 + $0x8] sm:$0xff]
      %v4654 = vld [vmem:[%s4 + $0x10] sm:$0xff]
      %v4655 = vld [vmem:[%s4 + $0x18] sm:$0xff]
      %4657 = vset.pattern.permute.xlu0 0
      %4658 = vperm.xlu0 %4657, %v4652
      %v4659 = vpop.permute.xlu0 %4658
      %4662 = vset.pattern.permute.xlu0 0
      %4663 = vperm.xlu0 %4662, %v4653
      %v4664 = vpop.permute.xlu0 %4663
      %4667 = vset.pattern.permute.xlu0 0
      %4668 = vperm.xlu0 %4667, %v4654
      %v4669 = vpop.permute.xlu0 %4668
      %4672 = vset.pattern.permute.xlu0 0
      %4673 = vperm.xlu0 %4672, %v4655
      %v4674 = vpop.permute.xlu0 %4673
      %vm4676 = vcmask 130048
      %v4678 = vsel %vm4676, %v4645, 0
      %v4681 = vsel %vm4676, %v4647, 0
      %v4684 = vsel %vm4676, %v4649, 0
      %v4687 = vsel %vm4676, %v4651, 0
      %4689 = vmatprep.subr.mxu0 %v3110
      %4690 = vmatpush1.msra.mxu0 %v3108
      %4691 = vmatprep.subr.mxu0 %v3116
      %4692 = vmatpush1.msra.mxu0 %v3114
      %4693 = vmatprep.subr.mxu0 %v4296
      %4694 = vmatpush1.msra.mxu0 %v4295
      %4695 = vmatprep.subr.mxu0 %v4301
      %4696 = vmatpush1.msra.mxu0 %v4300
      %4697 = vmatprep.subr.mxu0 %v4342
      %4698 = vmatpush1.msra.mxu0 %v4341
      %4699 = vmatprep.subr.mxu0 %v4347
      %4700 = vmatpush1.msra.mxu0 %v4346
      %4701 = vmatprep.subr.mxu0 %v4389
      %4702 = vmatpush1.msra.mxu0 %v4388
      %4703 = vmatprep.subr.mxu0 %v4394
      %4704 = vmatpush1.msra.mxu0 %v4393
      %4705 = vmatprep.subr.mxu0 %v4436
      %4706 = vmatpush1.msra.mxu0 %v4435
      %4707 = vmatprep.subr.mxu0 %v4441
      %4708 = vmatpush1.msra.mxu0 %v4440
      %4709 = vmatprep.subr.mxu0 %v4483
      %4710 = vmatpush1.msra.mxu0 %v4482
      %4711 = vmatprep.subr.mxu0 %v4488
      %4712 = vmatpush1.msra.mxu0 %v4487
      %4713 = vmatprep.subr.mxu0 %v4529
      %4714 = vmatpush1.msra.mxu0 %v4528
      %4715 = vmatprep.subr.mxu0 %v4534
      %4716 = vmatpush1.msra.mxu0 %v4533
      %4717 = vmatprep.subr.mxu0 %v4576
      %4718 = vmatpush1.msra.mxu0 %v4575
      %4719 = vmatprep.subr.mxu0 %v4581
      %4720 = vmatpush1.msra.mxu0 %v4580
      %4721 = vmatprep.subr.mxu0 %v4623
      %4722 = vmatpush1.msra.mxu0 %v4622
      %4723 = vmatprep.subr.mxu0 %v4628
      %4724 = vmatpush1.msra.mxu0 %v4627
      %4725 = vmatprep.subr.mxu0 0.0
      %4726 = vmatpush1.msra.mxu0 0.0
      %4727 = vmatprep.subr.mxu0 0.0
      %4728 = vmatpush1.msra.mxu0 0.0
      %4729 = vmatprep.subr.mxu0 0.0
      %4730 = vmatpush1.msra.mxu0 0.0
      %4731 = vmatprep.subr.mxu0 0.0
      %4732 = vmatpush1.msra.mxu0 0.0
      %4733 = vmatprep.subr.mxu0 0.0
      %4734 = vmatpush1.msra.mxu0 0.0
      %4735 = vmatprep.subr.mxu0 0.0
      %4736 = vmatpush1.msra.mxu0 0.0
      %4737 = vmatprep.subr.mxu0 0.0
      %4738 = vmatpush1.msra.mxu0 0.0
      %4739 = vmatprep.subr.mxu0 0.0
      %4740 = vmatpush1.msra.mxu0 0.0
      %4741 = vmatprep.subr.mxu0 0.0
      %4742 = vmatpush1.msra.mxu0 0.0
      %4743 = vmatprep.subr.mxu0 0.0
      %4744 = vmatpush1.msra.mxu0 0.0
      %4745 = vmatprep.subr.mxu0 0.0
      %4746 = vmatpush1.msra.mxu0 0.0
      %4747 = vmatprep.subr.mxu0 0.0
      %4748 = vmatpush1.msra.mxu0 0.0
      %4749 = vmatprep.subr.mxu0 0.0
      %4750 = vmatpush1.msra.mxu0 0.0
      %4751 = vmatprep.subr.mxu0 0.0
      %4752 = vmatpush1.msra.mxu0 0.0
      %4753 = vmatprep.mubr.f32.mxu0 %v4678
      %4754 = vmatmul.mubr.f32.gmra.mrb[0].mxu0 %v4644
      %v4755 = vpop.f32.mrb[0].mxu0
      %v4756 = vadd.f32 %v4659, %v4755
      %v4757 = vpop.f32.mrb[0].mxu0
      %v4758 = vadd.f32 %v4659, %v4757
      %4759 = vmatprep.mubr.f32.mxu0 %v4681
      %4760 = vmatmul.mubr.f32.gmra.mrb[0].mxu0 %v4646
      %v4761 = vpop.f32.mrb[0].mxu0
      %v4762 = vadd.f32 %v4664, %v4761
      %v4763 = vpop.f32.mrb[0].mxu0
      %v4764 = vadd.f32 %v4664, %v4763
      %4765 = vmatprep.mubr.f32.mxu0 %v4684
      %4766 = vmatmul.mubr.f32.gmra.mrb[0].mxu0 %v4648
      %v4767 = vpop.f32.mrb[0].mxu0
      %v4768 = vadd.f32 %v4669, %v4767
      %v4769 = vpop.f32.mrb[0].mxu0
      %v4770 = vadd.f32 %v4669, %v4769
      %4771 = vmatprep.mubr.f32.mxu0 %v4687
      %4772 = vmatmul.mubr.f32.gmra.mrb[0].mxu0 %v4650
      %v4773 = vpop.f32.mrb[0].mxu0
      %v4774 = vadd.f32 %v4674, %v4773
      %v4775 = vpop.f32.mrb[0].mxu0
      %v4776 = vadd.f32 %v4674, %v4775
      %4777 = vdwg.mxu0
      %4778 = vmatprep.subr.mxu0 %v3874
      %4779 = vmatpush1.msra.mxu0 %v3485
      %4780 = vmatprep.subr.mxu0 %v3880
      %4781 = vmatpush1.msra.mxu0 %v3490
      %4782 = vmatprep.subr.mxu0 %v4298
      %4783 = vmatpush1.msra.mxu0 %v4297
      %4784 = vmatprep.subr.mxu0 %v4303
      %4785 = vmatpush1.msra.mxu0 %v4302
      %4786 = vmatprep.subr.mxu0 %v4344
      %4787 = vmatpush1.msra.mxu0 %v4343
      %4788 = vmatprep.subr.mxu0 %v4349
      %4789 = vmatpush1.msra.mxu0 %v4348
      %4790 = vmatprep.subr.mxu0 %v4391
      %4791 = vmatpush1.msra.mxu0 %v4390
      %4792 = vmatprep.subr.mxu0 %v4396
      %4793 = vmatpush1.msra.mxu0 %v4395
      %4794 = vmatprep.subr.mxu0 %v4438
      %4795 = vmatpush1.msra.mxu0 %v4437
      %4796 = vmatprep.subr.mxu0 %v4443
      %4797 = vmatpush1.msra.mxu0 %v4442
      %4798 = vmatprep.subr.mxu0 %v4485
      %4799 = vmatpush1.msra.mxu0 %v4484
      %4800 = vmatprep.subr.mxu0 %v4490
      %4801 = vmatpush1.msra.mxu0 %v4489
      %4802 = vmatprep.subr.mxu0 %v4531
      %4803 = vmatpush1.msra.mxu0 %v4530
      %4804 = vmatprep.subr.mxu0 %v4536
      %4805 = vmatpush1.msra.mxu0 %v4535
      %4806 = vmatprep.subr.mxu0 %v4578
      %4807 = vmatpush1.msra.mxu0 %v4577
      %4808 = vmatprep.subr.mxu0 %v4583
      %4809 = vmatpush1.msra.mxu0 %v4582
      %4810 = vmatprep.subr.mxu0 %v4625
      %4811 = vmatpush1.msra.mxu0 %v4624
      %4812 = vmatprep.subr.mxu0 %v4630
      %4813 = vmatpush1.msra.mxu0 %v4629
      %4814 = vmatprep.subr.mxu0 0.0
      %4815 = vmatpush1.msra.mxu0 0.0
      %4816 = vmatprep.subr.mxu0 0.0
      %4817 = vmatpush1.msra.mxu0 0.0
      %4818 = vmatprep.subr.mxu0 0.0
      %4819 = vmatpush1.msra.mxu0 0.0
      %4820 = vmatprep.subr.mxu0 0.0
      %4821 = vmatpush1.msra.mxu0 0.0
      %4822 = vmatprep.subr.mxu0 0.0
      %4823 = vmatpush1.msra.mxu0 0.0
      %4824 = vmatprep.subr.mxu0 0.0
      %4825 = vmatpush1.msra.mxu0 0.0
      %4826 = vmatprep.subr.mxu0 0.0
      %4827 = vmatpush1.msra.mxu0 0.0
      %4828 = vmatprep.subr.mxu0 0.0
      %4829 = vmatpush1.msra.mxu0 0.0
      %4830 = vmatprep.subr.mxu0 0.0
      %4831 = vmatpush1.msra.mxu0 0.0
      %4832 = vmatprep.subr.mxu0 0.0
      %4833 = vmatpush1.msra.mxu0 0.0
      %4834 = vmatprep.subr.mxu0 0.0
      %4835 = vmatpush1.msra.mxu0 0.0
      %4836 = vmatprep.subr.mxu0 0.0
      %4837 = vmatpush1.msra.mxu0 0.0
      %4838 = vmatprep.subr.mxu0 0.0
      %4839 = vmatpush1.msra.mxu0 0.0
      %4840 = vmatprep.subr.mxu0 0.0
      %4841 = vmatpush1.msra.mxu0 0.0
      %4842 = vmatprep.mubr.f32.mxu0 %v4678
      %4843 = vmatmul.mubr.f32.gmra.mrb[0].mxu0 %v4644
      %v4844 = vpop.f32.mrb[0].mxu0
      %v4845 = vadd.f32 %v4659, %v4844
      %v4846 = vpop.f32.mrb[0].mxu0
      %v4847 = vadd.f32 %v4659, %v4846
      %4848 = vmatprep.mubr.f32.mxu0 %v4681
      %4849 = vmatmul.mubr.f32.gmra.mrb[0].mxu0 %v4646
      %v4850 = vpop.f32.mrb[0].mxu0
      %v4851 = vadd.f32 %v4664, %v4850
      %v4852 = vpop.f32.mrb[0].mxu0
      %v4853 = vadd.f32 %v4664, %v4852
      %4854 = vmatprep.mubr.f32.mxu0 %v4684
      %4855 = vmatmul.mubr.f32.gmra.mrb[0].mxu0 %v4648
      %v4856 = vpop.f32.mrb[0].mxu0
      %v4857 = vadd.f32 %v4669, %v4856
      %v4858 = vpop.f32.mrb[0].mxu0
      %v4859 = vadd.f32 %v4669, %v4858
      %4860 = vmatprep.mubr.f32.mxu0 %v4687
      %4861 = vmatmul.mubr.f32.gmra.mrb[0].mxu0 %v4650
      %v4862 = vpop.f32.mrb[0].mxu0
      %v4863 = vadd.f32 %v4674, %v4862
      %v4864 = vpop.f32.mrb[0].mxu0
      %v4865 = vadd.f32 %v4674, %v4864
      %4866 = vdwg.mxu0
      %4867 = vmatprep.subr.mxu0 %v4251
      %4868 = vmatpush1.msra.mxu0 %v3876
      %4869 = vmatprep.subr.mxu0 %v4256
      %4870 = vmatpush1.msra.mxu0 %v3882
      %4871 = vmatprep.subr.mxu0 %v4282
      %4872 = vmatpush1.msra.mxu0 %v4299
      %4873 = vmatprep.subr.mxu0 %v4294
      %4874 = vmatpush1.msra.mxu0 %v4304
      %4875 = vmatprep.subr.mxu0 %v4328
      %4876 = vmatpush1.msra.mxu0 %v4345
      %4877 = vmatprep.subr.mxu0 %v4340
      %4878 = vmatpush1.msra.mxu0 %v4350
      %4879 = vmatprep.subr.mxu0 %v4374
      %4880 = vmatpush1.msra.mxu0 %v4392
      %4881 = vmatprep.subr.mxu0 %v4386
      %4882 = vmatpush1.msra.mxu0 %v4397
      %4883 = vmatprep.subr.mxu0 %v4421
      %4884 = vmatpush1.msra.mxu0 %v4439
      %4885 = vmatprep.subr.mxu0 %v4433
      %4886 = vmatpush1.msra.mxu0 %v4444
      %4887 = vmatprep.subr.mxu0 %v4468
      %4888 = vmatpush1.msra.mxu0 %v4486
      %4889 = vmatprep.subr.mxu0 %v4480
      %4890 = vmatpush1.msra.mxu0 %v4491
      %4891 = vmatprep.subr.mxu0 %v4515
      %4892 = vmatpush1.msra.mxu0 %v4532
      %4893 = vmatprep.subr.mxu0 %v4527
      %4894 = vmatpush1.msra.mxu0 %v4537
      %4895 = vmatprep.subr.mxu0 %v4561
      %4896 = vmatpush1.msra.mxu0 %v4579
      %4897 = vmatprep.subr.mxu0 %v4573
      %4898 = vmatpush1.msra.mxu0 %v4584
      %4899 = vmatprep.subr.mxu0 %v4608
      %4900 = vmatpush1.msra.mxu0 %v4626
      %4901 = vmatprep.subr.mxu0 %v4620
      %4902 = vmatpush1.msra.mxu0 %v4631
      %4903 = vmatprep.subr.mxu0 0.0
      %4904 = vmatpush1.msra.mxu0 0.0
      %4905 = vmatprep.subr.mxu0 0.0
      %4906 = vmatpush1.msra.mxu0 0.0
      %4907 = vmatprep.subr.mxu0 0.0
      %4908 = vmatpush1.msra.mxu0 0.0
      %4909 = vmatprep.subr.mxu0 0.0
      %4910 = vmatpush1.msra.mxu0 0.0
      %4911 = vmatprep.subr.mxu0 0.0
      %4912 = vmatpush1.msra.mxu0 0.0
      %4913 = vmatprep.subr.mxu0 0.0
      %4914 = vmatpush1.msra.mxu0 0.0
      %4915 = vmatprep.subr.mxu0 0.0
      %4916 = vmatpush1.msra.mxu0 0.0
      %4917 = vmatprep.subr.mxu0 0.0
      %4918 = vmatpush1.msra.mxu0 0.0
      %4919 = vmatprep.subr.mxu0 0.0
      %4920 = vmatpush1.msra.mxu0 0.0
      %4921 = vmatprep.subr.mxu0 0.0
      %4922 = vmatpush1.msra.mxu0 0.0
      %4923 = vmatprep.subr.mxu0 0.0
      %4924 = vmatpush1.msra.mxu0 0.0
      %4925 = vmatprep.subr.mxu0 0.0
      %4926 = vmatpush1.msra.mxu0 0.0
      %4927 = vmatprep.subr.mxu0 0.0
      %4928 = vmatpush1.msra.mxu0 0.0
      %4929 = vmatprep.subr.mxu0 0.0
      %4930 = vmatpush1.msra.mxu0 0.0
      %4931 = vmatprep.mubr.f32.mxu0 %v4678
      %4932 = vmatmul.mubr.f32.gmra.mrb[0].mxu0 %v4644
      %v4933 = vpop.f32.mrb[0].mxu0
      %v4934 = vadd.f32 %v4659, %v4933
      %v4935 = vpop.f32.mrb[0].mxu0
      %v4936 = vadd.f32 %v4659, %v4935
      %4937 = vmatprep.mubr.f32.mxu0 %v4681
      %4938 = vmatmul.mubr.f32.gmra.mrb[0].mxu0 %v4646
      %v4939 = vpop.f32.mrb[0].mxu0
      %v4940 = vadd.f32 %v4664, %v4939
      %v4941 = vpop.f32.mrb[0].mxu0
      %v4942 = vadd.f32 %v4664, %v4941
      %4943 = vmatprep.mubr.f32.mxu0 %v4684
      %4944 = vmatmul.mubr.f32.gmra.mrb[0].mxu0 %v4648
      %v4945 = vpop.f32.mrb[0].mxu0
      %v4946 = vadd.f32 %v4669, %v4945
      %v4947 = vpop.f32.mrb[0].mxu0
      %v4948 = vadd.f32 %v4669, %v4947
      %4949 = vmatprep.mubr.f32.mxu0 %v4687
      %4950 = vmatmul.mubr.f32.gmra.mrb[0].mxu0 %v4650
      %v4951 = vpop.f32.mrb[0].mxu0
      %v4952 = vadd.f32 %v4674, %v4951
      %v4953 = vpop.f32.mrb[0].mxu0
      %v4954 = vadd.f32 %v4674, %v4953
      %4955 = vdwg.mxu0
      %v4956 = vmax.f32 %v4756, 0.0
      %v4957 = vmax.f32 %v4758, 0.0
      %v4958 = vmax.f32 %v4845, 0.0
      %v4959 = vmax.f32 %v4847, 0.0
      %v4960 = vmax.f32 %v4934, 0.0
      %v4961 = vmax.f32 %v4936, 0.0
      %v4962 = vmax.f32 %v4762, 0.0
      %v4963 = vmax.f32 %v4764, 0.0
      %v4964 = vmax.f32 %v4851, 0.0
      %v4965 = vmax.f32 %v4853, 0.0
      %v4966 = vmax.f32 %v4940, 0.0
      %v4967 = vmax.f32 %v4942, 0.0
      %v4968 = vmax.f32 %v4768, 0.0
      %v4969 = vmax.f32 %v4770, 0.0
      %v4970 = vmax.f32 %v4857, 0.0
      %v4971 = vmax.f32 %v4859, 0.0
      %v4972 = vmax.f32 %v4946, 0.0
      %v4973 = vmax.f32 %v4948, 0.0
      %v4974 = vmax.f32 %v4774, 0.0
      %v4975 = vmax.f32 %v4776, 0.0
      %v4976 = vmax.f32 %v4863, 0.0
      %v4977 = vmax.f32 %v4865, 0.0
      %v4978 = vmax.f32 %v4952, 0.0
      %v4979 = vmax.f32 %v4954, 0.0
      %5004 = vrot.lane.b32.xlu0 %v4956, 127
      %v5005 = vpop.permute.xlu0 %5004
      %5006 = vrot.lane.b32.xlu0 %v4957, 127
      %v5007 = vpop.permute.xlu0 %5006
      %5008 = vrot.lane.b32.xlu0 %v4958, 127
      %v5009 = vpop.permute.xlu0 %5008
      %5010 = vrot.lane.b32.xlu0 %v4959, 127
      %v5011 = vpop.permute.xlu0 %5010
      %5012 = vrot.lane.b32.xlu0 %v4960, 127
      %v5013 = vpop.permute.xlu0 %5012
      %5014 = vrot.lane.b32.xlu0 %v4961, 127
      %v5015 = vpop.permute.xlu0 %5014
      %5016 = vrot.lane.b32.xlu0 %v4962, 127
      %v5017 = vpop.permute.xlu0 %5016
      %5018 = vrot.lane.b32.xlu0 %v4963, 127
      %v5019 = vpop.permute.xlu0 %5018
      %5020 = vrot.lane.b32.xlu0 %v4964, 127
      %v5021 = vpop.permute.xlu0 %5020
      %5022 = vrot.lane.b32.xlu0 %v4965, 127
      %v5023 = vpop.permute.xlu0 %5022
      %5024 = vrot.lane.b32.xlu0 %v4966, 127
      %v5025 = vpop.permute.xlu0 %5024
      %5026 = vrot.lane.b32.xlu0 %v4967, 127
      %v5027 = vpop.permute.xlu0 %5026
      %5028 = vrot.lane.b32.xlu0 %v4968, 127
      %v5029 = vpop.permute.xlu0 %5028
      %5030 = vrot.lane.b32.xlu0 %v4969, 127
      %v5031 = vpop.permute.xlu0 %5030
      %5032 = vrot.lane.b32.xlu0 %v4970, 127
      %v5033 = vpop.permute.xlu0 %5032
      %5034 = vrot.lane.b32.xlu0 %v4971, 127
      %v5035 = vpop.permute.xlu0 %5034
      %5036 = vrot.lane.b32.xlu0 %v4972, 127
      %v5037 = vpop.permute.xlu0 %5036
      %5038 = vrot.lane.b32.xlu0 %v4973, 127
      %v5039 = vpop.permute.xlu0 %5038
      %5040 = vrot.lane.b32.xlu0 %v4974, 127
      %v5041 = vpop.permute.xlu0 %5040
      %5042 = vrot.lane.b32.xlu0 %v4975, 127
      %v5043 = vpop.permute.xlu0 %5042
      %5044 = vrot.lane.b32.xlu0 %v4976, 127
      %v5045 = vpop.permute.xlu0 %5044
      %5046 = vrot.lane.b32.xlu0 %v4977, 127
      %v5047 = vpop.permute.xlu0 %5046
      %5048 = vrot.lane.b32.xlu0 %v4978, 127
      %v5049 = vpop.permute.xlu0 %5048
      %5050 = vrot.lane.b32.xlu0 %v4979, 127
      %v5051 = vpop.permute.xlu0 %5050
      %v5052 = vsel %vm467, %v5005, %v5007
      %v5053 = vsel %vm467, %v5007, %v5009
      %v5054 = vsel %vm467, %v5009, %v5011
      %v5055 = vsel %vm467, %v5011, %v5013
      %v5056 = vsel %vm467, %v5013, %v5015
      %v5057 = vsel %vm467, %v5017, %v5019
      %v5058 = vsel %vm467, %v5019, %v5021
      %v5059 = vsel %vm467, %v5021, %v5023
      %v5060 = vsel %vm467, %v5023, %v5025
      %v5061 = vsel %vm467, %v5025, %v5027
      %v5062 = vsel %vm467, %v5029, %v5031
      %v5063 = vsel %vm467, %v5031, %v5033
      %v5064 = vsel %vm467, %v5033, %v5035
      %v5065 = vsel %vm467, %v5035, %v5037
      %v5066 = vsel %vm467, %v5037, %v5039
      %v5067 = vsel %vm467, %v5041, %v5043
      %v5068 = vsel %vm467, %v5043, %v5045
      %v5069 = vsel %vm467, %v5045, %v5047
      %v5070 = vsel %vm467, %v5047, %v5049
      %v5071 = vsel %vm467, %v5049, %v5051
      %v5096 = vmax.f32 %v4956, %v5052
      %v5097 = vmax.f32 %v4957, %v5053
      %v5098 = vmax.f32 %v4958, %v5054
      %v5099 = vmax.f32 %v4959, %v5055
      %v5100 = vmax.f32 %v4960, %v5056
      %v5101 = vmax.f32 %v4961, %v5015
      %v5102 = vmax.f32 %v4962, %v5057
      %v5103 = vmax.f32 %v4963, %v5058
      %v5104 = vmax.f32 %v4964, %v5059
      %v5105 = vmax.f32 %v4965, %v5060
      %v5106 = vmax.f32 %v4966, %v5061
      %v5107 = vmax.f32 %v4967, %v5027
      %v5108 = vmax.f32 %v4968, %v5062
      %v5109 = vmax.f32 %v4969, %v5063
      %v5110 = vmax.f32 %v4970, %v5064
      %v5111 = vmax.f32 %v4971, %v5065
      %v5112 = vmax.f32 %v4972, %v5066
      %v5113 = vmax.f32 %v4973, %v5039
      %v5114 = vmax.f32 %v4974, %v5067
      %v5115 = vmax.f32 %v4975, %v5068
      %v5116 = vmax.f32 %v4976, %v5069
      %v5117 = vmax.f32 %v4977, %v5070
      %v5118 = vmax.f32 %v4978, %v5071
      %v5119 = vmax.f32 %v4979, %v5051
      %5144 = vrot.lane.b32.xlu0 %v5096, 110
      %v5145 = vpop.permute.xlu0 %5144
      %5146 = vrot.lane.b32.xlu0 %v5097, 110
      %v5147 = vpop.permute.xlu0 %5146
      %5148 = vrot.lane.b32.xlu0 %v5098, 110
      %v5149 = vpop.permute.xlu0 %5148
      %5150 = vrot.lane.b32.xlu0 %v5099, 110
      %v5151 = vpop.permute.xlu0 %5150
      %5152 = vrot.lane.b32.xlu0 %v5100, 110
      %v5153 = vpop.permute.xlu0 %5152
      %5154 = vrot.lane.b32.xlu0 %v5101, 110
      %v5155 = vpop.permute.xlu0 %5154
      %5156 = vrot.lane.b32.xlu0 %v5102, 110
      %v5157 = vpop.permute.xlu0 %5156
      %5158 = vrot.lane.b32.xlu0 %v5103, 110
      %v5159 = vpop.permute.xlu0 %5158
      %5160 = vrot.lane.b32.xlu0 %v5104, 110
      %v5161 = vpop.permute.xlu0 %5160
      %5162 = vrot.lane.b32.xlu0 %v5105, 110
      %v5163 = vpop.permute.xlu0 %5162
      %5164 = vrot.lane.b32.xlu0 %v5106, 110
      %v5165 = vpop.permute.xlu0 %5164
      %5166 = vrot.lane.b32.xlu0 %v5107, 110
      %v5167 = vpop.permute.xlu0 %5166
      %5168 = vrot.lane.b32.xlu0 %v5108, 110
      %v5169 = vpop.permute.xlu0 %5168
      %5170 = vrot.lane.b32.xlu0 %v5109, 110
      %v5171 = vpop.permute.xlu0 %5170
      %5172 = vrot.lane.b32.xlu0 %v5110, 110
      %v5173 = vpop.permute.xlu0 %5172
      %5174 = vrot.lane.b32.xlu0 %v5111, 110
      %v5175 = vpop.permute.xlu0 %5174
      %5176 = vrot.lane.b32.xlu0 %v5112, 110
      %v5177 = vpop.permute.xlu0 %5176
      %5178 = vrot.lane.b32.xlu0 %v5113, 110
      %v5179 = vpop.permute.xlu0 %5178
      %5180 = vrot.lane.b32.xlu0 %v5114, 110
      %v5181 = vpop.permute.xlu0 %5180
      %5182 = vrot.lane.b32.xlu0 %v5115, 110
      %v5183 = vpop.permute.xlu0 %5182
      %5184 = vrot.lane.b32.xlu0 %v5116, 110
      %v5185 = vpop.permute.xlu0 %5184
      %5186 = vrot.lane.b32.xlu0 %v5117, 110
      %v5187 = vpop.permute.xlu0 %5186
      %5188 = vrot.lane.b32.xlu0 %v5118, 110
      %v5189 = vpop.permute.xlu0 %5188
      %5190 = vrot.lane.b32.xlu0 %v5119, 110
      %v5191 = vpop.permute.xlu0 %5190
      %v5192 = vsel %vm4387, %v5145, %v5147
      %v5193 = vsel %vm4387, %v5147, %v5149
      %v5194 = vsel %vm4387, %v5149, %v5151
      %v5195 = vsel %vm4387, %v5151, %v5153
      %v5196 = vsel %vm4387, %v5153, %v5155
      %v5197 = vsel %vm4387, %v5157, %v5159
      %v5198 = vsel %vm4387, %v5159, %v5161
      %v5199 = vsel %vm4387, %v5161, %v5163
      %v5200 = vsel %vm4387, %v5163, %v5165
      %v5201 = vsel %vm4387, %v5165, %v5167
      %v5202 = vsel %vm4387, %v5169, %v5171
      %v5203 = vsel %vm4387, %v5171, %v5173
      %v5204 = vsel %vm4387, %v5173, %v5175
      %v5205 = vsel %vm4387, %v5175, %v5177
      %v5206 = vsel %vm4387, %v5177, %v5179
      %v5207 = vsel %vm4387, %v5181, %v5183
      %v5208 = vsel %vm4387, %v5183, %v5185
      %v5209 = vsel %vm4387, %v5185, %v5187
      %v5210 = vsel %vm4387, %v5187, %v5189
      %v5211 = vsel %vm4387, %v5189, %v5191
      %v5236 = vmax.f32 %v5096, %v5192
      %v5237 = vmax.f32 %v5097, %v5193
      %v5238 = vmax.f32 %v5098, %v5194
      %v5239 = vmax.f32 %v5099, %v5195
      %v5240 = vmax.f32 %v5100, %v5196
      %v5241 = vmax.f32 %v5101, %v5155
      %v5242 = vmax.f32 %v5102, %v5197
      %v5243 = vmax.f32 %v5103, %v5198
      %v5244 = vmax.f32 %v5104, %v5199
      %v5245 = vmax.f32 %v5105, %v5200
      %v5246 = vmax.f32 %v5106, %v5201
      %v5247 = vmax.f32 %v5107, %v5167
      %v5248 = vmax.f32 %v5108, %v5202
      %v5249 = vmax.f32 %v5109, %v5203
      %v5250 = vmax.f32 %v5110, %v5204
      %v5251 = vmax.f32 %v5111, %v5205
      %v5252 = vmax.f32 %v5112, %v5206
      %v5253 = vmax.f32 %v5113, %v5179
      %v5254 = vmax.f32 %v5114, %v5207
      %v5255 = vmax.f32 %v5115, %v5208
      %v5256 = vmax.f32 %v5116, %v5209
      %v5257 = vmax.f32 %v5117, %v5210
      %v5258 = vmax.f32 %v5118, %v5211
      %v5259 = vmax.f32 %v5119, %v5191
      %v5260 = vld [vmem:[%s8] sm:$0xff]
      %v5261 = vld [vmem:[%s8 + $0x8] sm:$0xff]
      %v5262 = vld [vmem:[%s8 + $0x10] sm:$0xff]
      %v5263 = vld [vmem:[%s8 + $0x18] sm:$0xff]
      %v5264 = vld [vmem:[%s8 + $0x20] sm:$0xff]
      %v5265 = vld [vmem:[%s8 + $0x28] sm:$0xff]
      %v5266 = vld [vmem:[%s8 + $0x30] sm:$0xff]
      %v5267 = vld [vmem:[%s8 + $0x38] sm:$0xff]
      %v5268 = vld [vmem:[%s8 + $0x40] sm:$0xff]
      %v5269 = vld [vmem:[%s8 + $0x48] sm:$0xff]
      %v5270 = vld [vmem:[%s8 + $0x50] sm:$0xff]
      %v5271 = vld [vmem:[%s8 + $0x58] sm:$0xff]
      %v5272 = vld [vmem:[%s8 + $0x60] sm:$0xff]
      %v5273 = vld [vmem:[%s8 + $0x68] sm:$0xff]
      %v5274 = vld [vmem:[%s8 + $0x70] sm:$0xff]
      %v5275 = vld [vmem:[%s8 + $0x78] sm:$0xff]
      %v5276 = vld [vmem:[%s8 + $0x80] sm:$0xff]
      %v5277 = vld [vmem:[%s8 + $0x88] sm:$0xff]
      %v5278 = vld [vmem:[%s8 + $0x90] sm:$0xff]
      %v5279 = vld [vmem:[%s8 + $0x98] sm:$0xff]
      %v5280 = vld [vmem:[%s8 + $0xa0] sm:$0xff]
      %v5281 = vld [vmem:[%s8 + $0xa8] sm:$0xff]
      %v5282 = vld [vmem:[%s8 + $0xb0] sm:$0xff]
      %v5283 = vld [vmem:[%s8 + $0xb8] sm:$0xff]
      %v5284 = vld [vmem:[%s8 + $0xc0] sm:$0xff]
      %v5285 = vld [vmem:[%s8 + $0xc8] sm:$0xff]
      %v5286 = vld [vmem:[%s8 + $0xd0] sm:$0xff]
      %v5287 = vld [vmem:[%s8 + $0xd8] sm:$0xff]
      %v5288 = vld [vmem:[%s8 + $0xe0] sm:$0xff]
      %v5289 = vld [vmem:[%s8 + $0xe8] sm:$0xff]
      %v5290 = vld [vmem:[%s8 + $0xf0] sm:$0xff]
      %v5291 = vld [vmem:[%s8 + $0xf8] sm:$0xff]
      %v5292 = vld [vmem:[%s8 + $0x100] sm:$0xff]
      %v5293 = vld [vmem:[%s8 + $0x108] sm:$0x7]
      %vm5294 = vcmask 89088
      %v5296 = vsel %vm5294, %v5238, 0
      %v5299 = vsel %vm5294, %v5244, 0
      %v5302 = vsel %vm5294, %v5250, 0
      %v5305 = vsel %vm5294, %v5256, 0
      %v5308 = vsel %vm2723, %v5293, 0
      %5310 = vmatprep.subr.mxu0 0.0
      %5311 = vmatpush1.msra.mxu0 %v5260
      %5312 = vmatprep.subr.mxu0 0.0
      %5313 = vmatpush1.msra.mxu0 %v5261
      %5314 = vmatprep.subr.mxu0 0.0
      %5315 = vmatpush1.msra.mxu0 %v5262
      %5316 = vmatprep.subr.mxu0 0.0
      %5317 = vmatpush1.msra.mxu0 %v5263
      %5318 = vmatprep.subr.mxu0 0.0
      %5319 = vmatpush1.msra.mxu0 %v5264
      %5320 = vmatprep.subr.mxu0 0.0
      %5321 = vmatpush1.msra.mxu0 %v5265
      %5322 = vmatprep.subr.mxu0 0.0
      %5323 = vmatpush1.msra.mxu0 %v5266
      %5324 = vmatprep.subr.mxu0 0.0
      %5325 = vmatpush1.msra.mxu0 %v5267
      %5326 = vmatprep.subr.mxu0 0.0
      %5327 = vmatpush1.msra.mxu0 %v5268
      %5328 = vmatprep.subr.mxu0 0.0
      %5329 = vmatpush1.msra.mxu0 %v5269
      %5330 = vmatprep.subr.mxu0 0.0
      %5331 = vmatpush1.msra.mxu0 %v5270
      %5332 = vmatprep.subr.mxu0 0.0
      %5333 = vmatpush1.msra.mxu0 %v5271
      %5334 = vmatprep.subr.mxu0 0.0
      %5335 = vmatpush1.msra.mxu0 %v5272
      %5336 = vmatprep.subr.mxu0 0.0
      %5337 = vmatpush1.msra.mxu0 %v5273
      %5338 = vmatprep.subr.mxu0 0.0
      %5339 = vmatpush1.msra.mxu0 %v5274
      %5340 = vmatprep.subr.mxu0 0.0
      %5341 = vmatpush1.msra.mxu0 %v5275
      %5342 = vmatprep.subr.mxu0 0.0
      %5343 = vmatpush1.msra.mxu0 %v5276
      %5344 = vmatprep.subr.mxu0 0.0
      %5345 = vmatpush1.msra.mxu0 %v5277
      %5346 = vmatprep.subr.mxu0 0.0
      %5347 = vmatpush1.msra.mxu0 %v5278
      %5348 = vmatprep.subr.mxu0 0.0
      %5349 = vmatpush1.msra.mxu0 %v5279
      %5350 = vmatprep.subr.mxu0 0.0
      %5351 = vmatpush1.msra.mxu0 %v5280
      %5352 = vmatprep.subr.mxu0 0.0
      %5353 = vmatpush1.msra.mxu0 %v5281
      %5354 = vmatprep.subr.mxu0 0.0
      %5355 = vmatpush1.msra.mxu0 %v5282
      %5356 = vmatprep.subr.mxu0 0.0
      %5357 = vmatpush1.msra.mxu0 %v5283
      %5358 = vmatprep.subr.mxu0 0.0
      %5359 = vmatpush1.msra.mxu0 %v5284
      %5360 = vmatprep.subr.mxu0 0.0
      %5361 = vmatpush1.msra.mxu0 %v5285
      %5362 = vmatprep.subr.mxu0 0.0
      %5363 = vmatpush1.msra.mxu0 %v5286
      %5364 = vmatprep.subr.mxu0 0.0
      %5365 = vmatpush1.msra.mxu0 %v5287
      %5366 = vmatprep.subr.mxu0 0.0
      %5367 = vmatpush1.msra.mxu0 %v5288
      %5368 = vmatprep.subr.mxu0 0.0
      %5369 = vmatpush1.msra.mxu0 %v5289
      %5370 = vmatprep.subr.mxu0 0.0
      %5371 = vmatpush1.msra.mxu0 %v5290
      %5372 = vmatprep.subr.mxu0 0.0
      %5373 = vmatpush1.msra.mxu0 %v5291
      %5374 = vmatprep.mubr.f32.mxu0 %v5237
      %5375 = vmatmul.mubr.f32.gmra.mrb[0].mxu0 %v5236
      %v5376 = vpop.f32.mrb[0].mxu0
      %v5377 = vadd.f32 0.0, %v5376
      %v5378 = vpop.f32.mrb[0].mxu0
      %5379 = vmatprep.mubr.f32.mxu0 %v5243
      %5380 = vmatmul.mubr.f32.gmra.mrb[0].mxu0 %v5242
      %v5381 = vpop.f32.mrb[0].mxu0
      %v5382 = vadd.f32 0.0, %v5381
      %v5383 = vpop.f32.mrb[0].mxu0
      %5384 = vmatprep.mubr.f32.mxu0 %v5249
      %5385 = vmatmul.mubr.f32.gmra.mrb[0].mxu0 %v5248
      %v5386 = vpop.f32.mrb[0].mxu0
      %v5387 = vadd.f32 0.0, %v5386
      %v5388 = vpop.f32.mrb[0].mxu0
      %5389 = vmatprep.mubr.f32.mxu0 %v5255
      %5390 = vmatmul.mubr.f32.gmra.mrb[0].mxu0 %v5254
      %v5391 = vpop.f32.mrb[0].mxu0
      %v5392 = vadd.f32 0.0, %v5391
      %v5393 = vpop.f32.mrb[0].mxu0
      %5394 = vdwg.mxu0
      %5395 = vmatprep.subr.mxu0 0.0
      %5396 = vmatpush1.msra.mxu0 %v5292
      %5397 = vmatprep.subr.mxu0 0.0
      %5398 = vmatpush1.msra.mxu0 %v5308
      %5399 = vmatprep.subr.mxu0 0.0
      %5400 = vmatpush1.msra.mxu0 0.0
      %5401 = vmatprep.subr.mxu0 0.0
      %5402 = vmatpush1.msra.mxu0 0.0
      %5403 = vmatprep.subr.mxu0 0.0
      %5404 = vmatpush1.msra.mxu0 0.0
      %5405 = vmatprep.subr.mxu0 0.0
      %5406 = vmatpush1.msra.mxu0 0.0
      %5407 = vmatprep.subr.mxu0 0.0
      %5408 = vmatpush1.msra.mxu0 0.0
      %5409 = vmatprep.subr.mxu0 0.0
      %5410 = vmatpush1.msra.mxu0 0.0
      %5411 = vmatprep.subr.mxu0 0.0
      %5412 = vmatpush1.msra.mxu0 0.0
      %5413 = vmatprep.subr.mxu0 0.0
      %5414 = vmatpush1.msra.mxu0 0.0
      %5415 = vmatprep.subr.mxu0 0.0
      %5416 = vmatpush1.msra.mxu0 0.0
      %5417 = vmatprep.subr.mxu0 0.0
      %5418 = vmatpush1.msra.mxu0 0.0
      %5419 = vmatprep.subr.mxu0 0.0
      %5420 = vmatpush1.msra.mxu0 0.0
      %5421 = vmatprep.subr.mxu0 0.0
      %5422 = vmatpush1.msra.mxu0 0.0
      %5423 = vmatprep.subr.mxu0 0.0
      %5424 = vmatpush1.msra.mxu0 0.0
      %5425 = vmatprep.subr.mxu0 0.0
      %5426 = vmatpush1.msra.mxu0 0.0
      %5427 = vmatprep.subr.mxu0 0.0
      %5428 = vmatpush1.msra.mxu0 0.0
      %5429 = vmatprep.subr.mxu0 0.0
      %5430 = vmatpush1.msra.mxu0 0.0
      %5431 = vmatprep.subr.mxu0 0.0
      %5432 = vmatpush1.msra.mxu0 0.0
      %5433 = vmatprep.subr.mxu0 0.0
      %5434 = vmatpush1.msra.mxu0 0.0
      %5435 = vmatprep.subr.mxu0 0.0
      %5436 = vmatpush1.msra.mxu0 0.0
      %5437 = vmatprep.subr.mxu0 0.0
      %5438 = vmatpush1.msra.mxu0 0.0
      %5439 = vmatprep.subr.mxu0 0.0
      %5440 = vmatpush1.msra.mxu0 0.0
      %5441 = vmatprep.subr.mxu0 0.0
      %5442 = vmatpush1.msra.mxu0 0.0
      %5443 = vmatprep.subr.mxu0 0.0
      %5444 = vmatpush1.msra.mxu0 0.0
      %5445 = vmatprep.subr.mxu0 0.0
      %5446 = vmatpush1.msra.mxu0 0.0
      %5447 = vmatprep.subr.mxu0 0.0
      %5448 = vmatpush1.msra.mxu0 0.0
      %5449 = vmatprep.subr.mxu0 0.0
      %5450 = vmatpush1.msra.mxu0 0.0
      %5451 = vmatprep.subr.mxu0 0.0
      %5452 = vmatpush1.msra.mxu0 0.0
      %5453 = vmatprep.subr.mxu0 0.0
      %5454 = vmatpush1.msra.mxu0 0.0
      %5455 = vmatprep.subr.mxu0 0.0
      %5456 = vmatpush1.msra.mxu0 0.0
      %5457 = vmatprep.subr.mxu0 0.0
      %5458 = vmatpush1.msra.mxu0 0.0
      %5459 = vmatprep.mubr.f32.mxu0 0.0
      %5460 = vmatmul.mubr.f32.gmra.mrb[0].mxu0 %v5296
      %v5461 = vpop.f32.mrb[0].mxu0
      %v5462 = vadd.f32 %v5377, %v5461
      %v5463 = vpop.f32.mrb[0].mxu0
      %5464 = vmatprep.mubr.f32.mxu0 0.0
      %5465 = vmatmul.mubr.f32.gmra.mrb[0].mxu0 %v5299
      %v5466 = vpop.f32.mrb[0].mxu0
      %v5467 = vadd.f32 %v5382, %v5466
      %v5468 = vpop.f32.mrb[0].mxu0
      %5469 = vmatprep.mubr.f32.mxu0 0.0
      %5470 = vmatmul.mubr.f32.gmra.mrb[0].mxu0 %v5302
      %v5471 = vpop.f32.mrb[0].mxu0
      %v5472 = vadd.f32 %v5387, %v5471
      %v5473 = vpop.f32.mrb[0].mxu0
      %5474 = vmatprep.mubr.f32.mxu0 0.0
      %5475 = vmatmul.mubr.f32.gmra.mrb[0].mxu0 %v5305
      %v5476 = vpop.f32.mrb[0].mxu0
      %v5477 = vadd.f32 %v5392, %v5476
      %v5478 = vpop.f32.mrb[0].mxu0
      %5479 = vdwg.mxu0
      %v5481 = vsel %vm5294, %v5241, 0
      %v5484 = vsel %vm5294, %v5247, 0
      %v5487 = vsel %vm5294, %v5253, 0
      %v5490 = vsel %vm5294, %v5259, 0
      %5492 = vmatprep.subr.mxu0 0.0
      %5493 = vmatpush1.msra.mxu0 %v5260
      %5494 = vmatprep.subr.mxu0 0.0
      %5495 = vmatpush1.msra.mxu0 %v5261
      %5496 = vmatprep.subr.mxu0 0.0
      %5497 = vmatpush1.msra.mxu0 %v5262
      %5498 = vmatprep.subr.mxu0 0.0
      %5499 = vmatpush1.msra.mxu0 %v5263
      %5500 = vmatprep.subr.mxu0 0.0
      %5501 = vmatpush1.msra.mxu0 %v5264
      %5502 = vmatprep.subr.mxu0 0.0
      %5503 = vmatpush1.msra.mxu0 %v5265
      %5504 = vmatprep.subr.mxu0 0.0
      %5505 = vmatpush1.msra.mxu0 %v5266
      %5506 = vmatprep.subr.mxu0 0.0
      %5507 = vmatpush1.msra.mxu0 %v5267
      %5508 = vmatprep.subr.mxu0 0.0
      %5509 = vmatpush1.msra.mxu0 %v5268
      %5510 = vmatprep.subr.mxu0 0.0
      %5511 = vmatpush1.msra.mxu0 %v5269
      %5512 = vmatprep.subr.mxu0 0.0
      %5513 = vmatpush1.msra.mxu0 %v5270
      %5514 = vmatprep.subr.mxu0 0.0
      %5515 = vmatpush1.msra.mxu0 %v5271
      %5516 = vmatprep.subr.mxu0 0.0
      %5517 = vmatpush1.msra.mxu0 %v5272
      %5518 = vmatprep.subr.mxu0 0.0
      %5519 = vmatpush1.msra.mxu0 %v5273
      %5520 = vmatprep.subr.mxu0 0.0
      %5521 = vmatpush1.msra.mxu0 %v5274
      %5522 = vmatprep.subr.mxu0 0.0
      %5523 = vmatpush1.msra.mxu0 %v5275
      %5524 = vmatprep.subr.mxu0 0.0
      %5525 = vmatpush1.msra.mxu0 %v5276
      %5526 = vmatprep.subr.mxu0 0.0
      %5527 = vmatpush1.msra.mxu0 %v5277
      %5528 = vmatprep.subr.mxu0 0.0
      %5529 = vmatpush1.msra.mxu0 %v5278
      %5530 = vmatprep.subr.mxu0 0.0
      %5531 = vmatpush1.msra.mxu0 %v5279
      %5532 = vmatprep.subr.mxu0 0.0
      %5533 = vmatpush1.msra.mxu0 %v5280
      %5534 = vmatprep.subr.mxu0 0.0
      %5535 = vmatpush1.msra.mxu0 %v5281
      %5536 = vmatprep.subr.mxu0 0.0
      %5537 = vmatpush1.msra.mxu0 %v5282
      %5538 = vmatprep.subr.mxu0 0.0
      %5539 = vmatpush1.msra.mxu0 %v5283
      %5540 = vmatprep.subr.mxu0 0.0
      %5541 = vmatpush1.msra.mxu0 %v5284
      %5542 = vmatprep.subr.mxu0 0.0
      %5543 = vmatpush1.msra.mxu0 %v5285
      %5544 = vmatprep.subr.mxu0 0.0
      %5545 = vmatpush1.msra.mxu0 %v5286
      %5546 = vmatprep.subr.mxu0 0.0
      %5547 = vmatpush1.msra.mxu0 %v5287
      %5548 = vmatprep.subr.mxu0 0.0
      %5549 = vmatpush1.msra.mxu0 %v5288
      %5550 = vmatprep.subr.mxu0 0.0
      %5551 = vmatpush1.msra.mxu0 %v5289
      %5552 = vmatprep.subr.mxu0 0.0
      %5553 = vmatpush1.msra.mxu0 %v5290
      %5554 = vmatprep.subr.mxu0 0.0
      %5555 = vmatpush1.msra.mxu0 %v5291
      %5556 = vmatprep.mubr.f32.mxu0 %v5240
      %5557 = vmatmul.mubr.f32.gmra.mrb[0].mxu0 %v5239
      %v5558 = vpop.f32.mrb[0].mxu0
      %v5559 = vadd.f32 0.0, %v5558
      %v5560 = vpop.f32.mrb[0].mxu0
      %5561 = vmatprep.mubr.f32.mxu0 %v5246
      %5562 = vmatmul.mubr.f32.gmra.mrb[0].mxu0 %v5245
      %v5563 = vpop.f32.mrb[0].mxu0
      %v5564 = vadd.f32 0.0, %v5563
      %v5565 = vpop.f32.mrb[0].mxu0
      %5566 = vmatprep.mubr.f32.mxu0 %v5252
      %5567 = vmatmul.mubr.f32.gmra.mrb[0].mxu0 %v5251
      %v5568 = vpop.f32.mrb[0].mxu0
      %v5569 = vadd.f32 0.0, %v5568
      %v5570 = vpop.f32.mrb[0].mxu0
      %5571 = vmatprep.mubr.f32.mxu0 %v5258
      %5572 = vmatmul.mubr.f32.gmra.mrb[0].mxu0 %v5257
      %v5573 = vpop.f32.mrb[0].mxu0
      %v5574 = vadd.f32 0.0, %v5573
      %v5575 = vpop.f32.mrb[0].mxu0
      %5576 = vdwg.mxu0
      %5577 = vmatprep.subr.mxu0 0.0
      %5578 = vmatpush1.msra.mxu0 %v5292
      %5579 = vmatprep.subr.mxu0 0.0
      %5580 = vmatpush1.msra.mxu0 %v5308
      %5581 = vmatprep.subr.mxu0 0.0
      %5582 = vmatpush1.msra.mxu0 0.0
      %5583 = vmatprep.subr.mxu0 0.0
      %5584 = vmatpush1.msra.mxu0 0.0
      %5585 = vmatprep.subr.mxu0 0.0
      %5586 = vmatpush1.msra.mxu0 0.0
      %5587 = vmatprep.subr.mxu0 0.0
      %5588 = vmatpush1.msra.mxu0 0.0
      %5589 = vmatprep.subr.mxu0 0.0
      %5590 = vmatpush1.msra.mxu0 0.0
      %5591 = vmatprep.subr.mxu0 0.0
      %5592 = vmatpush1.msra.mxu0 0.0
      %5593 = vmatprep.subr.mxu0 0.0
      %5594 = vmatpush1.msra.mxu0 0.0
      %5595 = vmatprep.subr.mxu0 0.0
      %5596 = vmatpush1.msra.mxu0 0.0
      %5597 = vmatprep.subr.mxu0 0.0
      %5598 = vmatpush1.msra.mxu0 0.0
      %5599 = vmatprep.subr.mxu0 0.0
      %5600 = vmatpush1.msra.mxu0 0.0
      %5601 = vmatprep.subr.mxu0 0.0
      %5602 = vmatpush1.msra.mxu0 0.0
      %5603 = vmatprep.subr.mxu0 0.0
      %5604 = vmatpush1.msra.mxu0 0.0
      %5605 = vmatprep.subr.mxu0 0.0
      %5606 = vmatpush1.msra.mxu0 0.0
      %5607 = vmatprep.subr.mxu0 0.0
      %5608 = vmatpush1.msra.mxu0 0.0
      %5609 = vmatprep.subr.mxu0 0.0
      %5610 = vmatpush1.msra.mxu0 0.0
      %5611 = vmatprep.subr.mxu0 0.0
      %5612 = vmatpush1.msra.mxu0 0.0
      %5613 = vmatprep.subr.mxu0 0.0
      %5614 = vmatpush1.msra.mxu0 0.0
      %5615 = vmatprep.subr.mxu0 0.0
      %5616 = vmatpush1.msra.mxu0 0.0
      %5617 = vmatprep.subr.mxu0 0.0
      %5618 = vmatpush1.msra.mxu0 0.0
      %5619 = vmatprep.subr.mxu0 0.0
      %5620 = vmatpush1.msra.mxu0 0.0
      %5621 = vmatprep.subr.mxu0 0.0
      %5622 = vmatpush1.msra.mxu0 0.0
      %5623 = vmatprep.subr.mxu0 0.0
      %5624 = vmatpush1.msra.mxu0 0.0
      %5625 = vmatprep.subr.mxu0 0.0
      %5626 = vmatpush1.msra.mxu0 0.0
      %5627 = vmatprep.subr.mxu0 0.0
      %5628 = vmatpush1.msra.mxu0 0.0
      %5629 = vmatprep.subr.mxu0 0.0
      %5630 = vmatpush1.msra.mxu0 0.0
      %5631 = vmatprep.subr.mxu0 0.0
      %5632 = vmatpush1.msra.mxu0 0.0
      %5633 = vmatprep.subr.mxu0 0.0
      %5634 = vmatpush1.msra.mxu0 0.0
      %5635 = vmatprep.subr.mxu0 0.0
      %5636 = vmatpush1.msra.mxu0 0.0
      %5637 = vmatprep.subr.mxu0 0.0
      %5638 = vmatpush1.msra.mxu0 0.0
      %5639 = vmatprep.subr.mxu0 0.0
      %5640 = vmatpush1.msra.mxu0 0.0
      %5641 = vmatprep.mubr.f32.mxu0 0.0
      %5642 = vmatmul.mubr.f32.gmra.mrb[0].mxu0 %v5481
      %v5643 = vpop.f32.mrb[0].mxu0
      %v5644 = vadd.f32 %v5559, %v5643
      %v5645 = vpop.f32.mrb[0].mxu0
      %5646 = vmatprep.mubr.f32.mxu0 0.0
      %5647 = vmatmul.mubr.f32.gmra.mrb[0].mxu0 %v5484
      %v5648 = vpop.f32.mrb[0].mxu0
      %v5649 = vadd.f32 %v5564, %v5648
      %v5650 = vpop.f32.mrb[0].mxu0
      %5651 = vmatprep.mubr.f32.mxu0 0.0
      %5652 = vmatmul.mubr.f32.gmra.mrb[0].mxu0 %v5487
      %v5653 = vpop.f32.mrb[0].mxu0
      %v5654 = vadd.f32 %v5569, %v5653
      %v5655 = vpop.f32.mrb[0].mxu0
      %5656 = vmatprep.mubr.f32.mxu0 0.0
      %5657 = vmatmul.mubr.f32.gmra.mrb[0].mxu0 %v5490
      %v5658 = vpop.f32.mrb[0].mxu0
      %v5659 = vadd.f32 %v5574, %v5658
      %v5660 = vpop.f32.mrb[0].mxu0
      %5661 = vdwg.mxu0
      %5670 = vrot.lane.b32.xlu0 %v5462, 127
      %v5671 = vpop.permute.xlu0 %5670
      %5672 = vrot.lane.b32.xlu0 %v5644, 127
      %v5673 = vpop.permute.xlu0 %5672
      %5674 = vrot.lane.b32.xlu0 %v5467, 127
      %v5675 = vpop.permute.xlu0 %5674
      %5676 = vrot.lane.b32.xlu0 %v5649, 127
      %v5677 = vpop.permute.xlu0 %5676
      %5678 = vrot.lane.b32.xlu0 %v5472, 127
      %v5679 = vpop.permute.xlu0 %5678
      %5680 = vrot.lane.b32.xlu0 %v5654, 127
      %v5681 = vpop.permute.xlu0 %5680
      %5682 = vrot.lane.b32.xlu0 %v5477, 127
      %v5683 = vpop.permute.xlu0 %5682
      %5684 = vrot.lane.b32.xlu0 %v5659, 127
      %v5685 = vpop.permute.xlu0 %5684
      %v5686 = vsel %vm467, %v5671, %v5673
      %v5687 = vsel %vm467, %v5675, %v5677
      %v5688 = vsel %vm467, %v5679, %v5681
      %v5689 = vsel %vm467, %v5683, %v5685
      %5698 = vrot.lane.b32.xlu0 %v5462, 126
      %v5699 = vpop.permute.xlu0 %5698
      %5700 = vrot.lane.b32.xlu0 %v5644, 126
      %v5701 = vpop.permute.xlu0 %5700
      %5702 = vrot.lane.b32.xlu0 %v5467, 126
      %v5703 = vpop.permute.xlu0 %5702
      %5704 = vrot.lane.b32.xlu0 %v5649, 126
      %v5705 = vpop.permute.xlu0 %5704
      %5706 = vrot.lane.b32.xlu0 %v5472, 126
      %v5707 = vpop.permute.xlu0 %5706
      %5708 = vrot.lane.b32.xlu0 %v5654, 126
      %v5709 = vpop.permute.xlu0 %5708
      %5710 = vrot.lane.b32.xlu0 %v5477, 126
      %v5711 = vpop.permute.xlu0 %5710
      %5712 = vrot.lane.b32.xlu0 %v5659, 126
      %v5713 = vpop.permute.xlu0 %5712
      %v5714 = vsel %vm543, %v5699, %v5701
      %v5715 = vsel %vm543, %v5703, %v5705
      %v5716 = vsel %vm543, %v5707, %v5709
      %v5717 = vsel %vm543, %v5711, %v5713
      %5726 = vrot.lane.b32.xlu0 %v5462, 118
      %v5727 = vpop.permute.xlu0 %5726
      %5728 = vrot.lane.b32.xlu0 %v5644, 118
      %v5729 = vpop.permute.xlu0 %5728
      %5730 = vrot.lane.b32.xlu0 %v5467, 118
      %v5731 = vpop.permute.xlu0 %5730
      %5732 = vrot.lane.b32.xlu0 %v5649, 118
      %v5733 = vpop.permute.xlu0 %5732
      %5734 = vrot.lane.b32.xlu0 %v5472, 118
      %v5735 = vpop.permute.xlu0 %5734
      %5736 = vrot.lane.b32.xlu0 %v5654, 118
      %v5737 = vpop.permute.xlu0 %5736
      %5738 = vrot.lane.b32.xlu0 %v5477, 118
      %v5739 = vpop.permute.xlu0 %5738
      %5740 = vrot.lane.b32.xlu0 %v5659, 118
      %v5741 = vpop.permute.xlu0 %5740
      %vm5742 = vcmask 965632
      %v5743 = vsel %vm5742, %v5727, %v5729
      %v5744 = vsel %vm5742, %v5731, %v5733
      %v5745 = vsel %vm5742, %v5735, %v5737
      %v5746 = vsel %vm5742, %v5739, %v5741
      %5755 = vrot.lane.b32.xlu0 %v5462, 117
      %v5756 = vpop.permute.xlu0 %5755
      %5757 = vrot.lane.b32.xlu0 %v5644, 117
      %v5758 = vpop.permute.xlu0 %5757
      %5759 = vrot.lane.b32.xlu0 %v5467, 117
      %v5760 = vpop.permute.xlu0 %5759
      %5761 = vrot.lane.b32.xlu0 %v5649, 117
      %v5762 = vpop.permute.xlu0 %5761
      %5763 = vrot.lane.b32.xlu0 %v5472, 117
      %v5764 = vpop.permute.xlu0 %5763
      %5765 = vrot.lane.b32.xlu0 %v5654, 117
      %v5766 = vpop.permute.xlu0 %5765
      %5767 = vrot.lane.b32.xlu0 %v5477, 117
      %v5768 = vpop.permute.xlu0 %5767
      %5769 = vrot.lane.b32.xlu0 %v5659, 117
      %v5770 = vpop.permute.xlu0 %5769
      %vm5771 = vcmask 957440
      %v5772 = vsel %vm5771, %v5756, %v5758
      %v5773 = vsel %vm5771, %v5760, %v5762
      %v5774 = vsel %vm5771, %v5764, %v5766
      %v5775 = vsel %vm5771, %v5768, %v5770
      %5784 = vrot.lane.b32.xlu0 %v5462, 116
      %v5785 = vpop.permute.xlu0 %5784
      %5786 = vrot.lane.b32.xlu0 %v5644, 116
      %v5787 = vpop.permute.xlu0 %5786
      %5788 = vrot.lane.b32.xlu0 %v5467, 116
      %v5789 = vpop.permute.xlu0 %5788
      %5790 = vrot.lane.b32.xlu0 %v5649, 116
      %v5791 = vpop.permute.xlu0 %5790
      %5792 = vrot.lane.b32.xlu0 %v5472, 116
      %v5793 = vpop.permute.xlu0 %5792
      %5794 = vrot.lane.b32.xlu0 %v5654, 116
      %v5795 = vpop.permute.xlu0 %5794
      %5796 = vrot.lane.b32.xlu0 %v5477, 116
      %v5797 = vpop.permute.xlu0 %5796
      %5798 = vrot.lane.b32.xlu0 %v5659, 116
      %v5799 = vpop.permute.xlu0 %5798
      %vm5800 = vcmask 949248
      %v5801 = vsel %vm5800, %v5785, %v5787
      %v5802 = vsel %vm5800, %v5789, %v5791
      %v5803 = vsel %vm5800, %v5793, %v5795
      %v5804 = vsel %vm5800, %v5797, %v5799
      %5813 = vrot.lane.b32.xlu0 %v5462, 108
      %v5814 = vpop.permute.xlu0 %5813
      %5815 = vrot.lane.b32.xlu0 %v5644, 108
      %v5816 = vpop.permute.xlu0 %5815
      %5817 = vrot.lane.b32.xlu0 %v5467, 108
      %v5818 = vpop.permute.xlu0 %5817
      %5819 = vrot.lane.b32.xlu0 %v5649, 108
      %v5820 = vpop.permute.xlu0 %5819
      %5821 = vrot.lane.b32.xlu0 %v5472, 108
      %v5822 = vpop.permute.xlu0 %5821
      %5823 = vrot.lane.b32.xlu0 %v5654, 108
      %v5824 = vpop.permute.xlu0 %5823
      %5825 = vrot.lane.b32.xlu0 %v5477, 108
      %v5826 = vpop.permute.xlu0 %5825
      %5827 = vrot.lane.b32.xlu0 %v5659, 108
      %v5828 = vpop.permute.xlu0 %5827
      %v5829 = vsel %vm4481, %v5814, %v5816
      %v5830 = vsel %vm4481, %v5818, %v5820
      %v5831 = vsel %vm4481, %v5822, %v5824
      %v5832 = vsel %vm4481, %v5826, %v5828
      %5841 = vrot.lane.b32.xlu0 %v5462, 107
      %v5842 = vpop.permute.xlu0 %5841
      %5843 = vrot.lane.b32.xlu0 %v5644, 107
      %v5844 = vpop.permute.xlu0 %5843
      %5845 = vrot.lane.b32.xlu0 %v5467, 107
      %v5846 = vpop.permute.xlu0 %5845
      %5847 = vrot.lane.b32.xlu0 %v5649, 107
      %v5848 = vpop.permute.xlu0 %5847
      %5849 = vrot.lane.b32.xlu0 %v5472, 107
      %v5850 = vpop.permute.xlu0 %5849
      %5851 = vrot.lane.b32.xlu0 %v5654, 107
      %v5852 = vpop.permute.xlu0 %5851
      %5853 = vrot.lane.b32.xlu0 %v5477, 107
      %v5854 = vpop.permute.xlu0 %5853
      %5855 = vrot.lane.b32.xlu0 %v5659, 107
      %v5856 = vpop.permute.xlu0 %5855
      %vm5857 = vcmask 875520
      %v5858 = vsel %vm5857, %v5842, %v5844
      %v5859 = vsel %vm5857, %v5846, %v5848
      %v5860 = vsel %vm5857, %v5850, %v5852
      %v5861 = vsel %vm5857, %v5854, %v5856
      %5870 = vrot.lane.b32.xlu0 %v5462, 106
      %v5871 = vpop.permute.xlu0 %5870
      %5872 = vrot.lane.b32.xlu0 %v5644, 106
      %v5873 = vpop.permute.xlu0 %5872
      %5874 = vrot.lane.b32.xlu0 %v5467, 106
      %v5875 = vpop.permute.xlu0 %5874
      %5876 = vrot.lane.b32.xlu0 %v5649, 106
      %v5877 = vpop.permute.xlu0 %5876
      %5878 = vrot.lane.b32.xlu0 %v5472, 106
      %v5879 = vpop.permute.xlu0 %5878
      %5880 = vrot.lane.b32.xlu0 %v5654, 106
      %v5881 = vpop.permute.xlu0 %5880
      %5882 = vrot.lane.b32.xlu0 %v5477, 106
      %v5883 = vpop.permute.xlu0 %5882
      %5884 = vrot.lane.b32.xlu0 %v5659, 106
      %v5885 = vpop.permute.xlu0 %5884
      %vm5886 = vcmask 867328
      %v5887 = vsel %vm5886, %v5871, %v5873
      %v5888 = vsel %vm5886, %v5875, %v5877
      %v5889 = vsel %vm5886, %v5879, %v5881
      %v5890 = vsel %vm5886, %v5883, %v5885
      %v5899 = vld [vmem:[%s5] sm:$0xff]
      %v5900 = vld [vmem:[%s5 + $0x8] sm:$0xff]
      %v5901 = vld [vmem:[%s5 + $0x10] sm:$0xff]
      %v5902 = vld [vmem:[%s5 + $0x18] sm:$0xff]
      %v5903 = vld [vmem:[%s5 + $0x20] sm:$0xff]
      %v5904 = vld [vmem:[%s5 + $0x28] sm:$0xff]
      %v5905 = vld [vmem:[%s5 + $0x30] sm:$0xff]
      %v5906 = vld [vmem:[%s5 + $0x38] sm:$0xff]
      %v5907 = vld [vmem:[%s5 + $0x40] sm:$0xff]
      %v5908 = vld [vmem:[%s5 + $0x48] sm:$0xff]
      %v5909 = vld [vmem:[%s5 + $0x50] sm:$0xff]
      %v5910 = vld [vmem:[%s5 + $0x58] sm:$0xff]
      %v5911 = vld [vmem:[%s5 + $0x60] sm:$0xff]
      %v5912 = vld [vmem:[%s5 + $0x68] sm:$0xff]
      %v5913 = vld [vmem:[%s5 + $0x70] sm:$0xff]
      %v5914 = vld [vmem:[%s5 + $0x78] sm:$0xff]
      %v5915 = vld [vmem:[%s5 + $0x80] sm:$0xff]
      %v5916 = vld [vmem:[%s5 + $0x88] sm:$0xff]
      %v5917 = vld [vmem:[%s5 + $0x90] sm:$0xff]
      %v5918 = vld [vmem:[%s5 + $0x98] sm:$0xff]
      %v5919 = vld [vmem:[%s5 + $0xa0] sm:$0xff]
      %v5920 = vld [vmem:[%s5 + $0xa8] sm:$0xff]
      %v5921 = vld [vmem:[%s5 + $0xb0] sm:$0xff]
      %v5922 = vld [vmem:[%s5 + $0xb8] sm:$0xff]
      %v5923 = vld [vmem:[%s6] sm:$0xff]
      %v5924 = vld [vmem:[%s6 + $0x8] sm:$0xff]
      %v5925 = vld [vmem:[%s6 + $0x10] sm:$0xff]
      %v5926 = vld [vmem:[%s6 + $0x18] sm:$0xff]
      %v5927 = vld [vmem:[%s6 + $0x20] sm:$0xff]
      %v5928 = vld [vmem:[%s6 + $0x28] sm:$0xff]
      %v5929 = vld [vmem:[%s6 + $0x30] sm:$0xff]
      %v5930 = vld [vmem:[%s6 + $0x38] sm:$0xff]
      %5932 = vset.pattern.permute.xlu0 0
      %5933 = vperm.xlu0 %5932, %v5923
      %v5934 = vpop.permute.xlu0 %5933
      %5937 = vset.pattern.permute.xlu0 0
      %5938 = vperm.xlu0 %5937, %v5924
      %v5939 = vpop.permute.xlu0 %5938
      %5942 = vset.pattern.permute.xlu0 0
      %5943 = vperm.xlu0 %5942, %v5925
      %v5944 = vpop.permute.xlu0 %5943
      %5947 = vset.pattern.permute.xlu0 0
      %5948 = vperm.xlu0 %5947, %v5926
      %v5949 = vpop.permute.xlu0 %5948
      %5952 = vset.pattern.permute.xlu0 0
      %5953 = vperm.xlu0 %5952, %v5927
      %v5954 = vpop.permute.xlu0 %5953
      %5957 = vset.pattern.permute.xlu0 0
      %5958 = vperm.xlu0 %5957, %v5928
      %v5959 = vpop.permute.xlu0 %5958
      %5962 = vset.pattern.permute.xlu0 0
      %5963 = vperm.xlu0 %5962, %v5929
      %v5964 = vpop.permute.xlu0 %5963
      %5967 = vset.pattern.permute.xlu0 0
      %5968 = vperm.xlu0 %5967, %v5930
      %v5969 = vpop.permute.xlu0 %5968
      %vm5971 = vcmask 261120
      %v5973 = vsel %vm5971, %v5901, 0
      %v5976 = vsel %vm5971, %v5904, 0
      %v5979 = vsel %vm5971, %v5907, 0
      %v5982 = vsel %vm5971, %v5910, 0
      %v5985 = vsel %vm5971, %v5913, 0
      %v5988 = vsel %vm5971, %v5916, 0
      %v5991 = vsel %vm5971, %v5919, 0
      %v5994 = vsel %vm5971, %v5922, 0
      %5996 = vmatprep.subr.mxu0 %v5644
      %5997 = vmatpush1.msra.mxu0 %v5462
      %5998 = vmatprep.subr.mxu0 %v5649
      %5999 = vmatpush1.msra.mxu0 %v5467
      %6000 = vmatprep.subr.mxu0 %v5654
      %6001 = vmatpush1.msra.mxu0 %v5472
      %6002 = vmatprep.subr.mxu0 %v5659
      %6003 = vmatpush1.msra.mxu0 %v5477
      %6004 = vmatprep.subr.mxu0 %v5673
      %6005 = vmatpush1.msra.mxu0 %v5686
      %6006 = vmatprep.subr.mxu0 %v5677
      %6007 = vmatpush1.msra.mxu0 %v5687
      %6008 = vmatprep.subr.mxu0 %v5681
      %6009 = vmatpush1.msra.mxu0 %v5688
      %6010 = vmatprep.subr.mxu0 %v5685
      %6011 = vmatpush1.msra.mxu0 %v5689
      %6012 = vmatprep.subr.mxu0 %v5701
      %6013 = vmatpush1.msra.mxu0 %v5714
      %6014 = vmatprep.subr.mxu0 %v5705
      %6015 = vmatpush1.msra.mxu0 %v5715
      %6016 = vmatprep.subr.mxu0 %v5709
      %6017 = vmatpush1.msra.mxu0 %v5716
      %6018 = vmatprep.subr.mxu0 %v5713
      %6019 = vmatpush1.msra.mxu0 %v5717
      %6020 = vmatprep.subr.mxu0 %v5729
      %6021 = vmatpush1.msra.mxu0 %v5743
      %6022 = vmatprep.subr.mxu0 %v5733
      %6023 = vmatpush1.msra.mxu0 %v5744
      %6024 = vmatprep.subr.mxu0 %v5737
      %6025 = vmatpush1.msra.mxu0 %v5745
      %6026 = vmatprep.subr.mxu0 %v5741
      %6027 = vmatpush1.msra.mxu0 %v5746
      %6028 = vmatprep.subr.mxu0 %v5758
      %6029 = vmatpush1.msra.mxu0 %v5772
      %6030 = vmatprep.subr.mxu0 %v5762
      %6031 = vmatpush1.msra.mxu0 %v5773
      %6032 = vmatprep.subr.mxu0 %v5766
      %6033 = vmatpush1.msra.mxu0 %v5774
      %6034 = vmatprep.subr.mxu0 %v5770
      %6035 = vmatpush1.msra.mxu0 %v5775
      %6036 = vmatprep.subr.mxu0 %v5787
      %6037 = vmatpush1.msra.mxu0 %v5801
      %6038 = vmatprep.subr.mxu0 %v5791
      %6039 = vmatpush1.msra.mxu0 %v5802
      %6040 = vmatprep.subr.mxu0 %v5795
      %6041 = vmatpush1.msra.mxu0 %v5803
      %6042 = vmatprep.subr.mxu0 %v5799
      %6043 = vmatpush1.msra.mxu0 %v5804
      %6044 = vmatprep.subr.mxu0 %v5816
      %6045 = vmatpush1.msra.mxu0 %v5829
      %6046 = vmatprep.subr.mxu0 %v5820
      %6047 = vmatpush1.msra.mxu0 %v5830
      %6048 = vmatprep.subr.mxu0 %v5824
      %6049 = vmatpush1.msra.mxu0 %v5831
      %6050 = vmatprep.subr.mxu0 %v5828
      %6051 = vmatpush1.msra.mxu0 %v5832
      %6052 = vmatprep.subr.mxu0 %v5844
      %6053 = vmatpush1.msra.mxu0 %v5858
      %6054 = vmatprep.subr.mxu0 %v5848
      %6055 = vmatpush1.msra.mxu0 %v5859
      %6056 = vmatprep.subr.mxu0 %v5852
      %6057 = vmatpush1.msra.mxu0 %v5860
      %6058 = vmatprep.subr.mxu0 %v5856
      %6059 = vmatpush1.msra.mxu0 %v5861
      %6060 = vmatprep.mubr.f32.mxu0 %v5900
      %6061 = vmatmul.mubr.f32.gmra.mrb[0].mxu0 %v5899
      %v6062 = vpop.f32.mrb[0].mxu0
      %v6063 = vadd.f32 %v5934, %v6062
      %v6064 = vpop.f32.mrb[0].mxu0
      %v6065 = vadd.f32 %v5934, %v6064
      %6066 = vmatprep.mubr.f32.mxu0 %v5903
      %6067 = vmatmul.mubr.f32.gmra.mrb[0].mxu0 %v5902
      %v6068 = vpop.f32.mrb[0].mxu0
      %v6069 = vadd.f32 %v5939, %v6068
      %v6070 = vpop.f32.mrb[0].mxu0
      %v6071 = vadd.f32 %v5939, %v6070
      %6072 = vmatprep.mubr.f32.mxu0 %v5906
      %6073 = vmatmul.mubr.f32.gmra.mrb[0].mxu0 %v5905
      %v6074 = vpop.f32.mrb[0].mxu0
      %v6075 = vadd.f32 %v5944, %v6074
      %v6076 = vpop.f32.mrb[0].mxu0
      %v6077 = vadd.f32 %v5944, %v6076
      %6078 = vmatprep.mubr.f32.mxu0 %v5909
      %6079 = vmatmul.mubr.f32.gmra.mrb[0].mxu0 %v5908
      %v6080 = vpop.f32.mrb[0].mxu0
      %v6081 = vadd.f32 %v5949, %v6080
      %v6082 = vpop.f32.mrb[0].mxu0
      %v6083 = vadd.f32 %v5949, %v6082
      %6084 = vmatprep.mubr.f32.mxu0 %v5912
      %6085 = vmatmul.mubr.f32.gmra.mrb[0].mxu0 %v5911
      %v6086 = vpop.f32.mrb[0].mxu0
      %v6087 = vadd.f32 %v5954, %v6086
      %v6088 = vpop.f32.mrb[0].mxu0
      %v6089 = vadd.f32 %v5954, %v6088
      %6090 = vmatprep.mubr.f32.mxu0 %v5915
      %6091 = vmatmul.mubr.f32.gmra.mrb[0].mxu0 %v5914
      %v6092 = vpop.f32.mrb[0].mxu0
      %v6093 = vadd.f32 %v5959, %v6092
      %v6094 = vpop.f32.mrb[0].mxu0
      %v6095 = vadd.f32 %v5959, %v6094
      %6096 = vmatprep.mubr.f32.mxu0 %v5918
      %6097 = vmatmul.mubr.f32.gmra.mrb[0].mxu0 %v5917
      %v6098 = vpop.f32.mrb[0].mxu0
      %v6099 = vadd.f32 %v5964, %v6098
      %v6100 = vpop.f32.mrb[0].mxu0
      %v6101 = vadd.f32 %v5964, %v6100
      %6102 = vmatprep.mubr.f32.mxu0 %v5921
      %6103 = vmatmul.mubr.f32.gmra.mrb[0].mxu0 %v5920
      %v6104 = vpop.f32.mrb[0].mxu0
      %v6105 = vadd.f32 %v5969, %v6104
      %v6106 = vpop.f32.mrb[0].mxu0
      %v6107 = vadd.f32 %v5969, %v6106
      %6108 = vdwg.mxu0
      %6109 = vmatprep.subr.mxu0 %v5873
      %6110 = vmatpush1.msra.mxu0 %v5887
      %6111 = vmatprep.subr.mxu0 %v5877
      %6112 = vmatpush1.msra.mxu0 %v5888
      %6113 = vmatprep.subr.mxu0 %v5881
      %6114 = vmatpush1.msra.mxu0 %v5889
      %6115 = vmatprep.subr.mxu0 %v5885
      %6116 = vmatpush1.msra.mxu0 %v5890
      %6117 = vmatprep.subr.mxu0 0.0
      %6118 = vmatpush1.msra.mxu0 0.0
      %6119 = vmatprep.subr.mxu0 0.0
      %6120 = vmatpush1.msra.mxu0 0.0
      %6121 = vmatprep.subr.mxu0 0.0
      %6122 = vmatpush1.msra.mxu0 0.0
      %6123 = vmatprep.subr.mxu0 0.0
      %6124 = vmatpush1.msra.mxu0 0.0
      %6125 = vmatprep.subr.mxu0 0.0
      %6126 = vmatpush1.msra.mxu0 0.0
      %6127 = vmatprep.subr.mxu0 0.0
      %6128 = vmatpush1.msra.mxu0 0.0
      %6129 = vmatprep.subr.mxu0 0.0
      %6130 = vmatpush1.msra.mxu0 0.0
      %6131 = vmatprep.subr.mxu0 0.0
      %6132 = vmatpush1.msra.mxu0 0.0
      %6133 = vmatprep.subr.mxu0 0.0
      %6134 = vmatpush1.msra.mxu0 0.0
      %6135 = vmatprep.subr.mxu0 0.0
      %6136 = vmatpush1.msra.mxu0 0.0
      %6137 = vmatprep.subr.mxu0 0.0
      %6138 = vmatpush1.msra.mxu0 0.0
      %6139 = vmatprep.subr.mxu0 0.0
      %6140 = vmatpush1.msra.mxu0 0.0
      %6141 = vmatprep.subr.mxu0 0.0
      %6142 = vmatpush1.msra.mxu0 0.0
      %6143 = vmatprep.subr.mxu0 0.0
      %6144 = vmatpush1.msra.mxu0 0.0
      %6145 = vmatprep.subr.mxu0 0.0
      %6146 = vmatpush1.msra.mxu0 0.0
      %6147 = vmatprep.subr.mxu0 0.0
      %6148 = vmatpush1.msra.mxu0 0.0
      %6149 = vmatprep.subr.mxu0 0.0
      %6150 = vmatpush1.msra.mxu0 0.0
      %6151 = vmatprep.subr.mxu0 0.0
      %6152 = vmatpush1.msra.mxu0 0.0
      %6153 = vmatprep.subr.mxu0 0.0
      %6154 = vmatpush1.msra.mxu0 0.0
      %6155 = vmatprep.subr.mxu0 0.0
      %6156 = vmatpush1.msra.mxu0 0.0
      %6157 = vmatprep.subr.mxu0 0.0
      %6158 = vmatpush1.msra.mxu0 0.0
      %6159 = vmatprep.subr.mxu0 0.0
      %6160 = vmatpush1.msra.mxu0 0.0
      %6161 = vmatprep.subr.mxu0 0.0
      %6162 = vmatpush1.msra.mxu0 0.0
      %6163 = vmatprep.subr.mxu0 0.0
      %6164 = vmatpush1.msra.mxu0 0.0
      %6165 = vmatprep.subr.mxu0 0.0
      %6166 = vmatpush1.msra.mxu0 0.0
      %6167 = vmatprep.subr.mxu0 0.0
      %6168 = vmatpush1.msra.mxu0 0.0
      %6169 = vmatprep.subr.mxu0 0.0
      %6170 = vmatpush1.msra.mxu0 0.0
      %6171 = vmatprep.subr.mxu0 0.0
      %6172 = vmatpush1.msra.mxu0 0.0
      %6173 = vmatprep.mubr.f32.mxu0 0.0
      %6174 = vmatmul.mubr.f32.gmra.mrb[0].mxu0 %v5973
      %v6175 = vpop.f32.mrb[0].mxu0
      %v6176 = vadd.f32 %v6063, %v6175
      %v6177 = vpop.f32.mrb[0].mxu0
      %v6178 = vadd.f32 %v6065, %v6177
      %6179 = vmatprep.mubr.f32.mxu0 0.0
      %6180 = vmatmul.mubr.f32.gmra.mrb[0].mxu0 %v5976
      %v6181 = vpop.f32.mrb[0].mxu0
      %v6182 = vadd.f32 %v6069, %v6181
      %v6183 = vpop.f32.mrb[0].mxu0
      %v6184 = vadd.f32 %v6071, %v6183
      %6185 = vmatprep.mubr.f32.mxu0 0.0
      %6186 = vmatmul.mubr.f32.gmra.mrb[0].mxu0 %v5979
      %v6187 = vpop.f32.mrb[0].mxu0
      %v6188 = vadd.f32 %v6075, %v6187
      %v6189 = vpop.f32.mrb[0].mxu0
      %v6190 = vadd.f32 %v6077, %v6189
      %6191 = vmatprep.mubr.f32.mxu0 0.0
      %6192 = vmatmul.mubr.f32.gmra.mrb[0].mxu0 %v5982
      %v6193 = vpop.f32.mrb[0].mxu0
      %v6194 = vadd.f32 %v6081, %v6193
      %v6195 = vpop.f32.mrb[0].mxu0
      %v6196 = vadd.f32 %v6083, %v6195
      %6197 = vmatprep.mubr.f32.mxu0 0.0
      %6198 = vmatmul.mubr.f32.gmra.mrb[0].mxu0 %v5985
      %v6199 = vpop.f32.mrb[0].mxu0
      %v6200 = vadd.f32 %v6087, %v6199
      %v6201 = vpop.f32.mrb[0].mxu0
      %v6202 = vadd.f32 %v6089, %v6201
      %6203 = vmatprep.mubr.f32.mxu0 0.0
      %6204 = vmatmul.mubr.f32.gmra.mrb[0].mxu0 %v5988
      %v6205 = vpop.f32.mrb[0].mxu0
      %v6206 = vadd.f32 %v6093, %v6205
      %v6207 = vpop.f32.mrb[0].mxu0
      %v6208 = vadd.f32 %v6095, %v6207
      %6209 = vmatprep.mubr.f32.mxu0 0.0
      %6210 = vmatmul.mubr.f32.gmra.mrb[0].mxu0 %v5991
      %v6211 = vpop.f32.mrb[0].mxu0
      %v6212 = vadd.f32 %v6099, %v6211
      %v6213 = vpop.f32.mrb[0].mxu0
      %v6214 = vadd.f32 %v6101, %v6213
      %6215 = vmatprep.mubr.f32.mxu0 0.0
      %6216 = vmatmul.mubr.f32.gmra.mrb[0].mxu0 %v5994
      %v6217 = vpop.f32.mrb[0].mxu0
      %v6218 = vadd.f32 %v6105, %v6217
      %v6219 = vpop.f32.mrb[0].mxu0
      %v6220 = vadd.f32 %v6107, %v6219
      %6221 = vdwg.mxu0
      %v6222 = vmax.f32 %v6176, 0.0
      %v6223 = vmax.f32 %v6178, 0.0
      %v6224 = vmax.f32 %v6182, 0.0
      %v6225 = vmax.f32 %v6184, 0.0
      %v6226 = vmax.f32 %v6188, 0.0
      %v6227 = vmax.f32 %v6190, 0.0
      %v6228 = vmax.f32 %v6194, 0.0
      %v6229 = vmax.f32 %v6196, 0.0
      %v6230 = vmax.f32 %v6200, 0.0
      %v6231 = vmax.f32 %v6202, 0.0
      %v6232 = vmax.f32 %v6206, 0.0
      %v6233 = vmax.f32 %v6208, 0.0
      %v6234 = vmax.f32 %v6212, 0.0
      %v6235 = vmax.f32 %v6214, 0.0
      %v6236 = vmax.f32 %v6218, 0.0
      %v6237 = vmax.f32 %v6220, 0.0
      %6254 = vrot.lane.b32.xlu0 %v6222, 127
      %v6255 = vpop.permute.xlu0 %6254
      %6256 = vrot.lane.b32.xlu0 %v6223, 127
      %v6257 = vpop.permute.xlu0 %6256
      %6258 = vrot.lane.b32.xlu0 %v6224, 127
      %v6259 = vpop.permute.xlu0 %6258
      %6260 = vrot.lane.b32.xlu0 %v6225, 127
      %v6261 = vpop.permute.xlu0 %6260
      %6262 = vrot.lane.b32.xlu0 %v6226, 127
      %v6263 = vpop.permute.xlu0 %6262
      %6264 = vrot.lane.b32.xlu0 %v6227, 127
      %v6265 = vpop.permute.xlu0 %6264
      %6266 = vrot.lane.b32.xlu0 %v6228, 127
      %v6267 = vpop.permute.xlu0 %6266
      %6268 = vrot.lane.b32.xlu0 %v6229, 127
      %v6269 = vpop.permute.xlu0 %6268
      %6270 = vrot.lane.b32.xlu0 %v6230, 127
      %v6271 = vpop.permute.xlu0 %6270
      %6272 = vrot.lane.b32.xlu0 %v6231, 127
      %v6273 = vpop.permute.xlu0 %6272
      %6274 = vrot.lane.b32.xlu0 %v6232, 127
      %v6275 = vpop.permute.xlu0 %6274
      %6276 = vrot.lane.b32.xlu0 %v6233, 127
      %v6277 = vpop.permute.xlu0 %6276
      %6278 = vrot.lane.b32.xlu0 %v6234, 127
      %v6279 = vpop.permute.xlu0 %6278
      %6280 = vrot.lane.b32.xlu0 %v6235, 127
      %v6281 = vpop.permute.xlu0 %6280
      %6282 = vrot.lane.b32.xlu0 %v6236, 127
      %v6283 = vpop.permute.xlu0 %6282
      %6284 = vrot.lane.b32.xlu0 %v6237, 127
      %v6285 = vpop.permute.xlu0 %6284
      %v6286 = vsel %vm467, %v6255, %v6257
      %v6287 = vsel %vm467, %v6259, %v6261
      %v6288 = vsel %vm467, %v6263, %v6265
      %v6289 = vsel %vm467, %v6267, %v6269
      %v6290 = vsel %vm467, %v6271, %v6273
      %v6291 = vsel %vm467, %v6275, %v6277
      %v6292 = vsel %vm467, %v6279, %v6281
      %v6293 = vsel %vm467, %v6283, %v6285
      %v6310 = vmax.f32 %v6222, %v6286
      %v6311 = vmax.f32 %v6223, %v6257
      %v6312 = vmax.f32 %v6224, %v6287
      %v6313 = vmax.f32 %v6225, %v6261
      %v6314 = vmax.f32 %v6226, %v6288
      %v6315 = vmax.f32 %v6227, %v6265
      %v6316 = vmax.f32 %v6228, %v6289
      %v6317 = vmax.f32 %v6229, %v6269
      %v6318 = vmax.f32 %v6230, %v6290
      %v6319 = vmax.f32 %v6231, %v6273
      %v6320 = vmax.f32 %v6232, %v6291
      %v6321 = vmax.f32 %v6233, %v6277
      %v6322 = vmax.f32 %v6234, %v6292
      %v6323 = vmax.f32 %v6235, %v6281
      %v6324 = vmax.f32 %v6236, %v6293
      %v6325 = vmax.f32 %v6237, %v6285
      %6342 = vrot.lane.b32.xlu0 %v6310, 118
      %v6343 = vpop.permute.xlu0 %6342
      %6344 = vrot.lane.b32.xlu0 %v6311, 118
      %v6345 = vpop.permute.xlu0 %6344
      %6346 = vrot.lane.b32.xlu0 %v6312, 118
      %v6347 = vpop.permute.xlu0 %6346
      %6348 = vrot.lane.b32.xlu0 %v6313, 118
      %v6349 = vpop.permute.xlu0 %6348
      %6350 = vrot.lane.b32.xlu0 %v6314, 118
      %v6351 = vpop.permute.xlu0 %6350
      %6352 = vrot.lane.b32.xlu0 %v6315, 118
      %v6353 = vpop.permute.xlu0 %6352
      %6354 = vrot.lane.b32.xlu0 %v6316, 118
      %v6355 = vpop.permute.xlu0 %6354
      %6356 = vrot.lane.b32.xlu0 %v6317, 118
      %v6357 = vpop.permute.xlu0 %6356
      %6358 = vrot.lane.b32.xlu0 %v6318, 118
      %v6359 = vpop.permute.xlu0 %6358
      %6360 = vrot.lane.b32.xlu0 %v6319, 118
      %v6361 = vpop.permute.xlu0 %6360
      %6362 = vrot.lane.b32.xlu0 %v6320, 118
      %v6363 = vpop.permute.xlu0 %6362
      %6364 = vrot.lane.b32.xlu0 %v6321, 118
      %v6365 = vpop.permute.xlu0 %6364
      %6366 = vrot.lane.b32.xlu0 %v6322, 118
      %v6367 = vpop.permute.xlu0 %6366
      %6368 = vrot.lane.b32.xlu0 %v6323, 118
      %v6369 = vpop.permute.xlu0 %6368
      %6370 = vrot.lane.b32.xlu0 %v6324, 118
      %v6371 = vpop.permute.xlu0 %6370
      %6372 = vrot.lane.b32.xlu0 %v6325, 118
      %v6373 = vpop.permute.xlu0 %6372
      %v6374 = vsel %vm5742, %v6343, %v6345
      %v6375 = vsel %vm5742, %v6347, %v6349
      %v6376 = vsel %vm5742, %v6351, %v6353
      %v6377 = vsel %vm5742, %v6355, %v6357
      %v6378 = vsel %vm5742, %v6359, %v6361
      %v6379 = vsel %vm5742, %v6363, %v6365
      %v6380 = vsel %vm5742, %v6367, %v6369
      %v6381 = vsel %vm5742, %v6371, %v6373
      %v6398 = vmax.f32 %v6310, %v6374
      %v6399 = vmax.f32 %v6311, %v6345
      %v6400 = vmax.f32 %v6312, %v6375
      %v6401 = vmax.f32 %v6313, %v6349
      %v6402 = vmax.f32 %v6314, %v6376
      %v6403 = vmax.f32 %v6315, %v6353
      %v6404 = vmax.f32 %v6316, %v6377
      %v6405 = vmax.f32 %v6317, %v6357
      %v6406 = vmax.f32 %v6318, %v6378
      %v6407 = vmax.f32 %v6319, %v6361
      %v6408 = vmax.f32 %v6320, %v6379
      %v6409 = vmax.f32 %v6321, %v6365
      %v6410 = vmax.f32 %v6322, %v6380
      %v6411 = vmax.f32 %v6323, %v6369
      %v6412 = vmax.f32 %v6324, %v6381
      %v6413 = vmax.f32 %v6325, %v6373
      %6422 = vrot.lane.b32.xlu0 %v6398, 126
      %v6423 = vpop.permute.xlu0 %6422
      %6424 = vrot.lane.b32.xlu0 %v6400, 126
      %v6425 = vpop.permute.xlu0 %6424
      %6426 = vrot.lane.b32.xlu0 %v6402, 126
      %v6427 = vpop.permute.xlu0 %6426
      %6428 = vrot.lane.b32.xlu0 %v6404, 126
      %v6429 = vpop.permute.xlu0 %6428
      %6430 = vrot.lane.b32.xlu0 %v6406, 126
      %v6431 = vpop.permute.xlu0 %6430
      %6432 = vrot.lane.b32.xlu0 %v6408, 126
      %v6433 = vpop.permute.xlu0 %6432
      %6434 = vrot.lane.b32.xlu0 %v6410, 126
      %v6435 = vpop.permute.xlu0 %6434
      %6436 = vrot.lane.b32.xlu0 %v6412, 126
      %v6437 = vpop.permute.xlu0 %6436
      %6446 = vrot.lane.b32.xlu0 %v6398, 124
      %v6447 = vpop.permute.xlu0 %6446
      %6448 = vrot.lane.b32.xlu0 %v6400, 124
      %v6449 = vpop.permute.xlu0 %6448
      %6450 = vrot.lane.b32.xlu0 %v6402, 124
      %v6451 = vpop.permute.xlu0 %6450
      %6452 = vrot.lane.b32.xlu0 %v6404, 124
      %v6453 = vpop.permute.xlu0 %6452
      %6454 = vrot.lane.b32.xlu0 %v6406, 124
      %v6455 = vpop.permute.xlu0 %6454
      %6456 = vrot.lane.b32.xlu0 %v6408, 124
      %v6457 = vpop.permute.xlu0 %6456
      %6458 = vrot.lane.b32.xlu0 %v6410, 124
      %v6459 = vpop.permute.xlu0 %6458
      %6460 = vrot.lane.b32.xlu0 %v6412, 124
      %v6461 = vpop.permute.xlu0 %6460
      %6470 = vrot.lane.b32.xlu0 %v6398, 122
      %v6471 = vpop.permute.xlu0 %6470
      %6472 = vrot.lane.b32.xlu0 %v6400, 122
      %v6473 = vpop.permute.xlu0 %6472
      %6474 = vrot.lane.b32.xlu0 %v6402, 122
      %v6475 = vpop.permute.xlu0 %6474
      %6476 = vrot.lane.b32.xlu0 %v6404, 122
      %v6477 = vpop.permute.xlu0 %6476
      %6478 = vrot.lane.b32.xlu0 %v6406, 122
      %v6479 = vpop.permute.xlu0 %6478
      %6480 = vrot.lane.b32.xlu0 %v6408, 122
      %v6481 = vpop.permute.xlu0 %6480
      %6482 = vrot.lane.b32.xlu0 %v6410, 122
      %v6483 = vpop.permute.xlu0 %6482
      %6484 = vrot.lane.b32.xlu0 %v6412, 122
      %v6485 = vpop.permute.xlu0 %6484
      %6494 = vrot.lane.b32.xlu0 %v6398, 108
      %v6495 = vpop.permute.xlu0 %6494
      %6496 = vrot.lane.b32.xlu0 %v6400, 108
      %v6497 = vpop.permute.xlu0 %6496
      %6498 = vrot.lane.b32.xlu0 %v6402, 108
      %v6499 = vpop.permute.xlu0 %6498
      %6500 = vrot.lane.b32.xlu0 %v6404, 108
      %v6501 = vpop.permute.xlu0 %6500
      %6502 = vrot.lane.b32.xlu0 %v6406, 108
      %v6503 = vpop.permute.xlu0 %6502
      %6504 = vrot.lane.b32.xlu0 %v6408, 108
      %v6505 = vpop.permute.xlu0 %6504
      %6506 = vrot.lane.b32.xlu0 %v6410, 108
      %v6507 = vpop.permute.xlu0 %6506
      %6508 = vrot.lane.b32.xlu0 %v6412, 108
      %v6509 = vpop.permute.xlu0 %6508
      %6518 = vrot.lane.b32.xlu0 %v6398, 106
      %v6519 = vpop.permute.xlu0 %6518
      %6520 = vrot.lane.b32.xlu0 %v6400, 106
      %v6521 = vpop.permute.xlu0 %6520
      %6522 = vrot.lane.b32.xlu0 %v6402, 106
      %v6523 = vpop.permute.xlu0 %6522
      %6524 = vrot.lane.b32.xlu0 %v6404, 106
      %v6525 = vpop.permute.xlu0 %6524
      %6526 = vrot.lane.b32.xlu0 %v6406, 106
      %v6527 = vpop.permute.xlu0 %6526
      %6528 = vrot.lane.b32.xlu0 %v6408, 106
      %v6529 = vpop.permute.xlu0 %6528
      %6530 = vrot.lane.b32.xlu0 %v6410, 106
      %v6531 = vpop.permute.xlu0 %6530
      %6532 = vrot.lane.b32.xlu0 %v6412, 106
      %v6533 = vpop.permute.xlu0 %6532
      %6542 = vrot.lane.b32.xlu0 %v6398, 104
      %v6543 = vpop.permute.xlu0 %6542
      %6544 = vrot.lane.b32.xlu0 %v6400, 104
      %v6545 = vpop.permute.xlu0 %6544
      %6546 = vrot.lane.b32.xlu0 %v6402, 104
      %v6547 = vpop.permute.xlu0 %6546
      %6548 = vrot.lane.b32.xlu0 %v6404, 104
      %v6549 = vpop.permute.xlu0 %6548
      %6550 = vrot.lane.b32.xlu0 %v6406, 104
      %v6551 = vpop.permute.xlu0 %6550
      %6552 = vrot.lane.b32.xlu0 %v6408, 104
      %v6553 = vpop.permute.xlu0 %6552
      %6554 = vrot.lane.b32.xlu0 %v6410, 104
      %v6555 = vpop.permute.xlu0 %6554
      %6556 = vrot.lane.b32.xlu0 %v6412, 104
      %v6557 = vpop.permute.xlu0 %6556
      %6566 = vrot.lane.b32.xlu0 %v6398, 102
      %v6567 = vpop.permute.xlu0 %6566
      %6568 = vrot.lane.b32.xlu0 %v6400, 102
      %v6569 = vpop.permute.xlu0 %6568
      %6570 = vrot.lane.b32.xlu0 %v6402, 102
      %v6571 = vpop.permute.xlu0 %6570
      %6572 = vrot.lane.b32.xlu0 %v6404, 102
      %v6573 = vpop.permute.xlu0 %6572
      %6574 = vrot.lane.b32.xlu0 %v6406, 102
      %v6575 = vpop.permute.xlu0 %6574
      %6576 = vrot.lane.b32.xlu0 %v6408, 102
      %v6577 = vpop.permute.xlu0 %6576
      %6578 = vrot.lane.b32.xlu0 %v6410, 102
      %v6579 = vpop.permute.xlu0 %6578
      %6580 = vrot.lane.b32.xlu0 %v6412, 102
      %v6581 = vpop.permute.xlu0 %6580
      %6590 = vrot.lane.b32.xlu0 %v6398, 88
      %v6591 = vpop.permute.xlu0 %6590
      %6592 = vrot.lane.b32.xlu0 %v6400, 88
      %v6593 = vpop.permute.xlu0 %6592
      %6594 = vrot.lane.b32.xlu0 %v6402, 88
      %v6595 = vpop.permute.xlu0 %6594
      %6596 = vrot.lane.b32.xlu0 %v6404, 88
      %v6597 = vpop.permute.xlu0 %6596
      %6598 = vrot.lane.b32.xlu0 %v6406, 88
      %v6599 = vpop.permute.xlu0 %6598
      %6600 = vrot.lane.b32.xlu0 %v6408, 88
      %v6601 = vpop.permute.xlu0 %6600
      %6602 = vrot.lane.b32.xlu0 %v6410, 88
      %v6603 = vpop.permute.xlu0 %6602
      %6604 = vrot.lane.b32.xlu0 %v6412, 88
      %v6605 = vpop.permute.xlu0 %6604
      %6614 = vrot.lane.b32.xlu0 %v6398, 86
      %v6615 = vpop.permute.xlu0 %6614
      %6616 = vrot.lane.b32.xlu0 %v6400, 86
      %v6617 = vpop.permute.xlu0 %6616
      %6618 = vrot.lane.b32.xlu0 %v6402, 86
      %v6619 = vpop.permute.xlu0 %6618
      %6620 = vrot.lane.b32.xlu0 %v6404, 86
      %v6621 = vpop.permute.xlu0 %6620
      %6622 = vrot.lane.b32.xlu0 %v6406, 86
      %v6623 = vpop.permute.xlu0 %6622
      %6624 = vrot.lane.b32.xlu0 %v6408, 86
      %v6625 = vpop.permute.xlu0 %6624
      %6626 = vrot.lane.b32.xlu0 %v6410, 86
      %v6627 = vpop.permute.xlu0 %6626
      %6628 = vrot.lane.b32.xlu0 %v6412, 86
      %v6629 = vpop.permute.xlu0 %6628
      %6638 = vrot.lane.b32.xlu0 %v6398, 84
      %v6639 = vpop.permute.xlu0 %6638
      %6640 = vrot.lane.b32.xlu0 %v6400, 84
      %v6641 = vpop.permute.xlu0 %6640
      %6642 = vrot.lane.b32.xlu0 %v6402, 84
      %v6643 = vpop.permute.xlu0 %6642
      %6644 = vrot.lane.b32.xlu0 %v6404, 84
      %v6645 = vpop.permute.xlu0 %6644
      %6646 = vrot.lane.b32.xlu0 %v6406, 84
      %v6647 = vpop.permute.xlu0 %6646
      %6648 = vrot.lane.b32.xlu0 %v6408, 84
      %v6649 = vpop.permute.xlu0 %6648
      %6650 = vrot.lane.b32.xlu0 %v6410, 84
      %v6651 = vpop.permute.xlu0 %6650
      %6652 = vrot.lane.b32.xlu0 %v6412, 84
      %v6653 = vpop.permute.xlu0 %6652
      %6662 = vrot.lane.b32.xlu0 %v6398, 82
      %v6663 = vpop.permute.xlu0 %6662
      %6664 = vrot.lane.b32.xlu0 %v6400, 82
      %v6665 = vpop.permute.xlu0 %6664
      %6666 = vrot.lane.b32.xlu0 %v6402, 82
      %v6667 = vpop.permute.xlu0 %6666
      %6668 = vrot.lane.b32.xlu0 %v6404, 82
      %v6669 = vpop.permute.xlu0 %6668
      %6670 = vrot.lane.b32.xlu0 %v6406, 82
      %v6671 = vpop.permute.xlu0 %6670
      %6672 = vrot.lane.b32.xlu0 %v6408, 82
      %v6673 = vpop.permute.xlu0 %6672
      %6674 = vrot.lane.b32.xlu0 %v6410, 82
      %v6675 = vpop.permute.xlu0 %6674
      %6676 = vrot.lane.b32.xlu0 %v6412, 82
      %v6677 = vpop.permute.xlu0 %6676
      %6686 = vrot.lane.b32.xlu0 %v6398, 68
      %v6687 = vpop.permute.xlu0 %6686
      %6688 = vrot.lane.b32.xlu0 %v6400, 68
      %v6689 = vpop.permute.xlu0 %6688
      %6690 = vrot.lane.b32.xlu0 %v6402, 68
      %v6691 = vpop.permute.xlu0 %6690
      %6692 = vrot.lane.b32.xlu0 %v6404, 68
      %v6693 = vpop.permute.xlu0 %6692
      %6694 = vrot.lane.b32.xlu0 %v6406, 68
      %v6695 = vpop.permute.xlu0 %6694
      %6696 = vrot.lane.b32.xlu0 %v6408, 68
      %v6697 = vpop.permute.xlu0 %6696
      %6698 = vrot.lane.b32.xlu0 %v6410, 68
      %v6699 = vpop.permute.xlu0 %6698
      %6700 = vrot.lane.b32.xlu0 %v6412, 68
      %v6701 = vpop.permute.xlu0 %6700
      %6710 = vrot.lane.b32.xlu0 %v6398, 66
      %v6711 = vpop.permute.xlu0 %6710
      %6712 = vrot.lane.b32.xlu0 %v6400, 66
      %v6713 = vpop.permute.xlu0 %6712
      %6714 = vrot.lane.b32.xlu0 %v6402, 66
      %v6715 = vpop.permute.xlu0 %6714
      %6716 = vrot.lane.b32.xlu0 %v6404, 66
      %v6717 = vpop.permute.xlu0 %6716
      %6718 = vrot.lane.b32.xlu0 %v6406, 66
      %v6719 = vpop.permute.xlu0 %6718
      %6720 = vrot.lane.b32.xlu0 %v6408, 66
      %v6721 = vpop.permute.xlu0 %6720
      %6722 = vrot.lane.b32.xlu0 %v6410, 66
      %v6723 = vpop.permute.xlu0 %6722
      %6724 = vrot.lane.b32.xlu0 %v6412, 66
      %v6725 = vpop.permute.xlu0 %6724
      %6734 = vrot.lane.b32.xlu0 %v6398, 64
      %v6735 = vpop.permute.xlu0 %6734
      %6736 = vrot.lane.b32.xlu0 %v6400, 64
      %v6737 = vpop.permute.xlu0 %6736
      %6738 = vrot.lane.b32.xlu0 %v6402, 64
      %v6739 = vpop.permute.xlu0 %6738
      %6740 = vrot.lane.b32.xlu0 %v6404, 64
      %v6741 = vpop.permute.xlu0 %6740
      %6742 = vrot.lane.b32.xlu0 %v6406, 64
      %v6743 = vpop.permute.xlu0 %6742
      %6744 = vrot.lane.b32.xlu0 %v6408, 64
      %v6745 = vpop.permute.xlu0 %6744
      %6746 = vrot.lane.b32.xlu0 %v6410, 64
      %v6747 = vpop.permute.xlu0 %6746
      %6748 = vrot.lane.b32.xlu0 %v6412, 64
      %v6749 = vpop.permute.xlu0 %6748
      %6758 = vrot.lane.b32.xlu0 %v6398, 62
      %v6759 = vpop.permute.xlu0 %6758
      %6760 = vrot.lane.b32.xlu0 %v6400, 62
      %v6761 = vpop.permute.xlu0 %6760
      %6762 = vrot.lane.b32.xlu0 %v6402, 62
      %v6763 = vpop.permute.xlu0 %6762
      %6764 = vrot.lane.b32.xlu0 %v6404, 62
      %v6765 = vpop.permute.xlu0 %6764
      %6766 = vrot.lane.b32.xlu0 %v6406, 62
      %v6767 = vpop.permute.xlu0 %6766
      %6768 = vrot.lane.b32.xlu0 %v6408, 62
      %v6769 = vpop.permute.xlu0 %6768
      %6770 = vrot.lane.b32.xlu0 %v6410, 62
      %v6771 = vpop.permute.xlu0 %6770
      %6772 = vrot.lane.b32.xlu0 %v6412, 62
      %v6773 = vpop.permute.xlu0 %6772
      %v6782 = vld [vmem:[%s9] sm:$0xff]
      %v6783 = vld [vmem:[%s9 + $0x8] sm:$0xff]
      %v6784 = vld [vmem:[%s9 + $0x10] sm:$0xff]
      %v6785 = vld [vmem:[%s9 + $0x18] sm:$0xff]
      %v6786 = vld [vmem:[%s9 + $0x20] sm:$0xff]
      %v6787 = vld [vmem:[%s9 + $0x28] sm:$0xff]
      %v6788 = vld [vmem:[%s9 + $0x30] sm:$0xff]
      %v6789 = vld [vmem:[%s9 + $0x38] sm:$0xff]
      %v6790 = vld [vmem:[%s9 + $0x40] sm:$0x3]
      %v6791 = vld [vmem:[%s9 + $0x48] sm:$0x3]
      %v6792 = vld [vmem:[%s9 + $0x50] sm:$0x3]
      %v6793 = vld [vmem:[%s9 + $0x58] sm:$0x3]
      %v6794 = vld [vmem:[%s9 + $0x60] sm:$0x3]
      %v6795 = vld [vmem:[%s9 + $0x68] sm:$0x3]
      %v6796 = vld [vmem:[%s9 + $0x70] sm:$0x3]
      %v6797 = vld [vmem:[%s9 + $0x78] sm:$0x3]
      %v6798 = vld [vmem:[%s10] sm:$0xff]
      %v6799 = vld [vmem:[%s10 + $0x8] sm:$0x3]
      %6800 = vmatprep.subr.mxu0 0.0
      %6801 = vmatpush1.msra.mxu0 %v6398
      %6802 = vmatprep.subr.mxu0 0.0
      %6803 = vmatpush1.msra.mxu0 %v6400
      %6804 = vmatprep.subr.mxu0 0.0
      %6805 = vmatpush1.msra.mxu0 %v6402
      %6806 = vmatprep.subr.mxu0 0.0
      %6807 = vmatpush1.msra.mxu0 %v6404
      %6808 = vmatprep.subr.mxu0 0.0
      %6809 = vmatpush1.msra.mxu0 %v6406
      %6810 = vmatprep.subr.mxu0 0.0
      %6811 = vmatpush1.msra.mxu0 %v6408
      %6812 = vmatprep.subr.mxu0 0.0
      %6813 = vmatpush1.msra.mxu0 %v6410
      %6814 = vmatprep.subr.mxu0 0.0
      %6815 = vmatpush1.msra.mxu0 %v6412
      %6816 = vmatprep.subr.mxu0 0.0
      %6817 = vmatpush1.msra.mxu0 %v6423
      %6818 = vmatprep.subr.mxu0 0.0
      %6819 = vmatpush1.msra.mxu0 %v6425
      %6820 = vmatprep.subr.mxu0 0.0
      %6821 = vmatpush1.msra.mxu0 %v6427
      %6822 = vmatprep.subr.mxu0 0.0
      %6823 = vmatpush1.msra.mxu0 %v6429
      %6824 = vmatprep.subr.mxu0 0.0
      %6825 = vmatpush1.msra.mxu0 %v6431
      %6826 = vmatprep.subr.mxu0 0.0
      %6827 = vmatpush1.msra.mxu0 %v6433
      %6828 = vmatprep.subr.mxu0 0.0
      %6829 = vmatpush1.msra.mxu0 %v6435
      %6830 = vmatprep.subr.mxu0 0.0
      %6831 = vmatpush1.msra.mxu0 %v6437
      %6832 = vmatprep.subr.mxu0 0.0
      %6833 = vmatpush1.msra.mxu0 %v6447
      %6834 = vmatprep.subr.mxu0 0.0
      %6835 = vmatpush1.msra.mxu0 %v6449
      %6836 = vmatprep.subr.mxu0 0.0
      %6837 = vmatpush1.msra.mxu0 %v6451
      %6838 = vmatprep.subr.mxu0 0.0
      %6839 = vmatpush1.msra.mxu0 %v6453
      %6840 = vmatprep.subr.mxu0 0.0
      %6841 = vmatpush1.msra.mxu0 %v6455
      %6842 = vmatprep.subr.mxu0 0.0
      %6843 = vmatpush1.msra.mxu0 %v6457
      %6844 = vmatprep.subr.mxu0 0.0
      %6845 = vmatpush1.msra.mxu0 %v6459
      %6846 = vmatprep.subr.mxu0 0.0
      %6847 = vmatpush1.msra.mxu0 %v6461
      %6848 = vmatprep.subr.mxu0 0.0
      %6849 = vmatpush1.msra.mxu0 %v6471
      %6850 = vmatprep.subr.mxu0 0.0
      %6851 = vmatpush1.msra.mxu0 %v6473
      %6852 = vmatprep.subr.mxu0 0.0
      %6853 = vmatpush1.msra.mxu0 %v6475
      %6854 = vmatprep.subr.mxu0 0.0
      %6855 = vmatpush1.msra.mxu0 %v6477
      %6856 = vmatprep.subr.mxu0 0.0
      %6857 = vmatpush1.msra.mxu0 %v6479
      %6858 = vmatprep.subr.mxu0 0.0
      %6859 = vmatpush1.msra.mxu0 %v6481
      %6860 = vmatprep.subr.mxu0 0.0
      %6861 = vmatpush1.msra.mxu0 %v6483
      %6862 = vmatprep.subr.mxu0 0.0
      %6863 = vmatpush1.msra.mxu0 %v6485
      %6864 = vmatprep.mubr.f32.mxu0 %v6783
      %6865 = vmatmul.mubr.f32.gmra.mrb[0].mxu0 %v6782
      %v6866 = vpop.f32.mrb[0].mxu0
      %v6867 = vadd.f32 %v6798, %v6866
      %v6868 = vpop.f32.mrb[0].mxu0
      %6869 = vmatprep.mubr.f32.mxu0 %v6791
      %6870 = vmatmul.mubr.f32.gmra.mrb[0].mxu0 %v6790
      %v6871 = vpop.f32.mrb[0].mxu0
      %v6872 = vadd.f32 %v6799, %v6871
      %v6873 = vpop.f32.mrb[0].mxu0
      %6874 = vdwg.mxu0
      %6875 = vmatprep.subr.mxu0 0.0
      %6876 = vmatpush1.msra.mxu0 %v6495
      %6877 = vmatprep.subr.mxu0 0.0
      %6878 = vmatpush1.msra.mxu0 %v6497
      %6879 = vmatprep.subr.mxu0 0.0
      %6880 = vmatpush1.msra.mxu0 %v6499
      %6881 = vmatprep.subr.mxu0 0.0
      %6882 = vmatpush1.msra.mxu0 %v6501
      %6883 = vmatprep.subr.mxu0 0.0
      %6884 = vmatpush1.msra.mxu0 %v6503
      %6885 = vmatprep.subr.mxu0 0.0
      %6886 = vmatpush1.msra.mxu0 %v6505
      %6887 = vmatprep.subr.mxu0 0.0
      %6888 = vmatpush1.msra.mxu0 %v6507
      %6889 = vmatprep.subr.mxu0 0.0
      %6890 = vmatpush1.msra.mxu0 %v6509
      %6891 = vmatprep.subr.mxu0 0.0
      %6892 = vmatpush1.msra.mxu0 %v6519
      %6893 = vmatprep.subr.mxu0 0.0
      %6894 = vmatpush1.msra.mxu0 %v6521
      %6895 = vmatprep.subr.mxu0 0.0
      %6896 = vmatpush1.msra.mxu0 %v6523
      %6897 = vmatprep.subr.mxu0 0.0
      %6898 = vmatpush1.msra.mxu0 %v6525
      %6899 = vmatprep.subr.mxu0 0.0
      %6900 = vmatpush1.msra.mxu0 %v6527
      %6901 = vmatprep.subr.mxu0 0.0
      %6902 = vmatpush1.msra.mxu0 %v6529
      %6903 = vmatprep.subr.mxu0 0.0
      %6904 = vmatpush1.msra.mxu0 %v6531
      %6905 = vmatprep.subr.mxu0 0.0
      %6906 = vmatpush1.msra.mxu0 %v6533
      %6907 = vmatprep.subr.mxu0 0.0
      %6908 = vmatpush1.msra.mxu0 %v6543
      %6909 = vmatprep.subr.mxu0 0.0
      %6910 = vmatpush1.msra.mxu0 %v6545
      %6911 = vmatprep.subr.mxu0 0.0
      %6912 = vmatpush1.msra.mxu0 %v6547
      %6913 = vmatprep.subr.mxu0 0.0
      %6914 = vmatpush1.msra.mxu0 %v6549
      %6915 = vmatprep.subr.mxu0 0.0
      %6916 = vmatpush1.msra.mxu0 %v6551
      %6917 = vmatprep.subr.mxu0 0.0
      %6918 = vmatpush1.msra.mxu0 %v6553
      %6919 = vmatprep.subr.mxu0 0.0
      %6920 = vmatpush1.msra.mxu0 %v6555
      %6921 = vmatprep.subr.mxu0 0.0
      %6922 = vmatpush1.msra.mxu0 %v6557
      %6923 = vmatprep.subr.mxu0 0.0
      %6924 = vmatpush1.msra.mxu0 %v6567
      %6925 = vmatprep.subr.mxu0 0.0
      %6926 = vmatpush1.msra.mxu0 %v6569
      %6927 = vmatprep.subr.mxu0 0.0
      %6928 = vmatpush1.msra.mxu0 %v6571
      %6929 = vmatprep.subr.mxu0 0.0
      %6930 = vmatpush1.msra.mxu0 %v6573
      %6931 = vmatprep.subr.mxu0 0.0
      %6932 = vmatpush1.msra.mxu0 %v6575
      %6933 = vmatprep.subr.mxu0 0.0
      %6934 = vmatpush1.msra.mxu0 %v6577
      %6935 = vmatprep.subr.mxu0 0.0
      %6936 = vmatpush1.msra.mxu0 %v6579
      %6937 = vmatprep.subr.mxu0 0.0
      %6938 = vmatpush1.msra.mxu0 %v6581
      %6939 = vmatprep.mubr.f32.mxu0 %v6785
      %6940 = vmatmul.mubr.f32.gmra.mrb[0].mxu0 %v6784
      %v6941 = vpop.f32.mrb[0].mxu0
      %v6942 = vadd.f32 %v6867, %v6941
      %v6943 = vpop.f32.mrb[0].mxu0
      %6944 = vmatprep.mubr.f32.mxu0 %v6793
      %6945 = vmatmul.mubr.f32.gmra.mrb[0].mxu0 %v6792
      %v6946 = vpop.f32.mrb[0].mxu0
      %v6947 = vadd.f32 %v6872, %v6946
      %v6948 = vpop.f32.mrb[0].mxu0
      %6949 = vdwg.mxu0
      %6950 = vmatprep.subr.mxu0 0.0
      %6951 = vmatpush1.msra.mxu0 %v6591
      %6952 = vmatprep.subr.mxu0 0.0
      %6953 = vmatpush1.msra.mxu0 %v6593
      %6954 = vmatprep.subr.mxu0 0.0
      %6955 = vmatpush1.msra.mxu0 %v6595
      %6956 = vmatprep.subr.mxu0 0.0
      %6957 = vmatpush1.msra.mxu0 %v6597
      %6958 = vmatprep.subr.mxu0 0.0
      %6959 = vmatpush1.msra.mxu0 %v6599
      %6960 = vmatprep.subr.mxu0 0.0
      %6961 = vmatpush1.msra.mxu0 %v6601
      %6962 = vmatprep.subr.mxu0 0.0
      %6963 = vmatpush1.msra.mxu0 %v6603
      %6964 = vmatprep.subr.mxu0 0.0
      %6965 = vmatpush1.msra.mxu0 %v6605
      %6966 = vmatprep.subr.mxu0 0.0
      %6967 = vmatpush1.msra.mxu0 %v6615
      %6968 = vmatprep.subr.mxu0 0.0
      %6969 = vmatpush1.msra.mxu0 %v6617
      %6970 = vmatprep.subr.mxu0 0.0
      %6971 = vmatpush1.msra.mxu0 %v6619
      %6972 = vmatprep.subr.mxu0 0.0
      %6973 = vmatpush1.msra.mxu0 %v6621
      %6974 = vmatprep.subr.mxu0 0.0
      %6975 = vmatpush1.msra.mxu0 %v6623
      %6976 = vmatprep.subr.mxu0 0.0
      %6977 = vmatpush1.msra.mxu0 %v6625
      %6978 = vmatprep.subr.mxu0 0.0
      %6979 = vmatpush1.msra.mxu0 %v6627
      %6980 = vmatprep.subr.mxu0 0.0
      %6981 = vmatpush1.msra.mxu0 %v6629
      %6982 = vmatprep.subr.mxu0 0.0
      %6983 = vmatpush1.msra.mxu0 %v6639
      %6984 = vmatprep.subr.mxu0 0.0
      %6985 = vmatpush1.msra.mxu0 %v6641
      %6986 = vmatprep.subr.mxu0 0.0
      %6987 = vmatpush1.msra.mxu0 %v6643
      %6988 = vmatprep.subr.mxu0 0.0
      %6989 = vmatpush1.msra.mxu0 %v6645
      %6990 = vmatprep.subr.mxu0 0.0
      %6991 = vmatpush1.msra.mxu0 %v6647
      %6992 = vmatprep.subr.mxu0 0.0
      %6993 = vmatpush1.msra.mxu0 %v6649
      %6994 = vmatprep.subr.mxu0 0.0
      %6995 = vmatpush1.msra.mxu0 %v6651
      %6996 = vmatprep.subr.mxu0 0.0
      %6997 = vmatpush1.msra.mxu0 %v6653
      %6998 = vmatprep.subr.mxu0 0.0
      %6999 = vmatpush1.msra.mxu0 %v6663
      %7000 = vmatprep.subr.mxu0 0.0
      %7001 = vmatpush1.msra.mxu0 %v6665
      %7002 = vmatprep.subr.mxu0 0.0
      %7003 = vmatpush1.msra.mxu0 %v6667
      %7004 = vmatprep.subr.mxu0 0.0
      %7005 = vmatpush1.msra.mxu0 %v6669
      %7006 = vmatprep.subr.mxu0 0.0
      %7007 = vmatpush1.msra.mxu0 %v6671
      %7008 = vmatprep.subr.mxu0 0.0
      %7009 = vmatpush1.msra.mxu0 %v6673
      %7010 = vmatprep.subr.mxu0 0.0
      %7011 = vmatpush1.msra.mxu0 %v6675
      %7012 = vmatprep.subr.mxu0 0.0
      %7013 = vmatpush1.msra.mxu0 %v6677
      %7014 = vmatprep.mubr.f32.mxu0 %v6787
      %7015 = vmatmul.mubr.f32.gmra.mrb[0].mxu0 %v6786
      %v7016 = vpop.f32.mrb[0].mxu0
      %v7017 = vadd.f32 %v6942, %v7016
      %v7018 = vpop.f32.mrb[0].mxu0
      %7019 = vmatprep.mubr.f32.mxu0 %v6795
      %7020 = vmatmul.mubr.f32.gmra.mrb[0].mxu0 %v6794
      %v7021 = vpop.f32.mrb[0].mxu0
      %v7022 = vadd.f32 %v6947, %v7021
      %v7023 = vpop.f32.mrb[0].mxu0
      %7024 = vdwg.mxu0
      %7025 = vmatprep.subr.mxu0 0.0
      %7026 = vmatpush1.msra.mxu0 %v6687
      %7027 = vmatprep.subr.mxu0 0.0
      %7028 = vmatpush1.msra.mxu0 %v6689
      %7029 = vmatprep.subr.mxu0 0.0
      %7030 = vmatpush1.msra.mxu0 %v6691
      %7031 = vmatprep.subr.mxu0 0.0
      %7032 = vmatpush1.msra.mxu0 %v6693
      %7033 = vmatprep.subr.mxu0 0.0
      %7034 = vmatpush1.msra.mxu0 %v6695
      %7035 = vmatprep.subr.mxu0 0.0
      %7036 = vmatpush1.msra.mxu0 %v6697
      %7037 = vmatprep.subr.mxu0 0.0
      %7038 = vmatpush1.msra.mxu0 %v6699
      %7039 = vmatprep.subr.mxu0 0.0
      %7040 = vmatpush1.msra.mxu0 %v6701
      %7041 = vmatprep.subr.mxu0 0.0
      %7042 = vmatpush1.msra.mxu0 %v6711
      %7043 = vmatprep.subr.mxu0 0.0
      %7044 = vmatpush1.msra.mxu0 %v6713
      %7045 = vmatprep.subr.mxu0 0.0
      %7046 = vmatpush1.msra.mxu0 %v6715
      %7047 = vmatprep.subr.mxu0 0.0
      %7048 = vmatpush1.msra.mxu0 %v6717
      %7049 = vmatprep.subr.mxu0 0.0
      %7050 = vmatpush1.msra.mxu0 %v6719
      %7051 = vmatprep.subr.mxu0 0.0
      %7052 = vmatpush1.msra.mxu0 %v6721
      %7053 = vmatprep.subr.mxu0 0.0
      %7054 = vmatpush1.msra.mxu0 %v6723
      %7055 = vmatprep.subr.mxu0 0.0
      %7056 = vmatpush1.msra.mxu0 %v6725
      %7057 = vmatprep.subr.mxu0 0.0
      %7058 = vmatpush1.msra.mxu0 %v6735
      %7059 = vmatprep.subr.mxu0 0.0
      %7060 = vmatpush1.msra.mxu0 %v6737
      %7061 = vmatprep.subr.mxu0 0.0
      %7062 = vmatpush1.msra.mxu0 %v6739
      %7063 = vmatprep.subr.mxu0 0.0
      %7064 = vmatpush1.msra.mxu0 %v6741
      %7065 = vmatprep.subr.mxu0 0.0
      %7066 = vmatpush1.msra.mxu0 %v6743
      %7067 = vmatprep.subr.mxu0 0.0
      %7068 = vmatpush1.msra.mxu0 %v6745
      %7069 = vmatprep.subr.mxu0 0.0
      %7070 = vmatpush1.msra.mxu0 %v6747
      %7071 = vmatprep.subr.mxu0 0.0
      %7072 = vmatpush1.msra.mxu0 %v6749
      %7073 = vmatprep.subr.mxu0 0.0
      %7074 = vmatpush1.msra.mxu0 %v6759
      %7075 = vmatprep.subr.mxu0 0.0
      %7076 = vmatpush1.msra.mxu0 %v6761
      %7077 = vmatprep.subr.mxu0 0.0
      %7078 = vmatpush1.msra.mxu0 %v6763
      %7079 = vmatprep.subr.mxu0 0.0
      %7080 = vmatpush1.msra.mxu0 %v6765
      %7081 = vmatprep.subr.mxu0 0.0
      %7082 = vmatpush1.msra.mxu0 %v6767
      %7083 = vmatprep.subr.mxu0 0.0
      %7084 = vmatpush1.msra.mxu0 %v6769
      %7085 = vmatprep.subr.mxu0 0.0
      %7086 = vmatpush1.msra.mxu0 %v6771
      %7087 = vmatprep.subr.mxu0 0.0
      %7088 = vmatpush1.msra.mxu0 %v6773
      %7089 = vmatprep.mubr.f32.mxu0 %v6789
      %7090 = vmatmul.mubr.f32.gmra.mrb[0].mxu0 %v6788
      %v7091 = vpop.f32.mrb[0].mxu0
      %v7092 = vadd.f32 %v7017, %v7091
      %v7093 = vpop.f32.mrb[0].mxu0
      %7094 = vmatprep.mubr.f32.mxu0 %v6797
      %7095 = vmatmul.mubr.f32.gmra.mrb[0].mxu0 %v6796
      %v7096 = vpop.f32.mrb[0].mxu0
      %v7097 = vadd.f32 %v7022, %v7096
      %v7098 = vpop.f32.mrb[0].mxu0
      %7099 = vdwg.mxu0
      %vm7100 = vcmask 7168
      %7101 = vst.msk [vmem:[%s388] sm:$0xff] %vm7100, %v7092
      %vm7102 = vcmask 1024
      %7103 = vst.msk [vmem:[%s388 + $0x8] sm:$0x3] %vm7102, %v7097
      %7112 = vrot.lane.b32.xlu0 %v6399, 126
      %v7113 = vpop.permute.xlu0 %7112
      %7114 = vrot.lane.b32.xlu0 %v6401, 126
      %v7115 = vpop.permute.xlu0 %7114
      %7116 = vrot.lane.b32.xlu0 %v6403, 126
      %v7117 = vpop.permute.xlu0 %7116
      %7118 = vrot.lane.b32.xlu0 %v6405, 126
      %v7119 = vpop.permute.xlu0 %7118
      %7120 = vrot.lane.b32.xlu0 %v6407, 126
      %v7121 = vpop.permute.xlu0 %7120
      %7122 = vrot.lane.b32.xlu0 %v6409, 126
      %v7123 = vpop.permute.xlu0 %7122
      %7124 = vrot.lane.b32.xlu0 %v6411, 126
      %v7125 = vpop.permute.xlu0 %7124
      %7126 = vrot.lane.b32.xlu0 %v6413, 126
      %v7127 = vpop.permute.xlu0 %7126
      %7136 = vrot.lane.b32.xlu0 %v6399, 124
      %v7137 = vpop.permute.xlu0 %7136
      %7138 = vrot.lane.b32.xlu0 %v6401, 124
      %v7139 = vpop.permute.xlu0 %7138
      %7140 = vrot.lane.b32.xlu0 %v6403, 124
      %v7141 = vpop.permute.xlu0 %7140
      %7142 = vrot.lane.b32.xlu0 %v6405, 124
      %v7143 = vpop.permute.xlu0 %7142
      %7144 = vrot.lane.b32.xlu0 %v6407, 124
      %v7145 = vpop.permute.xlu0 %7144
      %7146 = vrot.lane.b32.xlu0 %v6409, 124
      %v7147 = vpop.permute.xlu0 %7146
      %7148 = vrot.lane.b32.xlu0 %v6411, 124
      %v7149 = vpop.permute.xlu0 %7148
      %7150 = vrot.lane.b32.xlu0 %v6413, 124
      %v7151 = vpop.permute.xlu0 %7150
      %7160 = vrot.lane.b32.xlu0 %v6399, 122
      %v7161 = vpop.permute.xlu0 %7160
      %7162 = vrot.lane.b32.xlu0 %v6401, 122
      %v7163 = vpop.permute.xlu0 %7162
      %7164 = vrot.lane.b32.xlu0 %v6403, 122
      %v7165 = vpop.permute.xlu0 %7164
      %7166 = vrot.lane.b32.xlu0 %v6405, 122
      %v7167 = vpop.permute.xlu0 %7166
      %7168 = vrot.lane.b32.xlu0 %v6407, 122
      %v7169 = vpop.permute.xlu0 %7168
      %7170 = vrot.lane.b32.xlu0 %v6409, 122
      %v7171 = vpop.permute.xlu0 %7170
      %7172 = vrot.lane.b32.xlu0 %v6411, 122
      %v7173 = vpop.permute.xlu0 %7172
      %7174 = vrot.lane.b32.xlu0 %v6413, 122
      %v7175 = vpop.permute.xlu0 %7174
      %7184 = vrot.lane.b32.xlu0 %v6399, 108
      %v7185 = vpop.permute.xlu0 %7184
      %7186 = vrot.lane.b32.xlu0 %v6401, 108
      %v7187 = vpop.permute.xlu0 %7186
      %7188 = vrot.lane.b32.xlu0 %v6403, 108
      %v7189 = vpop.permute.xlu0 %7188
      %7190 = vrot.lane.b32.xlu0 %v6405, 108
      %v7191 = vpop.permute.xlu0 %7190
      %7192 = vrot.lane.b32.xlu0 %v6407, 108
      %v7193 = vpop.permute.xlu0 %7192
      %7194 = vrot.lane.b32.xlu0 %v6409, 108
      %v7195 = vpop.permute.xlu0 %7194
      %7196 = vrot.lane.b32.xlu0 %v6411, 108
      %v7197 = vpop.permute.xlu0 %7196
      %7198 = vrot.lane.b32.xlu0 %v6413, 108
      %v7199 = vpop.permute.xlu0 %7198
      %7208 = vrot.lane.b32.xlu0 %v6399, 106
      %v7209 = vpop.permute.xlu0 %7208
      %7210 = vrot.lane.b32.xlu0 %v6401, 106
      %v7211 = vpop.permute.xlu0 %7210
      %7212 = vrot.lane.b32.xlu0 %v6403, 106
      %v7213 = vpop.permute.xlu0 %7212
      %7214 = vrot.lane.b32.xlu0 %v6405, 106
      %v7215 = vpop.permute.xlu0 %7214
      %7216 = vrot.lane.b32.xlu0 %v6407, 106
      %v7217 = vpop.permute.xlu0 %7216
      %7218 = vrot.lane.b32.xlu0 %v6409, 106
      %v7219 = vpop.permute.xlu0 %7218
      %7220 = vrot.lane.b32.xlu0 %v6411, 106
      %v7221 = vpop.permute.xlu0 %7220
      %7222 = vrot.lane.b32.xlu0 %v6413, 106
      %v7223 = vpop.permute.xlu0 %7222
      %7232 = vrot.lane.b32.xlu0 %v6399, 104
      %v7233 = vpop.permute.xlu0 %7232
      %7234 = vrot.lane.b32.xlu0 %v6401, 104
      %v7235 = vpop.permute.xlu0 %7234
      %7236 = vrot.lane.b32.xlu0 %v6403, 104
      %v7237 = vpop.permute.xlu0 %7236
      %7238 = vrot.lane.b32.xlu0 %v6405, 104
      %v7239 = vpop.permute.xlu0 %7238
      %7240 = vrot.lane.b32.xlu0 %v6407, 104
      %v7241 = vpop.permute.xlu0 %7240
      %7242 = vrot.lane.b32.xlu0 %v6409, 104
      %v7243 = vpop.permute.xlu0 %7242
      %7244 = vrot.lane.b32.xlu0 %v6411, 104
      %v7245 = vpop.permute.xlu0 %7244
      %7246 = vrot.lane.b32.xlu0 %v6413, 104
      %v7247 = vpop.permute.xlu0 %7246
      %7256 = vrot.lane.b32.xlu0 %v6399, 102
      %v7257 = vpop.permute.xlu0 %7256
      %7258 = vrot.lane.b32.xlu0 %v6401, 102
      %v7259 = vpop.permute.xlu0 %7258
      %7260 = vrot.lane.b32.xlu0 %v6403, 102
      %v7261 = vpop.permute.xlu0 %7260
      %7262 = vrot.lane.b32.xlu0 %v6405, 102
      %v7263 = vpop.permute.xlu0 %7262
      %7264 = vrot.lane.b32.xlu0 %v6407, 102
      %v7265 = vpop.permute.xlu0 %7264
      %7266 = vrot.lane.b32.xlu0 %v6409, 102
      %v7267 = vpop.permute.xlu0 %7266
      %7268 = vrot.lane.b32.xlu0 %v6411, 102
      %v7269 = vpop.permute.xlu0 %7268
      %7270 = vrot.lane.b32.xlu0 %v6413, 102
      %v7271 = vpop.permute.xlu0 %7270
      %7280 = vrot.lane.b32.xlu0 %v6399, 88
      %v7281 = vpop.permute.xlu0 %7280
      %7282 = vrot.lane.b32.xlu0 %v6401, 88
      %v7283 = vpop.permute.xlu0 %7282
      %7284 = vrot.lane.b32.xlu0 %v6403, 88
      %v7285 = vpop.permute.xlu0 %7284
      %7286 = vrot.lane.b32.xlu0 %v6405, 88
      %v7287 = vpop.permute.xlu0 %7286
      %7288 = vrot.lane.b32.xlu0 %v6407, 88
      %v7289 = vpop.permute.xlu0 %7288
      %7290 = vrot.lane.b32.xlu0 %v6409, 88
      %v7291 = vpop.permute.xlu0 %7290
      %7292 = vrot.lane.b32.xlu0 %v6411, 88
      %v7293 = vpop.permute.xlu0 %7292
      %7294 = vrot.lane.b32.xlu0 %v6413, 88
      %v7295 = vpop.permute.xlu0 %7294
      %7304 = vrot.lane.b32.xlu0 %v6399, 86
      %v7305 = vpop.permute.xlu0 %7304
      %7306 = vrot.lane.b32.xlu0 %v6401, 86
      %v7307 = vpop.permute.xlu0 %7306
      %7308 = vrot.lane.b32.xlu0 %v6403, 86
      %v7309 = vpop.permute.xlu0 %7308
      %7310 = vrot.lane.b32.xlu0 %v6405, 86
      %v7311 = vpop.permute.xlu0 %7310
      %7312 = vrot.lane.b32.xlu0 %v6407, 86
      %v7313 = vpop.permute.xlu0 %7312
      %7314 = vrot.lane.b32.xlu0 %v6409, 86
      %v7315 = vpop.permute.xlu0 %7314
      %7316 = vrot.lane.b32.xlu0 %v6411, 86
      %v7317 = vpop.permute.xlu0 %7316
      %7318 = vrot.lane.b32.xlu0 %v6413, 86
      %v7319 = vpop.permute.xlu0 %7318
      %7328 = vrot.lane.b32.xlu0 %v6399, 84
      %v7329 = vpop.permute.xlu0 %7328
      %7330 = vrot.lane.b32.xlu0 %v6401, 84
      %v7331 = vpop.permute.xlu0 %7330
      %7332 = vrot.lane.b32.xlu0 %v6403, 84
      %v7333 = vpop.permute.xlu0 %7332
      %7334 = vrot.lane.b32.xlu0 %v6405, 84
      %v7335 = vpop.permute.xlu0 %7334
      %7336 = vrot.lane.b32.xlu0 %v6407, 84
      %v7337 = vpop.permute.xlu0 %7336
      %7338 = vrot.lane.b32.xlu0 %v6409, 84
      %v7339 = vpop.permute.xlu0 %7338
      %7340 = vrot.lane.b32.xlu0 %v6411, 84
      %v7341 = vpop.permute.xlu0 %7340
      %7342 = vrot.lane.b32.xlu0 %v6413, 84
      %v7343 = vpop.permute.xlu0 %7342
      %7352 = vrot.lane.b32.xlu0 %v6399, 82
      %v7353 = vpop.permute.xlu0 %7352
      %7354 = vrot.lane.b32.xlu0 %v6401, 82
      %v7355 = vpop.permute.xlu0 %7354
      %7356 = vrot.lane.b32.xlu0 %v6403, 82
      %v7357 = vpop.permute.xlu0 %7356
      %7358 = vrot.lane.b32.xlu0 %v6405, 82
      %v7359 = vpop.permute.xlu0 %7358
      %7360 = vrot.lane.b32.xlu0 %v6407, 82
      %v7361 = vpop.permute.xlu0 %7360
      %7362 = vrot.lane.b32.xlu0 %v6409, 82
      %v7363 = vpop.permute.xlu0 %7362
      %7364 = vrot.lane.b32.xlu0 %v6411, 82
      %v7365 = vpop.permute.xlu0 %7364
      %7366 = vrot.lane.b32.xlu0 %v6413, 82
      %v7367 = vpop.permute.xlu0 %7366
      %7376 = vrot.lane.b32.xlu0 %v6399, 68
      %v7377 = vpop.permute.xlu0 %7376
      %7378 = vrot.lane.b32.xlu0 %v6401, 68
      %v7379 = vpop.permute.xlu0 %7378
      %7380 = vrot.lane.b32.xlu0 %v6403, 68
      %v7381 = vpop.permute.xlu0 %7380
      %7382 = vrot.lane.b32.xlu0 %v6405, 68
      %v7383 = vpop.permute.xlu0 %7382
      %7384 = vrot.lane.b32.xlu0 %v6407, 68
      %v7385 = vpop.permute.xlu0 %7384
      %7386 = vrot.lane.b32.xlu0 %v6409, 68
      %v7387 = vpop.permute.xlu0 %7386
      %7388 = vrot.lane.b32.xlu0 %v6411, 68
      %v7389 = vpop.permute.xlu0 %7388
      %7390 = vrot.lane.b32.xlu0 %v6413, 68
      %v7391 = vpop.permute.xlu0 %7390
      %7400 = vrot.lane.b32.xlu0 %v6399, 66
      %v7401 = vpop.permute.xlu0 %7400
      %7402 = vrot.lane.b32.xlu0 %v6401, 66
      %v7403 = vpop.permute.xlu0 %7402
      %7404 = vrot.lane.b32.xlu0 %v6403, 66
      %v7405 = vpop.permute.xlu0 %7404
      %7406 = vrot.lane.b32.xlu0 %v6405, 66
      %v7407 = vpop.permute.xlu0 %7406
      %7408 = vrot.lane.b32.xlu0 %v6407, 66
      %v7409 = vpop.permute.xlu0 %7408
      %7410 = vrot.lane.b32.xlu0 %v6409, 66
      %v7411 = vpop.permute.xlu0 %7410
      %7412 = vrot.lane.b32.xlu0 %v6411, 66
      %v7413 = vpop.permute.xlu0 %7412
      %7414 = vrot.lane.b32.xlu0 %v6413, 66
      %v7415 = vpop.permute.xlu0 %7414
      %7424 = vrot.lane.b32.xlu0 %v6399, 64
      %v7425 = vpop.permute.xlu0 %7424
      %7426 = vrot.lane.b32.xlu0 %v6401, 64
      %v7427 = vpop.permute.xlu0 %7426
      %7428 = vrot.lane.b32.xlu0 %v6403, 64
      %v7429 = vpop.permute.xlu0 %7428
      %7430 = vrot.lane.b32.xlu0 %v6405, 64
      %v7431 = vpop.permute.xlu0 %7430
      %7432 = vrot.lane.b32.xlu0 %v6407, 64
      %v7433 = vpop.permute.xlu0 %7432
      %7434 = vrot.lane.b32.xlu0 %v6409, 64
      %v7435 = vpop.permute.xlu0 %7434
      %7436 = vrot.lane.b32.xlu0 %v6411, 64
      %v7437 = vpop.permute.xlu0 %7436
      %7438 = vrot.lane.b32.xlu0 %v6413, 64
      %v7439 = vpop.permute.xlu0 %7438
      %7448 = vrot.lane.b32.xlu0 %v6399, 62
      %v7449 = vpop.permute.xlu0 %7448
      %7450 = vrot.lane.b32.xlu0 %v6401, 62
      %v7451 = vpop.permute.xlu0 %7450
      %7452 = vrot.lane.b32.xlu0 %v6403, 62
      %v7453 = vpop.permute.xlu0 %7452
      %7454 = vrot.lane.b32.xlu0 %v6405, 62
      %v7455 = vpop.permute.xlu0 %7454
      %7456 = vrot.lane.b32.xlu0 %v6407, 62
      %v7457 = vpop.permute.xlu0 %7456
      %7458 = vrot.lane.b32.xlu0 %v6409, 62
      %v7459 = vpop.permute.xlu0 %7458
      %7460 = vrot.lane.b32.xlu0 %v6411, 62
      %v7461 = vpop.permute.xlu0 %7460
      %7462 = vrot.lane.b32.xlu0 %v6413, 62
      %v7463 = vpop.permute.xlu0 %7462
      %v7472 = vld [vmem:[%s9] sm:$0xff]
      %v7473 = vld [vmem:[%s9 + $0x8] sm:$0xff]
      %v7474 = vld [vmem:[%s9 + $0x10] sm:$0xff]
      %v7475 = vld [vmem:[%s9 + $0x18] sm:$0xff]
      %v7476 = vld [vmem:[%s9 + $0x20] sm:$0xff]
      %v7477 = vld [vmem:[%s9 + $0x28] sm:$0xff]
      %v7478 = vld [vmem:[%s9 + $0x30] sm:$0xff]
      %v7479 = vld [vmem:[%s9 + $0x38] sm:$0xff]
      %v7480 = vld [vmem:[%s9 + $0x40] sm:$0x3]
      %v7481 = vld [vmem:[%s9 + $0x48] sm:$0x3]
      %v7482 = vld [vmem:[%s9 + $0x50] sm:$0x3]
      %v7483 = vld [vmem:[%s9 + $0x58] sm:$0x3]
      %v7484 = vld [vmem:[%s9 + $0x60] sm:$0x3]
      %v7485 = vld [vmem:[%s9 + $0x68] sm:$0x3]
      %v7486 = vld [vmem:[%s9 + $0x70] sm:$0x3]
      %v7487 = vld [vmem:[%s9 + $0x78] sm:$0x3]
      %v7488 = vld [vmem:[%s10] sm:$0xff]
      %v7489 = vld [vmem:[%s10 + $0x8] sm:$0x3]
      %7490 = vmatprep.subr.mxu0 0.0
      %7491 = vmatpush1.msra.mxu0 %v6399
      %7492 = vmatprep.subr.mxu0 0.0
      %7493 = vmatpush1.msra.mxu0 %v6401
      %7494 = vmatprep.subr.mxu0 0.0
      %7495 = vmatpush1.msra.mxu0 %v6403
      %7496 = vmatprep.subr.mxu0 0.0
      %7497 = vmatpush1.msra.mxu0 %v6405
      %7498 = vmatprep.subr.mxu0 0.0
      %7499 = vmatpush1.msra.mxu0 %v6407
      %7500 = vmatprep.subr.mxu0 0.0
      %7501 = vmatpush1.msra.mxu0 %v6409
      %7502 = vmatprep.subr.mxu0 0.0
      %7503 = vmatpush1.msra.mxu0 %v6411
      %7504 = vmatprep.subr.mxu0 0.0
      %7505 = vmatpush1.msra.mxu0 %v6413
      %7506 = vmatprep.subr.mxu0 0.0
      %7507 = vmatpush1.msra.mxu0 %v7113
      %7508 = vmatprep.subr.mxu0 0.0
      %7509 = vmatpush1.msra.mxu0 %v7115
      %7510 = vmatprep.subr.mxu0 0.0
      %7511 = vmatpush1.msra.mxu0 %v7117
      %7512 = vmatprep.subr.mxu0 0.0
      %7513 = vmatpush1.msra.mxu0 %v7119
      %7514 = vmatprep.subr.mxu0 0.0
      %7515 = vmatpush1.msra.mxu0 %v7121
      %7516 = vmatprep.subr.mxu0 0.0
      %7517 = vmatpush1.msra.mxu0 %v7123
      %7518 = vmatprep.subr.mxu0 0.0
      %7519 = vmatpush1.msra.mxu0 %v7125
      %7520 = vmatprep.subr.mxu0 0.0
      %7521 = vmatpush1.msra.mxu0 %v7127
      %7522 = vmatprep.subr.mxu0 0.0
      %7523 = vmatpush1.msra.mxu0 %v7137
      %7524 = vmatprep.subr.mxu0 0.0
      %7525 = vmatpush1.msra.mxu0 %v7139
      %7526 = vmatprep.subr.mxu0 0.0
      %7527 = vmatpush1.msra.mxu0 %v7141
      %7528 = vmatprep.subr.mxu0 0.0
      %7529 = vmatpush1.msra.mxu0 %v7143
      %7530 = vmatprep.subr.mxu0 0.0
      %7531 = vmatpush1.msra.mxu0 %v7145
      %7532 = vmatprep.subr.mxu0 0.0
      %7533 = vmatpush1.msra.mxu0 %v7147
      %7534 = vmatprep.subr.mxu0 0.0
      %7535 = vmatpush1.msra.mxu0 %v7149
      %7536 = vmatprep.subr.mxu0 0.0
      %7537 = vmatpush1.msra.mxu0 %v7151
      %7538 = vmatprep.subr.mxu0 0.0
      %7539 = vmatpush1.msra.mxu0 %v7161
      %7540 = vmatprep.subr.mxu0 0.0
      %7541 = vmatpush1.msra.mxu0 %v7163
      %7542 = vmatprep.subr.mxu0 0.0
      %7543 = vmatpush1.msra.mxu0 %v7165
      %7544 = vmatprep.subr.mxu0 0.0
      %7545 = vmatpush1.msra.mxu0 %v7167
      %7546 = vmatprep.subr.mxu0 0.0
      %7547 = vmatpush1.msra.mxu0 %v7169
      %7548 = vmatprep.subr.mxu0 0.0
      %7549 = vmatpush1.msra.mxu0 %v7171
      %7550 = vmatprep.subr.mxu0 0.0
      %7551 = vmatpush1.msra.mxu0 %v7173
      %7552 = vmatprep.subr.mxu0 0.0
      %7553 = vmatpush1.msra.mxu0 %v7175
      %7554 = vmatprep.mubr.f32.mxu0 %v7473
      %7555 = vmatmul.mubr.f32.gmra.mrb[0].mxu0 %v7472
      %v7556 = vpop.f32.mrb[0].mxu0
      %v7557 = vadd.f32 %v7488, %v7556
      %v7558 = vpop.f32.mrb[0].mxu0
      %7559 = vmatprep.mubr.f32.mxu0 %v7481
      %7560 = vmatmul.mubr.f32.gmra.mrb[0].mxu0 %v7480
      %v7561 = vpop.f32.mrb[0].mxu0
      %v7562 = vadd.f32 %v7489, %v7561
      %v7563 = vpop.f32.mrb[0].mxu0
      %7564 = vdwg.mxu0
      %7565 = vmatprep.subr.mxu0 0.0
      %7566 = vmatpush1.msra.mxu0 %v7185
      %7567 = vmatprep.subr.mxu0 0.0
      %7568 = vmatpush1.msra.mxu0 %v7187
      %7569 = vmatprep.subr.mxu0 0.0
      %7570 = vmatpush1.msra.mxu0 %v7189
      %7571 = vmatprep.subr.mxu0 0.0
      %7572 = vmatpush1.msra.mxu0 %v7191
      %7573 = vmatprep.subr.mxu0 0.0
      %7574 = vmatpush1.msra.mxu0 %v7193
      %7575 = vmatprep.subr.mxu0 0.0
      %7576 = vmatpush1.msra.mxu0 %v7195
      %7577 = vmatprep.subr.mxu0 0.0
      %7578 = vmatpush1.msra.mxu0 %v7197
      %7579 = vmatprep.subr.mxu0 0.0
      %7580 = vmatpush1.msra.mxu0 %v7199
      %7581 = vmatprep.subr.mxu0 0.0
      %7582 = vmatpush1.msra.mxu0 %v7209
      %7583 = vmatprep.subr.mxu0 0.0
      %7584 = vmatpush1.msra.mxu0 %v7211
      %7585 = vmatprep.subr.mxu0 0.0
      %7586 = vmatpush1.msra.mxu0 %v7213
      %7587 = vmatprep.subr.mxu0 0.0
      %7588 = vmatpush1.msra.mxu0 %v7215
      %7589 = vmatprep.subr.mxu0 0.0
      %7590 = vmatpush1.msra.mxu0 %v7217
      %7591 = vmatprep.subr.mxu0 0.0
      %7592 = vmatpush1.msra.mxu0 %v7219
      %7593 = vmatprep.subr.mxu0 0.0
      %7594 = vmatpush1.msra.mxu0 %v7221
      %7595 = vmatprep.subr.mxu0 0.0
      %7596 = vmatpush1.msra.mxu0 %v7223
      %7597 = vmatprep.subr.mxu0 0.0
      %7598 = vmatpush1.msra.mxu0 %v7233
      %7599 = vmatprep.subr.mxu0 0.0
      %7600 = vmatpush1.msra.mxu0 %v7235
      %7601 = vmatprep.subr.mxu0 0.0
      %7602 = vmatpush1.msra.mxu0 %v7237
      %7603 = vmatprep.subr.mxu0 0.0
      %7604 = vmatpush1.msra.mxu0 %v7239
      %7605 = vmatprep.subr.mxu0 0.0
      %7606 = vmatpush1.msra.mxu0 %v7241
      %7607 = vmatprep.subr.mxu0 0.0
      %7608 = vmatpush1.msra.mxu0 %v7243
      %7609 = vmatprep.subr.mxu0 0.0
      %7610 = vmatpush1.msra.mxu0 %v7245
      %7611 = vmatprep.subr.mxu0 0.0
      %7612 = vmatpush1.msra.mxu0 %v7247
      %7613 = vmatprep.subr.mxu0 0.0
      %7614 = vmatpush1.msra.mxu0 %v7257
      %7615 = vmatprep.subr.mxu0 0.0
      %7616 = vmatpush1.msra.mxu0 %v7259
      %7617 = vmatprep.subr.mxu0 0.0
      %7618 = vmatpush1.msra.mxu0 %v7261
      %7619 = vmatprep.subr.mxu0 0.0
      %7620 = vmatpush1.msra.mxu0 %v7263
      %7621 = vmatprep.subr.mxu0 0.0
      %7622 = vmatpush1.msra.mxu0 %v7265
      %7623 = vmatprep.subr.mxu0 0.0
      %7624 = vmatpush1.msra.mxu0 %v7267
      %7625 = vmatprep.subr.mxu0 0.0
      %7626 = vmatpush1.msra.mxu0 %v7269
      %7627 = vmatprep.subr.mxu0 0.0
      %7628 = vmatpush1.msra.mxu0 %v7271
      %7629 = vmatprep.mubr.f32.mxu0 %v7475
      %7630 = vmatmul.mubr.f32.gmra.mrb[0].mxu0 %v7474
      %v7631 = vpop.f32.mrb[0].mxu0
      %v7632 = vadd.f32 %v7557, %v7631
      %v7633 = vpop.f32.mrb[0].mxu0
      %7634 = vmatprep.mubr.f32.mxu0 %v7483
      %7635 = vmatmul.mubr.f32.gmra.mrb[0].mxu0 %v7482
      %v7636 = vpop.f32.mrb[0].mxu0
      %v7637 = vadd.f32 %v7562, %v7636
      %v7638 = vpop.f32.mrb[0].mxu0
      %7639 = vdwg.mxu0
      %7640 = vmatprep.subr.mxu0 0.0
      %7641 = vmatpush1.msra.mxu0 %v7281
      %7642 = vmatprep.subr.mxu0 0.0
      %7643 = vmatpush1.msra.mxu0 %v7283
      %7644 = vmatprep.subr.mxu0 0.0
      %7645 = vmatpush1.msra.mxu0 %v7285
      %7646 = vmatprep.subr.mxu0 0.0
      %7647 = vmatpush1.msra.mxu0 %v7287
      %7648 = vmatprep.subr.mxu0 0.0
      %7649 = vmatpush1.msra.mxu0 %v7289
      %7650 = vmatprep.subr.mxu0 0.0
      %7651 = vmatpush1.msra.mxu0 %v7291
      %7652 = vmatprep.subr.mxu0 0.0
      %7653 = vmatpush1.msra.mxu0 %v7293
      %7654 = vmatprep.subr.mxu0 0.0
      %7655 = vmatpush1.msra.mxu0 %v7295
      %7656 = vmatprep.subr.mxu0 0.0
      %7657 = vmatpush1.msra.mxu0 %v7305
      %7658 = vmatprep.subr.mxu0 0.0
      %7659 = vmatpush1.msra.mxu0 %v7307
      %7660 = vmatprep.subr.mxu0 0.0
      %7661 = vmatpush1.msra.mxu0 %v7309
      %7662 = vmatprep.subr.mxu0 0.0
      %7663 = vmatpush1.msra.mxu0 %v7311
      %7664 = vmatprep.subr.mxu0 0.0
      %7665 = vmatpush1.msra.mxu0 %v7313
      %7666 = vmatprep.subr.mxu0 0.0
      %7667 = vmatpush1.msra.mxu0 %v7315
      %7668 = vmatprep.subr.mxu0 0.0
      %7669 = vmatpush1.msra.mxu0 %v7317
      %7670 = vmatprep.subr.mxu0 0.0
      %7671 = vmatpush1.msra.mxu0 %v7319
      %7672 = vmatprep.subr.mxu0 0.0
      %7673 = vmatpush1.msra.mxu0 %v7329
      %7674 = vmatprep.subr.mxu0 0.0
      %7675 = vmatpush1.msra.mxu0 %v7331
      %7676 = vmatprep.subr.mxu0 0.0
      %7677 = vmatpush1.msra.mxu0 %v7333
      %7678 = vmatprep.subr.mxu0 0.0
      %7679 = vmatpush1.msra.mxu0 %v7335
      %7680 = vmatprep.subr.mxu0 0.0
      %7681 = vmatpush1.msra.mxu0 %v7337
      %7682 = vmatprep.subr.mxu0 0.0
      %7683 = vmatpush1.msra.mxu0 %v7339
      %7684 = vmatprep.subr.mxu0 0.0
      %7685 = vmatpush1.msra.mxu0 %v7341
      %7686 = vmatprep.subr.mxu0 0.0
      %7687 = vmatpush1.msra.mxu0 %v7343
      %7688 = vmatprep.subr.mxu0 0.0
      %7689 = vmatpush1.msra.mxu0 %v7353
      %7690 = vmatprep.subr.mxu0 0.0
      %7691 = vmatpush1.msra.mxu0 %v7355
      %7692 = vmatprep.subr.mxu0 0.0
      %7693 = vmatpush1.msra.mxu0 %v7357
      %7694 = vmatprep.subr.mxu0 0.0
      %7695 = vmatpush1.msra.mxu0 %v7359
      %7696 = vmatprep.subr.mxu0 0.0
      %7697 = vmatpush1.msra.mxu0 %v7361
      %7698 = vmatprep.subr.mxu0 0.0
      %7699 = vmatpush1.msra.mxu0 %v7363
      %7700 = vmatprep.subr.mxu0 0.0
      %7701 = vmatpush1.msra.mxu0 %v7365
      %7702 = vmatprep.subr.mxu0 0.0
      %7703 = vmatpush1.msra.mxu0 %v7367
      %7704 = vmatprep.mubr.f32.mxu0 %v7477
      %7705 = vmatmul.mubr.f32.gmra.mrb[0].mxu0 %v7476
      %v7706 = vpop.f32.mrb[0].mxu0
      %v7707 = vadd.f32 %v7632, %v7706
      %v7708 = vpop.f32.mrb[0].mxu0
      %7709 = vmatprep.mubr.f32.mxu0 %v7485
      %7710 = vmatmul.mubr.f32.gmra.mrb[0].mxu0 %v7484
      %v7711 = vpop.f32.mrb[0].mxu0
      %v7712 = vadd.f32 %v7637, %v7711
      %v7713 = vpop.f32.mrb[0].mxu0
      %7714 = vdwg.mxu0
      %7715 = vmatprep.subr.mxu0 0.0
      %7716 = vmatpush1.msra.mxu0 %v7377
      %7717 = vmatprep.subr.mxu0 0.0
      %7718 = vmatpush1.msra.mxu0 %v7379
      %7719 = vmatprep.subr.mxu0 0.0
      %7720 = vmatpush1.msra.mxu0 %v7381
      %7721 = vmatprep.subr.mxu0 0.0
      %7722 = vmatpush1.msra.mxu0 %v7383
      %7723 = vmatprep.subr.mxu0 0.0
      %7724 = vmatpush1.msra.mxu0 %v7385
      %7725 = vmatprep.subr.mxu0 0.0
      %7726 = vmatpush1.msra.mxu0 %v7387
      %7727 = vmatprep.subr.mxu0 0.0
      %7728 = vmatpush1.msra.mxu0 %v7389
      %7729 = vmatprep.subr.mxu0 0.0
      %7730 = vmatpush1.msra.mxu0 %v7391
      %7731 = vmatprep.subr.mxu0 0.0
      %7732 = vmatpush1.msra.mxu0 %v7401
      %7733 = vmatprep.subr.mxu0 0.0
      %7734 = vmatpush1.msra.mxu0 %v7403
      %7735 = vmatprep.subr.mxu0 0.0
      %7736 = vmatpush1.msra.mxu0 %v7405
      %7737 = vmatprep.subr.mxu0 0.0
      %7738 = vmatpush1.msra.mxu0 %v7407
      %7739 = vmatprep.subr.mxu0 0.0
      %7740 = vmatpush1.msra.mxu0 %v7409
      %7741 = vmatprep.subr.mxu0 0.0
      %7742 = vmatpush1.msra.mxu0 %v7411
      %7743 = vmatprep.subr.mxu0 0.0
      %7744 = vmatpush1.msra.mxu0 %v7413
      %7745 = vmatprep.subr.mxu0 0.0
      %7746 = vmatpush1.msra.mxu0 %v7415
      %7747 = vmatprep.subr.mxu0 0.0
      %7748 = vmatpush1.msra.mxu0 %v7425
      %7749 = vmatprep.subr.mxu0 0.0
      %7750 = vmatpush1.msra.mxu0 %v7427
      %7751 = vmatprep.subr.mxu0 0.0
      %7752 = vmatpush1.msra.mxu0 %v7429
      %7753 = vmatprep.subr.mxu0 0.0
      %7754 = vmatpush1.msra.mxu0 %v7431
      %7755 = vmatprep.subr.mxu0 0.0
      %7756 = vmatpush1.msra.mxu0 %v7433
      %7757 = vmatprep.subr.mxu0 0.0
      %7758 = vmatpush1.msra.mxu0 %v7435
      %7759 = vmatprep.subr.mxu0 0.0
      %7760 = vmatpush1.msra.mxu0 %v7437
      %7761 = vmatprep.subr.mxu0 0.0
      %7762 = vmatpush1.msra.mxu0 %v7439
      %7763 = vmatprep.subr.mxu0 0.0
      %7764 = vmatpush1.msra.mxu0 %v7449
      %7765 = vmatprep.subr.mxu0 0.0
      %7766 = vmatpush1.msra.mxu0 %v7451
      %7767 = vmatprep.subr.mxu0 0.0
      %7768 = vmatpush1.msra.mxu0 %v7453
      %7769 = vmatprep.subr.mxu0 0.0
      %7770 = vmatpush1.msra.mxu0 %v7455
      %7771 = vmatprep.subr.mxu0 0.0
      %7772 = vmatpush1.msra.mxu0 %v7457
      %7773 = vmatprep.subr.mxu0 0.0
      %7774 = vmatpush1.msra.mxu0 %v7459
      %7775 = vmatprep.subr.mxu0 0.0
      %7776 = vmatpush1.msra.mxu0 %v7461
      %7777 = vmatprep.subr.mxu0 0.0
      %7778 = vmatpush1.msra.mxu0 %v7463
      %7779 = vmatprep.mubr.f32.mxu0 %v7479
      %7780 = vmatmul.mubr.f32.gmra.mrb[0].mxu0 %v7478
      %v7781 = vpop.f32.mrb[0].mxu0
      %v7782 = vadd.f32 %v7707, %v7781
      %v7783 = vpop.f32.mrb[0].mxu0
      %7784 = vmatprep.mubr.f32.mxu0 %v7487
      %7785 = vmatmul.mubr.f32.gmra.mrb[0].mxu0 %v7486
      %v7786 = vpop.f32.mrb[0].mxu0
      %v7787 = vadd.f32 %v7712, %v7786
      %v7788 = vpop.f32.mrb[0].mxu0
      %7789 = vdwg.mxu0
      %s7790 = scalar_lea.vmem %s388, 16
      %7791 = vst.msk [vmem:[%s7790] sm:$0xff] %vm7100, %v7782
      %7792 = vst.msk [vmem:[%s7790 + $0x8] sm:$0x3] %vm7102, %v7787
      %s7793 = smul.u32 2, %s22
      %p7794 = scmp.lt.s32.totalorder %s7793, 3
      %s7795 = scalar_select %p7794, %s7793, 3
      %s7796 = smul.addr %s7795, 2
      %s7797 = smul.addr %s7796, 8
      %s7798 = scalar_lea.vmem %s11, %s7797
      // Predicated region
      $region65: #{simple_convnet_forward.1} parent=63 // pred_check
        %p7799 = pneg %p276
      $region66: #{simple_convnet_forward.1} parent=63 // pred_check_branch
        %7801 = sbr.rel (%p7799) target = $region68
      $region67: #{simple_convnet_forward.1} parent=63 // pred_region
        %s7802 = smul.u32 2, %s22
      $region68: #{simple_convnet_forward.1} parent=63 // pred_fallthru
        _
    $region64: #{simple_convnet_forward.1} parent=5 // pred_fallthru
      _
    %p7803 = scmp.le.s32.totalorder 2, %s17
    // Predicated region
    $region69: #{simple_convnet_forward.1} parent=5 // pred_check
      %p7804 = pneg %p7803
    $region70: #{simple_convnet_forward.1} parent=5 // pred_check_branch
      %7806 = sbr.rel (%p7804) target = $region72
    $region71: #{simple_convnet_forward.1} parent=5 // pred_region
      %s7807 = ssub.s32 %s17, 2
      // Predicated region
      $region73: #{simple_convnet_forward.1} parent=71 // pred_check
        %p7808 = pneg %p282
      $region74: #{simple_convnet_forward.1} parent=71 // pred_check_branch
        %7810 = sbr.rel (%p7808) target = $region76
      $region75: #{simple_convnet_forward.1} parent=71 // pred_region
        %s7811 = smul.u32 2, %s23
        %p7812 = scmp.lt.s32.totalorder %s7811, 3
        %s7813 = scalar_select %p7812, %s7811, 3
        %s7814 = smul.addr %s7813, 2
        %s7815 = smul.addr %s7814, 8
        %s7816 = scalar_lea.vmem %s11, %s7815
      $region76: #{simple_convnet_forward.1} parent=71 // pred_fallthru
        _
    $region72: #{simple_convnet_forward.1} parent=5 // pred_fallthru
      _
  $region6: #{simple_convnet_forward.1} parent=0 // loop_footer
    %s21 = sadd.s32 1, %s17
  $region7: #{simple_convnet_forward.1} parent=0 // loop_footer_branch
    %16 = sbr.rel target = $region3
  $region8: #{simple_convnet_forward.1} parent=0 // loop_exit
    _

</llo_original>
